<compile_context>
chip_gen: v6e
topology: v6e:2x2x1
jax: 0.10.0
libtpu: 0.0.40
codegen_flags: <defaults>
</compile_context>

<pallas_src>
import functools

import jax
import jax.numpy as jnp
from jax import lax
from jax.experimental import pallas as pl
from jax.experimental.pallas import tpu as pltpu


def _round_up(x, m):
    return (x + m - 1) // m * m


# ----------------------------------------------------------------------------
# Fused forward kernel
# ----------------------------------------------------------------------------
def _bigru_recurrence(L, Bt, H, gif_ref, gib_ref, whh_ref, bhn_ref, hout_ref):
    """Bidirectional GRU recurrence; both directions fused per step.

    gif_ref/gib_ref : (L*Bt, 3H) hoisted input projections (gate order r,z,n;
                      b_ih plus b_hh already folded in for r,z gates).
    whh_ref         : (2H, 6H) block-diagonal [Whh_fwd | Whh_bwd] weight.
    bhn_ref         : (1, 6H) b_hh of the n-gates only (zeros elsewhere).
    hout_ref        : (L*Bt, 2H); fwd hidden -> [:, :H], bwd hidden -> [:, H:].
    """
    whh = whh_ref[...]                         # (2H, 6H); fine to hoist at small H
    bhn = bhn_ref[...]                         # (1, 6H)
    h = jnp.zeros((Bt, 2 * H), jnp.float32)    # [h_fwd | h_bwd]
    for t in range(L):                         # static -> fully unrolled
        tb = L - 1 - t
        # ONE recurrent matmul for both directions (serial critical path).
        gh = jnp.dot(h, whh, preferred_element_type=jnp.float32) + bhn   # (Bt, 6H)
        gi_f = gif_ref[t * Bt:(t + 1) * Bt, :]         # sublane-aligned row block
        gi_b = gib_ref[tb * Bt:(tb + 1) * Bt, :]
        # forward direction (original time t)
        r_f = jax.nn.sigmoid(gi_f[:, :H] + gh[:, :H])
        z_f = jax.nn.sigmoid(gi_f[:, H:2 * H] + gh[:, H:2 * H])
        n_f = jnp.tanh(gi_f[:, 2 * H:] + r_f * gh[:, 2 * H:3 * H])
        h_f = (1.0 - z_f) * n_f + z_f * h[:, :H]
        # backward direction (original time L-1-t, reversed in-kernel)
        r_b = jax.nn.sigmoid(gi_b[:, :H] + gh[:, 3 * H:4 * H])
        z_b = jax.nn.sigmoid(gi_b[:, H:2 * H] + gh[:, 4 * H:5 * H])
        n_b = jnp.tanh(gi_b[:, 2 * H:] + r_b * gh[:, 5 * H:])
        h_b = (1.0 - z_b) * n_b + z_b * h[:, H:]
        hout_ref[t * Bt:(t + 1) * Bt, :H] = h_f
        hout_ref[tb * Bt:(tb + 1) * Bt, H:] = h_b
        h = jnp.concatenate([h_f, h_b], axis=1)


def _decoder_kernel(x_ref, wdec_ref, bdec_ref,
                    wih0f_ref, wih0b_ref, bgi0f_ref, bgi0b_ref,
                    whh0_ref, bhn0_ref,
                    wih1f_ref, wih1b_ref, bgi1f_ref, bgi1b_ref,
                    whh1_ref, bhn1_ref,
                    wfin_ref, bfin_ref,
                    out_ref,
                    x0_ref, gif_ref, gib_ref, hcat_ref,
                    *, Bt, L, n, H, K):
    f32 = jnp.float32

    # --- dec_linear: one MXU matmul over the whole batch tile ---------------
    dec = jnp.dot(x_ref[...], wdec_ref[...], preferred_element_type=f32)
    dec = dec + bdec_ref[...]                                    # (Bt, L*n)

    # One-time (off critical path) relayout (Bt, L*n) -> time-major (L*Bt, n).
    # TODO(synk): could be removed by folding W_dec into the layer-0 input
    #             projection at pack time (costs ~L x more off-path FLOPs).
    for t in range(L):
        x0_ref[t * Bt:(t + 1) * Bt, :] = dec[:, t * n:(t + 1) * n]
    x0 = x0_ref[...]                                             # (L*Bt, n)

    # --- layer-0 hoisted input projections: one wide matmul per direction ---
    gif_ref[...] = (jnp.dot(x0, wih0f_ref[...], preferred_element_type=f32)
                    + bgi0f_ref[...])
    gib_ref[...] = (jnp.dot(x0, wih0b_ref[...], preferred_element_type=f32)
                    + bgi0b_ref[...])

    # --- layer-0 bidirectional recurrence -> hcat = [h_fwd | h_bwd] ---------
    _bigru_recurrence(L, Bt, H, gif_ref, gib_ref, whh0_ref, bhn0_ref, hcat_ref)

    # --- layer-1 hoisted input projections (gi scratch reused) --------------
    h0 = hcat_ref[...]                                           # (L*Bt, 2H)
    gif_ref[...] = (jnp.dot(h0, wih1f_ref[...], preferred_element_type=f32)
                    + bgi1f_ref[...])
    gib_ref[...] = (jnp.dot(h0, wih1b_ref[...], preferred_element_type=f32)
                    + bgi1b_ref[...])

    # --- layer-1 bidirectional recurrence (hcat scratch reused) -------------
    _bigru_recurrence(L, Bt, H, gif_ref, gib_ref, whh1_ref, bhn1_ref, hcat_ref)

    # --- final linear + sigmoid: single lane-dense time-major slab store ----
    o = jax.nn.sigmoid(
        jnp.dot(hcat_ref[...], wfin_ref[...], preferred_element_type=f32)
        + bfin_ref[...])                                         # (L*Bt, K)
    out_ref[...] = o.reshape(L, Bt, K)


# ----------------------------------------------------------------------------
# Parameter init (canonical, PyTorch-like layout) and kernel packing
# ----------------------------------------------------------------------------
def _uniform(key, shape, bound):
    return jax.random.uniform(key, shape, jnp.float32, -bound, bound)


def init_params(key, args):
    """Canonical parameter layout (weights stored transposed: (in, out))."""
    n, k = args["code_rate_n"], args["code_rate_k"]
    L, H = args["block_len"], args["dec_num_unit"]
    keys = iter(jax.random.split(key, 32))
    params = {}
    b1 = 1.0 / (n * L) ** 0.5
    params["dec_linear_w"] = _uniform(next(keys), (n * L, 2 * k * L), b1)
    params["dec_linear_b"] = _uniform(next(keys), (1, 2 * k * L), b1)
    bH = 1.0 / H ** 0.5
    for layer, in_sz in ((0, n), (1, 2 * H)):
        for direction in ("fwd", "bwd"):
            params[f"gru_l{layer}_{direction}"] = (
                _uniform(next(keys), (in_sz, 3 * H), bH),   # W_ih^T (gates r,z,n)
                _uniform(next(keys), (H, 3 * H), bH),       # W_hh^T
                _uniform(next(keys), (1, 3 * H), bH),       # b_ih
                _uniform(next(keys), (1, 3 * H), bH),       # b_hh
            )
    bf = 1.0 / (2 * H) ** 0.5
    params["final_w"] = _uniform(next(keys), (2 * H, k), bf)
    params["final_b"] = _uniform(next(keys), (1, k), bf)
    return params


def pack_params(params, args):
    """One-time rearrangement into the fused, gate-aligned kernel layout."""
    H = args["dec_num_unit"]

    def pack_dir(wih_t, whh_t, bih, bhh):
        # r,z gates: fold b_hh into the hoisted input-projection bias;
        # n gate: b_hh must stay with the recurrent term (r * (Whh h + b_hn)).
        bgi = jnp.concatenate([bih[:, :2 * H] + bhh[:, :2 * H], bih[:, 2 * H:]],
                              axis=1)                             # (1, 3H)
        return wih_t, whh_t, bgi, bhh[:, 2 * H:]                  # bhn (1, H)

    def combine_dirs(whh_f, whh_b, bhn_f, bhn_b):
        z = jnp.zeros_like(whh_f)                                 # (H, 3H)
        whh = jnp.concatenate(
            [jnp.concatenate([whh_f, z], axis=1),
             jnp.concatenate([z, whh_b], axis=1)], axis=0)        # (2H, 6H)
        z1 = jnp.zeros((1, 2 * H), whh_f.dtype)
        bhn = jnp.concatenate([z1, bhn_f, z1, bhn_b], axis=1)     # (1, 6H)
        return whh, bhn

    packed = {"wdec": params["dec_linear_w"], "bdec": params["dec_linear_b"],
              "wfin": params["final_w"], "bfin": params["final_b"]}
    for layer in (0, 1):
        wf, whhf, bgif, bhnf = pack_dir(*params[f"gru_l{layer}_fwd"])
        wb, whhb, bgib, bhnb = pack_dir(*params[f"gru_l{layer}_bwd"])
        whh, bhn = combine_dirs(whhf, whhb, bhnf, bhnb)
        packed[f"wih{layer}f"], packed[f"wih{layer}b"] = wf, wb
        packed[f"bgi{layer}f"], packed[f"bgi{layer}b"] = bgif, bgib
        packed[f"whh{layer}"], packed[f"bhn{layer}"] = whh, bhn
    return packed


# ----------------------------------------------------------------------------
# Forward wrapper: one pallas_call, batch-tiled "parallel" grid
# ----------------------------------------------------------------------------
def rnn_decoder_rate_high_forward(received, packed, args, *, max_batch_tile=128):
    B, L = args["batch_size"], args["block_len"]
    n, k, H = args["code_rate_n"], args["code_rate_k"], args["dec_num_unit"]
    M = received.shape[-1]
    assert received.shape == (B, n * L, M)
    # torch `view(B, block_len, n)` after Linear(n*L -> 2kL) only makes sense if:
    assert M == 1 and n == 2 * k, "requires M == 1 and code_rate_n == 2*code_rate_k"

    # permute(0,2,1) with M == 1 is a pure (free) reshape.
    x_in = received.astype(jnp.float32).reshape(B, n * L)

    # Sublane-aligned batch tile (multiple of 8); pad the batch up to it.
    Bt = _round_up(min(max_batch_tile, _round_up(B, 8)), 8)
    Bp = _round_up(B, Bt)
    if Bp != B:
        x_in = jnp.pad(x_in, ((0, Bp - B), (0, 0)))   # padded rows are dropped below

    weight_names = ["wdec", "bdec",
                    "wih0f", "wih0b", "bgi0f", "bgi0b", "whh0", "bhn0",
                    "wih1f", "wih1b", "bgi1f", "bgi1b", "whh1", "bhn1",
                    "wfin", "bfin"]
    weights = [packed[name] for name in weight_names]

    in_specs = [pl.BlockSpec((Bt, n * L), lambda i: (i, 0))]
    in_specs += [pl.BlockSpec(w.shape, lambda i: (0, 0)) for w in weights]
    out_spec = pl.BlockSpec((L, Bt, k), lambda i: (0, i, 0))

    scratch_shapes = [
        pltpu.VMEM((L * Bt, n), jnp.float32),        # x0   (time-major GRU input)
        pltpu.VMEM((L * Bt, 3 * H), jnp.float32),    # gi fwd  (reused by layer 1)
        pltpu.VMEM((L * Bt, 3 * H), jnp.float32),    # gi bwd  (reused by layer 1)
        pltpu.VMEM((L * Bt, 2 * H), jnp.float32),    # [h_fwd|h_bwd] (reused by layer 1)
    ]

    # Scoped-VMEM budget sized to the actual operands + scratch (with headroom).
    weight_bytes = sum(int(w.size) * w.dtype.itemsize for w in weights)
    io_block_bytes = 4 * (Bt * n * L + L * Bt * k)
    scratch_bytes = 4 * L * Bt * (n + 3 * H + 3 * H + 2 * H)
    vmem_limit = int(min(2 * (weight_bytes + io_block_bytes) + scratch_bytes
                         + (4 << 20), 100 << 20))

    out = pl.pallas_call(
        functools.partial(_decoder_kernel, Bt=Bt, L=L, n=n, H=H, K=k),
        grid=(Bp // Bt,),
        out_shape=jax.ShapeDtypeStruct((L, Bp, k), jnp.float32),
        in_specs=in_specs,
        out_specs=out_spec,
        scratch_shapes=scratch_shapes,
        compiler_params=pltpu.CompilerParams(
            dimension_semantics=("parallel",),
            vmem_limit_bytes=vmem_limit),
    )(x_in, *weights)

    # Drop batch padding; time-major -> batch-major transpose happens in XLA.
    return jnp.transpose(out[:, :B, :], (1, 0, 2))               # (B, L, k)


# ----------------------------------------------------------------------------
# Pure-JAX reference (canonical params) for a correctness sanity check
# ----------------------------------------------------------------------------
def _gru_dir_ref(x_lbi, wih_t, whh_t, bih, bhh):
    H = whh_t.shape[0]
    B = x_lbi.shape[1]

    def step(h, x_t):
        gi = x_t @ wih_t + bih
        gh = h @ whh_t + bhh
        r = jax.nn.sigmoid(gi[:, :H] + gh[:, :H])
        z = jax.nn.sigmoid(gi[:, H:2 * H] + gh[:, H:2 * H])
        nn = jnp.tanh(gi[:, 2 * H:] + r * gh[:, 2 * H:])
        h_new = (1.0 - z) * nn + z * h
        return h_new, h_new

    h0 = jnp.zeros((B, H), jnp.float32)
    _, hs = lax.scan(step, h0, x_lbi)
    return hs


def reference_forward(received, params, args):
    B, L = args["batch_size"], args["block_len"]
    n, k, H = args["code_rate_n"], args["code_rate_k"], args["dec_num_unit"]
    permuted = jnp.transpose(received.astype(jnp.float32), (0, 2, 1))
    Bp, M, F = permuted.shape
    code = (permuted.reshape(Bp * M, F) @ params["dec_linear_w"]
            + params["dec_linear_b"]).reshape(B, L, n)
    x = jnp.transpose(code, (1, 0, 2))
    for layer in (0, 1):
        f = _gru_dir_ref(x, *params[f"gru_l{layer}_fwd"])
        b = jnp.flip(_gru_dir_ref(jnp.flip(x, 0), *params[f"gru_l{layer}_bwd"]), 0)
        x = jnp.concatenate([f, b], axis=-1)
    x_plr = jnp.transpose(x, (1, 0, 2))
    out = jax.nn.sigmoid(x_plr.reshape(B * L, 2 * H) @ params["final_w"]
                         + params["final_b"])
    return out.reshape(B, L, k)


# ----------------------------------------------------------------------------
if __name__ == "__main__":
    args = dict(batch_size=2, block_len=16, code_rate_n=2, code_rate_k=1,
                dec_num_unit=32)

    key = jax.random.PRNGKey(0)
    k_par, k_in = jax.random.split(key)
    params = init_params(k_par, args)
    packed = pack_params(params, args)

    # received: (B, code_rate_n * block_len, 1)
    received = jax.random.normal(
        k_in, (args["batch_size"], args["code_rate_n"] * args["block_len"], 1),
        jnp.float32)

    fwd = jax.jit(lambda r, p: rnn_decoder_rate_high_forward(r, p, args))
    out = jax.block_until_ready(fwd(received, packed))

    ref = jax.block_until_ready(reference_forward(received, params, args))
    assert out.shape == (args["batch_size"], args["block_len"], args["code_rate_k"])
    assert jnp.allclose(out, ref, atol=1e-4, rtol=1e-4), "mismatch vs. pure-JAX reference"

    print("KERNEL_OK")
</pallas_src>

<mosaic_0001>
module attributes {stable_mosaic.version = 11 : i64} {
  func.func @_decoder_kernel(%arg0: i32, %arg1: memref<8x32xf32, #tpu.memory_space<vmem>>, %arg2: memref<32x32xf32, #tpu.memory_space<vmem>>, %arg3: memref<1x32xf32, #tpu.memory_space<vmem>>, %arg4: memref<2x96xf32, #tpu.memory_space<vmem>>, %arg5: memref<2x96xf32, #tpu.memory_space<vmem>>, %arg6: memref<1x96xf32, #tpu.memory_space<vmem>>, %arg7: memref<1x96xf32, #tpu.memory_space<vmem>>, %arg8: memref<64x192xf32, #tpu.memory_space<vmem>>, %arg9: memref<1x192xf32, #tpu.memory_space<vmem>>, %arg10: memref<64x96xf32, #tpu.memory_space<vmem>>, %arg11: memref<64x96xf32, #tpu.memory_space<vmem>>, %arg12: memref<1x96xf32, #tpu.memory_space<vmem>>, %arg13: memref<1x96xf32, #tpu.memory_space<vmem>>, %arg14: memref<64x192xf32, #tpu.memory_space<vmem>>, %arg15: memref<1x192xf32, #tpu.memory_space<vmem>>, %arg16: memref<64x1xf32, #tpu.memory_space<vmem>>, %arg17: memref<1x1xf32, #tpu.memory_space<vmem>>, %arg18: memref<16x8x1xf32, #tpu.memory_space<vmem>>, %arg19: memref<128x2xf32, #tpu.memory_space<vmem>>, %arg20: memref<128x96xf32, #tpu.memory_space<vmem>>, %arg21: memref<128x96xf32, #tpu.memory_space<vmem>>, %arg22: memref<128x64xf32, #tpu.memory_space<vmem>>) attributes {dimension_semantics = [#tpu.dimension_semantics<parallel>], iteration_bounds = array<i64: 1>, scalar_prefetch = 0 : i64, scratch_operands = 4 : i64, tpu.core_type = #tpu.core_type<tc>, window_params = [{transform_indices = @transform_0, window_bounds = array<i64: 8, 32>}, {pipeline_mode = #tpu.pipeline_mode<synchronous>, transform_indices = @transform_1, window_bounds = array<i64: 32, 32>}, {pipeline_mode = #tpu.pipeline_mode<synchronous>, transform_indices = @transform_2, window_bounds = array<i64: 1, 32>}, {pipeline_mode = #tpu.pipeline_mode<synchronous>, transform_indices = @transform_3, window_bounds = array<i64: 2, 96>}, {pipeline_mode = #tpu.pipeline_mode<synchronous>, transform_indices = @transform_4, window_bounds = array<i64: 2, 96>}, {pipeline_mode = #tpu.pipeline_mode<synchronous>, transform_indices = @transform_5, window_bounds = array<i64: 1, 96>}, {pipeline_mode = #tpu.pipeline_mode<synchronous>, transform_indices = @transform_6, window_bounds = array<i64: 1, 96>}, {pipeline_mode = #tpu.pipeline_mode<synchronous>, transform_indices = @transform_7, window_bounds = array<i64: 64, 192>}, {pipeline_mode = #tpu.pipeline_mode<synchronous>, transform_indices = @transform_8, window_bounds = array<i64: 1, 192>}, {pipeline_mode = #tpu.pipeline_mode<synchronous>, transform_indices = @transform_9, window_bounds = array<i64: 64, 96>}, {pipeline_mode = #tpu.pipeline_mode<synchronous>, transform_indices = @transform_10, window_bounds = array<i64: 64, 96>}, {pipeline_mode = #tpu.pipeline_mode<synchronous>, transform_indices = @transform_11, window_bounds = array<i64: 1, 96>}, {pipeline_mode = #tpu.pipeline_mode<synchronous>, transform_indices = @transform_12, window_bounds = array<i64: 1, 96>}, {pipeline_mode = #tpu.pipeline_mode<synchronous>, transform_indices = @transform_13, window_bounds = array<i64: 64, 192>}, {pipeline_mode = #tpu.pipeline_mode<synchronous>, transform_indices = @transform_14, window_bounds = array<i64: 1, 192>}, {pipeline_mode = #tpu.pipeline_mode<synchronous>, transform_indices = @transform_15, window_bounds = array<i64: 64, 1>}, {pipeline_mode = #tpu.pipeline_mode<synchronous>, transform_indices = @transform_16, window_bounds = array<i64: 1, 1>}, {transform_indices = @transform_17, window_bounds = array<i64: 16, 8, 1>}]} {
    %c0 = arith.constant 0 : index
    %c0_0 = arith.constant 0 : index
    %0 = vector.load %arg1[%c0, %c0_0] : memref<8x32xf32, #tpu.memory_space<vmem>>, vector<8x32xf32>
    %c0_1 = arith.constant 0 : index
    %c0_2 = arith.constant 0 : index
    %1 = vector.load %arg2[%c0_1, %c0_2] : memref<32x32xf32, #tpu.memory_space<vmem>>, vector<32x32xf32>
    %cst = arith.constant dense<0.000000e+00> : vector<8x32xf32>
    %2 = tpu.matmul %0, %1, %cst {dimension_numbers = #tpu.dot_dimension_numbers<[1], [0], [0], [1], [0, 0, 1, 1], [], []>} : vector<8x32xf32>, vector<32x32xf32>, vector<8x32xf32> -> vector<8x32xf32>
    %c0_3 = arith.constant 0 : index
    %c0_4 = arith.constant 0 : index
    %3 = vector.load %arg3[%c0_3, %c0_4] : memref<1x32xf32, #tpu.memory_space<vmem>>, vector<1x32xf32>
    %4 = vector.broadcast %3 : vector<1x32xf32> to vector<8x32xf32>
    %5 = arith.addf %2, %4 : vector<8x32xf32>
    %6 = vector.extract_strided_slice %5 {offsets = [0, 0], sizes = [8, 2], strides = [1, 1]} : vector<8x32xf32> to vector<8x2xf32>
    %c0_5 = arith.constant 0 : index
    %c0_6 = arith.constant 0 : index
    %7 = vector.load %arg19[%c0_5, %c0_6] : memref<128x2xf32, #tpu.memory_space<vmem>>, vector<8x2xf32>
    tpu.vector_store %arg19[%c0_5, %c0_6], %6 {strides = array<i32>} : memref<128x2xf32, #tpu.memory_space<vmem>>, vector<8x2xf32>,
    %8 = vector.extract_strided_slice %5 {offsets = [0, 2], sizes = [8, 2], strides = [1, 1]} : vector<8x32xf32> to vector<8x2xf32>
    %c8 = arith.constant 8 : index
    %c0_7 = arith.constant 0 : index
    %9 = vector.load %arg19[%c8, %c0_7] : memref<128x2xf32, #tpu.memory_space<vmem>>, vector<8x2xf32>
    tpu.vector_store %arg19[%c8, %c0_7], %8 {strides = array<i32>} : memref<128x2xf32, #tpu.memory_space<vmem>>, vector<8x2xf32>,
    %10 = vector.extract_strided_slice %5 {offsets = [0, 4], sizes = [8, 2], strides = [1, 1]} : vector<8x32xf32> to vector<8x2xf32>
    %c16 = arith.constant 16 : index
    %c0_8 = arith.constant 0 : index
    %11 = vector.load %arg19[%c16, %c0_8] : memref<128x2xf32, #tpu.memory_space<vmem>>, vector<8x2xf32>
    tpu.vector_store %arg19[%c16, %c0_8], %10 {strides = array<i32>} : memref<128x2xf32, #tpu.memory_space<vmem>>, vector<8x2xf32>,
    %12 = vector.extract_strided_slice %5 {offsets = [0, 6], sizes = [8, 2], strides = [1, 1]} : vector<8x32xf32> to vector<8x2xf32>
    %c24 = arith.constant 24 : index
    %c0_9 = arith.constant 0 : index
    %13 = vector.load %arg19[%c24, %c0_9] : memref<128x2xf32, #tpu.memory_space<vmem>>, vector<8x2xf32>
    tpu.vector_store %arg19[%c24, %c0_9], %12 {strides = array<i32>} : memref<128x2xf32, #tpu.memory_space<vmem>>, vector<8x2xf32>,
    %14 = vector.extract_strided_slice %5 {offsets = [0, 8], sizes = [8, 2], strides = [1, 1]} : vector<8x32xf32> to vector<8x2xf32>
    %c32 = arith.constant 32 : index
    %c0_10 = arith.constant 0 : index
    %15 = vector.load %arg19[%c32, %c0_10] : memref<128x2xf32, #tpu.memory_space<vmem>>, vector<8x2xf32>
    tpu.vector_store %arg19[%c32, %c0_10], %14 {strides = array<i32>} : memref<128x2xf32, #tpu.memory_space<vmem>>, vector<8x2xf32>,
    %16 = vector.extract_strided_slice %5 {offsets = [0, 10], sizes = [8, 2], strides = [1, 1]} : vector<8x32xf32> to vector<8x2xf32>
    %c40 = arith.constant 40 : index
    %c0_11 = arith.constant 0 : index
    %17 = vector.load %arg19[%c40, %c0_11] : memref<128x2xf32, #tpu.memory_space<vmem>>, vector<8x2xf32>
    tpu.vector_store %arg19[%c40, %c0_11], %16 {strides = array<i32>} : memref<128x2xf32, #tpu.memory_space<vmem>>, vector<8x2xf32>,
    %18 = vector.extract_strided_slice %5 {offsets = [0, 12], sizes = [8, 2], strides = [1, 1]} : vector<8x32xf32> to vector<8x2xf32>
    %c48 = arith.constant 48 : index
    %c0_12 = arith.constant 0 : index
    %19 = vector.load %arg19[%c48, %c0_12] : memref<128x2xf32, #tpu.memory_space<vmem>>, vector<8x2xf32>
    tpu.vector_store %arg19[%c48, %c0_12], %18 {strides = array<i32>} : memref<128x2xf32, #tpu.memory_space<vmem>>, vector<8x2xf32>,
    %20 = vector.extract_strided_slice %5 {offsets = [0, 14], sizes = [8, 2], strides = [1, 1]} : vector<8x32xf32> to vector<8x2xf32>
    %c56 = arith.constant 56 : index
    %c0_13 = arith.constant 0 : index
    %21 = vector.load %arg19[%c56, %c0_13] : memref<128x2xf32, #tpu.memory_space<vmem>>, vector<8x2xf32>
    tpu.vector_store %arg19[%c56, %c0_13], %20 {strides = array<i32>} : memref<128x2xf32, #tpu.memory_space<vmem>>, vector<8x2xf32>,
    %22 = vector.extract_strided_slice %5 {offsets = [0, 16], sizes = [8, 2], strides = [1, 1]} : vector<8x32xf32> to vector<8x2xf32>
    %c64 = arith.constant 64 : index
    %c0_14 = arith.constant 0 : index
    %23 = vector.load %arg19[%c64, %c0_14] : memref<128x2xf32, #tpu.memory_space<vmem>>, vector<8x2xf32>
    tpu.vector_store %arg19[%c64, %c0_14], %22 {strides = array<i32>} : memref<128x2xf32, #tpu.memory_space<vmem>>, vector<8x2xf32>,
    %24 = vector.extract_strided_slice %5 {offsets = [0, 18], sizes = [8, 2], strides = [1, 1]} : vector<8x32xf32> to vector<8x2xf32>
    %c72 = arith.constant 72 : index
    %c0_15 = arith.constant 0 : index
    %25 = vector.load %arg19[%c72, %c0_15] : memref<128x2xf32, #tpu.memory_space<vmem>>, vector<8x2xf32>
    tpu.vector_store %arg19[%c72, %c0_15], %24 {strides = array<i32>} : memref<128x2xf32, #tpu.memory_space<vmem>>, vector<8x2xf32>,
    %26 = vector.extract_strided_slice %5 {offsets = [0, 20], sizes = [8, 2], strides = [1, 1]} : vector<8x32xf32> to vector<8x2xf32>
    %c80 = arith.constant 80 : index
    %c0_16 = arith.constant 0 : index
    %27 = vector.load %arg19[%c80, %c0_16] : memref<128x2xf32, #tpu.memory_space<vmem>>, vector<8x2xf32>
    tpu.vector_store %arg19[%c80, %c0_16], %26 {strides = array<i32>} : memref<128x2xf32, #tpu.memory_space<vmem>>, vector<8x2xf32>,
    %28 = vector.extract_strided_slice %5 {offsets = [0, 22], sizes = [8, 2], strides = [1, 1]} : vector<8x32xf32> to vector<8x2xf32>
    %c88 = arith.constant 88 : index
    %c0_17 = arith.constant 0 : index
    %29 = vector.load %arg19[%c88, %c0_17] : memref<128x2xf32, #tpu.memory_space<vmem>>, vector<8x2xf32>
    tpu.vector_store %arg19[%c88, %c0_17], %28 {strides = array<i32>} : memref<128x2xf32, #tpu.memory_space<vmem>>, vector<8x2xf32>,
    %30 = vector.extract_strided_slice %5 {offsets = [0, 24], sizes = [8, 2], strides = [1, 1]} : vector<8x32xf32> to vector<8x2xf32>
    %c96 = arith.constant 96 : index
    %c0_18 = arith.constant 0 : index
    %31 = vector.load %arg19[%c96, %c0_18] : memref<128x2xf32, #tpu.memory_space<vmem>>, vector<8x2xf32>
    tpu.vector_store %arg19[%c96, %c0_18], %30 {strides = array<i32>} : memref<128x2xf32, #tpu.memory_space<vmem>>, vector<8x2xf32>,
    %32 = vector.extract_strided_slice %5 {offsets = [0, 26], sizes = [8, 2], strides = [1, 1]} : vector<8x32xf32> to vector<8x2xf32>
    %c104 = arith.constant 104 : index
    %c0_19 = arith.constant 0 : index
    %33 = vector.load %arg19[%c104, %c0_19] : memref<128x2xf32, #tpu.memory_space<vmem>>, vector<8x2xf32>
    tpu.vector_store %arg19[%c104, %c0_19], %32 {strides = array<i32>} : memref<128x2xf32, #tpu.memory_space<vmem>>, vector<8x2xf32>,
    %34 = vector.extract_strided_slice %5 {offsets = [0, 28], sizes = [8, 2], strides = [1, 1]} : vector<8x32xf32> to vector<8x2xf32>
    %c112 = arith.constant 112 : index
    %c0_20 = arith.constant 0 : index
    %35 = vector.load %arg19[%c112, %c0_20] : memref<128x2xf32, #tpu.memory_space<vmem>>, vector<8x2xf32>
    tpu.vector_store %arg19[%c112, %c0_20], %34 {strides = array<i32>} : memref<128x2xf32, #tpu.memory_space<vmem>>, vector<8x2xf32>,
    %36 = vector.extract_strided_slice %5 {offsets = [0, 30], sizes = [8, 2], strides = [1, 1]} : vector<8x32xf32> to vector<8x2xf32>
    %c120 = arith.constant 120 : index
    %c0_21 = arith.constant 0 : index
    %37 = vector.load %arg19[%c120, %c0_21] : memref<128x2xf32, #tpu.memory_space<vmem>>, vector<8x2xf32>
    tpu.vector_store %arg19[%c120, %c0_21], %36 {strides = array<i32>} : memref<128x2xf32, #tpu.memory_space<vmem>>, vector<8x2xf32>,
    %c0_22 = arith.constant 0 : index
    %c0_23 = arith.constant 0 : index
    %38 = vector.load %arg19[%c0_22, %c0_23] : memref<128x2xf32, #tpu.memory_space<vmem>>, vector<128x2xf32>
    %c0_24 = arith.constant 0 : index
    %c0_25 = arith.constant 0 : index
    %39 = vector.load %arg4[%c0_24, %c0_25] : memref<2x96xf32, #tpu.memory_space<vmem>>, vector<2x96xf32>
    %cst_26 = arith.constant dense<0.000000e+00> : vector<128x96xf32>
    %40 = tpu.matmul %38, %39, %cst_26 {dimension_numbers = #tpu.dot_dimension_numbers<[1], [0], [0], [1], [0, 0, 1, 1], [], []>} : vector<128x2xf32>, vector<2x96xf32>, vector<128x96xf32> -> vector<128x96xf32>
    %c0_27 = arith.constant 0 : index
    %c0_28 = arith.constant 0 : index
    %41 = vector.load %arg6[%c0_27, %c0_28] : memref<1x96xf32, #tpu.memory_space<vmem>>, vector<1x96xf32>
    %42 = vector.broadcast %41 : vector<1x96xf32> to vector<128x96xf32>
    %43 = arith.addf %40, %42 : vector<128x96xf32>
    %c0_29 = arith.constant 0 : index
    %c0_30 = arith.constant 0 : index
    %44 = vector.load %arg20[%c0_29, %c0_30] : memref<128x96xf32, #tpu.memory_space<vmem>>, vector<128x96xf32>
    tpu.vector_store %arg20[%c0_29, %c0_30], %43 {strides = array<i32>} : memref<128x96xf32, #tpu.memory_space<vmem>>, vector<128x96xf32>,
    %c0_31 = arith.constant 0 : index
    %c0_32 = arith.constant 0 : index
    %45 = vector.load %arg5[%c0_31, %c0_32] : memref<2x96xf32, #tpu.memory_space<vmem>>, vector<2x96xf32>
    %cst_33 = arith.constant dense<0.000000e+00> : vector<128x96xf32>
    %46 = tpu.matmul %38, %45, %cst_33 {dimension_numbers = #tpu.dot_dimension_numbers<[1], [0], [0], [1], [0, 0, 1, 1], [], []>} : vector<128x2xf32>, vector<2x96xf32>, vector<128x96xf32> -> vector<128x96xf32>
    %c0_34 = arith.constant 0 : index
    %c0_35 = arith.constant 0 : index
    %47 = vector.load %arg7[%c0_34, %c0_35] : memref<1x96xf32, #tpu.memory_space<vmem>>, vector<1x96xf32>
    %48 = vector.broadcast %47 : vector<1x96xf32> to vector<128x96xf32>
    %49 = arith.addf %46, %48 : vector<128x96xf32>
    %c0_36 = arith.constant 0 : index
    %c0_37 = arith.constant 0 : index
    %50 = vector.load %arg21[%c0_36, %c0_37] : memref<128x96xf32, #tpu.memory_space<vmem>>, vector<128x96xf32>
    tpu.vector_store %arg21[%c0_36, %c0_37], %49 {strides = array<i32>} : memref<128x96xf32, #tpu.memory_space<vmem>>, vector<128x96xf32>,
    %c0_38 = arith.constant 0 : index
    %c0_39 = arith.constant 0 : index
    %51 = vector.load %arg8[%c0_38, %c0_39] : memref<64x192xf32, #tpu.memory_space<vmem>>, vector<64x192xf32>
    %c0_40 = arith.constant 0 : index
    %c0_41 = arith.constant 0 : index
    %52 = vector.load %arg9[%c0_40, %c0_41] : memref<1x192xf32, #tpu.memory_space<vmem>>, vector<1x192xf32>
    %cst_42 = arith.constant 0.000000e+00 : f32
    %53 = vector.broadcast %cst_42 : f32 to vector<8x64xf32>
    %cst_43 = arith.constant dense<0.000000e+00> : vector<8x192xf32>
    %54 = tpu.matmul %53, %51, %cst_43 {dimension_numbers = #tpu.dot_dimension_numbers<[1], [0], [0], [1], [0, 0, 1, 1], [], []>} : vector<8x64xf32>, vector<64x192xf32>, vector<8x192xf32> -> vector<8x192xf32>
    %55 = vector.broadcast %52 : vector<1x192xf32> to vector<8x192xf32>
    %56 = arith.addf %54, %55 : vector<8x192xf32>
    %c0_44 = arith.constant 0 : index
    %c0_45 = arith.constant 0 : index
    %57 = vector.load %arg20[%c0_44, %c0_45] : memref<128x96xf32, #tpu.memory_space<vmem>>, vector<8x96xf32>
    %c120_46 = arith.constant 120 : index
    %c0_47 = arith.constant 0 : index
    %58 = vector.load %arg21[%c120_46, %c0_47] : memref<128x96xf32, #tpu.memory_space<vmem>>, vector<8x96xf32>
    %59 = vector.extract_strided_slice %57 {offsets = [0, 0], sizes = [8, 32], strides = [1, 1]} : vector<8x96xf32> to vector<8x32xf32>
    %60 = vector.extract_strided_slice %56 {offsets = [0, 0], sizes = [8, 32], strides = [1, 1]} : vector<8x192xf32> to vector<8x32xf32>
    %61 = arith.addf %59, %60 : vector<8x32xf32>
    %62 = arith.negf %61 : vector<8x32xf32>
    %63 = math.exp %62 : vector<8x32xf32>
    %cst_48 = arith.constant 1.000000e+00 : f32
    %64 = vector.broadcast %cst_48 : f32 to vector<8x32xf32>
    %65 = arith.addf %64, %63 : vector<8x32xf32>
    %66 = arith.divf %64, %65 : vector<8x32xf32>
    %67 = vector.extract_strided_slice %57 {offsets = [0, 32], sizes = [8, 32], strides = [1, 1]} : vector<8x96xf32> to vector<8x32xf32>
    %68 = vector.extract_strided_slice %56 {offsets = [0, 32], sizes = [8, 32], strides = [1, 1]} : vector<8x192xf32> to vector<8x32xf32>
    %69 = arith.addf %67, %68 : vector<8x32xf32>
    %70 = arith.negf %69 : vector<8x32xf32>
    %71 = math.exp %70 : vector<8x32xf32>
    %cst_49 = arith.constant 1.000000e+00 : f32
    %72 = vector.broadcast %cst_49 : f32 to vector<8x32xf32>
    %73 = arith.addf %72, %71 : vector<8x32xf32>
    %74 = arith.divf %72, %73 : vector<8x32xf32>
    %75 = vector.extract_strided_slice %57 {offsets = [0, 64], sizes = [8, 32], strides = [1, 1]} : vector<8x96xf32> to vector<8x32xf32>
    %76 = vector.extract_strided_slice %56 {offsets = [0, 64], sizes = [8, 32], strides = [1, 1]} : vector<8x192xf32> to vector<8x32xf32>
    %77 = arith.mulf %66, %76 : vector<8x32xf32>
    %78 = arith.addf %75, %77 : vector<8x32xf32>
    %79 = math.tanh %78 : vector<8x32xf32>
    %cst_50 = arith.constant 1.000000e+00 : f32
    %80 = vector.broadcast %cst_50 : f32 to vector<8x32xf32>
    %81 = arith.subf %80, %74 : vector<8x32xf32>
    %82 = arith.mulf %81, %79 : vector<8x32xf32>
    %83 = vector.extract_strided_slice %53 {offsets = [0, 0], sizes = [8, 32], strides = [1, 1]} : vector<8x64xf32> to vector<8x32xf32>
    %84 = arith.mulf %74, %83 : vector<8x32xf32>
    %85 = arith.addf %82, %84 : vector<8x32xf32>
    %86 = vector.extract_strided_slice %58 {offsets = [0, 0], sizes = [8, 32], strides = [1, 1]} : vector<8x96xf32> to vector<8x32xf32>
    %87 = vector.extract_strided_slice %56 {offsets = [0, 96], sizes = [8, 32], strides = [1, 1]} : vector<8x192xf32> to vector<8x32xf32>
    %88 = arith.addf %86, %87 : vector<8x32xf32>
    %89 = arith.negf %88 : vector<8x32xf32>
    %90 = math.exp %89 : vector<8x32xf32>
    %cst_51 = arith.constant 1.000000e+00 : f32
    %91 = vector.broadcast %cst_51 : f32 to vector<8x32xf32>
    %92 = arith.addf %91, %90 : vector<8x32xf32>
    %93 = arith.divf %91, %92 : vector<8x32xf32>
    %94 = vector.extract_strided_slice %58 {offsets = [0, 32], sizes = [8, 32], strides = [1, 1]} : vector<8x96xf32> to vector<8x32xf32>
    %95 = vector.extract_strided_slice %56 {offsets = [0, 128], sizes = [8, 32], strides = [1, 1]} : vector<8x192xf32> to vector<8x32xf32>
    %96 = arith.addf %94, %95 : vector<8x32xf32>
    %97 = arith.negf %96 : vector<8x32xf32>
    %98 = math.exp %97 : vector<8x32xf32>
    %cst_52 = arith.constant 1.000000e+00 : f32
    %99 = vector.broadcast %cst_52 : f32 to vector<8x32xf32>
    %100 = arith.addf %99, %98 : vector<8x32xf32>
    %101 = arith.divf %99, %100 : vector<8x32xf32>
    %102 = vector.extract_strided_slice %58 {offsets = [0, 64], sizes = [8, 32], strides = [1, 1]} : vector<8x96xf32> to vector<8x32xf32>
    %103 = vector.extract_strided_slice %56 {offsets = [0, 160], sizes = [8, 32], strides = [1, 1]} : vector<8x192xf32> to vector<8x32xf32>
    %104 = arith.mulf %93, %103 : vector<8x32xf32>
    %105 = arith.addf %102, %104 : vector<8x32xf32>
    %106 = math.tanh %105 : vector<8x32xf32>
    %cst_53 = arith.constant 1.000000e+00 : f32
    %107 = vector.broadcast %cst_53 : f32 to vector<8x32xf32>
    %108 = arith.subf %107, %101 : vector<8x32xf32>
    %109 = arith.mulf %108, %106 : vector<8x32xf32>
    %110 = vector.extract_strided_slice %53 {offsets = [0, 32], sizes = [8, 32], strides = [1, 1]} : vector<8x64xf32> to vector<8x32xf32>
    %111 = arith.mulf %101, %110 : vector<8x32xf32>
    %112 = arith.addf %109, %111 : vector<8x32xf32>
    %c0_54 = arith.constant 0 : index
    %c0_55 = arith.constant 0 : index
    %113 = vector.load %arg22[%c0_54, %c0_55] : memref<128x64xf32, #tpu.memory_space<vmem>>, vector<8x32xf32>
    tpu.vector_store %arg22[%c0_54, %c0_55], %85 {strides = array<i32>} : memref<128x64xf32, #tpu.memory_space<vmem>>, vector<8x32xf32>,
    %c120_56 = arith.constant 120 : index
    %c32_57 = arith.constant 32 : index
    %114 = vector.load %arg22[%c120_56, %c32_57] : memref<128x64xf32, #tpu.memory_space<vmem>>, vector<8x32xf32>
    tpu.vector_store %arg22[%c120_56, %c32_57], %112 {strides = array<i32>} : memref<128x64xf32, #tpu.memory_space<vmem>>, vector<8x32xf32>,
    %115 = tpu.concatenate %85, %112 in 1 : vector<8x32xf32>, vector<8x32xf32> -> vector<8x64xf32>
    %cst_58 = arith.constant dense<0.000000e+00> : vector<8x192xf32>
    %116 = tpu.matmul %115, %51, %cst_58 {dimension_numbers = #tpu.dot_dimension_numbers<[1], [0], [0], [1], [0, 0, 1, 1], [], []>} : vector<8x64xf32>, vector<64x192xf32>, vector<8x192xf32> -> vector<8x192xf32>
    %117 = vector.broadcast %52 : vector<1x192xf32> to vector<8x192xf32>
    %118 = arith.addf %116, %117 : vector<8x192xf32>
    %c8_59 = arith.constant 8 : index
    %c0_60 = arith.constant 0 : index
    %119 = vector.load %arg20[%c8_59, %c0_60] : memref<128x96xf32, #tpu.memory_space<vmem>>, vector<8x96xf32>
    %c112_61 = arith.constant 112 : index
    %c0_62 = arith.constant 0 : index
    %120 = vector.load %arg21[%c112_61, %c0_62] : memref<128x96xf32, #tpu.memory_space<vmem>>, vector<8x96xf32>
    %121 = vector.extract_strided_slice %119 {offsets = [0, 0], sizes = [8, 32], strides = [1, 1]} : vector<8x96xf32> to vector<8x32xf32>
    %122 = vector.extract_strided_slice %118 {offsets = [0, 0], sizes = [8, 32], strides = [1, 1]} : vector<8x192xf32> to vector<8x32xf32>
    %123 = arith.addf %121, %122 : vector<8x32xf32>
    %124 = arith.negf %123 : vector<8x32xf32>
    %125 = math.exp %124 : vector<8x32xf32>
    %cst_63 = arith.constant 1.000000e+00 : f32
    %126 = vector.broadcast %cst_63 : f32 to vector<8x32xf32>
    %127 = arith.addf %126, %125 : vector<8x32xf32>
    %128 = arith.divf %126, %127 : vector<8x32xf32>
    %129 = vector.extract_strided_slice %119 {offsets = [0, 32], sizes = [8, 32], strides = [1, 1]} : vector<8x96xf32> to vector<8x32xf32>
    %130 = vector.extract_strided_slice %118 {offsets = [0, 32], sizes = [8, 32], strides = [1, 1]} : vector<8x192xf32> to vector<8x32xf32>
    %131 = arith.addf %129, %130 : vector<8x32xf32>
    %132 = arith.negf %131 : vector<8x32xf32>
    %133 = math.exp %132 : vector<8x32xf32>
    %cst_64 = arith.constant 1.000000e+00 : f32
    %134 = vector.broadcast %cst_64 : f32 to vector<8x32xf32>
    %135 = arith.addf %134, %133 : vector<8x32xf32>
    %136 = arith.divf %134, %135 : vector<8x32xf32>
    %137 = vector.extract_strided_slice %119 {offsets = [0, 64], sizes = [8, 32], strides = [1, 1]} : vector<8x96xf32> to vector<8x32xf32>
    %138 = vector.extract_strided_slice %118 {offsets = [0, 64], sizes = [8, 32], strides = [1, 1]} : vector<8x192xf32> to vector<8x32xf32>
    %139 = arith.mulf %128, %138 : vector<8x32xf32>
    %140 = arith.addf %137, %139 : vector<8x32xf32>
    %141 = math.tanh %140 : vector<8x32xf32>
    %cst_65 = arith.constant 1.000000e+00 : f32
    %142 = vector.broadcast %cst_65 : f32 to vector<8x32xf32>
    %143 = arith.subf %142, %136 : vector<8x32xf32>
    %144 = arith.mulf %143, %141 : vector<8x32xf32>
    %145 = vector.extract_strided_slice %115 {offsets = [0, 0], sizes = [8, 32], strides = [1, 1]} : vector<8x64xf32> to vector<8x32xf32>
    %146 = arith.mulf %136, %145 : vector<8x32xf32>
    %147 = arith.addf %144, %146 : vector<8x32xf32>
    %148 = vector.extract_strided_slice %120 {offsets = [0, 0], sizes = [8, 32], strides = [1, 1]} : vector<8x96xf32> to vector<8x32xf32>
    %149 = vector.extract_strided_slice %118 {offsets = [0, 96], sizes = [8, 32], strides = [1, 1]} : vector<8x192xf32> to vector<8x32xf32>
    %150 = arith.addf %148, %149 : vector<8x32xf32>
    %151 = arith.negf %150 : vector<8x32xf32>
    %152 = math.exp %151 : vector<8x32xf32>
    %cst_66 = arith.constant 1.000000e+00 : f32
    %153 = vector.broadcast %cst_66 : f32 to vector<8x32xf32>
    %154 = arith.addf %153, %152 : vector<8x32xf32>
    %155 = arith.divf %153, %154 : vector<8x32xf32>
    %156 = vector.extract_strided_slice %120 {offsets = [0, 32], sizes = [8, 32], strides = [1, 1]} : vector<8x96xf32> to vector<8x32xf32>
    %157 = vector.extract_strided_slice %118 {offsets = [0, 128], sizes = [8, 32], strides = [1, 1]} : vector<8x192xf32> to vector<8x32xf32>
    %158 = arith.addf %156, %157 : vector<8x32xf32>
    %159 = arith.negf %158 : vector<8x32xf32>
    %160 = math.exp %159 : vector<8x32xf32>
    %cst_67 = arith.constant 1.000000e+00 : f32
    %161 = vector.broadcast %cst_67 : f32 to vector<8x32xf32>
    %162 = arith.addf %161, %160 : vector<8x32xf32>
    %163 = arith.divf %161, %162 : vector<8x32xf32>
    %164 = vector.extract_strided_slice %120 {offsets = [0, 64], sizes = [8, 32], strides = [1, 1]} : vector<8x96xf32> to vector<8x32xf32>
    %165 = vector.extract_strided_slice %118 {offsets = [0, 160], sizes = [8, 32], strides = [1, 1]} : vector<8x192xf32> to vector<8x32xf32>
    %166 = arith.mulf %155, %165 : vector<8x32xf32>
    %167 = arith.addf %164, %166 : vector<8x32xf32>
    %168 = math.tanh %167 : vector<8x32xf32>
    %cst_68 = arith.constant 1.000000e+00 : f32
    %169 = vector.broadcast %cst_68 : f32 to vector<8x32xf32>
    %170 = arith.subf %169, %163 : vector<8x32xf32>
    %171 = arith.mulf %170, %168 : vector<8x32xf32>
    %172 = vector.extract_strided_slice %115 {offsets = [0, 32], sizes = [8, 32], strides = [1, 1]} : vector<8x64xf32> to vector<8x32xf32>
    %173 = arith.mulf %163, %172 : vector<8x32xf32>
    %174 = arith.addf %171, %173 : vector<8x32xf32>
    %c8_69 = arith.constant 8 : index
    %c0_70 = arith.constant 0 : index
    %175 = vector.load %arg22[%c8_69, %c0_70] : memref<128x64xf32, #tpu.memory_space<vmem>>, vector<8x32xf32>
    tpu.vector_store %arg22[%c8_69, %c0_70], %147 {strides = array<i32>} : memref<128x64xf32, #tpu.memory_space<vmem>>, vector<8x32xf32>,
    %c112_71 = arith.constant 112 : index
    %c32_72 = arith.constant 32 : index
    %176 = vector.load %arg22[%c112_71, %c32_72] : memref<128x64xf32, #tpu.memory_space<vmem>>, vector<8x32xf32>
    tpu.vector_store %arg22[%c112_71, %c32_72], %174 {strides = array<i32>} : memref<128x64xf32, #tpu.memory_space<vmem>>, vector<8x32xf32>,
    %177 = tpu.concatenate %147, %174 in 1 : vector<8x32xf32>, vector<8x32xf32> -> vector<8x64xf32>
    %cst_73 = arith.constant dense<0.000000e+00> : vector<8x192xf32>
    %178 = tpu.matmul %177, %51, %cst_73 {dimension_numbers = #tpu.dot_dimension_numbers<[1], [0], [0], [1], [0, 0, 1, 1], [], []>} : vector<8x64xf32>, vector<64x192xf32>, vector<8x192xf32> -> vector<8x192xf32>
    %179 = vector.broadcast %52 : vector<1x192xf32> to vector<8x192xf32>
    %180 = arith.addf %178, %179 : vector<8x192xf32>
    %c16_74 = arith.constant 16 : index
    %c0_75 = arith.constant 0 : index
    %181 = vector.load %arg20[%c16_74, %c0_75] : memref<128x96xf32, #tpu.memory_space<vmem>>, vector<8x96xf32>
    %c104_76 = arith.constant 104 : index
    %c0_77 = arith.constant 0 : index
    %182 = vector.load %arg21[%c104_76, %c0_77] : memref<128x96xf32, #tpu.memory_space<vmem>>, vector<8x96xf32>
    %183 = vector.extract_strided_slice %181 {offsets = [0, 0], sizes = [8, 32], strides = [1, 1]} : vector<8x96xf32> to vector<8x32xf32>
    %184 = vector.extract_strided_slice %180 {offsets = [0, 0], sizes = [8, 32], strides = [1, 1]} : vector<8x192xf32> to vector<8x32xf32>
    %185 = arith.addf %183, %184 : vector<8x32xf32>
    %186 = arith.negf %185 : vector<8x32xf32>
    %187 = math.exp %186 : vector<8x32xf32>
    %cst_78 = arith.constant 1.000000e+00 : f32
    %188 = vector.broadcast %cst_78 : f32 to vector<8x32xf32>
    %189 = arith.addf %188, %187 : vector<8x32xf32>
    %190 = arith.divf %188, %189 : vector<8x32xf32>
    %191 = vector.extract_strided_slice %181 {offsets = [0, 32], sizes = [8, 32], strides = [1, 1]} : vector<8x96xf32> to vector<8x32xf32>
    %192 = vector.extract_strided_slice %180 {offsets = [0, 32], sizes = [8, 32], strides = [1, 1]} : vector<8x192xf32> to vector<8x32xf32>
    %193 = arith.addf %191, %192 : vector<8x32xf32>
    %194 = arith.negf %193 : vector<8x32xf32>
    %195 = math.exp %194 : vector<8x32xf32>
    %cst_79 = arith.constant 1.000000e+00 : f32
    %196 = vector.broadcast %cst_79 : f32 to vector<8x32xf32>
    %197 = arith.addf %196, %195 : vector<8x32xf32>
    %198 = arith.divf %196, %197 : vector<8x32xf32>
    %199 = vector.extract_strided_slice %181 {offsets = [0, 64], sizes = [8, 32], strides = [1, 1]} : vector<8x96xf32> to vector<8x32xf32>
    %200 = vector.extract_strided_slice %180 {offsets = [0, 64], sizes = [8, 32], strides = [1, 1]} : vector<8x192xf32> to vector<8x32xf32>
    %201 = arith.mulf %190, %200 : vector<8x32xf32>
    %202 = arith.addf %199, %201 : vector<8x32xf32>
    %203 = math.tanh %202 : vector<8x32xf32>
    %cst_80 = arith.constant 1.000000e+00 : f32
    %204 = vector.broadcast %cst_80 : f32 to vector<8x32xf32>
    %205 = arith.subf %204, %198 : vector<8x32xf32>
    %206 = arith.mulf %205, %203 : vector<8x32xf32>
    %207 = vector.extract_strided_slice %177 {offsets = [0, 0], sizes = [8, 32], strides = [1, 1]} : vector<8x64xf32> to vector<8x32xf32>
    %208 = arith.mulf %198, %207 : vector<8x32xf32>
    %209 = arith.addf %206, %208 : vector<8x32xf32>
    %210 = vector.extract_strided_slice %182 {offsets = [0, 0], sizes = [8, 32], strides = [1, 1]} : vector<8x96xf32> to vector<8x32xf32>
    %211 = vector.extract_strided_slice %180 {offsets = [0, 96], sizes = [8, 32], strides = [1, 1]} : vector<8x192xf32> to vector<8x32xf32>
    %212 = arith.addf %210, %211 : vector<8x32xf32>
    %213 = arith.negf %212 : vector<8x32xf32>
    %214 = math.exp %213 : vector<8x32xf32>
    %cst_81 = arith.constant 1.000000e+00 : f32
    %215 = vector.broadcast %cst_81 : f32 to vector<8x32xf32>
    %216 = arith.addf %215, %214 : vector<8x32xf32>
    %217 = arith.divf %215, %216 : vector<8x32xf32>
    %218 = vector.extract_strided_slice %182 {offsets = [0, 32], sizes = [8, 32], strides = [1, 1]} : vector<8x96xf32> to vector<8x32xf32>
    %219 = vector.extract_strided_slice %180 {offsets = [0, 128], sizes = [8, 32], strides = [1, 1]} : vector<8x192xf32> to vector<8x32xf32>
    %220 = arith.addf %218, %219 : vector<8x32xf32>
    %221 = arith.negf %220 : vector<8x32xf32>
    %222 = math.exp %221 : vector<8x32xf32>
    %cst_82 = arith.constant 1.000000e+00 : f32
    %223 = vector.broadcast %cst_82 : f32 to vector<8x32xf32>
    %224 = arith.addf %223, %222 : vector<8x32xf32>
    %225 = arith.divf %223, %224 : vector<8x32xf32>
    %226 = vector.extract_strided_slice %182 {offsets = [0, 64], sizes = [8, 32], strides = [1, 1]} : vector<8x96xf32> to vector<8x32xf32>
    %227 = vector.extract_strided_slice %180 {offsets = [0, 160], sizes = [8, 32], strides = [1, 1]} : vector<8x192xf32> to vector<8x32xf32>
    %228 = arith.mulf %217, %227 : vector<8x32xf32>
    %229 = arith.addf %226, %228 : vector<8x32xf32>
    %230 = math.tanh %229 : vector<8x32xf32>
    %cst_83 = arith.constant 1.000000e+00 : f32
    %231 = vector.broadcast %cst_83 : f32 to vector<8x32xf32>
    %232 = arith.subf %231, %225 : vector<8x32xf32>
    %233 = arith.mulf %232, %230 : vector<8x32xf32>
    %234 = vector.extract_strided_slice %177 {offsets = [0, 32], sizes = [8, 32], strides = [1, 1]} : vector<8x64xf32> to vector<8x32xf32>
    %235 = arith.mulf %225, %234 : vector<8x32xf32>
    %236 = arith.addf %233, %235 : vector<8x32xf32>
    %c16_84 = arith.constant 16 : index
    %c0_85 = arith.constant 0 : index
    %237 = vector.load %arg22[%c16_84, %c0_85] : memref<128x64xf32, #tpu.memory_space<vmem>>, vector<8x32xf32>
    tpu.vector_store %arg22[%c16_84, %c0_85], %209 {strides = array<i32>} : memref<128x64xf32, #tpu.memory_space<vmem>>, vector<8x32xf32>,
    %c104_86 = arith.constant 104 : index
    %c32_87 = arith.constant 32 : index
    %238 = vector.load %arg22[%c104_86, %c32_87] : memref<128x64xf32, #tpu.memory_space<vmem>>, vector<8x32xf32>
    tpu.vector_store %arg22[%c104_86, %c32_87], %236 {strides = array<i32>} : memref<128x64xf32, #tpu.memory_space<vmem>>, vector<8x32xf32>,
    %239 = tpu.concatenate %209, %236 in 1 : vector<8x32xf32>, vector<8x32xf32> -> vector<8x64xf32>
    %cst_88 = arith.constant dense<0.000000e+00> : vector<8x192xf32>
    %240 = tpu.matmul %239, %51, %cst_88 {dimension_numbers = #tpu.dot_dimension_numbers<[1], [0], [0], [1], [0, 0, 1, 1], [], []>} : vector<8x64xf32>, vector<64x192xf32>, vector<8x192xf32> -> vector<8x192xf32>
    %241 = vector.broadcast %52 : vector<1x192xf32> to vector<8x192xf32>
    %242 = arith.addf %240, %241 : vector<8x192xf32>
    %c24_89 = arith.constant 24 : index
    %c0_90 = arith.constant 0 : index
    %243 = vector.load %arg20[%c24_89, %c0_90] : memref<128x96xf32, #tpu.memory_space<vmem>>, vector<8x96xf32>
    %c96_91 = arith.constant 96 : index
    %c0_92 = arith.constant 0 : index
    %244 = vector.load %arg21[%c96_91, %c0_92] : memref<128x96xf32, #tpu.memory_space<vmem>>, vector<8x96xf32>
    %245 = vector.extract_strided_slice %243 {offsets = [0, 0], sizes = [8, 32], strides = [1, 1]} : vector<8x96xf32> to vector<8x32xf32>
    %246 = vector.extract_strided_slice %242 {offsets = [0, 0], sizes = [8, 32], strides = [1, 1]} : vector<8x192xf32> to vector<8x32xf32>
    %247 = arith.addf %245, %246 : vector<8x32xf32>
    %248 = arith.negf %247 : vector<8x32xf32>
    %249 = math.exp %248 : vector<8x32xf32>
    %cst_93 = arith.constant 1.000000e+00 : f32
    %250 = vector.broadcast %cst_93 : f32 to vector<8x32xf32>
    %251 = arith.addf %250, %249 : vector<8x32xf32>
    %252 = arith.divf %250, %251 : vector<8x32xf32>
    %253 = vector.extract_strided_slice %243 {offsets = [0, 32], sizes = [8, 32], strides = [1, 1]} : vector<8x96xf32> to vector<8x32xf32>
    %254 = vector.extract_strided_slice %242 {offsets = [0, 32], sizes = [8, 32], strides = [1, 1]} : vector<8x192xf32> to vector<8x32xf32>
    %255 = arith.addf %253, %254 : vector<8x32xf32>
    %256 = arith.negf %255 : vector<8x32xf32>
    %257 = math.exp %256 : vector<8x32xf32>
    %cst_94 = arith.constant 1.000000e+00 : f32
    %258 = vector.broadcast %cst_94 : f32 to vector<8x32xf32>
    %259 = arith.addf %258, %257 : vector<8x32xf32>
    %260 = arith.divf %258, %259 : vector<8x32xf32>
    %261 = vector.extract_strided_slice %243 {offsets = [0, 64], sizes = [8, 32], strides = [1, 1]} : vector<8x96xf32> to vector<8x32xf32>
    %262 = vector.extract_strided_slice %242 {offsets = [0, 64], sizes = [8, 32], strides = [1, 1]} : vector<8x192xf32> to vector<8x32xf32>
    %263 = arith.mulf %252, %262 : vector<8x32xf32>
    %264 = arith.addf %261, %263 : vector<8x32xf32>
    %265 = math.tanh %264 : vector<8x32xf32>
    %cst_95 = arith.constant 1.000000e+00 : f32
    %266 = vector.broadcast %cst_95 : f32 to vector<8x32xf32>
    %267 = arith.subf %266, %260 : vector<8x32xf32>
    %268 = arith.mulf %267, %265 : vector<8x32xf32>
    %269 = vector.extract_strided_slice %239 {offsets = [0, 0], sizes = [8, 32], strides = [1, 1]} : vector<8x64xf32> to vector<8x32xf32>
    %270 = arith.mulf %260, %269 : vector<8x32xf32>
    %271 = arith.addf %268, %270 : vector<8x32xf32>
    %272 = vector.extract_strided_slice %244 {offsets = [0, 0], sizes = [8, 32], strides = [1, 1]} : vector<8x96xf32> to vector<8x32xf32>
    %273 = vector.extract_strided_slice %242 {offsets = [0, 96], sizes = [8, 32], strides = [1, 1]} : vector<8x192xf32> to vector<8x32xf32>
    %274 = arith.addf %272, %273 : vector<8x32xf32>
    %275 = arith.negf %274 : vector<8x32xf32>
    %276 = math.exp %275 : vector<8x32xf32>
    %cst_96 = arith.constant 1.000000e+00 : f32
    %277 = vector.broadcast %cst_96 : f32 to vector<8x32xf32>
    %278 = arith.addf %277, %276 : vector<8x32xf32>
    %279 = arith.divf %277, %278 : vector<8x32xf32>
    %280 = vector.extract_strided_slice %244 {offsets = [0, 32], sizes = [8, 32], strides = [1, 1]} : vector<8x96xf32> to vector<8x32xf32>
    %281 = vector.extract_strided_slice %242 {offsets = [0, 128], sizes = [8, 32], strides = [1, 1]} : vector<8x192xf32> to vector<8x32xf32>
    %282 = arith.addf %280, %281 : vector<8x32xf32>
    %283 = arith.negf %282 : vector<8x32xf32>
    %284 = math.exp %283 : vector<8x32xf32>
    %cst_97 = arith.constant 1.000000e+00 : f32
    %285 = vector.broadcast %cst_97 : f32 to vector<8x32xf32>
    %286 = arith.addf %285, %284 : vector<8x32xf32>
    %287 = arith.divf %285, %286 : vector<8x32xf32>
    %288 = vector.extract_strided_slice %244 {offsets = [0, 64], sizes = [8, 32], strides = [1, 1]} : vector<8x96xf32> to vector<8x32xf32>
    %289 = vector.extract_strided_slice %242 {offsets = [0, 160], sizes = [8, 32], strides = [1, 1]} : vector<8x192xf32> to vector<8x32xf32>
    %290 = arith.mulf %279, %289 : vector<8x32xf32>
    %291 = arith.addf %288, %290 : vector<8x32xf32>
    %292 = math.tanh %291 : vector<8x32xf32>
    %cst_98 = arith.constant 1.000000e+00 : f32
    %293 = vector.broadcast %cst_98 : f32 to vector<8x32xf32>
    %294 = arith.subf %293, %287 : vector<8x32xf32>
    %295 = arith.mulf %294, %292 : vector<8x32xf32>
    %296 = vector.extract_strided_slice %239 {offsets = [0, 32], sizes = [8, 32], strides = [1, 1]} : vector<8x64xf32> to vector<8x32xf32>
    %297 = arith.mulf %287, %296 : vector<8x32xf32>
    %298 = arith.addf %295, %297 : vector<8x32xf32>
    %c24_99 = arith.constant 24 : index
    %c0_100 = arith.constant 0 : index
    %299 = vector.load %arg22[%c24_99, %c0_100] : memref<128x64xf32, #tpu.memory_space<vmem>>, vector<8x32xf32>
    tpu.vector_store %arg22[%c24_99, %c0_100], %271 {strides = array<i32>} : memref<128x64xf32, #tpu.memory_space<vmem>>, vector<8x32xf32>,
    %c96_101 = arith.constant 96 : index
    %c32_102 = arith.constant 32 : index
    %300 = vector.load %arg22[%c96_101, %c32_102] : memref<128x64xf32, #tpu.memory_space<vmem>>, vector<8x32xf32>
    tpu.vector_store %arg22[%c96_101, %c32_102], %298 {strides = array<i32>} : memref<128x64xf32, #tpu.memory_space<vmem>>, vector<8x32xf32>,
    %301 = tpu.concatenate %271, %298 in 1 : vector<8x32xf32>, vector<8x32xf32> -> vector<8x64xf32>
    %cst_103 = arith.constant dense<0.000000e+00> : vector<8x192xf32>
    %302 = tpu.matmul %301, %51, %cst_103 {dimension_numbers = #tpu.dot_dimension_numbers<[1], [0], [0], [1], [0, 0, 1, 1], [], []>} : vector<8x64xf32>, vector<64x192xf32>, vector<8x192xf32> -> vector<8x192xf32>
    %303 = vector.broadcast %52 : vector<1x192xf32> to vector<8x192xf32>
    %304 = arith.addf %302, %303 : vector<8x192xf32>
    %c32_104 = arith.constant 32 : index
    %c0_105 = arith.constant 0 : index
    %305 = vector.load %arg20[%c32_104, %c0_105] : memref<128x96xf32, #tpu.memory_space<vmem>>, vector<8x96xf32>
    %c88_106 = arith.constant 88 : index
    %c0_107 = arith.constant 0 : index
    %306 = vector.load %arg21[%c88_106, %c0_107] : memref<128x96xf32, #tpu.memory_space<vmem>>, vector<8x96xf32>
    %307 = vector.extract_strided_slice %305 {offsets = [0, 0], sizes = [8, 32], strides = [1, 1]} : vector<8x96xf32> to vector<8x32xf32>
    %308 = vector.extract_strided_slice %304 {offsets = [0, 0], sizes = [8, 32], strides = [1, 1]} : vector<8x192xf32> to vector<8x32xf32>
    %309 = arith.addf %307, %308 : vector<8x32xf32>
    %310 = arith.negf %309 : vector<8x32xf32>
    %311 = math.exp %310 : vector<8x32xf32>
    %cst_108 = arith.constant 1.000000e+00 : f32
    %312 = vector.broadcast %cst_108 : f32 to vector<8x32xf32>
    %313 = arith.addf %312, %311 : vector<8x32xf32>
    %314 = arith.divf %312, %313 : vector<8x32xf32>
    %315 = vector.extract_strided_slice %305 {offsets = [0, 32], sizes = [8, 32], strides = [1, 1]} : vector<8x96xf32> to vector<8x32xf32>
    %316 = vector.extract_strided_slice %304 {offsets = [0, 32], sizes = [8, 32], strides = [1, 1]} : vector<8x192xf32> to vector<8x32xf32>
    %317 = arith.addf %315, %316 : vector<8x32xf32>
    %318 = arith.negf %317 : vector<8x32xf32>
    %319 = math.exp %318 : vector<8x32xf32>
    %cst_109 = arith.constant 1.000000e+00 : f32
    %320 = vector.broadcast %cst_109 : f32 to vector<8x32xf32>
    %321 = arith.addf %320, %319 : vector<8x32xf32>
    %322 = arith.divf %320, %321 : vector<8x32xf32>
    %323 = vector.extract_strided_slice %305 {offsets = [0, 64], sizes = [8, 32], strides = [1, 1]} : vector<8x96xf32> to vector<8x32xf32>
    %324 = vector.extract_strided_slice %304 {offsets = [0, 64], sizes = [8, 32], strides = [1, 1]} : vector<8x192xf32> to vector<8x32xf32>
    %325 = arith.mulf %314, %324 : vector<8x32xf32>
    %326 = arith.addf %323, %325 : vector<8x32xf32>
    %327 = math.tanh %326 : vector<8x32xf32>
    %cst_110 = arith.constant 1.000000e+00 : f32
    %328 = vector.broadcast %cst_110 : f32 to vector<8x32xf32>
    %329 = arith.subf %328, %322 : vector<8x32xf32>
    %330 = arith.mulf %329, %327 : vector<8x32xf32>
    %331 = vector.extract_strided_slice %301 {offsets = [0, 0], sizes = [8, 32], strides = [1, 1]} : vector<8x64xf32> to vector<8x32xf32>
    %332 = arith.mulf %322, %331 : vector<8x32xf32>
    %333 = arith.addf %330, %332 : vector<8x32xf32>
    %334 = vector.extract_strided_slice %306 {offsets = [0, 0], sizes = [8, 32], strides = [1, 1]} : vector<8x96xf32> to vector<8x32xf32>
    %335 = vector.extract_strided_slice %304 {offsets = [0, 96], sizes = [8, 32], strides = [1, 1]} : vector<8x192xf32> to vector<8x32xf32>
    %336 = arith.addf %334, %335 : vector<8x32xf32>
    %337 = arith.negf %336 : vector<8x32xf32>
    %338 = math.exp %337 : vector<8x32xf32>
    %cst_111 = arith.constant 1.000000e+00 : f32
    %339 = vector.broadcast %cst_111 : f32 to vector<8x32xf32>
    %340 = arith.addf %339, %338 : vector<8x32xf32>
    %341 = arith.divf %339, %340 : vector<8x32xf32>
    %342 = vector.extract_strided_slice %306 {offsets = [0, 32], sizes = [8, 32], strides = [1, 1]} : vector<8x96xf32> to vector<8x32xf32>
    %343 = vector.extract_strided_slice %304 {offsets = [0, 128], sizes = [8, 32], strides = [1, 1]} : vector<8x192xf32> to vector<8x32xf32>
    %344 = arith.addf %342, %343 : vector<8x32xf32>
    %345 = arith.negf %344 : vector<8x32xf32>
    %346 = math.exp %345 : vector<8x32xf32>
    %cst_112 = arith.constant 1.000000e+00 : f32
    %347 = vector.broadcast %cst_112 : f32 to vector<8x32xf32>
    %348 = arith.addf %347, %346 : vector<8x32xf32>
    %349 = arith.divf %347, %348 : vector<8x32xf32>
    %350 = vector.extract_strided_slice %306 {offsets = [0, 64], sizes = [8, 32], strides = [1, 1]} : vector<8x96xf32> to vector<8x32xf32>
    %351 = vector.extract_strided_slice %304 {offsets = [0, 160], sizes = [8, 32], strides = [1, 1]} : vector<8x192xf32> to vector<8x32xf32>
    %352 = arith.mulf %341, %351 : vector<8x32xf32>
    %353 = arith.addf %350, %352 : vector<8x32xf32>
    %354 = math.tanh %353 : vector<8x32xf32>
    %cst_113 = arith.constant 1.000000e+00 : f32
    %355 = vector.broadcast %cst_113 : f32 to vector<8x32xf32>
    %356 = arith.subf %355, %349 : vector<8x32xf32>
    %357 = arith.mulf %356, %354 : vector<8x32xf32>
    %358 = vector.extract_strided_slice %301 {offsets = [0, 32], sizes = [8, 32], strides = [1, 1]} : vector<8x64xf32> to vector<8x32xf32>
    %359 = arith.mulf %349, %358 : vector<8x32xf32>
    %360 = arith.addf %357, %359 : vector<8x32xf32>
    %c32_114 = arith.constant 32 : index
    %c0_115 = arith.constant 0 : index
    %361 = vector.load %arg22[%c32_114, %c0_115] : memref<128x64xf32, #tpu.memory_space<vmem>>, vector<8x32xf32>
    tpu.vector_store %arg22[%c32_114, %c0_115], %333 {strides = array<i32>} : memref<128x64xf32, #tpu.memory_space<vmem>>, vector<8x32xf32>,
    %c88_116 = arith.constant 88 : index
    %c32_117 = arith.constant 32 : index
    %362 = vector.load %arg22[%c88_116, %c32_117] : memref<128x64xf32, #tpu.memory_space<vmem>>, vector<8x32xf32>
    tpu.vector_store %arg22[%c88_116, %c32_117], %360 {strides = array<i32>} : memref<128x64xf32, #tpu.memory_space<vmem>>, vector<8x32xf32>,
    %363 = tpu.concatenate %333, %360 in 1 : vector<8x32xf32>, vector<8x32xf32> -> vector<8x64xf32>
    %cst_118 = arith.constant dense<0.000000e+00> : vector<8x192xf32>
    %364 = tpu.matmul %363, %51, %cst_118 {dimension_numbers = #tpu.dot_dimension_numbers<[1], [0], [0], [1], [0, 0, 1, 1], [], []>} : vector<8x64xf32>, vector<64x192xf32>, vector<8x192xf32> -> vector<8x192xf32>
    %365 = vector.broadcast %52 : vector<1x192xf32> to vector<8x192xf32>
    %366 = arith.addf %364, %365 : vector<8x192xf32>
    %c40_119 = arith.constant 40 : index
    %c0_120 = arith.constant 0 : index
    %367 = vector.load %arg20[%c40_119, %c0_120] : memref<128x96xf32, #tpu.memory_space<vmem>>, vector<8x96xf32>
    %c80_121 = arith.constant 80 : index
    %c0_122 = arith.constant 0 : index
    %368 = vector.load %arg21[%c80_121, %c0_122] : memref<128x96xf32, #tpu.memory_space<vmem>>, vector<8x96xf32>
    %369 = vector.extract_strided_slice %367 {offsets = [0, 0], sizes = [8, 32], strides = [1, 1]} : vector<8x96xf32> to vector<8x32xf32>
    %370 = vector.extract_strided_slice %366 {offsets = [0, 0], sizes = [8, 32], strides = [1, 1]} : vector<8x192xf32> to vector<8x32xf32>
    %371 = arith.addf %369, %370 : vector<8x32xf32>
    %372 = arith.negf %371 : vector<8x32xf32>
    %373 = math.exp %372 : vector<8x32xf32>
    %cst_123 = arith.constant 1.000000e+00 : f32
    %374 = vector.broadcast %cst_123 : f32 to vector<8x32xf32>
    %375 = arith.addf %374, %373 : vector<8x32xf32>
    %376 = arith.divf %374, %375 : vector<8x32xf32>
    %377 = vector.extract_strided_slice %367 {offsets = [0, 32], sizes = [8, 32], strides = [1, 1]} : vector<8x96xf32> to vector<8x32xf32>
    %378 = vector.extract_strided_slice %366 {offsets = [0, 32], sizes = [8, 32], strides = [1, 1]} : vector<8x192xf32> to vector<8x32xf32>
    %379 = arith.addf %377, %378 : vector<8x32xf32>
    %380 = arith.negf %379 : vector<8x32xf32>
    %381 = math.exp %380 : vector<8x32xf32>
    %cst_124 = arith.constant 1.000000e+00 : f32
    %382 = vector.broadcast %cst_124 : f32 to vector<8x32xf32>
    %383 = arith.addf %382, %381 : vector<8x32xf32>
    %384 = arith.divf %382, %383 : vector<8x32xf32>
    %385 = vector.extract_strided_slice %367 {offsets = [0, 64], sizes = [8, 32], strides = [1, 1]} : vector<8x96xf32> to vector<8x32xf32>
    %386 = vector.extract_strided_slice %366 {offsets = [0, 64], sizes = [8, 32], strides = [1, 1]} : vector<8x192xf32> to vector<8x32xf32>
    %387 = arith.mulf %376, %386 : vector<8x32xf32>
    %388 = arith.addf %385, %387 : vector<8x32xf32>
    %389 = math.tanh %388 : vector<8x32xf32>
    %cst_125 = arith.constant 1.000000e+00 : f32
    %390 = vector.broadcast %cst_125 : f32 to vector<8x32xf32>
    %391 = arith.subf %390, %384 : vector<8x32xf32>
    %392 = arith.mulf %391, %389 : vector<8x32xf32>
    %393 = vector.extract_strided_slice %363 {offsets = [0, 0], sizes = [8, 32], strides = [1, 1]} : vector<8x64xf32> to vector<8x32xf32>
    %394 = arith.mulf %384, %393 : vector<8x32xf32>
    %395 = arith.addf %392, %394 : vector<8x32xf32>
    %396 = vector.extract_strided_slice %368 {offsets = [0, 0], sizes = [8, 32], strides = [1, 1]} : vector<8x96xf32> to vector<8x32xf32>
    %397 = vector.extract_strided_slice %366 {offsets = [0, 96], sizes = [8, 32], strides = [1, 1]} : vector<8x192xf32> to vector<8x32xf32>
    %398 = arith.addf %396, %397 : vector<8x32xf32>
    %399 = arith.negf %398 : vector<8x32xf32>
    %400 = math.exp %399 : vector<8x32xf32>
    %cst_126 = arith.constant 1.000000e+00 : f32
    %401 = vector.broadcast %cst_126 : f32 to vector<8x32xf32>
    %402 = arith.addf %401, %400 : vector<8x32xf32>
    %403 = arith.divf %401, %402 : vector<8x32xf32>
    %404 = vector.extract_strided_slice %368 {offsets = [0, 32], sizes = [8, 32], strides = [1, 1]} : vector<8x96xf32> to vector<8x32xf32>
    %405 = vector.extract_strided_slice %366 {offsets = [0, 128], sizes = [8, 32], strides = [1, 1]} : vector<8x192xf32> to vector<8x32xf32>
    %406 = arith.addf %404, %405 : vector<8x32xf32>
    %407 = arith.negf %406 : vector<8x32xf32>
    %408 = math.exp %407 : vector<8x32xf32>
    %cst_127 = arith.constant 1.000000e+00 : f32
    %409 = vector.broadcast %cst_127 : f32 to vector<8x32xf32>
    %410 = arith.addf %409, %408 : vector<8x32xf32>
    %411 = arith.divf %409, %410 : vector<8x32xf32>
    %412 = vector.extract_strided_slice %368 {offsets = [0, 64], sizes = [8, 32], strides = [1, 1]} : vector<8x96xf32> to vector<8x32xf32>
    %413 = vector.extract_strided_slice %366 {offsets = [0, 160], sizes = [8, 32], strides = [1, 1]} : vector<8x192xf32> to vector<8x32xf32>
    %414 = arith.mulf %403, %413 : vector<8x32xf32>
    %415 = arith.addf %412, %414 : vector<8x32xf32>
    %416 = math.tanh %415 : vector<8x32xf32>
    %cst_128 = arith.constant 1.000000e+00 : f32
    %417 = vector.broadcast %cst_128 : f32 to vector<8x32xf32>
    %418 = arith.subf %417, %411 : vector<8x32xf32>
    %419 = arith.mulf %418, %416 : vector<8x32xf32>
    %420 = vector.extract_strided_slice %363 {offsets = [0, 32], sizes = [8, 32], strides = [1, 1]} : vector<8x64xf32> to vector<8x32xf32>
    %421 = arith.mulf %411, %420 : vector<8x32xf32>
    %422 = arith.addf %419, %421 : vector<8x32xf32>
    %c40_129 = arith.constant 40 : index
    %c0_130 = arith.constant 0 : index
    %423 = vector.load %arg22[%c40_129, %c0_130] : memref<128x64xf32, #tpu.memory_space<vmem>>, vector<8x32xf32>
    tpu.vector_store %arg22[%c40_129, %c0_130], %395 {strides = array<i32>} : memref<128x64xf32, #tpu.memory_space<vmem>>, vector<8x32xf32>,
    %c80_131 = arith.constant 80 : index
    %c32_132 = arith.constant 32 : index
    %424 = vector.load %arg22[%c80_131, %c32_132] : memref<128x64xf32, #tpu.memory_space<vmem>>, vector<8x32xf32>
    tpu.vector_store %arg22[%c80_131, %c32_132], %422 {strides = array<i32>} : memref<128x64xf32, #tpu.memory_space<vmem>>, vector<8x32xf32>,
    %425 = tpu.concatenate %395, %422 in 1 : vector<8x32xf32>, vector<8x32xf32> -> vector<8x64xf32>
    %cst_133 = arith.constant dense<0.000000e+00> : vector<8x192xf32>
    %426 = tpu.matmul %425, %51, %cst_133 {dimension_numbers = #tpu.dot_dimension_numbers<[1], [0], [0], [1], [0, 0, 1, 1], [], []>} : vector<8x64xf32>, vector<64x192xf32>, vector<8x192xf32> -> vector<8x192xf32>
    %427 = vector.broadcast %52 : vector<1x192xf32> to vector<8x192xf32>
    %428 = arith.addf %426, %427 : vector<8x192xf32>
    %c48_134 = arith.constant 48 : index
    %c0_135 = arith.constant 0 : index
    %429 = vector.load %arg20[%c48_134, %c0_135] : memref<128x96xf32, #tpu.memory_space<vmem>>, vector<8x96xf32>
    %c72_136 = arith.constant 72 : index
    %c0_137 = arith.constant 0 : index
    %430 = vector.load %arg21[%c72_136, %c0_137] : memref<128x96xf32, #tpu.memory_space<vmem>>, vector<8x96xf32>
    %431 = vector.extract_strided_slice %429 {offsets = [0, 0], sizes = [8, 32], strides = [1, 1]} : vector<8x96xf32> to vector<8x32xf32>
    %432 = vector.extract_strided_slice %428 {offsets = [0, 0], sizes = [8, 32], strides = [1, 1]} : vector<8x192xf32> to vector<8x32xf32>
    %433 = arith.addf %431, %432 : vector<8x32xf32>
    %434 = arith.negf %433 : vector<8x32xf32>
    %435 = math.exp %434 : vector<8x32xf32>
    %cst_138 = arith.constant 1.000000e+00 : f32
    %436 = vector.broadcast %cst_138 : f32 to vector<8x32xf32>
    %437 = arith.addf %436, %435 : vector<8x32xf32>
    %438 = arith.divf %436, %437 : vector<8x32xf32>
    %439 = vector.extract_strided_slice %429 {offsets = [0, 32], sizes = [8, 32], strides = [1, 1]} : vector<8x96xf32> to vector<8x32xf32>
    %440 = vector.extract_strided_slice %428 {offsets = [0, 32], sizes = [8, 32], strides = [1, 1]} : vector<8x192xf32> to vector<8x32xf32>
    %441 = arith.addf %439, %440 : vector<8x32xf32>
    %442 = arith.negf %441 : vector<8x32xf32>
    %443 = math.exp %442 : vector<8x32xf32>
    %cst_139 = arith.constant 1.000000e+00 : f32
    %444 = vector.broadcast %cst_139 : f32 to vector<8x32xf32>
    %445 = arith.addf %444, %443 : vector<8x32xf32>
    %446 = arith.divf %444, %445 : vector<8x32xf32>
    %447 = vector.extract_strided_slice %429 {offsets = [0, 64], sizes = [8, 32], strides = [1, 1]} : vector<8x96xf32> to vector<8x32xf32>
    %448 = vector.extract_strided_slice %428 {offsets = [0, 64], sizes = [8, 32], strides = [1, 1]} : vector<8x192xf32> to vector<8x32xf32>
    %449 = arith.mulf %438, %448 : vector<8x32xf32>
    %450 = arith.addf %447, %449 : vector<8x32xf32>
    %451 = math.tanh %450 : vector<8x32xf32>
    %cst_140 = arith.constant 1.000000e+00 : f32
    %452 = vector.broadcast %cst_140 : f32 to vector<8x32xf32>
    %453 = arith.subf %452, %446 : vector<8x32xf32>
    %454 = arith.mulf %453, %451 : vector<8x32xf32>
    %455 = vector.extract_strided_slice %425 {offsets = [0, 0], sizes = [8, 32], strides = [1, 1]} : vector<8x64xf32> to vector<8x32xf32>
    %456 = arith.mulf %446, %455 : vector<8x32xf32>
    %457 = arith.addf %454, %456 : vector<8x32xf32>
    %458 = vector.extract_strided_slice %430 {offsets = [0, 0], sizes = [8, 32], strides = [1, 1]} : vector<8x96xf32> to vector<8x32xf32>
    %459 = vector.extract_strided_slice %428 {offsets = [0, 96], sizes = [8, 32], strides = [1, 1]} : vector<8x192xf32> to vector<8x32xf32>
    %460 = arith.addf %458, %459 : vector<8x32xf32>
    %461 = arith.negf %460 : vector<8x32xf32>
    %462 = math.exp %461 : vector<8x32xf32>
    %cst_141 = arith.constant 1.000000e+00 : f32
    %463 = vector.broadcast %cst_141 : f32 to vector<8x32xf32>
    %464 = arith.addf %463, %462 : vector<8x32xf32>
    %465 = arith.divf %463, %464 : vector<8x32xf32>
    %466 = vector.extract_strided_slice %430 {offsets = [0, 32], sizes = [8, 32], strides = [1, 1]} : vector<8x96xf32> to vector<8x32xf32>
    %467 = vector.extract_strided_slice %428 {offsets = [0, 128], sizes = [8, 32], strides = [1, 1]} : vector<8x192xf32> to vector<8x32xf32>
    %468 = arith.addf %466, %467 : vector<8x32xf32>
    %469 = arith.negf %468 : vector<8x32xf32>
    %470 = math.exp %469 : vector<8x32xf32>
    %cst_142 = arith.constant 1.000000e+00 : f32
    %471 = vector.broadcast %cst_142 : f32 to vector<8x32xf32>
    %472 = arith.addf %471, %470 : vector<8x32xf32>
    %473 = arith.divf %471, %472 : vector<8x32xf32>
    %474 = vector.extract_strided_slice %430 {offsets = [0, 64], sizes = [8, 32], strides = [1, 1]} : vector<8x96xf32> to vector<8x32xf32>
    %475 = vector.extract_strided_slice %428 {offsets = [0, 160], sizes = [8, 32], strides = [1, 1]} : vector<8x192xf32> to vector<8x32xf32>
    %476 = arith.mulf %465, %475 : vector<8x32xf32>
    %477 = arith.addf %474, %476 : vector<8x32xf32>
    %478 = math.tanh %477 : vector<8x32xf32>
    %cst_143 = arith.constant 1.000000e+00 : f32
    %479 = vector.broadcast %cst_143 : f32 to vector<8x32xf32>
    %480 = arith.subf %479, %473 : vector<8x32xf32>
    %481 = arith.mulf %480, %478 : vector<8x32xf32>
    %482 = vector.extract_strided_slice %425 {offsets = [0, 32], sizes = [8, 32], strides = [1, 1]} : vector<8x64xf32> to vector<8x32xf32>
    %483 = arith.mulf %473, %482 : vector<8x32xf32>
    %484 = arith.addf %481, %483 : vector<8x32xf32>
    %c48_144 = arith.constant 48 : index
    %c0_145 = arith.constant 0 : index
    %485 = vector.load %arg22[%c48_144, %c0_145] : memref<128x64xf32, #tpu.memory_space<vmem>>, vector<8x32xf32>
    tpu.vector_store %arg22[%c48_144, %c0_145], %457 {strides = array<i32>} : memref<128x64xf32, #tpu.memory_space<vmem>>, vector<8x32xf32>,
    %c72_146 = arith.constant 72 : index
    %c32_147 = arith.constant 32 : index
    %486 = vector.load %arg22[%c72_146, %c32_147] : memref<128x64xf32, #tpu.memory_space<vmem>>, vector<8x32xf32>
    tpu.vector_store %arg22[%c72_146, %c32_147], %484 {strides = array<i32>} : memref<128x64xf32, #tpu.memory_space<vmem>>, vector<8x32xf32>,
    %487 = tpu.concatenate %457, %484 in 1 : vector<8x32xf32>, vector<8x32xf32> -> vector<8x64xf32>
    %cst_148 = arith.constant dense<0.000000e+00> : vector<8x192xf32>
    %488 = tpu.matmul %487, %51, %cst_148 {dimension_numbers = #tpu.dot_dimension_numbers<[1], [0], [0], [1], [0, 0, 1, 1], [], []>} : vector<8x64xf32>, vector<64x192xf32>, vector<8x192xf32> -> vector<8x192xf32>
    %489 = vector.broadcast %52 : vector<1x192xf32> to vector<8x192xf32>
    %490 = arith.addf %488, %489 : vector<8x192xf32>
    %c56_149 = arith.constant 56 : index
    %c0_150 = arith.constant 0 : index
    %491 = vector.load %arg20[%c56_149, %c0_150] : memref<128x96xf32, #tpu.memory_space<vmem>>, vector<8x96xf32>
    %c64_151 = arith.constant 64 : index
    %c0_152 = arith.constant 0 : index
    %492 = vector.load %arg21[%c64_151, %c0_152] : memref<128x96xf32, #tpu.memory_space<vmem>>, vector<8x96xf32>
    %493 = vector.extract_strided_slice %491 {offsets = [0, 0], sizes = [8, 32], strides = [1, 1]} : vector<8x96xf32> to vector<8x32xf32>
    %494 = vector.extract_strided_slice %490 {offsets = [0, 0], sizes = [8, 32], strides = [1, 1]} : vector<8x192xf32> to vector<8x32xf32>
    %495 = arith.addf %493, %494 : vector<8x32xf32>
    %496 = arith.negf %495 : vector<8x32xf32>
    %497 = math.exp %496 : vector<8x32xf32>
    %cst_153 = arith.constant 1.000000e+00 : f32
    %498 = vector.broadcast %cst_153 : f32 to vector<8x32xf32>
    %499 = arith.addf %498, %497 : vector<8x32xf32>
    %500 = arith.divf %498, %499 : vector<8x32xf32>
    %501 = vector.extract_strided_slice %491 {offsets = [0, 32], sizes = [8, 32], strides = [1, 1]} : vector<8x96xf32> to vector<8x32xf32>
    %502 = vector.extract_strided_slice %490 {offsets = [0, 32], sizes = [8, 32], strides = [1, 1]} : vector<8x192xf32> to vector<8x32xf32>
    %503 = arith.addf %501, %502 : vector<8x32xf32>
    %504 = arith.negf %503 : vector<8x32xf32>
    %505 = math.exp %504 : vector<8x32xf32>
    %cst_154 = arith.constant 1.000000e+00 : f32
    %506 = vector.broadcast %cst_154 : f32 to vector<8x32xf32>
    %507 = arith.addf %506, %505 : vector<8x32xf32>
    %508 = arith.divf %506, %507 : vector<8x32xf32>
    %509 = vector.extract_strided_slice %491 {offsets = [0, 64], sizes = [8, 32], strides = [1, 1]} : vector<8x96xf32> to vector<8x32xf32>
    %510 = vector.extract_strided_slice %490 {offsets = [0, 64], sizes = [8, 32], strides = [1, 1]} : vector<8x192xf32> to vector<8x32xf32>
    %511 = arith.mulf %500, %510 : vector<8x32xf32>
    %512 = arith.addf %509, %511 : vector<8x32xf32>
    %513 = math.tanh %512 : vector<8x32xf32>
    %cst_155 = arith.constant 1.000000e+00 : f32
    %514 = vector.broadcast %cst_155 : f32 to vector<8x32xf32>
    %515 = arith.subf %514, %508 : vector<8x32xf32>
    %516 = arith.mulf %515, %513 : vector<8x32xf32>
    %517 = vector.extract_strided_slice %487 {offsets = [0, 0], sizes = [8, 32], strides = [1, 1]} : vector<8x64xf32> to vector<8x32xf32>
    %518 = arith.mulf %508, %517 : vector<8x32xf32>
    %519 = arith.addf %516, %518 : vector<8x32xf32>
    %520 = vector.extract_strided_slice %492 {offsets = [0, 0], sizes = [8, 32], strides = [1, 1]} : vector<8x96xf32> to vector<8x32xf32>
    %521 = vector.extract_strided_slice %490 {offsets = [0, 96], sizes = [8, 32], strides = [1, 1]} : vector<8x192xf32> to vector<8x32xf32>
    %522 = arith.addf %520, %521 : vector<8x32xf32>
    %523 = arith.negf %522 : vector<8x32xf32>
    %524 = math.exp %523 : vector<8x32xf32>
    %cst_156 = arith.constant 1.000000e+00 : f32
    %525 = vector.broadcast %cst_156 : f32 to vector<8x32xf32>
    %526 = arith.addf %525, %524 : vector<8x32xf32>
    %527 = arith.divf %525, %526 : vector<8x32xf32>
    %528 = vector.extract_strided_slice %492 {offsets = [0, 32], sizes = [8, 32], strides = [1, 1]} : vector<8x96xf32> to vector<8x32xf32>
    %529 = vector.extract_strided_slice %490 {offsets = [0, 128], sizes = [8, 32], strides = [1, 1]} : vector<8x192xf32> to vector<8x32xf32>
    %530 = arith.addf %528, %529 : vector<8x32xf32>
    %531 = arith.negf %530 : vector<8x32xf32>
    %532 = math.exp %531 : vector<8x32xf32>
    %cst_157 = arith.constant 1.000000e+00 : f32
    %533 = vector.broadcast %cst_157 : f32 to vector<8x32xf32>
    %534 = arith.addf %533, %532 : vector<8x32xf32>
    %535 = arith.divf %533, %534 : vector<8x32xf32>
    %536 = vector.extract_strided_slice %492 {offsets = [0, 64], sizes = [8, 32], strides = [1, 1]} : vector<8x96xf32> to vector<8x32xf32>
    %537 = vector.extract_strided_slice %490 {offsets = [0, 160], sizes = [8, 32], strides = [1, 1]} : vector<8x192xf32> to vector<8x32xf32>
    %538 = arith.mulf %527, %537 : vector<8x32xf32>
    %539 = arith.addf %536, %538 : vector<8x32xf32>
    %540 = math.tanh %539 : vector<8x32xf32>
    %cst_158 = arith.constant 1.000000e+00 : f32
    %541 = vector.broadcast %cst_158 : f32 to vector<8x32xf32>
    %542 = arith.subf %541, %535 : vector<8x32xf32>
    %543 = arith.mulf %542, %540 : vector<8x32xf32>
    %544 = vector.extract_strided_slice %487 {offsets = [0, 32], sizes = [8, 32], strides = [1, 1]} : vector<8x64xf32> to vector<8x32xf32>
    %545 = arith.mulf %535, %544 : vector<8x32xf32>
    %546 = arith.addf %543, %545 : vector<8x32xf32>
    %c56_159 = arith.constant 56 : index
    %c0_160 = arith.constant 0 : index
    %547 = vector.load %arg22[%c56_159, %c0_160] : memref<128x64xf32, #tpu.memory_space<vmem>>, vector<8x32xf32>
    tpu.vector_store %arg22[%c56_159, %c0_160], %519 {strides = array<i32>} : memref<128x64xf32, #tpu.memory_space<vmem>>, vector<8x32xf32>,
    %c64_161 = arith.constant 64 : index
    %c32_162 = arith.constant 32 : index
    %548 = vector.load %arg22[%c64_161, %c32_162] : memref<128x64xf32, #tpu.memory_space<vmem>>, vector<8x32xf32>
    tpu.vector_store %arg22[%c64_161, %c32_162], %546 {strides = array<i32>} : memref<128x64xf32, #tpu.memory_space<vmem>>, vector<8x32xf32>,
    %549 = tpu.concatenate %519, %546 in 1 : vector<8x32xf32>, vector<8x32xf32> -> vector<8x64xf32>
    %cst_163 = arith.constant dense<0.000000e+00> : vector<8x192xf32>
    %550 = tpu.matmul %549, %51, %cst_163 {dimension_numbers = #tpu.dot_dimension_numbers<[1], [0], [0], [1], [0, 0, 1, 1], [], []>} : vector<8x64xf32>, vector<64x192xf32>, vector<8x192xf32> -> vector<8x192xf32>
    %551 = vector.broadcast %52 : vector<1x192xf32> to vector<8x192xf32>
    %552 = arith.addf %550, %551 : vector<8x192xf32>
    %c64_164 = arith.constant 64 : index
    %c0_165 = arith.constant 0 : index
    %553 = vector.load %arg20[%c64_164, %c0_165] : memref<128x96xf32, #tpu.memory_space<vmem>>, vector<8x96xf32>
    %c56_166 = arith.constant 56 : index
    %c0_167 = arith.constant 0 : index
    %554 = vector.load %arg21[%c56_166, %c0_167] : memref<128x96xf32, #tpu.memory_space<vmem>>, vector<8x96xf32>
    %555 = vector.extract_strided_slice %553 {offsets = [0, 0], sizes = [8, 32], strides = [1, 1]} : vector<8x96xf32> to vector<8x32xf32>
    %556 = vector.extract_strided_slice %552 {offsets = [0, 0], sizes = [8, 32], strides = [1, 1]} : vector<8x192xf32> to vector<8x32xf32>
    %557 = arith.addf %555, %556 : vector<8x32xf32>
    %558 = arith.negf %557 : vector<8x32xf32>
    %559 = math.exp %558 : vector<8x32xf32>
    %cst_168 = arith.constant 1.000000e+00 : f32
    %560 = vector.broadcast %cst_168 : f32 to vector<8x32xf32>
    %561 = arith.addf %560, %559 : vector<8x32xf32>
    %562 = arith.divf %560, %561 : vector<8x32xf32>
    %563 = vector.extract_strided_slice %553 {offsets = [0, 32], sizes = [8, 32], strides = [1, 1]} : vector<8x96xf32> to vector<8x32xf32>
    %564 = vector.extract_strided_slice %552 {offsets = [0, 32], sizes = [8, 32], strides = [1, 1]} : vector<8x192xf32> to vector<8x32xf32>
    %565 = arith.addf %563, %564 : vector<8x32xf32>
    %566 = arith.negf %565 : vector<8x32xf32>
    %567 = math.exp %566 : vector<8x32xf32>
    %cst_169 = arith.constant 1.000000e+00 : f32
    %568 = vector.broadcast %cst_169 : f32 to vector<8x32xf32>
    %569 = arith.addf %568, %567 : vector<8x32xf32>
    %570 = arith.divf %568, %569 : vector<8x32xf32>
    %571 = vector.extract_strided_slice %553 {offsets = [0, 64], sizes = [8, 32], strides = [1, 1]} : vector<8x96xf32> to vector<8x32xf32>
    %572 = vector.extract_strided_slice %552 {offsets = [0, 64], sizes = [8, 32], strides = [1, 1]} : vector<8x192xf32> to vector<8x32xf32>
    %573 = arith.mulf %562, %572 : vector<8x32xf32>
    %574 = arith.addf %571, %573 : vector<8x32xf32>
    %575 = math.tanh %574 : vector<8x32xf32>
    %cst_170 = arith.constant 1.000000e+00 : f32
    %576 = vector.broadcast %cst_170 : f32 to vector<8x32xf32>
    %577 = arith.subf %576, %570 : vector<8x32xf32>
    %578 = arith.mulf %577, %575 : vector<8x32xf32>
    %579 = vector.extract_strided_slice %549 {offsets = [0, 0], sizes = [8, 32], strides = [1, 1]} : vector<8x64xf32> to vector<8x32xf32>
    %580 = arith.mulf %570, %579 : vector<8x32xf32>
    %581 = arith.addf %578, %580 : vector<8x32xf32>
    %582 = vector.extract_strided_slice %554 {offsets = [0, 0], sizes = [8, 32], strides = [1, 1]} : vector<8x96xf32> to vector<8x32xf32>
    %583 = vector.extract_strided_slice %552 {offsets = [0, 96], sizes = [8, 32], strides = [1, 1]} : vector<8x192xf32> to vector<8x32xf32>
    %584 = arith.addf %582, %583 : vector<8x32xf32>
    %585 = arith.negf %584 : vector<8x32xf32>
    %586 = math.exp %585 : vector<8x32xf32>
    %cst_171 = arith.constant 1.000000e+00 : f32
    %587 = vector.broadcast %cst_171 : f32 to vector<8x32xf32>
    %588 = arith.addf %587, %586 : vector<8x32xf32>
    %589 = arith.divf %587, %588 : vector<8x32xf32>
    %590 = vector.extract_strided_slice %554 {offsets = [0, 32], sizes = [8, 32], strides = [1, 1]} : vector<8x96xf32> to vector<8x32xf32>
    %591 = vector.extract_strided_slice %552 {offsets = [0, 128], sizes = [8, 32], strides = [1, 1]} : vector<8x192xf32> to vector<8x32xf32>
    %592 = arith.addf %590, %591 : vector<8x32xf32>
    %593 = arith.negf %592 : vector<8x32xf32>
    %594 = math.exp %593 : vector<8x32xf32>
    %cst_172 = arith.constant 1.000000e+00 : f32
    %595 = vector.broadcast %cst_172 : f32 to vector<8x32xf32>
    %596 = arith.addf %595, %594 : vector<8x32xf32>
    %597 = arith.divf %595, %596 : vector<8x32xf32>
    %598 = vector.extract_strided_slice %554 {offsets = [0, 64], sizes = [8, 32], strides = [1, 1]} : vector<8x96xf32> to vector<8x32xf32>
    %599 = vector.extract_strided_slice %552 {offsets = [0, 160], sizes = [8, 32], strides = [1, 1]} : vector<8x192xf32> to vector<8x32xf32>
    %600 = arith.mulf %589, %599 : vector<8x32xf32>
    %601 = arith.addf %598, %600 : vector<8x32xf32>
    %602 = math.tanh %601 : vector<8x32xf32>
    %cst_173 = arith.constant 1.000000e+00 : f32
    %603 = vector.broadcast %cst_173 : f32 to vector<8x32xf32>
    %604 = arith.subf %603, %597 : vector<8x32xf32>
    %605 = arith.mulf %604, %602 : vector<8x32xf32>
    %606 = vector.extract_strided_slice %549 {offsets = [0, 32], sizes = [8, 32], strides = [1, 1]} : vector<8x64xf32> to vector<8x32xf32>
    %607 = arith.mulf %597, %606 : vector<8x32xf32>
    %608 = arith.addf %605, %607 : vector<8x32xf32>
    %c64_174 = arith.constant 64 : index
    %c0_175 = arith.constant 0 : index
    %609 = vector.load %arg22[%c64_174, %c0_175] : memref<128x64xf32, #tpu.memory_space<vmem>>, vector<8x32xf32>
    tpu.vector_store %arg22[%c64_174, %c0_175], %581 {strides = array<i32>} : memref<128x64xf32, #tpu.memory_space<vmem>>, vector<8x32xf32>,
    %c56_176 = arith.constant 56 : index
    %c32_177 = arith.constant 32 : index
    %610 = vector.load %arg22[%c56_176, %c32_177] : memref<128x64xf32, #tpu.memory_space<vmem>>, vector<8x32xf32>
    tpu.vector_store %arg22[%c56_176, %c32_177], %608 {strides = array<i32>} : memref<128x64xf32, #tpu.memory_space<vmem>>, vector<8x32xf32>,
    %611 = tpu.concatenate %581, %608 in 1 : vector<8x32xf32>, vector<8x32xf32> -> vector<8x64xf32>
    %cst_178 = arith.constant dense<0.000000e+00> : vector<8x192xf32>
    %612 = tpu.matmul %611, %51, %cst_178 {dimension_numbers = #tpu.dot_dimension_numbers<[1], [0], [0], [1], [0, 0, 1, 1], [], []>} : vector<8x64xf32>, vector<64x192xf32>, vector<8x192xf32> -> vector<8x192xf32>
    %613 = vector.broadcast %52 : vector<1x192xf32> to vector<8x192xf32>
    %614 = arith.addf %612, %613 : vector<8x192xf32>
    %c72_179 = arith.constant 72 : index
    %c0_180 = arith.constant 0 : index
    %615 = vector.load %arg20[%c72_179, %c0_180] : memref<128x96xf32, #tpu.memory_space<vmem>>, vector<8x96xf32>
    %c48_181 = arith.constant 48 : index
    %c0_182 = arith.constant 0 : index
    %616 = vector.load %arg21[%c48_181, %c0_182] : memref<128x96xf32, #tpu.memory_space<vmem>>, vector<8x96xf32>
    %617 = vector.extract_strided_slice %615 {offsets = [0, 0], sizes = [8, 32], strides = [1, 1]} : vector<8x96xf32> to vector<8x32xf32>
    %618 = vector.extract_strided_slice %614 {offsets = [0, 0], sizes = [8, 32], strides = [1, 1]} : vector<8x192xf32> to vector<8x32xf32>
    %619 = arith.addf %617, %618 : vector<8x32xf32>
    %620 = arith.negf %619 : vector<8x32xf32>
    %621 = math.exp %620 : vector<8x32xf32>
    %cst_183 = arith.constant 1.000000e+00 : f32
    %622 = vector.broadcast %cst_183 : f32 to vector<8x32xf32>
    %623 = arith.addf %622, %621 : vector<8x32xf32>
    %624 = arith.divf %622, %623 : vector<8x32xf32>
    %625 = vector.extract_strided_slice %615 {offsets = [0, 32], sizes = [8, 32], strides = [1, 1]} : vector<8x96xf32> to vector<8x32xf32>
    %626 = vector.extract_strided_slice %614 {offsets = [0, 32], sizes = [8, 32], strides = [1, 1]} : vector<8x192xf32> to vector<8x32xf32>
    %627 = arith.addf %625, %626 : vector<8x32xf32>
    %628 = arith.negf %627 : vector<8x32xf32>
    %629 = math.exp %628 : vector<8x32xf32>
    %cst_184 = arith.constant 1.000000e+00 : f32
    %630 = vector.broadcast %cst_184 : f32 to vector<8x32xf32>
    %631 = arith.addf %630, %629 : vector<8x32xf32>
    %632 = arith.divf %630, %631 : vector<8x32xf32>
    %633 = vector.extract_strided_slice %615 {offsets = [0, 64], sizes = [8, 32], strides = [1, 1]} : vector<8x96xf32> to vector<8x32xf32>
    %634 = vector.extract_strided_slice %614 {offsets = [0, 64], sizes = [8, 32], strides = [1, 1]} : vector<8x192xf32> to vector<8x32xf32>
    %635 = arith.mulf %624, %634 : vector<8x32xf32>
    %636 = arith.addf %633, %635 : vector<8x32xf32>
    %637 = math.tanh %636 : vector<8x32xf32>
    %cst_185 = arith.constant 1.000000e+00 : f32
    %638 = vector.broadcast %cst_185 : f32 to vector<8x32xf32>
    %639 = arith.subf %638, %632 : vector<8x32xf32>
    %640 = arith.mulf %639, %637 : vector<8x32xf32>
    %641 = vector.extract_strided_slice %611 {offsets = [0, 0], sizes = [8, 32], strides = [1, 1]} : vector<8x64xf32> to vector<8x32xf32>
    %642 = arith.mulf %632, %641 : vector<8x32xf32>
    %643 = arith.addf %640, %642 : vector<8x32xf32>
    %644 = vector.extract_strided_slice %616 {offsets = [0, 0], sizes = [8, 32], strides = [1, 1]} : vector<8x96xf32> to vector<8x32xf32>
    %645 = vector.extract_strided_slice %614 {offsets = [0, 96], sizes = [8, 32], strides = [1, 1]} : vector<8x192xf32> to vector<8x32xf32>
    %646 = arith.addf %644, %645 : vector<8x32xf32>
    %647 = arith.negf %646 : vector<8x32xf32>
    %648 = math.exp %647 : vector<8x32xf32>
    %cst_186 = arith.constant 1.000000e+00 : f32
    %649 = vector.broadcast %cst_186 : f32 to vector<8x32xf32>
    %650 = arith.addf %649, %648 : vector<8x32xf32>
    %651 = arith.divf %649, %650 : vector<8x32xf32>
    %652 = vector.extract_strided_slice %616 {offsets = [0, 32], sizes = [8, 32], strides = [1, 1]} : vector<8x96xf32> to vector<8x32xf32>
    %653 = vector.extract_strided_slice %614 {offsets = [0, 128], sizes = [8, 32], strides = [1, 1]} : vector<8x192xf32> to vector<8x32xf32>
    %654 = arith.addf %652, %653 : vector<8x32xf32>
    %655 = arith.negf %654 : vector<8x32xf32>
    %656 = math.exp %655 : vector<8x32xf32>
    %cst_187 = arith.constant 1.000000e+00 : f32
    %657 = vector.broadcast %cst_187 : f32 to vector<8x32xf32>
    %658 = arith.addf %657, %656 : vector<8x32xf32>
    %659 = arith.divf %657, %658 : vector<8x32xf32>
    %660 = vector.extract_strided_slice %616 {offsets = [0, 64], sizes = [8, 32], strides = [1, 1]} : vector<8x96xf32> to vector<8x32xf32>
    %661 = vector.extract_strided_slice %614 {offsets = [0, 160], sizes = [8, 32], strides = [1, 1]} : vector<8x192xf32> to vector<8x32xf32>
    %662 = arith.mulf %651, %661 : vector<8x32xf32>
    %663 = arith.addf %660, %662 : vector<8x32xf32>
    %664 = math.tanh %663 : vector<8x32xf32>
    %cst_188 = arith.constant 1.000000e+00 : f32
    %665 = vector.broadcast %cst_188 : f32 to vector<8x32xf32>
    %666 = arith.subf %665, %659 : vector<8x32xf32>
    %667 = arith.mulf %666, %664 : vector<8x32xf32>
    %668 = vector.extract_strided_slice %611 {offsets = [0, 32], sizes = [8, 32], strides = [1, 1]} : vector<8x64xf32> to vector<8x32xf32>
    %669 = arith.mulf %659, %668 : vector<8x32xf32>
    %670 = arith.addf %667, %669 : vector<8x32xf32>
    %c72_189 = arith.constant 72 : index
    %c0_190 = arith.constant 0 : index
    %671 = vector.load %arg22[%c72_189, %c0_190] : memref<128x64xf32, #tpu.memory_space<vmem>>, vector<8x32xf32>
    tpu.vector_store %arg22[%c72_189, %c0_190], %643 {strides = array<i32>} : memref<128x64xf32, #tpu.memory_space<vmem>>, vector<8x32xf32>,
    %c48_191 = arith.constant 48 : index
    %c32_192 = arith.constant 32 : index
    %672 = vector.load %arg22[%c48_191, %c32_192] : memref<128x64xf32, #tpu.memory_space<vmem>>, vector<8x32xf32>
    tpu.vector_store %arg22[%c48_191, %c32_192], %670 {strides = array<i32>} : memref<128x64xf32, #tpu.memory_space<vmem>>, vector<8x32xf32>,
    %673 = tpu.concatenate %643, %670 in 1 : vector<8x32xf32>, vector<8x32xf32> -> vector<8x64xf32>
    %cst_193 = arith.constant dense<0.000000e+00> : vector<8x192xf32>
    %674 = tpu.matmul %673, %51, %cst_193 {dimension_numbers = #tpu.dot_dimension_numbers<[1], [0], [0], [1], [0, 0, 1, 1], [], []>} : vector<8x64xf32>, vector<64x192xf32>, vector<8x192xf32> -> vector<8x192xf32>
    %675 = vector.broadcast %52 : vector<1x192xf32> to vector<8x192xf32>
    %676 = arith.addf %674, %675 : vector<8x192xf32>
    %c80_194 = arith.constant 80 : index
    %c0_195 = arith.constant 0 : index
    %677 = vector.load %arg20[%c80_194, %c0_195] : memref<128x96xf32, #tpu.memory_space<vmem>>, vector<8x96xf32>
    %c40_196 = arith.constant 40 : index
    %c0_197 = arith.constant 0 : index
    %678 = vector.load %arg21[%c40_196, %c0_197] : memref<128x96xf32, #tpu.memory_space<vmem>>, vector<8x96xf32>
    %679 = vector.extract_strided_slice %677 {offsets = [0, 0], sizes = [8, 32], strides = [1, 1]} : vector<8x96xf32> to vector<8x32xf32>
    %680 = vector.extract_strided_slice %676 {offsets = [0, 0], sizes = [8, 32], strides = [1, 1]} : vector<8x192xf32> to vector<8x32xf32>
    %681 = arith.addf %679, %680 : vector<8x32xf32>
    %682 = arith.negf %681 : vector<8x32xf32>
    %683 = math.exp %682 : vector<8x32xf32>
    %cst_198 = arith.constant 1.000000e+00 : f32
    %684 = vector.broadcast %cst_198 : f32 to vector<8x32xf32>
    %685 = arith.addf %684, %683 : vector<8x32xf32>
    %686 = arith.divf %684, %685 : vector<8x32xf32>
    %687 = vector.extract_strided_slice %677 {offsets = [0, 32], sizes = [8, 32], strides = [1, 1]} : vector<8x96xf32> to vector<8x32xf32>
    %688 = vector.extract_strided_slice %676 {offsets = [0, 32], sizes = [8, 32], strides = [1, 1]} : vector<8x192xf32> to vector<8x32xf32>
    %689 = arith.addf %687, %688 : vector<8x32xf32>
    %690 = arith.negf %689 : vector<8x32xf32>
    %691 = math.exp %690 : vector<8x32xf32>
    %cst_199 = arith.constant 1.000000e+00 : f32
    %692 = vector.broadcast %cst_199 : f32 to vector<8x32xf32>
    %693 = arith.addf %692, %691 : vector<8x32xf32>
    %694 = arith.divf %692, %693 : vector<8x32xf32>
    %695 = vector.extract_strided_slice %677 {offsets = [0, 64], sizes = [8, 32], strides = [1, 1]} : vector<8x96xf32> to vector<8x32xf32>
    %696 = vector.extract_strided_slice %676 {offsets = [0, 64], sizes = [8, 32], strides = [1, 1]} : vector<8x192xf32> to vector<8x32xf32>
    %697 = arith.mulf %686, %696 : vector<8x32xf32>
    %698 = arith.addf %695, %697 : vector<8x32xf32>
    %699 = math.tanh %698 : vector<8x32xf32>
    %cst_200 = arith.constant 1.000000e+00 : f32
    %700 = vector.broadcast %cst_200 : f32 to vector<8x32xf32>
    %701 = arith.subf %700, %694 : vector<8x32xf32>
    %702 = arith.mulf %701, %699 : vector<8x32xf32>
    %703 = vector.extract_strided_slice %673 {offsets = [0, 0], sizes = [8, 32], strides = [1, 1]} : vector<8x64xf32> to vector<8x32xf32>
    %704 = arith.mulf %694, %703 : vector<8x32xf32>
    %705 = arith.addf %702, %704 : vector<8x32xf32>
    %706 = vector.extract_strided_slice %678 {offsets = [0, 0], sizes = [8, 32], strides = [1, 1]} : vector<8x96xf32> to vector<8x32xf32>
    %707 = vector.extract_strided_slice %676 {offsets = [0, 96], sizes = [8, 32], strides = [1, 1]} : vector<8x192xf32> to vector<8x32xf32>
    %708 = arith.addf %706, %707 : vector<8x32xf32>
    %709 = arith.negf %708 : vector<8x32xf32>
    %710 = math.exp %709 : vector<8x32xf32>
    %cst_201 = arith.constant 1.000000e+00 : f32
    %711 = vector.broadcast %cst_201 : f32 to vector<8x32xf32>
    %712 = arith.addf %711, %710 : vector<8x32xf32>
    %713 = arith.divf %711, %712 : vector<8x32xf32>
    %714 = vector.extract_strided_slice %678 {offsets = [0, 32], sizes = [8, 32], strides = [1, 1]} : vector<8x96xf32> to vector<8x32xf32>
    %715 = vector.extract_strided_slice %676 {offsets = [0, 128], sizes = [8, 32], strides = [1, 1]} : vector<8x192xf32> to vector<8x32xf32>
    %716 = arith.addf %714, %715 : vector<8x32xf32>
    %717 = arith.negf %716 : vector<8x32xf32>
    %718 = math.exp %717 : vector<8x32xf32>
    %cst_202 = arith.constant 1.000000e+00 : f32
    %719 = vector.broadcast %cst_202 : f32 to vector<8x32xf32>
    %720 = arith.addf %719, %718 : vector<8x32xf32>
    %721 = arith.divf %719, %720 : vector<8x32xf32>
    %722 = vector.extract_strided_slice %678 {offsets = [0, 64], sizes = [8, 32], strides = [1, 1]} : vector<8x96xf32> to vector<8x32xf32>
    %723 = vector.extract_strided_slice %676 {offsets = [0, 160], sizes = [8, 32], strides = [1, 1]} : vector<8x192xf32> to vector<8x32xf32>
    %724 = arith.mulf %713, %723 : vector<8x32xf32>
    %725 = arith.addf %722, %724 : vector<8x32xf32>
    %726 = math.tanh %725 : vector<8x32xf32>
    %cst_203 = arith.constant 1.000000e+00 : f32
    %727 = vector.broadcast %cst_203 : f32 to vector<8x32xf32>
    %728 = arith.subf %727, %721 : vector<8x32xf32>
    %729 = arith.mulf %728, %726 : vector<8x32xf32>
    %730 = vector.extract_strided_slice %673 {offsets = [0, 32], sizes = [8, 32], strides = [1, 1]} : vector<8x64xf32> to vector<8x32xf32>
    %731 = arith.mulf %721, %730 : vector<8x32xf32>
    %732 = arith.addf %729, %731 : vector<8x32xf32>
    %c80_204 = arith.constant 80 : index
    %c0_205 = arith.constant 0 : index
    %733 = vector.load %arg22[%c80_204, %c0_205] : memref<128x64xf32, #tpu.memory_space<vmem>>, vector<8x32xf32>
    tpu.vector_store %arg22[%c80_204, %c0_205], %705 {strides = array<i32>} : memref<128x64xf32, #tpu.memory_space<vmem>>, vector<8x32xf32>,
    %c40_206 = arith.constant 40 : index
    %c32_207 = arith.constant 32 : index
    %734 = vector.load %arg22[%c40_206, %c32_207] : memref<128x64xf32, #tpu.memory_space<vmem>>, vector<8x32xf32>
    tpu.vector_store %arg22[%c40_206, %c32_207], %732 {strides = array<i32>} : memref<128x64xf32, #tpu.memory_space<vmem>>, vector<8x32xf32>,
    %735 = tpu.concatenate %705, %732 in 1 : vector<8x32xf32>, vector<8x32xf32> -> vector<8x64xf32>
    %cst_208 = arith.constant dense<0.000000e+00> : vector<8x192xf32>
    %736 = tpu.matmul %735, %51, %cst_208 {dimension_numbers = #tpu.dot_dimension_numbers<[1], [0], [0], [1], [0, 0, 1, 1], [], []>} : vector<8x64xf32>, vector<64x192xf32>, vector<8x192xf32> -> vector<8x192xf32>
    %737 = vector.broadcast %52 : vector<1x192xf32> to vector<8x192xf32>
    %738 = arith.addf %736, %737 : vector<8x192xf32>
    %c88_209 = arith.constant 88 : index
    %c0_210 = arith.constant 0 : index
    %739 = vector.load %arg20[%c88_209, %c0_210] : memref<128x96xf32, #tpu.memory_space<vmem>>, vector<8x96xf32>
    %c32_211 = arith.constant 32 : index
    %c0_212 = arith.constant 0 : index
    %740 = vector.load %arg21[%c32_211, %c0_212] : memref<128x96xf32, #tpu.memory_space<vmem>>, vector<8x96xf32>
    %741 = vector.extract_strided_slice %739 {offsets = [0, 0], sizes = [8, 32], strides = [1, 1]} : vector<8x96xf32> to vector<8x32xf32>
    %742 = vector.extract_strided_slice %738 {offsets = [0, 0], sizes = [8, 32], strides = [1, 1]} : vector<8x192xf32> to vector<8x32xf32>
    %743 = arith.addf %741, %742 : vector<8x32xf32>
    %744 = arith.negf %743 : vector<8x32xf32>
    %745 = math.exp %744 : vector<8x32xf32>
    %cst_213 = arith.constant 1.000000e+00 : f32
    %746 = vector.broadcast %cst_213 : f32 to vector<8x32xf32>
    %747 = arith.addf %746, %745 : vector<8x32xf32>
    %748 = arith.divf %746, %747 : vector<8x32xf32>
    %749 = vector.extract_strided_slice %739 {offsets = [0, 32], sizes = [8, 32], strides = [1, 1]} : vector<8x96xf32> to vector<8x32xf32>
    %750 = vector.extract_strided_slice %738 {offsets = [0, 32], sizes = [8, 32], strides = [1, 1]} : vector<8x192xf32> to vector<8x32xf32>
    %751 = arith.addf %749, %750 : vector<8x32xf32>
    %752 = arith.negf %751 : vector<8x32xf32>
    %753 = math.exp %752 : vector<8x32xf32>
    %cst_214 = arith.constant 1.000000e+00 : f32
    %754 = vector.broadcast %cst_214 : f32 to vector<8x32xf32>
    %755 = arith.addf %754, %753 : vector<8x32xf32>
    %756 = arith.divf %754, %755 : vector<8x32xf32>
    %757 = vector.extract_strided_slice %739 {offsets = [0, 64], sizes = [8, 32], strides = [1, 1]} : vector<8x96xf32> to vector<8x32xf32>
    %758 = vector.extract_strided_slice %738 {offsets = [0, 64], sizes = [8, 32], strides = [1, 1]} : vector<8x192xf32> to vector<8x32xf32>
    %759 = arith.mulf %748, %758 : vector<8x32xf32>
    %760 = arith.addf %757, %759 : vector<8x32xf32>
    %761 = math.tanh %760 : vector<8x32xf32>
    %cst_215 = arith.constant 1.000000e+00 : f32
    %762 = vector.broadcast %cst_215 : f32 to vector<8x32xf32>
    %763 = arith.subf %762, %756 : vector<8x32xf32>
    %764 = arith.mulf %763, %761 : vector<8x32xf32>
    %765 = vector.extract_strided_slice %735 {offsets = [0, 0], sizes = [8, 32], strides = [1, 1]} : vector<8x64xf32> to vector<8x32xf32>
    %766 = arith.mulf %756, %765 : vector<8x32xf32>
    %767 = arith.addf %764, %766 : vector<8x32xf32>
    %768 = vector.extract_strided_slice %740 {offsets = [0, 0], sizes = [8, 32], strides = [1, 1]} : vector<8x96xf32> to vector<8x32xf32>
    %769 = vector.extract_strided_slice %738 {offsets = [0, 96], sizes = [8, 32], strides = [1, 1]} : vector<8x192xf32> to vector<8x32xf32>
    %770 = arith.addf %768, %769 : vector<8x32xf32>
    %771 = arith.negf %770 : vector<8x32xf32>
    %772 = math.exp %771 : vector<8x32xf32>
    %cst_216 = arith.constant 1.000000e+00 : f32
    %773 = vector.broadcast %cst_216 : f32 to vector<8x32xf32>
    %774 = arith.addf %773, %772 : vector<8x32xf32>
    %775 = arith.divf %773, %774 : vector<8x32xf32>
    %776 = vector.extract_strided_slice %740 {offsets = [0, 32], sizes = [8, 32], strides = [1, 1]} : vector<8x96xf32> to vector<8x32xf32>
    %777 = vector.extract_strided_slice %738 {offsets = [0, 128], sizes = [8, 32], strides = [1, 1]} : vector<8x192xf32> to vector<8x32xf32>
    %778 = arith.addf %776, %777 : vector<8x32xf32>
    %779 = arith.negf %778 : vector<8x32xf32>
    %780 = math.exp %779 : vector<8x32xf32>
    %cst_217 = arith.constant 1.000000e+00 : f32
    %781 = vector.broadcast %cst_217 : f32 to vector<8x32xf32>
    %782 = arith.addf %781, %780 : vector<8x32xf32>
    %783 = arith.divf %781, %782 : vector<8x32xf32>
    %784 = vector.extract_strided_slice %740 {offsets = [0, 64], sizes = [8, 32], strides = [1, 1]} : vector<8x96xf32> to vector<8x32xf32>
    %785 = vector.extract_strided_slice %738 {offsets = [0, 160], sizes = [8, 32], strides = [1, 1]} : vector<8x192xf32> to vector<8x32xf32>
    %786 = arith.mulf %775, %785 : vector<8x32xf32>
    %787 = arith.addf %784, %786 : vector<8x32xf32>
    %788 = math.tanh %787 : vector<8x32xf32>
    %cst_218 = arith.constant 1.000000e+00 : f32
    %789 = vector.broadcast %cst_218 : f32 to vector<8x32xf32>
    %790 = arith.subf %789, %783 : vector<8x32xf32>
    %791 = arith.mulf %790, %788 : vector<8x32xf32>
    %792 = vector.extract_strided_slice %735 {offsets = [0, 32], sizes = [8, 32], strides = [1, 1]} : vector<8x64xf32> to vector<8x32xf32>
    %793 = arith.mulf %783, %792 : vector<8x32xf32>
    %794 = arith.addf %791, %793 : vector<8x32xf32>
    %c88_219 = arith.constant 88 : index
    %c0_220 = arith.constant 0 : index
    %795 = vector.load %arg22[%c88_219, %c0_220] : memref<128x64xf32, #tpu.memory_space<vmem>>, vector<8x32xf32>
    tpu.vector_store %arg22[%c88_219, %c0_220], %767 {strides = array<i32>} : memref<128x64xf32, #tpu.memory_space<vmem>>, vector<8x32xf32>,
    %c32_221 = arith.constant 32 : index
    %c32_222 = arith.constant 32 : index
    %796 = vector.load %arg22[%c32_221, %c32_222] : memref<128x64xf32, #tpu.memory_space<vmem>>, vector<8x32xf32>
    tpu.vector_store %arg22[%c32_221, %c32_222], %794 {strides = array<i32>} : memref<128x64xf32, #tpu.memory_space<vmem>>, vector<8x32xf32>,
    %797 = tpu.concatenate %767, %794 in 1 : vector<8x32xf32>, vector<8x32xf32> -> vector<8x64xf32>
    %cst_223 = arith.constant dense<0.000000e+00> : vector<8x192xf32>
    %798 = tpu.matmul %797, %51, %cst_223 {dimension_numbers = #tpu.dot_dimension_numbers<[1], [0], [0], [1], [0, 0, 1, 1], [], []>} : vector<8x64xf32>, vector<64x192xf32>, vector<8x192xf32> -> vector<8x192xf32>
    %799 = vector.broadcast %52 : vector<1x192xf32> to vector<8x192xf32>
    %800 = arith.addf %798, %799 : vector<8x192xf32>
    %c96_224 = arith.constant 96 : index
    %c0_225 = arith.constant 0 : index
    %801 = vector.load %arg20[%c96_224, %c0_225] : memref<128x96xf32, #tpu.memory_space<vmem>>, vector<8x96xf32>
    %c24_226 = arith.constant 24 : index
    %c0_227 = arith.constant 0 : index
    %802 = vector.load %arg21[%c24_226, %c0_227] : memref<128x96xf32, #tpu.memory_space<vmem>>, vector<8x96xf32>
    %803 = vector.extract_strided_slice %801 {offsets = [0, 0], sizes = [8, 32], strides = [1, 1]} : vector<8x96xf32> to vector<8x32xf32>
    %804 = vector.extract_strided_slice %800 {offsets = [0, 0], sizes = [8, 32], strides = [1, 1]} : vector<8x192xf32> to vector<8x32xf32>
    %805 = arith.addf %803, %804 : vector<8x32xf32>
    %806 = arith.negf %805 : vector<8x32xf32>
    %807 = math.exp %806 : vector<8x32xf32>
    %cst_228 = arith.constant 1.000000e+00 : f32
    %808 = vector.broadcast %cst_228 : f32 to vector<8x32xf32>
    %809 = arith.addf %808, %807 : vector<8x32xf32>
    %810 = arith.divf %808, %809 : vector<8x32xf32>
    %811 = vector.extract_strided_slice %801 {offsets = [0, 32], sizes = [8, 32], strides = [1, 1]} : vector<8x96xf32> to vector<8x32xf32>
    %812 = vector.extract_strided_slice %800 {offsets = [0, 32], sizes = [8, 32], strides = [1, 1]} : vector<8x192xf32> to vector<8x32xf32>
    %813 = arith.addf %811, %812 : vector<8x32xf32>
    %814 = arith.negf %813 : vector<8x32xf32>
    %815 = math.exp %814 : vector<8x32xf32>
    %cst_229 = arith.constant 1.000000e+00 : f32
    %816 = vector.broadcast %cst_229 : f32 to vector<8x32xf32>
    %817 = arith.addf %816, %815 : vector<8x32xf32>
    %818 = arith.divf %816, %817 : vector<8x32xf32>
    %819 = vector.extract_strided_slice %801 {offsets = [0, 64], sizes = [8, 32], strides = [1, 1]} : vector<8x96xf32> to vector<8x32xf32>
    %820 = vector.extract_strided_slice %800 {offsets = [0, 64], sizes = [8, 32], strides = [1, 1]} : vector<8x192xf32> to vector<8x32xf32>
    %821 = arith.mulf %810, %820 : vector<8x32xf32>
    %822 = arith.addf %819, %821 : vector<8x32xf32>
    %823 = math.tanh %822 : vector<8x32xf32>
    %cst_230 = arith.constant 1.000000e+00 : f32
    %824 = vector.broadcast %cst_230 : f32 to vector<8x32xf32>
    %825 = arith.subf %824, %818 : vector<8x32xf32>
    %826 = arith.mulf %825, %823 : vector<8x32xf32>
    %827 = vector.extract_strided_slice %797 {offsets = [0, 0], sizes = [8, 32], strides = [1, 1]} : vector<8x64xf32> to vector<8x32xf32>
    %828 = arith.mulf %818, %827 : vector<8x32xf32>
    %829 = arith.addf %826, %828 : vector<8x32xf32>
    %830 = vector.extract_strided_slice %802 {offsets = [0, 0], sizes = [8, 32], strides = [1, 1]} : vector<8x96xf32> to vector<8x32xf32>
    %831 = vector.extract_strided_slice %800 {offsets = [0, 96], sizes = [8, 32], strides = [1, 1]} : vector<8x192xf32> to vector<8x32xf32>
    %832 = arith.addf %830, %831 : vector<8x32xf32>
    %833 = arith.negf %832 : vector<8x32xf32>
    %834 = math.exp %833 : vector<8x32xf32>
    %cst_231 = arith.constant 1.000000e+00 : f32
    %835 = vector.broadcast %cst_231 : f32 to vector<8x32xf32>
    %836 = arith.addf %835, %834 : vector<8x32xf32>
    %837 = arith.divf %835, %836 : vector<8x32xf32>
    %838 = vector.extract_strided_slice %802 {offsets = [0, 32], sizes = [8, 32], strides = [1, 1]} : vector<8x96xf32> to vector<8x32xf32>
    %839 = vector.extract_strided_slice %800 {offsets = [0, 128], sizes = [8, 32], strides = [1, 1]} : vector<8x192xf32> to vector<8x32xf32>
    %840 = arith.addf %838, %839 : vector<8x32xf32>
    %841 = arith.negf %840 : vector<8x32xf32>
    %842 = math.exp %841 : vector<8x32xf32>
    %cst_232 = arith.constant 1.000000e+00 : f32
    %843 = vector.broadcast %cst_232 : f32 to vector<8x32xf32>
    %844 = arith.addf %843, %842 : vector<8x32xf32>
    %845 = arith.divf %843, %844 : vector<8x32xf32>
    %846 = vector.extract_strided_slice %802 {offsets = [0, 64], sizes = [8, 32], strides = [1, 1]} : vector<8x96xf32> to vector<8x32xf32>
    %847 = vector.extract_strided_slice %800 {offsets = [0, 160], sizes = [8, 32], strides = [1, 1]} : vector<8x192xf32> to vector<8x32xf32>
    %848 = arith.mulf %837, %847 : vector<8x32xf32>
    %849 = arith.addf %846, %848 : vector<8x32xf32>
    %850 = math.tanh %849 : vector<8x32xf32>
    %cst_233 = arith.constant 1.000000e+00 : f32
    %851 = vector.broadcast %cst_233 : f32 to vector<8x32xf32>
    %852 = arith.subf %851, %845 : vector<8x32xf32>
    %853 = arith.mulf %852, %850 : vector<8x32xf32>
    %854 = vector.extract_strided_slice %797 {offsets = [0, 32], sizes = [8, 32], strides = [1, 1]} : vector<8x64xf32> to vector<8x32xf32>
    %855 = arith.mulf %845, %854 : vector<8x32xf32>
    %856 = arith.addf %853, %855 : vector<8x32xf32>
    %c96_234 = arith.constant 96 : index
    %c0_235 = arith.constant 0 : index
    %857 = vector.load %arg22[%c96_234, %c0_235] : memref<128x64xf32, #tpu.memory_space<vmem>>, vector<8x32xf32>
    tpu.vector_store %arg22[%c96_234, %c0_235], %829 {strides = array<i32>} : memref<128x64xf32, #tpu.memory_space<vmem>>, vector<8x32xf32>,
    %c24_236 = arith.constant 24 : index
    %c32_237 = arith.constant 32 : index
    %858 = vector.load %arg22[%c24_236, %c32_237] : memref<128x64xf32, #tpu.memory_space<vmem>>, vector<8x32xf32>
    tpu.vector_store %arg22[%c24_236, %c32_237], %856 {strides = array<i32>} : memref<128x64xf32, #tpu.memory_space<vmem>>, vector<8x32xf32>,
    %859 = tpu.concatenate %829, %856 in 1 : vector<8x32xf32>, vector<8x32xf32> -> vector<8x64xf32>
    %cst_238 = arith.constant dense<0.000000e+00> : vector<8x192xf32>
    %860 = tpu.matmul %859, %51, %cst_238 {dimension_numbers = #tpu.dot_dimension_numbers<[1], [0], [0], [1], [0, 0, 1, 1], [], []>} : vector<8x64xf32>, vector<64x192xf32>, vector<8x192xf32> -> vector<8x192xf32>
    %861 = vector.broadcast %52 : vector<1x192xf32> to vector<8x192xf32>
    %862 = arith.addf %860, %861 : vector<8x192xf32>
    %c104_239 = arith.constant 104 : index
    %c0_240 = arith.constant 0 : index
    %863 = vector.load %arg20[%c104_239, %c0_240] : memref<128x96xf32, #tpu.memory_space<vmem>>, vector<8x96xf32>
    %c16_241 = arith.constant 16 : index
    %c0_242 = arith.constant 0 : index
    %864 = vector.load %arg21[%c16_241, %c0_242] : memref<128x96xf32, #tpu.memory_space<vmem>>, vector<8x96xf32>
    %865 = vector.extract_strided_slice %863 {offsets = [0, 0], sizes = [8, 32], strides = [1, 1]} : vector<8x96xf32> to vector<8x32xf32>
    %866 = vector.extract_strided_slice %862 {offsets = [0, 0], sizes = [8, 32], strides = [1, 1]} : vector<8x192xf32> to vector<8x32xf32>
    %867 = arith.addf %865, %866 : vector<8x32xf32>
    %868 = arith.negf %867 : vector<8x32xf32>
    %869 = math.exp %868 : vector<8x32xf32>
    %cst_243 = arith.constant 1.000000e+00 : f32
    %870 = vector.broadcast %cst_243 : f32 to vector<8x32xf32>
    %871 = arith.addf %870, %869 : vector<8x32xf32>
    %872 = arith.divf %870, %871 : vector<8x32xf32>
    %873 = vector.extract_strided_slice %863 {offsets = [0, 32], sizes = [8, 32], strides = [1, 1]} : vector<8x96xf32> to vector<8x32xf32>
    %874 = vector.extract_strided_slice %862 {offsets = [0, 32], sizes = [8, 32], strides = [1, 1]} : vector<8x192xf32> to vector<8x32xf32>
    %875 = arith.addf %873, %874 : vector<8x32xf32>
    %876 = arith.negf %875 : vector<8x32xf32>
    %877 = math.exp %876 : vector<8x32xf32>
    %cst_244 = arith.constant 1.000000e+00 : f32
    %878 = vector.broadcast %cst_244 : f32 to vector<8x32xf32>
    %879 = arith.addf %878, %877 : vector<8x32xf32>
    %880 = arith.divf %878, %879 : vector<8x32xf32>
    %881 = vector.extract_strided_slice %863 {offsets = [0, 64], sizes = [8, 32], strides = [1, 1]} : vector<8x96xf32> to vector<8x32xf32>
    %882 = vector.extract_strided_slice %862 {offsets = [0, 64], sizes = [8, 32], strides = [1, 1]} : vector<8x192xf32> to vector<8x32xf32>
    %883 = arith.mulf %872, %882 : vector<8x32xf32>
    %884 = arith.addf %881, %883 : vector<8x32xf32>
    %885 = math.tanh %884 : vector<8x32xf32>
    %cst_245 = arith.constant 1.000000e+00 : f32
    %886 = vector.broadcast %cst_245 : f32 to vector<8x32xf32>
    %887 = arith.subf %886, %880 : vector<8x32xf32>
    %888 = arith.mulf %887, %885 : vector<8x32xf32>
    %889 = vector.extract_strided_slice %859 {offsets = [0, 0], sizes = [8, 32], strides = [1, 1]} : vector<8x64xf32> to vector<8x32xf32>
    %890 = arith.mulf %880, %889 : vector<8x32xf32>
    %891 = arith.addf %888, %890 : vector<8x32xf32>
    %892 = vector.extract_strided_slice %864 {offsets = [0, 0], sizes = [8, 32], strides = [1, 1]} : vector<8x96xf32> to vector<8x32xf32>
    %893 = vector.extract_strided_slice %862 {offsets = [0, 96], sizes = [8, 32], strides = [1, 1]} : vector<8x192xf32> to vector<8x32xf32>
    %894 = arith.addf %892, %893 : vector<8x32xf32>
    %895 = arith.negf %894 : vector<8x32xf32>
    %896 = math.exp %895 : vector<8x32xf32>
    %cst_246 = arith.constant 1.000000e+00 : f32
    %897 = vector.broadcast %cst_246 : f32 to vector<8x32xf32>
    %898 = arith.addf %897, %896 : vector<8x32xf32>
    %899 = arith.divf %897, %898 : vector<8x32xf32>
    %900 = vector.extract_strided_slice %864 {offsets = [0, 32], sizes = [8, 32], strides = [1, 1]} : vector<8x96xf32> to vector<8x32xf32>
    %901 = vector.extract_strided_slice %862 {offsets = [0, 128], sizes = [8, 32], strides = [1, 1]} : vector<8x192xf32> to vector<8x32xf32>
    %902 = arith.addf %900, %901 : vector<8x32xf32>
    %903 = arith.negf %902 : vector<8x32xf32>
    %904 = math.exp %903 : vector<8x32xf32>
    %cst_247 = arith.constant 1.000000e+00 : f32
    %905 = vector.broadcast %cst_247 : f32 to vector<8x32xf32>
    %906 = arith.addf %905, %904 : vector<8x32xf32>
    %907 = arith.divf %905, %906 : vector<8x32xf32>
    %908 = vector.extract_strided_slice %864 {offsets = [0, 64], sizes = [8, 32], strides = [1, 1]} : vector<8x96xf32> to vector<8x32xf32>
    %909 = vector.extract_strided_slice %862 {offsets = [0, 160], sizes = [8, 32], strides = [1, 1]} : vector<8x192xf32> to vector<8x32xf32>
    %910 = arith.mulf %899, %909 : vector<8x32xf32>
    %911 = arith.addf %908, %910 : vector<8x32xf32>
    %912 = math.tanh %911 : vector<8x32xf32>
    %cst_248 = arith.constant 1.000000e+00 : f32
    %913 = vector.broadcast %cst_248 : f32 to vector<8x32xf32>
    %914 = arith.subf %913, %907 : vector<8x32xf32>
    %915 = arith.mulf %914, %912 : vector<8x32xf32>
    %916 = vector.extract_strided_slice %859 {offsets = [0, 32], sizes = [8, 32], strides = [1, 1]} : vector<8x64xf32> to vector<8x32xf32>
    %917 = arith.mulf %907, %916 : vector<8x32xf32>
    %918 = arith.addf %915, %917 : vector<8x32xf32>
    %c104_249 = arith.constant 104 : index
    %c0_250 = arith.constant 0 : index
    %919 = vector.load %arg22[%c104_249, %c0_250] : memref<128x64xf32, #tpu.memory_space<vmem>>, vector<8x32xf32>
    tpu.vector_store %arg22[%c104_249, %c0_250], %891 {strides = array<i32>} : memref<128x64xf32, #tpu.memory_space<vmem>>, vector<8x32xf32>,
    %c16_251 = arith.constant 16 : index
    %c32_252 = arith.constant 32 : index
    %920 = vector.load %arg22[%c16_251, %c32_252] : memref<128x64xf32, #tpu.memory_space<vmem>>, vector<8x32xf32>
    tpu.vector_store %arg22[%c16_251, %c32_252], %918 {strides = array<i32>} : memref<128x64xf32, #tpu.memory_space<vmem>>, vector<8x32xf32>,
    %921 = tpu.concatenate %891, %918 in 1 : vector<8x32xf32>, vector<8x32xf32> -> vector<8x64xf32>
    %cst_253 = arith.constant dense<0.000000e+00> : vector<8x192xf32>
    %922 = tpu.matmul %921, %51, %cst_253 {dimension_numbers = #tpu.dot_dimension_numbers<[1], [0], [0], [1], [0, 0, 1, 1], [], []>} : vector<8x64xf32>, vector<64x192xf32>, vector<8x192xf32> -> vector<8x192xf32>
    %923 = vector.broadcast %52 : vector<1x192xf32> to vector<8x192xf32>
    %924 = arith.addf %922, %923 : vector<8x192xf32>
    %c112_254 = arith.constant 112 : index
    %c0_255 = arith.constant 0 : index
    %925 = vector.load %arg20[%c112_254, %c0_255] : memref<128x96xf32, #tpu.memory_space<vmem>>, vector<8x96xf32>
    %c8_256 = arith.constant 8 : index
    %c0_257 = arith.constant 0 : index
    %926 = vector.load %arg21[%c8_256, %c0_257] : memref<128x96xf32, #tpu.memory_space<vmem>>, vector<8x96xf32>
    %927 = vector.extract_strided_slice %925 {offsets = [0, 0], sizes = [8, 32], strides = [1, 1]} : vector<8x96xf32> to vector<8x32xf32>
    %928 = vector.extract_strided_slice %924 {offsets = [0, 0], sizes = [8, 32], strides = [1, 1]} : vector<8x192xf32> to vector<8x32xf32>
    %929 = arith.addf %927, %928 : vector<8x32xf32>
    %930 = arith.negf %929 : vector<8x32xf32>
    %931 = math.exp %930 : vector<8x32xf32>
    %cst_258 = arith.constant 1.000000e+00 : f32
    %932 = vector.broadcast %cst_258 : f32 to vector<8x32xf32>
    %933 = arith.addf %932, %931 : vector<8x32xf32>
    %934 = arith.divf %932, %933 : vector<8x32xf32>
    %935 = vector.extract_strided_slice %925 {offsets = [0, 32], sizes = [8, 32], strides = [1, 1]} : vector<8x96xf32> to vector<8x32xf32>
    %936 = vector.extract_strided_slice %924 {offsets = [0, 32], sizes = [8, 32], strides = [1, 1]} : vector<8x192xf32> to vector<8x32xf32>
    %937 = arith.addf %935, %936 : vector<8x32xf32>
    %938 = arith.negf %937 : vector<8x32xf32>
    %939 = math.exp %938 : vector<8x32xf32>
    %cst_259 = arith.constant 1.000000e+00 : f32
    %940 = vector.broadcast %cst_259 : f32 to vector<8x32xf32>
    %941 = arith.addf %940, %939 : vector<8x32xf32>
    %942 = arith.divf %940, %941 : vector<8x32xf32>
    %943 = vector.extract_strided_slice %925 {offsets = [0, 64], sizes = [8, 32], strides = [1, 1]} : vector<8x96xf32> to vector<8x32xf32>
    %944 = vector.extract_strided_slice %924 {offsets = [0, 64], sizes = [8, 32], strides = [1, 1]} : vector<8x192xf32> to vector<8x32xf32>
    %945 = arith.mulf %934, %944 : vector<8x32xf32>
    %946 = arith.addf %943, %945 : vector<8x32xf32>
    %947 = math.tanh %946 : vector<8x32xf32>
    %cst_260 = arith.constant 1.000000e+00 : f32
    %948 = vector.broadcast %cst_260 : f32 to vector<8x32xf32>
    %949 = arith.subf %948, %942 : vector<8x32xf32>
    %950 = arith.mulf %949, %947 : vector<8x32xf32>
    %951 = vector.extract_strided_slice %921 {offsets = [0, 0], sizes = [8, 32], strides = [1, 1]} : vector<8x64xf32> to vector<8x32xf32>
    %952 = arith.mulf %942, %951 : vector<8x32xf32>
    %953 = arith.addf %950, %952 : vector<8x32xf32>
    %954 = vector.extract_strided_slice %926 {offsets = [0, 0], sizes = [8, 32], strides = [1, 1]} : vector<8x96xf32> to vector<8x32xf32>
    %955 = vector.extract_strided_slice %924 {offsets = [0, 96], sizes = [8, 32], strides = [1, 1]} : vector<8x192xf32> to vector<8x32xf32>
    %956 = arith.addf %954, %955 : vector<8x32xf32>
    %957 = arith.negf %956 : vector<8x32xf32>
    %958 = math.exp %957 : vector<8x32xf32>
    %cst_261 = arith.constant 1.000000e+00 : f32
    %959 = vector.broadcast %cst_261 : f32 to vector<8x32xf32>
    %960 = arith.addf %959, %958 : vector<8x32xf32>
    %961 = arith.divf %959, %960 : vector<8x32xf32>
    %962 = vector.extract_strided_slice %926 {offsets = [0, 32], sizes = [8, 32], strides = [1, 1]} : vector<8x96xf32> to vector<8x32xf32>
    %963 = vector.extract_strided_slice %924 {offsets = [0, 128], sizes = [8, 32], strides = [1, 1]} : vector<8x192xf32> to vector<8x32xf32>
    %964 = arith.addf %962, %963 : vector<8x32xf32>
    %965 = arith.negf %964 : vector<8x32xf32>
    %966 = math.exp %965 : vector<8x32xf32>
    %cst_262 = arith.constant 1.000000e+00 : f32
    %967 = vector.broadcast %cst_262 : f32 to vector<8x32xf32>
    %968 = arith.addf %967, %966 : vector<8x32xf32>
    %969 = arith.divf %967, %968 : vector<8x32xf32>
    %970 = vector.extract_strided_slice %926 {offsets = [0, 64], sizes = [8, 32], strides = [1, 1]} : vector<8x96xf32> to vector<8x32xf32>
    %971 = vector.extract_strided_slice %924 {offsets = [0, 160], sizes = [8, 32], strides = [1, 1]} : vector<8x192xf32> to vector<8x32xf32>
    %972 = arith.mulf %961, %971 : vector<8x32xf32>
    %973 = arith.addf %970, %972 : vector<8x32xf32>
    %974 = math.tanh %973 : vector<8x32xf32>
    %cst_263 = arith.constant 1.000000e+00 : f32
    %975 = vector.broadcast %cst_263 : f32 to vector<8x32xf32>
    %976 = arith.subf %975, %969 : vector<8x32xf32>
    %977 = arith.mulf %976, %974 : vector<8x32xf32>
    %978 = vector.extract_strided_slice %921 {offsets = [0, 32], sizes = [8, 32], strides = [1, 1]} : vector<8x64xf32> to vector<8x32xf32>
    %979 = arith.mulf %969, %978 : vector<8x32xf32>
    %980 = arith.addf %977, %979 : vector<8x32xf32>
    %c112_264 = arith.constant 112 : index
    %c0_265 = arith.constant 0 : index
    %981 = vector.load %arg22[%c112_264, %c0_265] : memref<128x64xf32, #tpu.memory_space<vmem>>, vector<8x32xf32>
    tpu.vector_store %arg22[%c112_264, %c0_265], %953 {strides = array<i32>} : memref<128x64xf32, #tpu.memory_space<vmem>>, vector<8x32xf32>,
    %c8_266 = arith.constant 8 : index
    %c32_267 = arith.constant 32 : index
    %982 = vector.load %arg22[%c8_266, %c32_267] : memref<128x64xf32, #tpu.memory_space<vmem>>, vector<8x32xf32>
    tpu.vector_store %arg22[%c8_266, %c32_267], %980 {strides = array<i32>} : memref<128x64xf32, #tpu.memory_space<vmem>>, vector<8x32xf32>,
    %983 = tpu.concatenate %953, %980 in 1 : vector<8x32xf32>, vector<8x32xf32> -> vector<8x64xf32>
    %cst_268 = arith.constant dense<0.000000e+00> : vector<8x192xf32>
    %984 = tpu.matmul %983, %51, %cst_268 {dimension_numbers = #tpu.dot_dimension_numbers<[1], [0], [0], [1], [0, 0, 1, 1], [], []>} : vector<8x64xf32>, vector<64x192xf32>, vector<8x192xf32> -> vector<8x192xf32>
    %985 = vector.broadcast %52 : vector<1x192xf32> to vector<8x192xf32>
    %986 = arith.addf %984, %985 : vector<8x192xf32>
    %c120_269 = arith.constant 120 : index
    %c0_270 = arith.constant 0 : index
    %987 = vector.load %arg20[%c120_269, %c0_270] : memref<128x96xf32, #tpu.memory_space<vmem>>, vector<8x96xf32>
    %c0_271 = arith.constant 0 : index
    %c0_272 = arith.constant 0 : index
    %988 = vector.load %arg21[%c0_271, %c0_272] : memref<128x96xf32, #tpu.memory_space<vmem>>, vector<8x96xf32>
    %989 = vector.extract_strided_slice %987 {offsets = [0, 0], sizes = [8, 32], strides = [1, 1]} : vector<8x96xf32> to vector<8x32xf32>
    %990 = vector.extract_strided_slice %986 {offsets = [0, 0], sizes = [8, 32], strides = [1, 1]} : vector<8x192xf32> to vector<8x32xf32>
    %991 = arith.addf %989, %990 : vector<8x32xf32>
    %992 = arith.negf %991 : vector<8x32xf32>
    %993 = math.exp %992 : vector<8x32xf32>
    %cst_273 = arith.constant 1.000000e+00 : f32
    %994 = vector.broadcast %cst_273 : f32 to vector<8x32xf32>
    %995 = arith.addf %994, %993 : vector<8x32xf32>
    %996 = arith.divf %994, %995 : vector<8x32xf32>
    %997 = vector.extract_strided_slice %987 {offsets = [0, 32], sizes = [8, 32], strides = [1, 1]} : vector<8x96xf32> to vector<8x32xf32>
    %998 = vector.extract_strided_slice %986 {offsets = [0, 32], sizes = [8, 32], strides = [1, 1]} : vector<8x192xf32> to vector<8x32xf32>
    %999 = arith.addf %997, %998 : vector<8x32xf32>
    %1000 = arith.negf %999 : vector<8x32xf32>
    %1001 = math.exp %1000 : vector<8x32xf32>
    %cst_274 = arith.constant 1.000000e+00 : f32
    %1002 = vector.broadcast %cst_274 : f32 to vector<8x32xf32>
    %1003 = arith.addf %1002, %1001 : vector<8x32xf32>
    %1004 = arith.divf %1002, %1003 : vector<8x32xf32>
    %1005 = vector.extract_strided_slice %987 {offsets = [0, 64], sizes = [8, 32], strides = [1, 1]} : vector<8x96xf32> to vector<8x32xf32>
    %1006 = vector.extract_strided_slice %986 {offsets = [0, 64], sizes = [8, 32], strides = [1, 1]} : vector<8x192xf32> to vector<8x32xf32>
    %1007 = arith.mulf %996, %1006 : vector<8x32xf32>
    %1008 = arith.addf %1005, %1007 : vector<8x32xf32>
    %1009 = math.tanh %1008 : vector<8x32xf32>
    %cst_275 = arith.constant 1.000000e+00 : f32
    %1010 = vector.broadcast %cst_275 : f32 to vector<8x32xf32>
    %1011 = arith.subf %1010, %1004 : vector<8x32xf32>
    %1012 = arith.mulf %1011, %1009 : vector<8x32xf32>
    %1013 = vector.extract_strided_slice %983 {offsets = [0, 0], sizes = [8, 32], strides = [1, 1]} : vector<8x64xf32> to vector<8x32xf32>
    %1014 = arith.mulf %1004, %1013 : vector<8x32xf32>
    %1015 = arith.addf %1012, %1014 : vector<8x32xf32>
    %1016 = vector.extract_strided_slice %988 {offsets = [0, 0], sizes = [8, 32], strides = [1, 1]} : vector<8x96xf32> to vector<8x32xf32>
    %1017 = vector.extract_strided_slice %986 {offsets = [0, 96], sizes = [8, 32], strides = [1, 1]} : vector<8x192xf32> to vector<8x32xf32>
    %1018 = arith.addf %1016, %1017 : vector<8x32xf32>
    %1019 = arith.negf %1018 : vector<8x32xf32>
    %1020 = math.exp %1019 : vector<8x32xf32>
    %cst_276 = arith.constant 1.000000e+00 : f32
    %1021 = vector.broadcast %cst_276 : f32 to vector<8x32xf32>
    %1022 = arith.addf %1021, %1020 : vector<8x32xf32>
    %1023 = arith.divf %1021, %1022 : vector<8x32xf32>
    %1024 = vector.extract_strided_slice %988 {offsets = [0, 32], sizes = [8, 32], strides = [1, 1]} : vector<8x96xf32> to vector<8x32xf32>
    %1025 = vector.extract_strided_slice %986 {offsets = [0, 128], sizes = [8, 32], strides = [1, 1]} : vector<8x192xf32> to vector<8x32xf32>
    %1026 = arith.addf %1024, %1025 : vector<8x32xf32>
    %1027 = arith.negf %1026 : vector<8x32xf32>
    %1028 = math.exp %1027 : vector<8x32xf32>
    %cst_277 = arith.constant 1.000000e+00 : f32
    %1029 = vector.broadcast %cst_277 : f32 to vector<8x32xf32>
    %1030 = arith.addf %1029, %1028 : vector<8x32xf32>
    %1031 = arith.divf %1029, %1030 : vector<8x32xf32>
    %1032 = vector.extract_strided_slice %988 {offsets = [0, 64], sizes = [8, 32], strides = [1, 1]} : vector<8x96xf32> to vector<8x32xf32>
    %1033 = vector.extract_strided_slice %986 {offsets = [0, 160], sizes = [8, 32], strides = [1, 1]} : vector<8x192xf32> to vector<8x32xf32>
    %1034 = arith.mulf %1023, %1033 : vector<8x32xf32>
    %1035 = arith.addf %1032, %1034 : vector<8x32xf32>
    %1036 = math.tanh %1035 : vector<8x32xf32>
    %cst_278 = arith.constant 1.000000e+00 : f32
    %1037 = vector.broadcast %cst_278 : f32 to vector<8x32xf32>
    %1038 = arith.subf %1037, %1031 : vector<8x32xf32>
    %1039 = arith.mulf %1038, %1036 : vector<8x32xf32>
    %1040 = vector.extract_strided_slice %983 {offsets = [0, 32], sizes = [8, 32], strides = [1, 1]} : vector<8x64xf32> to vector<8x32xf32>
    %1041 = arith.mulf %1031, %1040 : vector<8x32xf32>
    %1042 = arith.addf %1039, %1041 : vector<8x32xf32>
    %c120_279 = arith.constant 120 : index
    %c0_280 = arith.constant 0 : index
    %1043 = vector.load %arg22[%c120_279, %c0_280] : memref<128x64xf32, #tpu.memory_space<vmem>>, vector<8x32xf32>
    tpu.vector_store %arg22[%c120_279, %c0_280], %1015 {strides = array<i32>} : memref<128x64xf32, #tpu.memory_space<vmem>>, vector<8x32xf32>,
    %c0_281 = arith.constant 0 : index
    %c32_282 = arith.constant 32 : index
    %1044 = vector.load %arg22[%c0_281, %c32_282] : memref<128x64xf32, #tpu.memory_space<vmem>>, vector<8x32xf32>
    tpu.vector_store %arg22[%c0_281, %c32_282], %1042 {strides = array<i32>} : memref<128x64xf32, #tpu.memory_space<vmem>>, vector<8x32xf32>,
    %c0_283 = arith.constant 0 : index
    %c0_284 = arith.constant 0 : index
    %1045 = vector.load %arg22[%c0_283, %c0_284] : memref<128x64xf32, #tpu.memory_space<vmem>>, vector<128x64xf32>
    %c0_285 = arith.constant 0 : index
    %c0_286 = arith.constant 0 : index
    %1046 = vector.load %arg10[%c0_285, %c0_286] : memref<64x96xf32, #tpu.memory_space<vmem>>, vector<64x96xf32>
    %cst_287 = arith.constant dense<0.000000e+00> : vector<128x96xf32>
    %1047 = tpu.matmul %1045, %1046, %cst_287 {dimension_numbers = #tpu.dot_dimension_numbers<[1], [0], [0], [1], [0, 0, 1, 1], [], []>} : vector<128x64xf32>, vector<64x96xf32>, vector<128x96xf32> -> vector<128x96xf32>
    %c0_288 = arith.constant 0 : index
    %c0_289 = arith.constant 0 : index
    %1048 = vector.load %arg12[%c0_288, %c0_289] : memref<1x96xf32, #tpu.memory_space<vmem>>, vector<1x96xf32>
    %1049 = vector.broadcast %1048 : vector<1x96xf32> to vector<128x96xf32>
    %1050 = arith.addf %1047, %1049 : vector<128x96xf32>
    %c0_290 = arith.constant 0 : index
    %c0_291 = arith.constant 0 : index
    %1051 = vector.load %arg20[%c0_290, %c0_291] : memref<128x96xf32, #tpu.memory_space<vmem>>, vector<128x96xf32>
    tpu.vector_store %arg20[%c0_290, %c0_291], %1050 {strides = array<i32>} : memref<128x96xf32, #tpu.memory_space<vmem>>, vector<128x96xf32>,
    %c0_292 = arith.constant 0 : index
    %c0_293 = arith.constant 0 : index
    %1052 = vector.load %arg11[%c0_292, %c0_293] : memref<64x96xf32, #tpu.memory_space<vmem>>, vector<64x96xf32>
    %cst_294 = arith.constant dense<0.000000e+00> : vector<128x96xf32>
    %1053 = tpu.matmul %1045, %1052, %cst_294 {dimension_numbers = #tpu.dot_dimension_numbers<[1], [0], [0], [1], [0, 0, 1, 1], [], []>} : vector<128x64xf32>, vector<64x96xf32>, vector<128x96xf32> -> vector<128x96xf32>
    %c0_295 = arith.constant 0 : index
    %c0_296 = arith.constant 0 : index
    %1054 = vector.load %arg13[%c0_295, %c0_296] : memref<1x96xf32, #tpu.memory_space<vmem>>, vector<1x96xf32>
    %1055 = vector.broadcast %1054 : vector<1x96xf32> to vector<128x96xf32>
    %1056 = arith.addf %1053, %1055 : vector<128x96xf32>
    %c0_297 = arith.constant 0 : index
    %c0_298 = arith.constant 0 : index
    %1057 = vector.load %arg21[%c0_297, %c0_298] : memref<128x96xf32, #tpu.memory_space<vmem>>, vector<128x96xf32>
    tpu.vector_store %arg21[%c0_297, %c0_298], %1056 {strides = array<i32>} : memref<128x96xf32, #tpu.memory_space<vmem>>, vector<128x96xf32>,
    %c0_299 = arith.constant 0 : index
    %c0_300 = arith.constant 0 : index
    %1058 = vector.load %arg14[%c0_299, %c0_300] : memref<64x192xf32, #tpu.memory_space<vmem>>, vector<64x192xf32>
    %c0_301 = arith.constant 0 : index
    %c0_302 = arith.constant 0 : index
    %1059 = vector.load %arg15[%c0_301, %c0_302] : memref<1x192xf32, #tpu.memory_space<vmem>>, vector<1x192xf32>
    %cst_303 = arith.constant 0.000000e+00 : f32
    %1060 = vector.broadcast %cst_303 : f32 to vector<8x64xf32>
    %cst_304 = arith.constant dense<0.000000e+00> : vector<8x192xf32>
    %1061 = tpu.matmul %1060, %1058, %cst_304 {dimension_numbers = #tpu.dot_dimension_numbers<[1], [0], [0], [1], [0, 0, 1, 1], [], []>} : vector<8x64xf32>, vector<64x192xf32>, vector<8x192xf32> -> vector<8x192xf32>
    %1062 = vector.broadcast %1059 : vector<1x192xf32> to vector<8x192xf32>
    %1063 = arith.addf %1061, %1062 : vector<8x192xf32>
    %c0_305 = arith.constant 0 : index
    %c0_306 = arith.constant 0 : index
    %1064 = vector.load %arg20[%c0_305, %c0_306] : memref<128x96xf32, #tpu.memory_space<vmem>>, vector<8x96xf32>
    %c120_307 = arith.constant 120 : index
    %c0_308 = arith.constant 0 : index
    %1065 = vector.load %arg21[%c120_307, %c0_308] : memref<128x96xf32, #tpu.memory_space<vmem>>, vector<8x96xf32>
    %1066 = vector.extract_strided_slice %1064 {offsets = [0, 0], sizes = [8, 32], strides = [1, 1]} : vector<8x96xf32> to vector<8x32xf32>
    %1067 = vector.extract_strided_slice %1063 {offsets = [0, 0], sizes = [8, 32], strides = [1, 1]} : vector<8x192xf32> to vector<8x32xf32>
    %1068 = arith.addf %1066, %1067 : vector<8x32xf32>
    %1069 = arith.negf %1068 : vector<8x32xf32>
    %1070 = math.exp %1069 : vector<8x32xf32>
    %cst_309 = arith.constant 1.000000e+00 : f32
    %1071 = vector.broadcast %cst_309 : f32 to vector<8x32xf32>
    %1072 = arith.addf %1071, %1070 : vector<8x32xf32>
    %1073 = arith.divf %1071, %1072 : vector<8x32xf32>
    %1074 = vector.extract_strided_slice %1064 {offsets = [0, 32], sizes = [8, 32], strides = [1, 1]} : vector<8x96xf32> to vector<8x32xf32>
    %1075 = vector.extract_strided_slice %1063 {offsets = [0, 32], sizes = [8, 32], strides = [1, 1]} : vector<8x192xf32> to vector<8x32xf32>
    %1076 = arith.addf %1074, %1075 : vector<8x32xf32>
    %1077 = arith.negf %1076 : vector<8x32xf32>
    %1078 = math.exp %1077 : vector<8x32xf32>
    %cst_310 = arith.constant 1.000000e+00 : f32
    %1079 = vector.broadcast %cst_310 : f32 to vector<8x32xf32>
    %1080 = arith.addf %1079, %1078 : vector<8x32xf32>
    %1081 = arith.divf %1079, %1080 : vector<8x32xf32>
    %1082 = vector.extract_strided_slice %1064 {offsets = [0, 64], sizes = [8, 32], strides = [1, 1]} : vector<8x96xf32> to vector<8x32xf32>
    %1083 = vector.extract_strided_slice %1063 {offsets = [0, 64], sizes = [8, 32], strides = [1, 1]} : vector<8x192xf32> to vector<8x32xf32>
    %1084 = arith.mulf %1073, %1083 : vector<8x32xf32>
    %1085 = arith.addf %1082, %1084 : vector<8x32xf32>
    %1086 = math.tanh %1085 : vector<8x32xf32>
    %cst_311 = arith.constant 1.000000e+00 : f32
    %1087 = vector.broadcast %cst_311 : f32 to vector<8x32xf32>
    %1088 = arith.subf %1087, %1081 : vector<8x32xf32>
    %1089 = arith.mulf %1088, %1086 : vector<8x32xf32>
    %1090 = vector.extract_strided_slice %1060 {offsets = [0, 0], sizes = [8, 32], strides = [1, 1]} : vector<8x64xf32> to vector<8x32xf32>
    %1091 = arith.mulf %1081, %1090 : vector<8x32xf32>
    %1092 = arith.addf %1089, %1091 : vector<8x32xf32>
    %1093 = vector.extract_strided_slice %1065 {offsets = [0, 0], sizes = [8, 32], strides = [1, 1]} : vector<8x96xf32> to vector<8x32xf32>
    %1094 = vector.extract_strided_slice %1063 {offsets = [0, 96], sizes = [8, 32], strides = [1, 1]} : vector<8x192xf32> to vector<8x32xf32>
    %1095 = arith.addf %1093, %1094 : vector<8x32xf32>
    %1096 = arith.negf %1095 : vector<8x32xf32>
    %1097 = math.exp %1096 : vector<8x32xf32>
    %cst_312 = arith.constant 1.000000e+00 : f32
    %1098 = vector.broadcast %cst_312 : f32 to vector<8x32xf32>
    %1099 = arith.addf %1098, %1097 : vector<8x32xf32>
    %1100 = arith.divf %1098, %1099 : vector<8x32xf32>
    %1101 = vector.extract_strided_slice %1065 {offsets = [0, 32], sizes = [8, 32], strides = [1, 1]} : vector<8x96xf32> to vector<8x32xf32>
    %1102 = vector.extract_strided_slice %1063 {offsets = [0, 128], sizes = [8, 32], strides = [1, 1]} : vector<8x192xf32> to vector<8x32xf32>
    %1103 = arith.addf %1101, %1102 : vector<8x32xf32>
    %1104 = arith.negf %1103 : vector<8x32xf32>
    %1105 = math.exp %1104 : vector<8x32xf32>
    %cst_313 = arith.constant 1.000000e+00 : f32
    %1106 = vector.broadcast %cst_313 : f32 to vector<8x32xf32>
    %1107 = arith.addf %1106, %1105 : vector<8x32xf32>
    %1108 = arith.divf %1106, %1107 : vector<8x32xf32>
    %1109 = vector.extract_strided_slice %1065 {offsets = [0, 64], sizes = [8, 32], strides = [1, 1]} : vector<8x96xf32> to vector<8x32xf32>
    %1110 = vector.extract_strided_slice %1063 {offsets = [0, 160], sizes = [8, 32], strides = [1, 1]} : vector<8x192xf32> to vector<8x32xf32>
    %1111 = arith.mulf %1100, %1110 : vector<8x32xf32>
    %1112 = arith.addf %1109, %1111 : vector<8x32xf32>
    %1113 = math.tanh %1112 : vector<8x32xf32>
    %cst_314 = arith.constant 1.000000e+00 : f32
    %1114 = vector.broadcast %cst_314 : f32 to vector<8x32xf32>
    %1115 = arith.subf %1114, %1108 : vector<8x32xf32>
    %1116 = arith.mulf %1115, %1113 : vector<8x32xf32>
    %1117 = vector.extract_strided_slice %1060 {offsets = [0, 32], sizes = [8, 32], strides = [1, 1]} : vector<8x64xf32> to vector<8x32xf32>
    %1118 = arith.mulf %1108, %1117 : vector<8x32xf32>
    %1119 = arith.addf %1116, %1118 : vector<8x32xf32>
    %c0_315 = arith.constant 0 : index
    %c0_316 = arith.constant 0 : index
    %1120 = vector.load %arg22[%c0_315, %c0_316] : memref<128x64xf32, #tpu.memory_space<vmem>>, vector<8x32xf32>
    tpu.vector_store %arg22[%c0_315, %c0_316], %1092 {strides = array<i32>} : memref<128x64xf32, #tpu.memory_space<vmem>>, vector<8x32xf32>,
    %c120_317 = arith.constant 120 : index
    %c32_318 = arith.constant 32 : index
    %1121 = vector.load %arg22[%c120_317, %c32_318] : memref<128x64xf32, #tpu.memory_space<vmem>>, vector<8x32xf32>
    tpu.vector_store %arg22[%c120_317, %c32_318], %1119 {strides = array<i32>} : memref<128x64xf32, #tpu.memory_space<vmem>>, vector<8x32xf32>,
    %1122 = tpu.concatenate %1092, %1119 in 1 : vector<8x32xf32>, vector<8x32xf32> -> vector<8x64xf32>
    %cst_319 = arith.constant dense<0.000000e+00> : vector<8x192xf32>
    %1123 = tpu.matmul %1122, %1058, %cst_319 {dimension_numbers = #tpu.dot_dimension_numbers<[1], [0], [0], [1], [0, 0, 1, 1], [], []>} : vector<8x64xf32>, vector<64x192xf32>, vector<8x192xf32> -> vector<8x192xf32>
    %1124 = vector.broadcast %1059 : vector<1x192xf32> to vector<8x192xf32>
    %1125 = arith.addf %1123, %1124 : vector<8x192xf32>
    %c8_320 = arith.constant 8 : index
    %c0_321 = arith.constant 0 : index
    %1126 = vector.load %arg20[%c8_320, %c0_321] : memref<128x96xf32, #tpu.memory_space<vmem>>, vector<8x96xf32>
    %c112_322 = arith.constant 112 : index
    %c0_323 = arith.constant 0 : index
    %1127 = vector.load %arg21[%c112_322, %c0_323] : memref<128x96xf32, #tpu.memory_space<vmem>>, vector<8x96xf32>
    %1128 = vector.extract_strided_slice %1126 {offsets = [0, 0], sizes = [8, 32], strides = [1, 1]} : vector<8x96xf32> to vector<8x32xf32>
    %1129 = vector.extract_strided_slice %1125 {offsets = [0, 0], sizes = [8, 32], strides = [1, 1]} : vector<8x192xf32> to vector<8x32xf32>
    %1130 = arith.addf %1128, %1129 : vector<8x32xf32>
    %1131 = arith.negf %1130 : vector<8x32xf32>
    %1132 = math.exp %1131 : vector<8x32xf32>
    %cst_324 = arith.constant 1.000000e+00 : f32
    %1133 = vector.broadcast %cst_324 : f32 to vector<8x32xf32>
    %1134 = arith.addf %1133, %1132 : vector<8x32xf32>
    %1135 = arith.divf %1133, %1134 : vector<8x32xf32>
    %1136 = vector.extract_strided_slice %1126 {offsets = [0, 32], sizes = [8, 32], strides = [1, 1]} : vector<8x96xf32> to vector<8x32xf32>
    %1137 = vector.extract_strided_slice %1125 {offsets = [0, 32], sizes = [8, 32], strides = [1, 1]} : vector<8x192xf32> to vector<8x32xf32>
    %1138 = arith.addf %1136, %1137 : vector<8x32xf32>
    %1139 = arith.negf %1138 : vector<8x32xf32>
    %1140 = math.exp %1139 : vector<8x32xf32>
    %cst_325 = arith.constant 1.000000e+00 : f32
    %1141 = vector.broadcast %cst_325 : f32 to vector<8x32xf32>
    %1142 = arith.addf %1141, %1140 : vector<8x32xf32>
    %1143 = arith.divf %1141, %1142 : vector<8x32xf32>
    %1144 = vector.extract_strided_slice %1126 {offsets = [0, 64], sizes = [8, 32], strides = [1, 1]} : vector<8x96xf32> to vector<8x32xf32>
    %1145 = vector.extract_strided_slice %1125 {offsets = [0, 64], sizes = [8, 32], strides = [1, 1]} : vector<8x192xf32> to vector<8x32xf32>
    %1146 = arith.mulf %1135, %1145 : vector<8x32xf32>
    %1147 = arith.addf %1144, %1146 : vector<8x32xf32>
    %1148 = math.tanh %1147 : vector<8x32xf32>
    %cst_326 = arith.constant 1.000000e+00 : f32
    %1149 = vector.broadcast %cst_326 : f32 to vector<8x32xf32>
    %1150 = arith.subf %1149, %1143 : vector<8x32xf32>
    %1151 = arith.mulf %1150, %1148 : vector<8x32xf32>
    %1152 = vector.extract_strided_slice %1122 {offsets = [0, 0], sizes = [8, 32], strides = [1, 1]} : vector<8x64xf32> to vector<8x32xf32>
    %1153 = arith.mulf %1143, %1152 : vector<8x32xf32>
    %1154 = arith.addf %1151, %1153 : vector<8x32xf32>
    %1155 = vector.extract_strided_slice %1127 {offsets = [0, 0], sizes = [8, 32], strides = [1, 1]} : vector<8x96xf32> to vector<8x32xf32>
    %1156 = vector.extract_strided_slice %1125 {offsets = [0, 96], sizes = [8, 32], strides = [1, 1]} : vector<8x192xf32> to vector<8x32xf32>
    %1157 = arith.addf %1155, %1156 : vector<8x32xf32>
    %1158 = arith.negf %1157 : vector<8x32xf32>
    %1159 = math.exp %1158 : vector<8x32xf32>
    %cst_327 = arith.constant 1.000000e+00 : f32
    %1160 = vector.broadcast %cst_327 : f32 to vector<8x32xf32>
    %1161 = arith.addf %1160, %1159 : vector<8x32xf32>
    %1162 = arith.divf %1160, %1161 : vector<8x32xf32>
    %1163 = vector.extract_strided_slice %1127 {offsets = [0, 32], sizes = [8, 32], strides = [1, 1]} : vector<8x96xf32> to vector<8x32xf32>
    %1164 = vector.extract_strided_slice %1125 {offsets = [0, 128], sizes = [8, 32], strides = [1, 1]} : vector<8x192xf32> to vector<8x32xf32>
    %1165 = arith.addf %1163, %1164 : vector<8x32xf32>
    %1166 = arith.negf %1165 : vector<8x32xf32>
    %1167 = math.exp %1166 : vector<8x32xf32>
    %cst_328 = arith.constant 1.000000e+00 : f32
    %1168 = vector.broadcast %cst_328 : f32 to vector<8x32xf32>
    %1169 = arith.addf %1168, %1167 : vector<8x32xf32>
    %1170 = arith.divf %1168, %1169 : vector<8x32xf32>
    %1171 = vector.extract_strided_slice %1127 {offsets = [0, 64], sizes = [8, 32], strides = [1, 1]} : vector<8x96xf32> to vector<8x32xf32>
    %1172 = vector.extract_strided_slice %1125 {offsets = [0, 160], sizes = [8, 32], strides = [1, 1]} : vector<8x192xf32> to vector<8x32xf32>
    %1173 = arith.mulf %1162, %1172 : vector<8x32xf32>
    %1174 = arith.addf %1171, %1173 : vector<8x32xf32>
    %1175 = math.tanh %1174 : vector<8x32xf32>
    %cst_329 = arith.constant 1.000000e+00 : f32
    %1176 = vector.broadcast %cst_329 : f32 to vector<8x32xf32>
    %1177 = arith.subf %1176, %1170 : vector<8x32xf32>
    %1178 = arith.mulf %1177, %1175 : vector<8x32xf32>
    %1179 = vector.extract_strided_slice %1122 {offsets = [0, 32], sizes = [8, 32], strides = [1, 1]} : vector<8x64xf32> to vector<8x32xf32>
    %1180 = arith.mulf %1170, %1179 : vector<8x32xf32>
    %1181 = arith.addf %1178, %1180 : vector<8x32xf32>
    %c8_330 = arith.constant 8 : index
    %c0_331 = arith.constant 0 : index
    %1182 = vector.load %arg22[%c8_330, %c0_331] : memref<128x64xf32, #tpu.memory_space<vmem>>, vector<8x32xf32>
    tpu.vector_store %arg22[%c8_330, %c0_331], %1154 {strides = array<i32>} : memref<128x64xf32, #tpu.memory_space<vmem>>, vector<8x32xf32>,
    %c112_332 = arith.constant 112 : index
    %c32_333 = arith.constant 32 : index
    %1183 = vector.load %arg22[%c112_332, %c32_333] : memref<128x64xf32, #tpu.memory_space<vmem>>, vector<8x32xf32>
    tpu.vector_store %arg22[%c112_332, %c32_333], %1181 {strides = array<i32>} : memref<128x64xf32, #tpu.memory_space<vmem>>, vector<8x32xf32>,
    %1184 = tpu.concatenate %1154, %1181 in 1 : vector<8x32xf32>, vector<8x32xf32> -> vector<8x64xf32>
    %cst_334 = arith.constant dense<0.000000e+00> : vector<8x192xf32>
    %1185 = tpu.matmul %1184, %1058, %cst_334 {dimension_numbers = #tpu.dot_dimension_numbers<[1], [0], [0], [1], [0, 0, 1, 1], [], []>} : vector<8x64xf32>, vector<64x192xf32>, vector<8x192xf32> -> vector<8x192xf32>
    %1186 = vector.broadcast %1059 : vector<1x192xf32> to vector<8x192xf32>
    %1187 = arith.addf %1185, %1186 : vector<8x192xf32>
    %c16_335 = arith.constant 16 : index
    %c0_336 = arith.constant 0 : index
    %1188 = vector.load %arg20[%c16_335, %c0_336] : memref<128x96xf32, #tpu.memory_space<vmem>>, vector<8x96xf32>
    %c104_337 = arith.constant 104 : index
    %c0_338 = arith.constant 0 : index
    %1189 = vector.load %arg21[%c104_337, %c0_338] : memref<128x96xf32, #tpu.memory_space<vmem>>, vector<8x96xf32>
    %1190 = vector.extract_strided_slice %1188 {offsets = [0, 0], sizes = [8, 32], strides = [1, 1]} : vector<8x96xf32> to vector<8x32xf32>
    %1191 = vector.extract_strided_slice %1187 {offsets = [0, 0], sizes = [8, 32], strides = [1, 1]} : vector<8x192xf32> to vector<8x32xf32>
    %1192 = arith.addf %1190, %1191 : vector<8x32xf32>
    %1193 = arith.negf %1192 : vector<8x32xf32>
    %1194 = math.exp %1193 : vector<8x32xf32>
    %cst_339 = arith.constant 1.000000e+00 : f32
    %1195 = vector.broadcast %cst_339 : f32 to vector<8x32xf32>
    %1196 = arith.addf %1195, %1194 : vector<8x32xf32>
    %1197 = arith.divf %1195, %1196 : vector<8x32xf32>
    %1198 = vector.extract_strided_slice %1188 {offsets = [0, 32], sizes = [8, 32], strides = [1, 1]} : vector<8x96xf32> to vector<8x32xf32>
    %1199 = vector.extract_strided_slice %1187 {offsets = [0, 32], sizes = [8, 32], strides = [1, 1]} : vector<8x192xf32> to vector<8x32xf32>
    %1200 = arith.addf %1198, %1199 : vector<8x32xf32>
    %1201 = arith.negf %1200 : vector<8x32xf32>
    %1202 = math.exp %1201 : vector<8x32xf32>
    %cst_340 = arith.constant 1.000000e+00 : f32
    %1203 = vector.broadcast %cst_340 : f32 to vector<8x32xf32>
    %1204 = arith.addf %1203, %1202 : vector<8x32xf32>
    %1205 = arith.divf %1203, %1204 : vector<8x32xf32>
    %1206 = vector.extract_strided_slice %1188 {offsets = [0, 64], sizes = [8, 32], strides = [1, 1]} : vector<8x96xf32> to vector<8x32xf32>
    %1207 = vector.extract_strided_slice %1187 {offsets = [0, 64], sizes = [8, 32], strides = [1, 1]} : vector<8x192xf32> to vector<8x32xf32>
    %1208 = arith.mulf %1197, %1207 : vector<8x32xf32>
    %1209 = arith.addf %1206, %1208 : vector<8x32xf32>
    %1210 = math.tanh %1209 : vector<8x32xf32>
    %cst_341 = arith.constant 1.000000e+00 : f32
    %1211 = vector.broadcast %cst_341 : f32 to vector<8x32xf32>
    %1212 = arith.subf %1211, %1205 : vector<8x32xf32>
    %1213 = arith.mulf %1212, %1210 : vector<8x32xf32>
    %1214 = vector.extract_strided_slice %1184 {offsets = [0, 0], sizes = [8, 32], strides = [1, 1]} : vector<8x64xf32> to vector<8x32xf32>
    %1215 = arith.mulf %1205, %1214 : vector<8x32xf32>
    %1216 = arith.addf %1213, %1215 : vector<8x32xf32>
    %1217 = vector.extract_strided_slice %1189 {offsets = [0, 0], sizes = [8, 32], strides = [1, 1]} : vector<8x96xf32> to vector<8x32xf32>
    %1218 = vector.extract_strided_slice %1187 {offsets = [0, 96], sizes = [8, 32], strides = [1, 1]} : vector<8x192xf32> to vector<8x32xf32>
    %1219 = arith.addf %1217, %1218 : vector<8x32xf32>
    %1220 = arith.negf %1219 : vector<8x32xf32>
    %1221 = math.exp %1220 : vector<8x32xf32>
    %cst_342 = arith.constant 1.000000e+00 : f32
    %1222 = vector.broadcast %cst_342 : f32 to vector<8x32xf32>
    %1223 = arith.addf %1222, %1221 : vector<8x32xf32>
    %1224 = arith.divf %1222, %1223 : vector<8x32xf32>
    %1225 = vector.extract_strided_slice %1189 {offsets = [0, 32], sizes = [8, 32], strides = [1, 1]} : vector<8x96xf32> to vector<8x32xf32>
    %1226 = vector.extract_strided_slice %1187 {offsets = [0, 128], sizes = [8, 32], strides = [1, 1]} : vector<8x192xf32> to vector<8x32xf32>
    %1227 = arith.addf %1225, %1226 : vector<8x32xf32>
    %1228 = arith.negf %1227 : vector<8x32xf32>
    %1229 = math.exp %1228 : vector<8x32xf32>
    %cst_343 = arith.constant 1.000000e+00 : f32
    %1230 = vector.broadcast %cst_343 : f32 to vector<8x32xf32>
    %1231 = arith.addf %1230, %1229 : vector<8x32xf32>
    %1232 = arith.divf %1230, %1231 : vector<8x32xf32>
    %1233 = vector.extract_strided_slice %1189 {offsets = [0, 64], sizes = [8, 32], strides = [1, 1]} : vector<8x96xf32> to vector<8x32xf32>
    %1234 = vector.extract_strided_slice %1187 {offsets = [0, 160], sizes = [8, 32], strides = [1, 1]} : vector<8x192xf32> to vector<8x32xf32>
    %1235 = arith.mulf %1224, %1234 : vector<8x32xf32>
    %1236 = arith.addf %1233, %1235 : vector<8x32xf32>
    %1237 = math.tanh %1236 : vector<8x32xf32>
    %cst_344 = arith.constant 1.000000e+00 : f32
    %1238 = vector.broadcast %cst_344 : f32 to vector<8x32xf32>
    %1239 = arith.subf %1238, %1232 : vector<8x32xf32>
    %1240 = arith.mulf %1239, %1237 : vector<8x32xf32>
    %1241 = vector.extract_strided_slice %1184 {offsets = [0, 32], sizes = [8, 32], strides = [1, 1]} : vector<8x64xf32> to vector<8x32xf32>
    %1242 = arith.mulf %1232, %1241 : vector<8x32xf32>
    %1243 = arith.addf %1240, %1242 : vector<8x32xf32>
    %c16_345 = arith.constant 16 : index
    %c0_346 = arith.constant 0 : index
    %1244 = vector.load %arg22[%c16_345, %c0_346] : memref<128x64xf32, #tpu.memory_space<vmem>>, vector<8x32xf32>
    tpu.vector_store %arg22[%c16_345, %c0_346], %1216 {strides = array<i32>} : memref<128x64xf32, #tpu.memory_space<vmem>>, vector<8x32xf32>,
    %c104_347 = arith.constant 104 : index
    %c32_348 = arith.constant 32 : index
    %1245 = vector.load %arg22[%c104_347, %c32_348] : memref<128x64xf32, #tpu.memory_space<vmem>>, vector<8x32xf32>
    tpu.vector_store %arg22[%c104_347, %c32_348], %1243 {strides = array<i32>} : memref<128x64xf32, #tpu.memory_space<vmem>>, vector<8x32xf32>,
    %1246 = tpu.concatenate %1216, %1243 in 1 : vector<8x32xf32>, vector<8x32xf32> -> vector<8x64xf32>
    %cst_349 = arith.constant dense<0.000000e+00> : vector<8x192xf32>
    %1247 = tpu.matmul %1246, %1058, %cst_349 {dimension_numbers = #tpu.dot_dimension_numbers<[1], [0], [0], [1], [0, 0, 1, 1], [], []>} : vector<8x64xf32>, vector<64x192xf32>, vector<8x192xf32> -> vector<8x192xf32>
    %1248 = vector.broadcast %1059 : vector<1x192xf32> to vector<8x192xf32>
    %1249 = arith.addf %1247, %1248 : vector<8x192xf32>
    %c24_350 = arith.constant 24 : index
    %c0_351 = arith.constant 0 : index
    %1250 = vector.load %arg20[%c24_350, %c0_351] : memref<128x96xf32, #tpu.memory_space<vmem>>, vector<8x96xf32>
    %c96_352 = arith.constant 96 : index
    %c0_353 = arith.constant 0 : index
    %1251 = vector.load %arg21[%c96_352, %c0_353] : memref<128x96xf32, #tpu.memory_space<vmem>>, vector<8x96xf32>
    %1252 = vector.extract_strided_slice %1250 {offsets = [0, 0], sizes = [8, 32], strides = [1, 1]} : vector<8x96xf32> to vector<8x32xf32>
    %1253 = vector.extract_strided_slice %1249 {offsets = [0, 0], sizes = [8, 32], strides = [1, 1]} : vector<8x192xf32> to vector<8x32xf32>
    %1254 = arith.addf %1252, %1253 : vector<8x32xf32>
    %1255 = arith.negf %1254 : vector<8x32xf32>
    %1256 = math.exp %1255 : vector<8x32xf32>
    %cst_354 = arith.constant 1.000000e+00 : f32
    %1257 = vector.broadcast %cst_354 : f32 to vector<8x32xf32>
    %1258 = arith.addf %1257, %1256 : vector<8x32xf32>
    %1259 = arith.divf %1257, %1258 : vector<8x32xf32>
    %1260 = vector.extract_strided_slice %1250 {offsets = [0, 32], sizes = [8, 32], strides = [1, 1]} : vector<8x96xf32> to vector<8x32xf32>
    %1261 = vector.extract_strided_slice %1249 {offsets = [0, 32], sizes = [8, 32], strides = [1, 1]} : vector<8x192xf32> to vector<8x32xf32>
    %1262 = arith.addf %1260, %1261 : vector<8x32xf32>
    %1263 = arith.negf %1262 : vector<8x32xf32>
    %1264 = math.exp %1263 : vector<8x32xf32>
    %cst_355 = arith.constant 1.000000e+00 : f32
    %1265 = vector.broadcast %cst_355 : f32 to vector<8x32xf32>
    %1266 = arith.addf %1265, %1264 : vector<8x32xf32>
    %1267 = arith.divf %1265, %1266 : vector<8x32xf32>
    %1268 = vector.extract_strided_slice %1250 {offsets = [0, 64], sizes = [8, 32], strides = [1, 1]} : vector<8x96xf32> to vector<8x32xf32>
    %1269 = vector.extract_strided_slice %1249 {offsets = [0, 64], sizes = [8, 32], strides = [1, 1]} : vector<8x192xf32> to vector<8x32xf32>
    %1270 = arith.mulf %1259, %1269 : vector<8x32xf32>
    %1271 = arith.addf %1268, %1270 : vector<8x32xf32>
    %1272 = math.tanh %1271 : vector<8x32xf32>
    %cst_356 = arith.constant 1.000000e+00 : f32
    %1273 = vector.broadcast %cst_356 : f32 to vector<8x32xf32>
    %1274 = arith.subf %1273, %1267 : vector<8x32xf32>
    %1275 = arith.mulf %1274, %1272 : vector<8x32xf32>
    %1276 = vector.extract_strided_slice %1246 {offsets = [0, 0], sizes = [8, 32], strides = [1, 1]} : vector<8x64xf32> to vector<8x32xf32>
    %1277 = arith.mulf %1267, %1276 : vector<8x32xf32>
    %1278 = arith.addf %1275, %1277 : vector<8x32xf32>
    %1279 = vector.extract_strided_slice %1251 {offsets = [0, 0], sizes = [8, 32], strides = [1, 1]} : vector<8x96xf32> to vector<8x32xf32>
    %1280 = vector.extract_strided_slice %1249 {offsets = [0, 96], sizes = [8, 32], strides = [1, 1]} : vector<8x192xf32> to vector<8x32xf32>
    %1281 = arith.addf %1279, %1280 : vector<8x32xf32>
    %1282 = arith.negf %1281 : vector<8x32xf32>
    %1283 = math.exp %1282 : vector<8x32xf32>
    %cst_357 = arith.constant 1.000000e+00 : f32
    %1284 = vector.broadcast %cst_357 : f32 to vector<8x32xf32>
    %1285 = arith.addf %1284, %1283 : vector<8x32xf32>
    %1286 = arith.divf %1284, %1285 : vector<8x32xf32>
    %1287 = vector.extract_strided_slice %1251 {offsets = [0, 32], sizes = [8, 32], strides = [1, 1]} : vector<8x96xf32> to vector<8x32xf32>
    %1288 = vector.extract_strided_slice %1249 {offsets = [0, 128], sizes = [8, 32], strides = [1, 1]} : vector<8x192xf32> to vector<8x32xf32>
    %1289 = arith.addf %1287, %1288 : vector<8x32xf32>
    %1290 = arith.negf %1289 : vector<8x32xf32>
    %1291 = math.exp %1290 : vector<8x32xf32>
    %cst_358 = arith.constant 1.000000e+00 : f32
    %1292 = vector.broadcast %cst_358 : f32 to vector<8x32xf32>
    %1293 = arith.addf %1292, %1291 : vector<8x32xf32>
    %1294 = arith.divf %1292, %1293 : vector<8x32xf32>
    %1295 = vector.extract_strided_slice %1251 {offsets = [0, 64], sizes = [8, 32], strides = [1, 1]} : vector<8x96xf32> to vector<8x32xf32>
    %1296 = vector.extract_strided_slice %1249 {offsets = [0, 160], sizes = [8, 32], strides = [1, 1]} : vector<8x192xf32> to vector<8x32xf32>
    %1297 = arith.mulf %1286, %1296 : vector<8x32xf32>
    %1298 = arith.addf %1295, %1297 : vector<8x32xf32>
    %1299 = math.tanh %1298 : vector<8x32xf32>
    %cst_359 = arith.constant 1.000000e+00 : f32
    %1300 = vector.broadcast %cst_359 : f32 to vector<8x32xf32>
    %1301 = arith.subf %1300, %1294 : vector<8x32xf32>
    %1302 = arith.mulf %1301, %1299 : vector<8x32xf32>
    %1303 = vector.extract_strided_slice %1246 {offsets = [0, 32], sizes = [8, 32], strides = [1, 1]} : vector<8x64xf32> to vector<8x32xf32>
    %1304 = arith.mulf %1294, %1303 : vector<8x32xf32>
    %1305 = arith.addf %1302, %1304 : vector<8x32xf32>
    %c24_360 = arith.constant 24 : index
    %c0_361 = arith.constant 0 : index
    %1306 = vector.load %arg22[%c24_360, %c0_361] : memref<128x64xf32, #tpu.memory_space<vmem>>, vector<8x32xf32>
    tpu.vector_store %arg22[%c24_360, %c0_361], %1278 {strides = array<i32>} : memref<128x64xf32, #tpu.memory_space<vmem>>, vector<8x32xf32>,
    %c96_362 = arith.constant 96 : index
    %c32_363 = arith.constant 32 : index
    %1307 = vector.load %arg22[%c96_362, %c32_363] : memref<128x64xf32, #tpu.memory_space<vmem>>, vector<8x32xf32>
    tpu.vector_store %arg22[%c96_362, %c32_363], %1305 {strides = array<i32>} : memref<128x64xf32, #tpu.memory_space<vmem>>, vector<8x32xf32>,
    %1308 = tpu.concatenate %1278, %1305 in 1 : vector<8x32xf32>, vector<8x32xf32> -> vector<8x64xf32>
    %cst_364 = arith.constant dense<0.000000e+00> : vector<8x192xf32>
    %1309 = tpu.matmul %1308, %1058, %cst_364 {dimension_numbers = #tpu.dot_dimension_numbers<[1], [0], [0], [1], [0, 0, 1, 1], [], []>} : vector<8x64xf32>, vector<64x192xf32>, vector<8x192xf32> -> vector<8x192xf32>
    %1310 = vector.broadcast %1059 : vector<1x192xf32> to vector<8x192xf32>
    %1311 = arith.addf %1309, %1310 : vector<8x192xf32>
    %c32_365 = arith.constant 32 : index
    %c0_366 = arith.constant 0 : index
    %1312 = vector.load %arg20[%c32_365, %c0_366] : memref<128x96xf32, #tpu.memory_space<vmem>>, vector<8x96xf32>
    %c88_367 = arith.constant 88 : index
    %c0_368 = arith.constant 0 : index
    %1313 = vector.load %arg21[%c88_367, %c0_368] : memref<128x96xf32, #tpu.memory_space<vmem>>, vector<8x96xf32>
    %1314 = vector.extract_strided_slice %1312 {offsets = [0, 0], sizes = [8, 32], strides = [1, 1]} : vector<8x96xf32> to vector<8x32xf32>
    %1315 = vector.extract_strided_slice %1311 {offsets = [0, 0], sizes = [8, 32], strides = [1, 1]} : vector<8x192xf32> to vector<8x32xf32>
    %1316 = arith.addf %1314, %1315 : vector<8x32xf32>
    %1317 = arith.negf %1316 : vector<8x32xf32>
    %1318 = math.exp %1317 : vector<8x32xf32>
    %cst_369 = arith.constant 1.000000e+00 : f32
    %1319 = vector.broadcast %cst_369 : f32 to vector<8x32xf32>
    %1320 = arith.addf %1319, %1318 : vector<8x32xf32>
    %1321 = arith.divf %1319, %1320 : vector<8x32xf32>
    %1322 = vector.extract_strided_slice %1312 {offsets = [0, 32], sizes = [8, 32], strides = [1, 1]} : vector<8x96xf32> to vector<8x32xf32>
    %1323 = vector.extract_strided_slice %1311 {offsets = [0, 32], sizes = [8, 32], strides = [1, 1]} : vector<8x192xf32> to vector<8x32xf32>
    %1324 = arith.addf %1322, %1323 : vector<8x32xf32>
    %1325 = arith.negf %1324 : vector<8x32xf32>
    %1326 = math.exp %1325 : vector<8x32xf32>
    %cst_370 = arith.constant 1.000000e+00 : f32
    %1327 = vector.broadcast %cst_370 : f32 to vector<8x32xf32>
    %1328 = arith.addf %1327, %1326 : vector<8x32xf32>
    %1329 = arith.divf %1327, %1328 : vector<8x32xf32>
    %1330 = vector.extract_strided_slice %1312 {offsets = [0, 64], sizes = [8, 32], strides = [1, 1]} : vector<8x96xf32> to vector<8x32xf32>
    %1331 = vector.extract_strided_slice %1311 {offsets = [0, 64], sizes = [8, 32], strides = [1, 1]} : vector<8x192xf32> to vector<8x32xf32>
    %1332 = arith.mulf %1321, %1331 : vector<8x32xf32>
    %1333 = arith.addf %1330, %1332 : vector<8x32xf32>
    %1334 = math.tanh %1333 : vector<8x32xf32>
    %cst_371 = arith.constant 1.000000e+00 : f32
    %1335 = vector.broadcast %cst_371 : f32 to vector<8x32xf32>
    %1336 = arith.subf %1335, %1329 : vector<8x32xf32>
    %1337 = arith.mulf %1336, %1334 : vector<8x32xf32>
    %1338 = vector.extract_strided_slice %1308 {offsets = [0, 0], sizes = [8, 32], strides = [1, 1]} : vector<8x64xf32> to vector<8x32xf32>
    %1339 = arith.mulf %1329, %1338 : vector<8x32xf32>
    %1340 = arith.addf %1337, %1339 : vector<8x32xf32>
    %1341 = vector.extract_strided_slice %1313 {offsets = [0, 0], sizes = [8, 32], strides = [1, 1]} : vector<8x96xf32> to vector<8x32xf32>
    %1342 = vector.extract_strided_slice %1311 {offsets = [0, 96], sizes = [8, 32], strides = [1, 1]} : vector<8x192xf32> to vector<8x32xf32>
    %1343 = arith.addf %1341, %1342 : vector<8x32xf32>
    %1344 = arith.negf %1343 : vector<8x32xf32>
    %1345 = math.exp %1344 : vector<8x32xf32>
    %cst_372 = arith.constant 1.000000e+00 : f32
    %1346 = vector.broadcast %cst_372 : f32 to vector<8x32xf32>
    %1347 = arith.addf %1346, %1345 : vector<8x32xf32>
    %1348 = arith.divf %1346, %1347 : vector<8x32xf32>
    %1349 = vector.extract_strided_slice %1313 {offsets = [0, 32], sizes = [8, 32], strides = [1, 1]} : vector<8x96xf32> to vector<8x32xf32>
    %1350 = vector.extract_strided_slice %1311 {offsets = [0, 128], sizes = [8, 32], strides = [1, 1]} : vector<8x192xf32> to vector<8x32xf32>
    %1351 = arith.addf %1349, %1350 : vector<8x32xf32>
    %1352 = arith.negf %1351 : vector<8x32xf32>
    %1353 = math.exp %1352 : vector<8x32xf32>
    %cst_373 = arith.constant 1.000000e+00 : f32
    %1354 = vector.broadcast %cst_373 : f32 to vector<8x32xf32>
    %1355 = arith.addf %1354, %1353 : vector<8x32xf32>
    %1356 = arith.divf %1354, %1355 : vector<8x32xf32>
    %1357 = vector.extract_strided_slice %1313 {offsets = [0, 64], sizes = [8, 32], strides = [1, 1]} : vector<8x96xf32> to vector<8x32xf32>
    %1358 = vector.extract_strided_slice %1311 {offsets = [0, 160], sizes = [8, 32], strides = [1, 1]} : vector<8x192xf32> to vector<8x32xf32>
    %1359 = arith.mulf %1348, %1358 : vector<8x32xf32>
    %1360 = arith.addf %1357, %1359 : vector<8x32xf32>
    %1361 = math.tanh %1360 : vector<8x32xf32>
    %cst_374 = arith.constant 1.000000e+00 : f32
    %1362 = vector.broadcast %cst_374 : f32 to vector<8x32xf32>
    %1363 = arith.subf %1362, %1356 : vector<8x32xf32>
    %1364 = arith.mulf %1363, %1361 : vector<8x32xf32>
    %1365 = vector.extract_strided_slice %1308 {offsets = [0, 32], sizes = [8, 32], strides = [1, 1]} : vector<8x64xf32> to vector<8x32xf32>
    %1366 = arith.mulf %1356, %1365 : vector<8x32xf32>
    %1367 = arith.addf %1364, %1366 : vector<8x32xf32>
    %c32_375 = arith.constant 32 : index
    %c0_376 = arith.constant 0 : index
    %1368 = vector.load %arg22[%c32_375, %c0_376] : memref<128x64xf32, #tpu.memory_space<vmem>>, vector<8x32xf32>
    tpu.vector_store %arg22[%c32_375, %c0_376], %1340 {strides = array<i32>} : memref<128x64xf32, #tpu.memory_space<vmem>>, vector<8x32xf32>,
    %c88_377 = arith.constant 88 : index
    %c32_378 = arith.constant 32 : index
    %1369 = vector.load %arg22[%c88_377, %c32_378] : memref<128x64xf32, #tpu.memory_space<vmem>>, vector<8x32xf32>
    tpu.vector_store %arg22[%c88_377, %c32_378], %1367 {strides = array<i32>} : memref<128x64xf32, #tpu.memory_space<vmem>>, vector<8x32xf32>,
    %1370 = tpu.concatenate %1340, %1367 in 1 : vector<8x32xf32>, vector<8x32xf32> -> vector<8x64xf32>
    %cst_379 = arith.constant dense<0.000000e+00> : vector<8x192xf32>
    %1371 = tpu.matmul %1370, %1058, %cst_379 {dimension_numbers = #tpu.dot_dimension_numbers<[1], [0], [0], [1], [0, 0, 1, 1], [], []>} : vector<8x64xf32>, vector<64x192xf32>, vector<8x192xf32> -> vector<8x192xf32>
    %1372 = vector.broadcast %1059 : vector<1x192xf32> to vector<8x192xf32>
    %1373 = arith.addf %1371, %1372 : vector<8x192xf32>
    %c40_380 = arith.constant 40 : index
    %c0_381 = arith.constant 0 : index
    %1374 = vector.load %arg20[%c40_380, %c0_381] : memref<128x96xf32, #tpu.memory_space<vmem>>, vector<8x96xf32>
    %c80_382 = arith.constant 80 : index
    %c0_383 = arith.constant 0 : index
    %1375 = vector.load %arg21[%c80_382, %c0_383] : memref<128x96xf32, #tpu.memory_space<vmem>>, vector<8x96xf32>
    %1376 = vector.extract_strided_slice %1374 {offsets = [0, 0], sizes = [8, 32], strides = [1, 1]} : vector<8x96xf32> to vector<8x32xf32>
    %1377 = vector.extract_strided_slice %1373 {offsets = [0, 0], sizes = [8, 32], strides = [1, 1]} : vector<8x192xf32> to vector<8x32xf32>
    %1378 = arith.addf %1376, %1377 : vector<8x32xf32>
    %1379 = arith.negf %1378 : vector<8x32xf32>
    %1380 = math.exp %1379 : vector<8x32xf32>
    %cst_384 = arith.constant 1.000000e+00 : f32
    %1381 = vector.broadcast %cst_384 : f32 to vector<8x32xf32>
    %1382 = arith.addf %1381, %1380 : vector<8x32xf32>
    %1383 = arith.divf %1381, %1382 : vector<8x32xf32>
    %1384 = vector.extract_strided_slice %1374 {offsets = [0, 32], sizes = [8, 32], strides = [1, 1]} : vector<8x96xf32> to vector<8x32xf32>
    %1385 = vector.extract_strided_slice %1373 {offsets = [0, 32], sizes = [8, 32], strides = [1, 1]} : vector<8x192xf32> to vector<8x32xf32>
    %1386 = arith.addf %1384, %1385 : vector<8x32xf32>
    %1387 = arith.negf %1386 : vector<8x32xf32>
    %1388 = math.exp %1387 : vector<8x32xf32>
    %cst_385 = arith.constant 1.000000e+00 : f32
    %1389 = vector.broadcast %cst_385 : f32 to vector<8x32xf32>
    %1390 = arith.addf %1389, %1388 : vector<8x32xf32>
    %1391 = arith.divf %1389, %1390 : vector<8x32xf32>
    %1392 = vector.extract_strided_slice %1374 {offsets = [0, 64], sizes = [8, 32], strides = [1, 1]} : vector<8x96xf32> to vector<8x32xf32>
    %1393 = vector.extract_strided_slice %1373 {offsets = [0, 64], sizes = [8, 32], strides = [1, 1]} : vector<8x192xf32> to vector<8x32xf32>
    %1394 = arith.mulf %1383, %1393 : vector<8x32xf32>
    %1395 = arith.addf %1392, %1394 : vector<8x32xf32>
    %1396 = math.tanh %1395 : vector<8x32xf32>
    %cst_386 = arith.constant 1.000000e+00 : f32
    %1397 = vector.broadcast %cst_386 : f32 to vector<8x32xf32>
    %1398 = arith.subf %1397, %1391 : vector<8x32xf32>
    %1399 = arith.mulf %1398, %1396 : vector<8x32xf32>
    %1400 = vector.extract_strided_slice %1370 {offsets = [0, 0], sizes = [8, 32], strides = [1, 1]} : vector<8x64xf32> to vector<8x32xf32>
    %1401 = arith.mulf %1391, %1400 : vector<8x32xf32>
    %1402 = arith.addf %1399, %1401 : vector<8x32xf32>
    %1403 = vector.extract_strided_slice %1375 {offsets = [0, 0], sizes = [8, 32], strides = [1, 1]} : vector<8x96xf32> to vector<8x32xf32>
    %1404 = vector.extract_strided_slice %1373 {offsets = [0, 96], sizes = [8, 32], strides = [1, 1]} : vector<8x192xf32> to vector<8x32xf32>
    %1405 = arith.addf %1403, %1404 : vector<8x32xf32>
    %1406 = arith.negf %1405 : vector<8x32xf32>
    %1407 = math.exp %1406 : vector<8x32xf32>
    %cst_387 = arith.constant 1.000000e+00 : f32
    %1408 = vector.broadcast %cst_387 : f32 to vector<8x32xf32>
    %1409 = arith.addf %1408, %1407 : vector<8x32xf32>
    %1410 = arith.divf %1408, %1409 : vector<8x32xf32>
    %1411 = vector.extract_strided_slice %1375 {offsets = [0, 32], sizes = [8, 32], strides = [1, 1]} : vector<8x96xf32> to vector<8x32xf32>
    %1412 = vector.extract_strided_slice %1373 {offsets = [0, 128], sizes = [8, 32], strides = [1, 1]} : vector<8x192xf32> to vector<8x32xf32>
    %1413 = arith.addf %1411, %1412 : vector<8x32xf32>
    %1414 = arith.negf %1413 : vector<8x32xf32>
    %1415 = math.exp %1414 : vector<8x32xf32>
    %cst_388 = arith.constant 1.000000e+00 : f32
    %1416 = vector.broadcast %cst_388 : f32 to vector<8x32xf32>
    %1417 = arith.addf %1416, %1415 : vector<8x32xf32>
    %1418 = arith.divf %1416, %1417 : vector<8x32xf32>
    %1419 = vector.extract_strided_slice %1375 {offsets = [0, 64], sizes = [8, 32], strides = [1, 1]} : vector<8x96xf32> to vector<8x32xf32>
    %1420 = vector.extract_strided_slice %1373 {offsets = [0, 160], sizes = [8, 32], strides = [1, 1]} : vector<8x192xf32> to vector<8x32xf32>
    %1421 = arith.mulf %1410, %1420 : vector<8x32xf32>
    %1422 = arith.addf %1419, %1421 : vector<8x32xf32>
    %1423 = math.tanh %1422 : vector<8x32xf32>
    %cst_389 = arith.constant 1.000000e+00 : f32
    %1424 = vector.broadcast %cst_389 : f32 to vector<8x32xf32>
    %1425 = arith.subf %1424, %1418 : vector<8x32xf32>
    %1426 = arith.mulf %1425, %1423 : vector<8x32xf32>
    %1427 = vector.extract_strided_slice %1370 {offsets = [0, 32], sizes = [8, 32], strides = [1, 1]} : vector<8x64xf32> to vector<8x32xf32>
    %1428 = arith.mulf %1418, %1427 : vector<8x32xf32>
    %1429 = arith.addf %1426, %1428 : vector<8x32xf32>
    %c40_390 = arith.constant 40 : index
    %c0_391 = arith.constant 0 : index
    %1430 = vector.load %arg22[%c40_390, %c0_391] : memref<128x64xf32, #tpu.memory_space<vmem>>, vector<8x32xf32>
    tpu.vector_store %arg22[%c40_390, %c0_391], %1402 {strides = array<i32>} : memref<128x64xf32, #tpu.memory_space<vmem>>, vector<8x32xf32>,
    %c80_392 = arith.constant 80 : index
    %c32_393 = arith.constant 32 : index
    %1431 = vector.load %arg22[%c80_392, %c32_393] : memref<128x64xf32, #tpu.memory_space<vmem>>, vector<8x32xf32>
    tpu.vector_store %arg22[%c80_392, %c32_393], %1429 {strides = array<i32>} : memref<128x64xf32, #tpu.memory_space<vmem>>, vector<8x32xf32>,
    %1432 = tpu.concatenate %1402, %1429 in 1 : vector<8x32xf32>, vector<8x32xf32> -> vector<8x64xf32>
    %cst_394 = arith.constant dense<0.000000e+00> : vector<8x192xf32>
    %1433 = tpu.matmul %1432, %1058, %cst_394 {dimension_numbers = #tpu.dot_dimension_numbers<[1], [0], [0], [1], [0, 0, 1, 1], [], []>} : vector<8x64xf32>, vector<64x192xf32>, vector<8x192xf32> -> vector<8x192xf32>
    %1434 = vector.broadcast %1059 : vector<1x192xf32> to vector<8x192xf32>
    %1435 = arith.addf %1433, %1434 : vector<8x192xf32>
    %c48_395 = arith.constant 48 : index
    %c0_396 = arith.constant 0 : index
    %1436 = vector.load %arg20[%c48_395, %c0_396] : memref<128x96xf32, #tpu.memory_space<vmem>>, vector<8x96xf32>
    %c72_397 = arith.constant 72 : index
    %c0_398 = arith.constant 0 : index
    %1437 = vector.load %arg21[%c72_397, %c0_398] : memref<128x96xf32, #tpu.memory_space<vmem>>, vector<8x96xf32>
    %1438 = vector.extract_strided_slice %1436 {offsets = [0, 0], sizes = [8, 32], strides = [1, 1]} : vector<8x96xf32> to vector<8x32xf32>
    %1439 = vector.extract_strided_slice %1435 {offsets = [0, 0], sizes = [8, 32], strides = [1, 1]} : vector<8x192xf32> to vector<8x32xf32>
    %1440 = arith.addf %1438, %1439 : vector<8x32xf32>
    %1441 = arith.negf %1440 : vector<8x32xf32>
    %1442 = math.exp %1441 : vector<8x32xf32>
    %cst_399 = arith.constant 1.000000e+00 : f32
    %1443 = vector.broadcast %cst_399 : f32 to vector<8x32xf32>
    %1444 = arith.addf %1443, %1442 : vector<8x32xf32>
    %1445 = arith.divf %1443, %1444 : vector<8x32xf32>
    %1446 = vector.extract_strided_slice %1436 {offsets = [0, 32], sizes = [8, 32], strides = [1, 1]} : vector<8x96xf32> to vector<8x32xf32>
    %1447 = vector.extract_strided_slice %1435 {offsets = [0, 32], sizes = [8, 32], strides = [1, 1]} : vector<8x192xf32> to vector<8x32xf32>
    %1448 = arith.addf %1446, %1447 : vector<8x32xf32>
    %1449 = arith.negf %1448 : vector<8x32xf32>
    %1450 = math.exp %1449 : vector<8x32xf32>
    %cst_400 = arith.constant 1.000000e+00 : f32
    %1451 = vector.broadcast %cst_400 : f32 to vector<8x32xf32>
    %1452 = arith.addf %1451, %1450 : vector<8x32xf32>
    %1453 = arith.divf %1451, %1452 : vector<8x32xf32>
    %1454 = vector.extract_strided_slice %1436 {offsets = [0, 64], sizes = [8, 32], strides = [1, 1]} : vector<8x96xf32> to vector<8x32xf32>
    %1455 = vector.extract_strided_slice %1435 {offsets = [0, 64], sizes = [8, 32], strides = [1, 1]} : vector<8x192xf32> to vector<8x32xf32>
    %1456 = arith.mulf %1445, %1455 : vector<8x32xf32>
    %1457 = arith.addf %1454, %1456 : vector<8x32xf32>
    %1458 = math.tanh %1457 : vector<8x32xf32>
    %cst_401 = arith.constant 1.000000e+00 : f32
    %1459 = vector.broadcast %cst_401 : f32 to vector<8x32xf32>
    %1460 = arith.subf %1459, %1453 : vector<8x32xf32>
    %1461 = arith.mulf %1460, %1458 : vector<8x32xf32>
    %1462 = vector.extract_strided_slice %1432 {offsets = [0, 0], sizes = [8, 32], strides = [1, 1]} : vector<8x64xf32> to vector<8x32xf32>
    %1463 = arith.mulf %1453, %1462 : vector<8x32xf32>
    %1464 = arith.addf %1461, %1463 : vector<8x32xf32>
    %1465 = vector.extract_strided_slice %1437 {offsets = [0, 0], sizes = [8, 32], strides = [1, 1]} : vector<8x96xf32> to vector<8x32xf32>
    %1466 = vector.extract_strided_slice %1435 {offsets = [0, 96], sizes = [8, 32], strides = [1, 1]} : vector<8x192xf32> to vector<8x32xf32>
    %1467 = arith.addf %1465, %1466 : vector<8x32xf32>
    %1468 = arith.negf %1467 : vector<8x32xf32>
    %1469 = math.exp %1468 : vector<8x32xf32>
    %cst_402 = arith.constant 1.000000e+00 : f32
    %1470 = vector.broadcast %cst_402 : f32 to vector<8x32xf32>
    %1471 = arith.addf %1470, %1469 : vector<8x32xf32>
    %1472 = arith.divf %1470, %1471 : vector<8x32xf32>
    %1473 = vector.extract_strided_slice %1437 {offsets = [0, 32], sizes = [8, 32], strides = [1, 1]} : vector<8x96xf32> to vector<8x32xf32>
    %1474 = vector.extract_strided_slice %1435 {offsets = [0, 128], sizes = [8, 32], strides = [1, 1]} : vector<8x192xf32> to vector<8x32xf32>
    %1475 = arith.addf %1473, %1474 : vector<8x32xf32>
    %1476 = arith.negf %1475 : vector<8x32xf32>
    %1477 = math.exp %1476 : vector<8x32xf32>
    %cst_403 = arith.constant 1.000000e+00 : f32
    %1478 = vector.broadcast %cst_403 : f32 to vector<8x32xf32>
    %1479 = arith.addf %1478, %1477 : vector<8x32xf32>
    %1480 = arith.divf %1478, %1479 : vector<8x32xf32>
    %1481 = vector.extract_strided_slice %1437 {offsets = [0, 64], sizes = [8, 32], strides = [1, 1]} : vector<8x96xf32> to vector<8x32xf32>
    %1482 = vector.extract_strided_slice %1435 {offsets = [0, 160], sizes = [8, 32], strides = [1, 1]} : vector<8x192xf32> to vector<8x32xf32>
    %1483 = arith.mulf %1472, %1482 : vector<8x32xf32>
    %1484 = arith.addf %1481, %1483 : vector<8x32xf32>
    %1485 = math.tanh %1484 : vector<8x32xf32>
    %cst_404 = arith.constant 1.000000e+00 : f32
    %1486 = vector.broadcast %cst_404 : f32 to vector<8x32xf32>
    %1487 = arith.subf %1486, %1480 : vector<8x32xf32>
    %1488 = arith.mulf %1487, %1485 : vector<8x32xf32>
    %1489 = vector.extract_strided_slice %1432 {offsets = [0, 32], sizes = [8, 32], strides = [1, 1]} : vector<8x64xf32> to vector<8x32xf32>
    %1490 = arith.mulf %1480, %1489 : vector<8x32xf32>
    %1491 = arith.addf %1488, %1490 : vector<8x32xf32>
    %c48_405 = arith.constant 48 : index
    %c0_406 = arith.constant 0 : index
    %1492 = vector.load %arg22[%c48_405, %c0_406] : memref<128x64xf32, #tpu.memory_space<vmem>>, vector<8x32xf32>
    tpu.vector_store %arg22[%c48_405, %c0_406], %1464 {strides = array<i32>} : memref<128x64xf32, #tpu.memory_space<vmem>>, vector<8x32xf32>,
    %c72_407 = arith.constant 72 : index
    %c32_408 = arith.constant 32 : index
    %1493 = vector.load %arg22[%c72_407, %c32_408] : memref<128x64xf32, #tpu.memory_space<vmem>>, vector<8x32xf32>
    tpu.vector_store %arg22[%c72_407, %c32_408], %1491 {strides = array<i32>} : memref<128x64xf32, #tpu.memory_space<vmem>>, vector<8x32xf32>,
    %1494 = tpu.concatenate %1464, %1491 in 1 : vector<8x32xf32>, vector<8x32xf32> -> vector<8x64xf32>
    %cst_409 = arith.constant dense<0.000000e+00> : vector<8x192xf32>
    %1495 = tpu.matmul %1494, %1058, %cst_409 {dimension_numbers = #tpu.dot_dimension_numbers<[1], [0], [0], [1], [0, 0, 1, 1], [], []>} : vector<8x64xf32>, vector<64x192xf32>, vector<8x192xf32> -> vector<8x192xf32>
    %1496 = vector.broadcast %1059 : vector<1x192xf32> to vector<8x192xf32>
    %1497 = arith.addf %1495, %1496 : vector<8x192xf32>
    %c56_410 = arith.constant 56 : index
    %c0_411 = arith.constant 0 : index
    %1498 = vector.load %arg20[%c56_410, %c0_411] : memref<128x96xf32, #tpu.memory_space<vmem>>, vector<8x96xf32>
    %c64_412 = arith.constant 64 : index
    %c0_413 = arith.constant 0 : index
    %1499 = vector.load %arg21[%c64_412, %c0_413] : memref<128x96xf32, #tpu.memory_space<vmem>>, vector<8x96xf32>
    %1500 = vector.extract_strided_slice %1498 {offsets = [0, 0], sizes = [8, 32], strides = [1, 1]} : vector<8x96xf32> to vector<8x32xf32>
    %1501 = vector.extract_strided_slice %1497 {offsets = [0, 0], sizes = [8, 32], strides = [1, 1]} : vector<8x192xf32> to vector<8x32xf32>
    %1502 = arith.addf %1500, %1501 : vector<8x32xf32>
    %1503 = arith.negf %1502 : vector<8x32xf32>
    %1504 = math.exp %1503 : vector<8x32xf32>
    %cst_414 = arith.constant 1.000000e+00 : f32
    %1505 = vector.broadcast %cst_414 : f32 to vector<8x32xf32>
    %1506 = arith.addf %1505, %1504 : vector<8x32xf32>
    %1507 = arith.divf %1505, %1506 : vector<8x32xf32>
    %1508 = vector.extract_strided_slice %1498 {offsets = [0, 32], sizes = [8, 32], strides = [1, 1]} : vector<8x96xf32> to vector<8x32xf32>
    %1509 = vector.extract_strided_slice %1497 {offsets = [0, 32], sizes = [8, 32], strides = [1, 1]} : vector<8x192xf32> to vector<8x32xf32>
    %1510 = arith.addf %1508, %1509 : vector<8x32xf32>
    %1511 = arith.negf %1510 : vector<8x32xf32>
    %1512 = math.exp %1511 : vector<8x32xf32>
    %cst_415 = arith.constant 1.000000e+00 : f32
    %1513 = vector.broadcast %cst_415 : f32 to vector<8x32xf32>
    %1514 = arith.addf %1513, %1512 : vector<8x32xf32>
    %1515 = arith.divf %1513, %1514 : vector<8x32xf32>
    %1516 = vector.extract_strided_slice %1498 {offsets = [0, 64], sizes = [8, 32], strides = [1, 1]} : vector<8x96xf32> to vector<8x32xf32>
    %1517 = vector.extract_strided_slice %1497 {offsets = [0, 64], sizes = [8, 32], strides = [1, 1]} : vector<8x192xf32> to vector<8x32xf32>
    %1518 = arith.mulf %1507, %1517 : vector<8x32xf32>
    %1519 = arith.addf %1516, %1518 : vector<8x32xf32>
    %1520 = math.tanh %1519 : vector<8x32xf32>
    %cst_416 = arith.constant 1.000000e+00 : f32
    %1521 = vector.broadcast %cst_416 : f32 to vector<8x32xf32>
    %1522 = arith.subf %1521, %1515 : vector<8x32xf32>
    %1523 = arith.mulf %1522, %1520 : vector<8x32xf32>
    %1524 = vector.extract_strided_slice %1494 {offsets = [0, 0], sizes = [8, 32], strides = [1, 1]} : vector<8x64xf32> to vector<8x32xf32>
    %1525 = arith.mulf %1515, %1524 : vector<8x32xf32>
    %1526 = arith.addf %1523, %1525 : vector<8x32xf32>
    %1527 = vector.extract_strided_slice %1499 {offsets = [0, 0], sizes = [8, 32], strides = [1, 1]} : vector<8x96xf32> to vector<8x32xf32>
    %1528 = vector.extract_strided_slice %1497 {offsets = [0, 96], sizes = [8, 32], strides = [1, 1]} : vector<8x192xf32> to vector<8x32xf32>
    %1529 = arith.addf %1527, %1528 : vector<8x32xf32>
    %1530 = arith.negf %1529 : vector<8x32xf32>
    %1531 = math.exp %1530 : vector<8x32xf32>
    %cst_417 = arith.constant 1.000000e+00 : f32
    %1532 = vector.broadcast %cst_417 : f32 to vector<8x32xf32>
    %1533 = arith.addf %1532, %1531 : vector<8x32xf32>
    %1534 = arith.divf %1532, %1533 : vector<8x32xf32>
    %1535 = vector.extract_strided_slice %1499 {offsets = [0, 32], sizes = [8, 32], strides = [1, 1]} : vector<8x96xf32> to vector<8x32xf32>
    %1536 = vector.extract_strided_slice %1497 {offsets = [0, 128], sizes = [8, 32], strides = [1, 1]} : vector<8x192xf32> to vector<8x32xf32>
    %1537 = arith.addf %1535, %1536 : vector<8x32xf32>
    %1538 = arith.negf %1537 : vector<8x32xf32>
    %1539 = math.exp %1538 : vector<8x32xf32>
    %cst_418 = arith.constant 1.000000e+00 : f32
    %1540 = vector.broadcast %cst_418 : f32 to vector<8x32xf32>
    %1541 = arith.addf %1540, %1539 : vector<8x32xf32>
    %1542 = arith.divf %1540, %1541 : vector<8x32xf32>
    %1543 = vector.extract_strided_slice %1499 {offsets = [0, 64], sizes = [8, 32], strides = [1, 1]} : vector<8x96xf32> to vector<8x32xf32>
    %1544 = vector.extract_strided_slice %1497 {offsets = [0, 160], sizes = [8, 32], strides = [1, 1]} : vector<8x192xf32> to vector<8x32xf32>
    %1545 = arith.mulf %1534, %1544 : vector<8x32xf32>
    %1546 = arith.addf %1543, %1545 : vector<8x32xf32>
    %1547 = math.tanh %1546 : vector<8x32xf32>
    %cst_419 = arith.constant 1.000000e+00 : f32
    %1548 = vector.broadcast %cst_419 : f32 to vector<8x32xf32>
    %1549 = arith.subf %1548, %1542 : vector<8x32xf32>
    %1550 = arith.mulf %1549, %1547 : vector<8x32xf32>
    %1551 = vector.extract_strided_slice %1494 {offsets = [0, 32], sizes = [8, 32], strides = [1, 1]} : vector<8x64xf32> to vector<8x32xf32>
    %1552 = arith.mulf %1542, %1551 : vector<8x32xf32>
    %1553 = arith.addf %1550, %1552 : vector<8x32xf32>
    %c56_420 = arith.constant 56 : index
    %c0_421 = arith.constant 0 : index
    %1554 = vector.load %arg22[%c56_420, %c0_421] : memref<128x64xf32, #tpu.memory_space<vmem>>, vector<8x32xf32>
    tpu.vector_store %arg22[%c56_420, %c0_421], %1526 {strides = array<i32>} : memref<128x64xf32, #tpu.memory_space<vmem>>, vector<8x32xf32>,
    %c64_422 = arith.constant 64 : index
    %c32_423 = arith.constant 32 : index
    %1555 = vector.load %arg22[%c64_422, %c32_423] : memref<128x64xf32, #tpu.memory_space<vmem>>, vector<8x32xf32>
    tpu.vector_store %arg22[%c64_422, %c32_423], %1553 {strides = array<i32>} : memref<128x64xf32, #tpu.memory_space<vmem>>, vector<8x32xf32>,
    %1556 = tpu.concatenate %1526, %1553 in 1 : vector<8x32xf32>, vector<8x32xf32> -> vector<8x64xf32>
    %cst_424 = arith.constant dense<0.000000e+00> : vector<8x192xf32>
    %1557 = tpu.matmul %1556, %1058, %cst_424 {dimension_numbers = #tpu.dot_dimension_numbers<[1], [0], [0], [1], [0, 0, 1, 1], [], []>} : vector<8x64xf32>, vector<64x192xf32>, vector<8x192xf32> -> vector<8x192xf32>
    %1558 = vector.broadcast %1059 : vector<1x192xf32> to vector<8x192xf32>
    %1559 = arith.addf %1557, %1558 : vector<8x192xf32>
    %c64_425 = arith.constant 64 : index
    %c0_426 = arith.constant 0 : index
    %1560 = vector.load %arg20[%c64_425, %c0_426] : memref<128x96xf32, #tpu.memory_space<vmem>>, vector<8x96xf32>
    %c56_427 = arith.constant 56 : index
    %c0_428 = arith.constant 0 : index
    %1561 = vector.load %arg21[%c56_427, %c0_428] : memref<128x96xf32, #tpu.memory_space<vmem>>, vector<8x96xf32>
    %1562 = vector.extract_strided_slice %1560 {offsets = [0, 0], sizes = [8, 32], strides = [1, 1]} : vector<8x96xf32> to vector<8x32xf32>
    %1563 = vector.extract_strided_slice %1559 {offsets = [0, 0], sizes = [8, 32], strides = [1, 1]} : vector<8x192xf32> to vector<8x32xf32>
    %1564 = arith.addf %1562, %1563 : vector<8x32xf32>
    %1565 = arith.negf %1564 : vector<8x32xf32>
    %1566 = math.exp %1565 : vector<8x32xf32>
    %cst_429 = arith.constant 1.000000e+00 : f32
    %1567 = vector.broadcast %cst_429 : f32 to vector<8x32xf32>
    %1568 = arith.addf %1567, %1566 : vector<8x32xf32>
    %1569 = arith.divf %1567, %1568 : vector<8x32xf32>
    %1570 = vector.extract_strided_slice %1560 {offsets = [0, 32], sizes = [8, 32], strides = [1, 1]} : vector<8x96xf32> to vector<8x32xf32>
    %1571 = vector.extract_strided_slice %1559 {offsets = [0, 32], sizes = [8, 32], strides = [1, 1]} : vector<8x192xf32> to vector<8x32xf32>
    %1572 = arith.addf %1570, %1571 : vector<8x32xf32>
    %1573 = arith.negf %1572 : vector<8x32xf32>
    %1574 = math.exp %1573 : vector<8x32xf32>
    %cst_430 = arith.constant 1.000000e+00 : f32
    %1575 = vector.broadcast %cst_430 : f32 to vector<8x32xf32>
    %1576 = arith.addf %1575, %1574 : vector<8x32xf32>
    %1577 = arith.divf %1575, %1576 : vector<8x32xf32>
    %1578 = vector.extract_strided_slice %1560 {offsets = [0, 64], sizes = [8, 32], strides = [1, 1]} : vector<8x96xf32> to vector<8x32xf32>
    %1579 = vector.extract_strided_slice %1559 {offsets = [0, 64], sizes = [8, 32], strides = [1, 1]} : vector<8x192xf32> to vector<8x32xf32>
    %1580 = arith.mulf %1569, %1579 : vector<8x32xf32>
    %1581 = arith.addf %1578, %1580 : vector<8x32xf32>
    %1582 = math.tanh %1581 : vector<8x32xf32>
    %cst_431 = arith.constant 1.000000e+00 : f32
    %1583 = vector.broadcast %cst_431 : f32 to vector<8x32xf32>
    %1584 = arith.subf %1583, %1577 : vector<8x32xf32>
    %1585 = arith.mulf %1584, %1582 : vector<8x32xf32>
    %1586 = vector.extract_strided_slice %1556 {offsets = [0, 0], sizes = [8, 32], strides = [1, 1]} : vector<8x64xf32> to vector<8x32xf32>
    %1587 = arith.mulf %1577, %1586 : vector<8x32xf32>
    %1588 = arith.addf %1585, %1587 : vector<8x32xf32>
    %1589 = vector.extract_strided_slice %1561 {offsets = [0, 0], sizes = [8, 32], strides = [1, 1]} : vector<8x96xf32> to vector<8x32xf32>
    %1590 = vector.extract_strided_slice %1559 {offsets = [0, 96], sizes = [8, 32], strides = [1, 1]} : vector<8x192xf32> to vector<8x32xf32>
    %1591 = arith.addf %1589, %1590 : vector<8x32xf32>
    %1592 = arith.negf %1591 : vector<8x32xf32>
    %1593 = math.exp %1592 : vector<8x32xf32>
    %cst_432 = arith.constant 1.000000e+00 : f32
    %1594 = vector.broadcast %cst_432 : f32 to vector<8x32xf32>
    %1595 = arith.addf %1594, %1593 : vector<8x32xf32>
    %1596 = arith.divf %1594, %1595 : vector<8x32xf32>
    %1597 = vector.extract_strided_slice %1561 {offsets = [0, 32], sizes = [8, 32], strides = [1, 1]} : vector<8x96xf32> to vector<8x32xf32>
    %1598 = vector.extract_strided_slice %1559 {offsets = [0, 128], sizes = [8, 32], strides = [1, 1]} : vector<8x192xf32> to vector<8x32xf32>
    %1599 = arith.addf %1597, %1598 : vector<8x32xf32>
    %1600 = arith.negf %1599 : vector<8x32xf32>
    %1601 = math.exp %1600 : vector<8x32xf32>
    %cst_433 = arith.constant 1.000000e+00 : f32
    %1602 = vector.broadcast %cst_433 : f32 to vector<8x32xf32>
    %1603 = arith.addf %1602, %1601 : vector<8x32xf32>
    %1604 = arith.divf %1602, %1603 : vector<8x32xf32>
    %1605 = vector.extract_strided_slice %1561 {offsets = [0, 64], sizes = [8, 32], strides = [1, 1]} : vector<8x96xf32> to vector<8x32xf32>
    %1606 = vector.extract_strided_slice %1559 {offsets = [0, 160], sizes = [8, 32], strides = [1, 1]} : vector<8x192xf32> to vector<8x32xf32>
    %1607 = arith.mulf %1596, %1606 : vector<8x32xf32>
    %1608 = arith.addf %1605, %1607 : vector<8x32xf32>
    %1609 = math.tanh %1608 : vector<8x32xf32>
    %cst_434 = arith.constant 1.000000e+00 : f32
    %1610 = vector.broadcast %cst_434 : f32 to vector<8x32xf32>
    %1611 = arith.subf %1610, %1604 : vector<8x32xf32>
    %1612 = arith.mulf %1611, %1609 : vector<8x32xf32>
    %1613 = vector.extract_strided_slice %1556 {offsets = [0, 32], sizes = [8, 32], strides = [1, 1]} : vector<8x64xf32> to vector<8x32xf32>
    %1614 = arith.mulf %1604, %1613 : vector<8x32xf32>
    %1615 = arith.addf %1612, %1614 : vector<8x32xf32>
    %c64_435 = arith.constant 64 : index
    %c0_436 = arith.constant 0 : index
    %1616 = vector.load %arg22[%c64_435, %c0_436] : memref<128x64xf32, #tpu.memory_space<vmem>>, vector<8x32xf32>
    tpu.vector_store %arg22[%c64_435, %c0_436], %1588 {strides = array<i32>} : memref<128x64xf32, #tpu.memory_space<vmem>>, vector<8x32xf32>,
    %c56_437 = arith.constant 56 : index
    %c32_438 = arith.constant 32 : index
    %1617 = vector.load %arg22[%c56_437, %c32_438] : memref<128x64xf32, #tpu.memory_space<vmem>>, vector<8x32xf32>
    tpu.vector_store %arg22[%c56_437, %c32_438], %1615 {strides = array<i32>} : memref<128x64xf32, #tpu.memory_space<vmem>>, vector<8x32xf32>,
    %1618 = tpu.concatenate %1588, %1615 in 1 : vector<8x32xf32>, vector<8x32xf32> -> vector<8x64xf32>
    %cst_439 = arith.constant dense<0.000000e+00> : vector<8x192xf32>
    %1619 = tpu.matmul %1618, %1058, %cst_439 {dimension_numbers = #tpu.dot_dimension_numbers<[1], [0], [0], [1], [0, 0, 1, 1], [], []>} : vector<8x64xf32>, vector<64x192xf32>, vector<8x192xf32> -> vector<8x192xf32>
    %1620 = vector.broadcast %1059 : vector<1x192xf32> to vector<8x192xf32>
    %1621 = arith.addf %1619, %1620 : vector<8x192xf32>
    %c72_440 = arith.constant 72 : index
    %c0_441 = arith.constant 0 : index
    %1622 = vector.load %arg20[%c72_440, %c0_441] : memref<128x96xf32, #tpu.memory_space<vmem>>, vector<8x96xf32>
    %c48_442 = arith.constant 48 : index
    %c0_443 = arith.constant 0 : index
    %1623 = vector.load %arg21[%c48_442, %c0_443] : memref<128x96xf32, #tpu.memory_space<vmem>>, vector<8x96xf32>
    %1624 = vector.extract_strided_slice %1622 {offsets = [0, 0], sizes = [8, 32], strides = [1, 1]} : vector<8x96xf32> to vector<8x32xf32>
    %1625 = vector.extract_strided_slice %1621 {offsets = [0, 0], sizes = [8, 32], strides = [1, 1]} : vector<8x192xf32> to vector<8x32xf32>
    %1626 = arith.addf %1624, %1625 : vector<8x32xf32>
    %1627 = arith.negf %1626 : vector<8x32xf32>
    %1628 = math.exp %1627 : vector<8x32xf32>
    %cst_444 = arith.constant 1.000000e+00 : f32
    %1629 = vector.broadcast %cst_444 : f32 to vector<8x32xf32>
    %1630 = arith.addf %1629, %1628 : vector<8x32xf32>
    %1631 = arith.divf %1629, %1630 : vector<8x32xf32>
    %1632 = vector.extract_strided_slice %1622 {offsets = [0, 32], sizes = [8, 32], strides = [1, 1]} : vector<8x96xf32> to vector<8x32xf32>
    %1633 = vector.extract_strided_slice %1621 {offsets = [0, 32], sizes = [8, 32], strides = [1, 1]} : vector<8x192xf32> to vector<8x32xf32>
    %1634 = arith.addf %1632, %1633 : vector<8x32xf32>
    %1635 = arith.negf %1634 : vector<8x32xf32>
    %1636 = math.exp %1635 : vector<8x32xf32>
    %cst_445 = arith.constant 1.000000e+00 : f32
    %1637 = vector.broadcast %cst_445 : f32 to vector<8x32xf32>
    %1638 = arith.addf %1637, %1636 : vector<8x32xf32>
    %1639 = arith.divf %1637, %1638 : vector<8x32xf32>
    %1640 = vector.extract_strided_slice %1622 {offsets = [0, 64], sizes = [8, 32], strides = [1, 1]} : vector<8x96xf32> to vector<8x32xf32>
    %1641 = vector.extract_strided_slice %1621 {offsets = [0, 64], sizes = [8, 32], strides = [1, 1]} : vector<8x192xf32> to vector<8x32xf32>
    %1642 = arith.mulf %1631, %1641 : vector<8x32xf32>
    %1643 = arith.addf %1640, %1642 : vector<8x32xf32>
    %1644 = math.tanh %1643 : vector<8x32xf32>
    %cst_446 = arith.constant 1.000000e+00 : f32
    %1645 = vector.broadcast %cst_446 : f32 to vector<8x32xf32>
    %1646 = arith.subf %1645, %1639 : vector<8x32xf32>
    %1647 = arith.mulf %1646, %1644 : vector<8x32xf32>
    %1648 = vector.extract_strided_slice %1618 {offsets = [0, 0], sizes = [8, 32], strides = [1, 1]} : vector<8x64xf32> to vector<8x32xf32>
    %1649 = arith.mulf %1639, %1648 : vector<8x32xf32>
    %1650 = arith.addf %1647, %1649 : vector<8x32xf32>
    %1651 = vector.extract_strided_slice %1623 {offsets = [0, 0], sizes = [8, 32], strides = [1, 1]} : vector<8x96xf32> to vector<8x32xf32>
    %1652 = vector.extract_strided_slice %1621 {offsets = [0, 96], sizes = [8, 32], strides = [1, 1]} : vector<8x192xf32> to vector<8x32xf32>
    %1653 = arith.addf %1651, %1652 : vector<8x32xf32>
    %1654 = arith.negf %1653 : vector<8x32xf32>
    %1655 = math.exp %1654 : vector<8x32xf32>
    %cst_447 = arith.constant 1.000000e+00 : f32
    %1656 = vector.broadcast %cst_447 : f32 to vector<8x32xf32>
    %1657 = arith.addf %1656, %1655 : vector<8x32xf32>
    %1658 = arith.divf %1656, %1657 : vector<8x32xf32>
    %1659 = vector.extract_strided_slice %1623 {offsets = [0, 32], sizes = [8, 32], strides = [1, 1]} : vector<8x96xf32> to vector<8x32xf32>
    %1660 = vector.extract_strided_slice %1621 {offsets = [0, 128], sizes = [8, 32], strides = [1, 1]} : vector<8x192xf32> to vector<8x32xf32>
    %1661 = arith.addf %1659, %1660 : vector<8x32xf32>
    %1662 = arith.negf %1661 : vector<8x32xf32>
    %1663 = math.exp %1662 : vector<8x32xf32>
    %cst_448 = arith.constant 1.000000e+00 : f32
    %1664 = vector.broadcast %cst_448 : f32 to vector<8x32xf32>
    %1665 = arith.addf %1664, %1663 : vector<8x32xf32>
    %1666 = arith.divf %1664, %1665 : vector<8x32xf32>
    %1667 = vector.extract_strided_slice %1623 {offsets = [0, 64], sizes = [8, 32], strides = [1, 1]} : vector<8x96xf32> to vector<8x32xf32>
    %1668 = vector.extract_strided_slice %1621 {offsets = [0, 160], sizes = [8, 32], strides = [1, 1]} : vector<8x192xf32> to vector<8x32xf32>
    %1669 = arith.mulf %1658, %1668 : vector<8x32xf32>
    %1670 = arith.addf %1667, %1669 : vector<8x32xf32>
    %1671 = math.tanh %1670 : vector<8x32xf32>
    %cst_449 = arith.constant 1.000000e+00 : f32
    %1672 = vector.broadcast %cst_449 : f32 to vector<8x32xf32>
    %1673 = arith.subf %1672, %1666 : vector<8x32xf32>
    %1674 = arith.mulf %1673, %1671 : vector<8x32xf32>
    %1675 = vector.extract_strided_slice %1618 {offsets = [0, 32], sizes = [8, 32], strides = [1, 1]} : vector<8x64xf32> to vector<8x32xf32>
    %1676 = arith.mulf %1666, %1675 : vector<8x32xf32>
    %1677 = arith.addf %1674, %1676 : vector<8x32xf32>
    %c72_450 = arith.constant 72 : index
    %c0_451 = arith.constant 0 : index
    %1678 = vector.load %arg22[%c72_450, %c0_451] : memref<128x64xf32, #tpu.memory_space<vmem>>, vector<8x32xf32>
    tpu.vector_store %arg22[%c72_450, %c0_451], %1650 {strides = array<i32>} : memref<128x64xf32, #tpu.memory_space<vmem>>, vector<8x32xf32>,
    %c48_452 = arith.constant 48 : index
    %c32_453 = arith.constant 32 : index
    %1679 = vector.load %arg22[%c48_452, %c32_453] : memref<128x64xf32, #tpu.memory_space<vmem>>, vector<8x32xf32>
    tpu.vector_store %arg22[%c48_452, %c32_453], %1677 {strides = array<i32>} : memref<128x64xf32, #tpu.memory_space<vmem>>, vector<8x32xf32>,
    %1680 = tpu.concatenate %1650, %1677 in 1 : vector<8x32xf32>, vector<8x32xf32> -> vector<8x64xf32>
    %cst_454 = arith.constant dense<0.000000e+00> : vector<8x192xf32>
    %1681 = tpu.matmul %1680, %1058, %cst_454 {dimension_numbers = #tpu.dot_dimension_numbers<[1], [0], [0], [1], [0, 0, 1, 1], [], []>} : vector<8x64xf32>, vector<64x192xf32>, vector<8x192xf32> -> vector<8x192xf32>
    %1682 = vector.broadcast %1059 : vector<1x192xf32> to vector<8x192xf32>
    %1683 = arith.addf %1681, %1682 : vector<8x192xf32>
    %c80_455 = arith.constant 80 : index
    %c0_456 = arith.constant 0 : index
    %1684 = vector.load %arg20[%c80_455, %c0_456] : memref<128x96xf32, #tpu.memory_space<vmem>>, vector<8x96xf32>
    %c40_457 = arith.constant 40 : index
    %c0_458 = arith.constant 0 : index
    %1685 = vector.load %arg21[%c40_457, %c0_458] : memref<128x96xf32, #tpu.memory_space<vmem>>, vector<8x96xf32>
    %1686 = vector.extract_strided_slice %1684 {offsets = [0, 0], sizes = [8, 32], strides = [1, 1]} : vector<8x96xf32> to vector<8x32xf32>
    %1687 = vector.extract_strided_slice %1683 {offsets = [0, 0], sizes = [8, 32], strides = [1, 1]} : vector<8x192xf32> to vector<8x32xf32>
    %1688 = arith.addf %1686, %1687 : vector<8x32xf32>
    %1689 = arith.negf %1688 : vector<8x32xf32>
    %1690 = math.exp %1689 : vector<8x32xf32>
    %cst_459 = arith.constant 1.000000e+00 : f32
    %1691 = vector.broadcast %cst_459 : f32 to vector<8x32xf32>
    %1692 = arith.addf %1691, %1690 : vector<8x32xf32>
    %1693 = arith.divf %1691, %1692 : vector<8x32xf32>
    %1694 = vector.extract_strided_slice %1684 {offsets = [0, 32], sizes = [8, 32], strides = [1, 1]} : vector<8x96xf32> to vector<8x32xf32>
    %1695 = vector.extract_strided_slice %1683 {offsets = [0, 32], sizes = [8, 32], strides = [1, 1]} : vector<8x192xf32> to vector<8x32xf32>
    %1696 = arith.addf %1694, %1695 : vector<8x32xf32>
    %1697 = arith.negf %1696 : vector<8x32xf32>
    %1698 = math.exp %1697 : vector<8x32xf32>
    %cst_460 = arith.constant 1.000000e+00 : f32
    %1699 = vector.broadcast %cst_460 : f32 to vector<8x32xf32>
    %1700 = arith.addf %1699, %1698 : vector<8x32xf32>
    %1701 = arith.divf %1699, %1700 : vector<8x32xf32>
    %1702 = vector.extract_strided_slice %1684 {offsets = [0, 64], sizes = [8, 32], strides = [1, 1]} : vector<8x96xf32> to vector<8x32xf32>
    %1703 = vector.extract_strided_slice %1683 {offsets = [0, 64], sizes = [8, 32], strides = [1, 1]} : vector<8x192xf32> to vector<8x32xf32>
    %1704 = arith.mulf %1693, %1703 : vector<8x32xf32>
    %1705 = arith.addf %1702, %1704 : vector<8x32xf32>
    %1706 = math.tanh %1705 : vector<8x32xf32>
    %cst_461 = arith.constant 1.000000e+00 : f32
    %1707 = vector.broadcast %cst_461 : f32 to vector<8x32xf32>
    %1708 = arith.subf %1707, %1701 : vector<8x32xf32>
    %1709 = arith.mulf %1708, %1706 : vector<8x32xf32>
    %1710 = vector.extract_strided_slice %1680 {offsets = [0, 0], sizes = [8, 32], strides = [1, 1]} : vector<8x64xf32> to vector<8x32xf32>
    %1711 = arith.mulf %1701, %1710 : vector<8x32xf32>
    %1712 = arith.addf %1709, %1711 : vector<8x32xf32>
    %1713 = vector.extract_strided_slice %1685 {offsets = [0, 0], sizes = [8, 32], strides = [1, 1]} : vector<8x96xf32> to vector<8x32xf32>
    %1714 = vector.extract_strided_slice %1683 {offsets = [0, 96], sizes = [8, 32], strides = [1, 1]} : vector<8x192xf32> to vector<8x32xf32>
    %1715 = arith.addf %1713, %1714 : vector<8x32xf32>
    %1716 = arith.negf %1715 : vector<8x32xf32>
    %1717 = math.exp %1716 : vector<8x32xf32>
    %cst_462 = arith.constant 1.000000e+00 : f32
    %1718 = vector.broadcast %cst_462 : f32 to vector<8x32xf32>
    %1719 = arith.addf %1718, %1717 : vector<8x32xf32>
    %1720 = arith.divf %1718, %1719 : vector<8x32xf32>
    %1721 = vector.extract_strided_slice %1685 {offsets = [0, 32], sizes = [8, 32], strides = [1, 1]} : vector<8x96xf32> to vector<8x32xf32>
    %1722 = vector.extract_strided_slice %1683 {offsets = [0, 128], sizes = [8, 32], strides = [1, 1]} : vector<8x192xf32> to vector<8x32xf32>
    %1723 = arith.addf %1721, %1722 : vector<8x32xf32>
    %1724 = arith.negf %1723 : vector<8x32xf32>
    %1725 = math.exp %1724 : vector<8x32xf32>
    %cst_463 = arith.constant 1.000000e+00 : f32
    %1726 = vector.broadcast %cst_463 : f32 to vector<8x32xf32>
    %1727 = arith.addf %1726, %1725 : vector<8x32xf32>
    %1728 = arith.divf %1726, %1727 : vector<8x32xf32>
    %1729 = vector.extract_strided_slice %1685 {offsets = [0, 64], sizes = [8, 32], strides = [1, 1]} : vector<8x96xf32> to vector<8x32xf32>
    %1730 = vector.extract_strided_slice %1683 {offsets = [0, 160], sizes = [8, 32], strides = [1, 1]} : vector<8x192xf32> to vector<8x32xf32>
    %1731 = arith.mulf %1720, %1730 : vector<8x32xf32>
    %1732 = arith.addf %1729, %1731 : vector<8x32xf32>
    %1733 = math.tanh %1732 : vector<8x32xf32>
    %cst_464 = arith.constant 1.000000e+00 : f32
    %1734 = vector.broadcast %cst_464 : f32 to vector<8x32xf32>
    %1735 = arith.subf %1734, %1728 : vector<8x32xf32>
    %1736 = arith.mulf %1735, %1733 : vector<8x32xf32>
    %1737 = vector.extract_strided_slice %1680 {offsets = [0, 32], sizes = [8, 32], strides = [1, 1]} : vector<8x64xf32> to vector<8x32xf32>
    %1738 = arith.mulf %1728, %1737 : vector<8x32xf32>
    %1739 = arith.addf %1736, %1738 : vector<8x32xf32>
    %c80_465 = arith.constant 80 : index
    %c0_466 = arith.constant 0 : index
    %1740 = vector.load %arg22[%c80_465, %c0_466] : memref<128x64xf32, #tpu.memory_space<vmem>>, vector<8x32xf32>
    tpu.vector_store %arg22[%c80_465, %c0_466], %1712 {strides = array<i32>} : memref<128x64xf32, #tpu.memory_space<vmem>>, vector<8x32xf32>,
    %c40_467 = arith.constant 40 : index
    %c32_468 = arith.constant 32 : index
    %1741 = vector.load %arg22[%c40_467, %c32_468] : memref<128x64xf32, #tpu.memory_space<vmem>>, vector<8x32xf32>
    tpu.vector_store %arg22[%c40_467, %c32_468], %1739 {strides = array<i32>} : memref<128x64xf32, #tpu.memory_space<vmem>>, vector<8x32xf32>,
    %1742 = tpu.concatenate %1712, %1739 in 1 : vector<8x32xf32>, vector<8x32xf32> -> vector<8x64xf32>
    %cst_469 = arith.constant dense<0.000000e+00> : vector<8x192xf32>
    %1743 = tpu.matmul %1742, %1058, %cst_469 {dimension_numbers = #tpu.dot_dimension_numbers<[1], [0], [0], [1], [0, 0, 1, 1], [], []>} : vector<8x64xf32>, vector<64x192xf32>, vector<8x192xf32> -> vector<8x192xf32>
    %1744 = vector.broadcast %1059 : vector<1x192xf32> to vector<8x192xf32>
    %1745 = arith.addf %1743, %1744 : vector<8x192xf32>
    %c88_470 = arith.constant 88 : index
    %c0_471 = arith.constant 0 : index
    %1746 = vector.load %arg20[%c88_470, %c0_471] : memref<128x96xf32, #tpu.memory_space<vmem>>, vector<8x96xf32>
    %c32_472 = arith.constant 32 : index
    %c0_473 = arith.constant 0 : index
    %1747 = vector.load %arg21[%c32_472, %c0_473] : memref<128x96xf32, #tpu.memory_space<vmem>>, vector<8x96xf32>
    %1748 = vector.extract_strided_slice %1746 {offsets = [0, 0], sizes = [8, 32], strides = [1, 1]} : vector<8x96xf32> to vector<8x32xf32>
    %1749 = vector.extract_strided_slice %1745 {offsets = [0, 0], sizes = [8, 32], strides = [1, 1]} : vector<8x192xf32> to vector<8x32xf32>
    %1750 = arith.addf %1748, %1749 : vector<8x32xf32>
    %1751 = arith.negf %1750 : vector<8x32xf32>
    %1752 = math.exp %1751 : vector<8x32xf32>
    %cst_474 = arith.constant 1.000000e+00 : f32
    %1753 = vector.broadcast %cst_474 : f32 to vector<8x32xf32>
    %1754 = arith.addf %1753, %1752 : vector<8x32xf32>
    %1755 = arith.divf %1753, %1754 : vector<8x32xf32>
    %1756 = vector.extract_strided_slice %1746 {offsets = [0, 32], sizes = [8, 32], strides = [1, 1]} : vector<8x96xf32> to vector<8x32xf32>
    %1757 = vector.extract_strided_slice %1745 {offsets = [0, 32], sizes = [8, 32], strides = [1, 1]} : vector<8x192xf32> to vector<8x32xf32>
    %1758 = arith.addf %1756, %1757 : vector<8x32xf32>
    %1759 = arith.negf %1758 : vector<8x32xf32>
    %1760 = math.exp %1759 : vector<8x32xf32>
    %cst_475 = arith.constant 1.000000e+00 : f32
    %1761 = vector.broadcast %cst_475 : f32 to vector<8x32xf32>
    %1762 = arith.addf %1761, %1760 : vector<8x32xf32>
    %1763 = arith.divf %1761, %1762 : vector<8x32xf32>
    %1764 = vector.extract_strided_slice %1746 {offsets = [0, 64], sizes = [8, 32], strides = [1, 1]} : vector<8x96xf32> to vector<8x32xf32>
    %1765 = vector.extract_strided_slice %1745 {offsets = [0, 64], sizes = [8, 32], strides = [1, 1]} : vector<8x192xf32> to vector<8x32xf32>
    %1766 = arith.mulf %1755, %1765 : vector<8x32xf32>
    %1767 = arith.addf %1764, %1766 : vector<8x32xf32>
    %1768 = math.tanh %1767 : vector<8x32xf32>
    %cst_476 = arith.constant 1.000000e+00 : f32
    %1769 = vector.broadcast %cst_476 : f32 to vector<8x32xf32>
    %1770 = arith.subf %1769, %1763 : vector<8x32xf32>
    %1771 = arith.mulf %1770, %1768 : vector<8x32xf32>
    %1772 = vector.extract_strided_slice %1742 {offsets = [0, 0], sizes = [8, 32], strides = [1, 1]} : vector<8x64xf32> to vector<8x32xf32>
    %1773 = arith.mulf %1763, %1772 : vector<8x32xf32>
    %1774 = arith.addf %1771, %1773 : vector<8x32xf32>
    %1775 = vector.extract_strided_slice %1747 {offsets = [0, 0], sizes = [8, 32], strides = [1, 1]} : vector<8x96xf32> to vector<8x32xf32>
    %1776 = vector.extract_strided_slice %1745 {offsets = [0, 96], sizes = [8, 32], strides = [1, 1]} : vector<8x192xf32> to vector<8x32xf32>
    %1777 = arith.addf %1775, %1776 : vector<8x32xf32>
    %1778 = arith.negf %1777 : vector<8x32xf32>
    %1779 = math.exp %1778 : vector<8x32xf32>
    %cst_477 = arith.constant 1.000000e+00 : f32
    %1780 = vector.broadcast %cst_477 : f32 to vector<8x32xf32>
    %1781 = arith.addf %1780, %1779 : vector<8x32xf32>
    %1782 = arith.divf %1780, %1781 : vector<8x32xf32>
    %1783 = vector.extract_strided_slice %1747 {offsets = [0, 32], sizes = [8, 32], strides = [1, 1]} : vector<8x96xf32> to vector<8x32xf32>
    %1784 = vector.extract_strided_slice %1745 {offsets = [0, 128], sizes = [8, 32], strides = [1, 1]} : vector<8x192xf32> to vector<8x32xf32>
    %1785 = arith.addf %1783, %1784 : vector<8x32xf32>
    %1786 = arith.negf %1785 : vector<8x32xf32>
    %1787 = math.exp %1786 : vector<8x32xf32>
    %cst_478 = arith.constant 1.000000e+00 : f32
    %1788 = vector.broadcast %cst_478 : f32 to vector<8x32xf32>
    %1789 = arith.addf %1788, %1787 : vector<8x32xf32>
    %1790 = arith.divf %1788, %1789 : vector<8x32xf32>
    %1791 = vector.extract_strided_slice %1747 {offsets = [0, 64], sizes = [8, 32], strides = [1, 1]} : vector<8x96xf32> to vector<8x32xf32>
    %1792 = vector.extract_strided_slice %1745 {offsets = [0, 160], sizes = [8, 32], strides = [1, 1]} : vector<8x192xf32> to vector<8x32xf32>
    %1793 = arith.mulf %1782, %1792 : vector<8x32xf32>
    %1794 = arith.addf %1791, %1793 : vector<8x32xf32>
    %1795 = math.tanh %1794 : vector<8x32xf32>
    %cst_479 = arith.constant 1.000000e+00 : f32
    %1796 = vector.broadcast %cst_479 : f32 to vector<8x32xf32>
    %1797 = arith.subf %1796, %1790 : vector<8x32xf32>
    %1798 = arith.mulf %1797, %1795 : vector<8x32xf32>
    %1799 = vector.extract_strided_slice %1742 {offsets = [0, 32], sizes = [8, 32], strides = [1, 1]} : vector<8x64xf32> to vector<8x32xf32>
    %1800 = arith.mulf %1790, %1799 : vector<8x32xf32>
    %1801 = arith.addf %1798, %1800 : vector<8x32xf32>
    %c88_480 = arith.constant 88 : index
    %c0_481 = arith.constant 0 : index
    %1802 = vector.load %arg22[%c88_480, %c0_481] : memref<128x64xf32, #tpu.memory_space<vmem>>, vector<8x32xf32>
    tpu.vector_store %arg22[%c88_480, %c0_481], %1774 {strides = array<i32>} : memref<128x64xf32, #tpu.memory_space<vmem>>, vector<8x32xf32>,
    %c32_482 = arith.constant 32 : index
    %c32_483 = arith.constant 32 : index
    %1803 = vector.load %arg22[%c32_482, %c32_483] : memref<128x64xf32, #tpu.memory_space<vmem>>, vector<8x32xf32>
    tpu.vector_store %arg22[%c32_482, %c32_483], %1801 {strides = array<i32>} : memref<128x64xf32, #tpu.memory_space<vmem>>, vector<8x32xf32>,
    %1804 = tpu.concatenate %1774, %1801 in 1 : vector<8x32xf32>, vector<8x32xf32> -> vector<8x64xf32>
    %cst_484 = arith.constant dense<0.000000e+00> : vector<8x192xf32>
    %1805 = tpu.matmul %1804, %1058, %cst_484 {dimension_numbers = #tpu.dot_dimension_numbers<[1], [0], [0], [1], [0, 0, 1, 1], [], []>} : vector<8x64xf32>, vector<64x192xf32>, vector<8x192xf32> -> vector<8x192xf32>
    %1806 = vector.broadcast %1059 : vector<1x192xf32> to vector<8x192xf32>
    %1807 = arith.addf %1805, %1806 : vector<8x192xf32>
    %c96_485 = arith.constant 96 : index
    %c0_486 = arith.constant 0 : index
    %1808 = vector.load %arg20[%c96_485, %c0_486] : memref<128x96xf32, #tpu.memory_space<vmem>>, vector<8x96xf32>
    %c24_487 = arith.constant 24 : index
    %c0_488 = arith.constant 0 : index
    %1809 = vector.load %arg21[%c24_487, %c0_488] : memref<128x96xf32, #tpu.memory_space<vmem>>, vector<8x96xf32>
    %1810 = vector.extract_strided_slice %1808 {offsets = [0, 0], sizes = [8, 32], strides = [1, 1]} : vector<8x96xf32> to vector<8x32xf32>
    %1811 = vector.extract_strided_slice %1807 {offsets = [0, 0], sizes = [8, 32], strides = [1, 1]} : vector<8x192xf32> to vector<8x32xf32>
    %1812 = arith.addf %1810, %1811 : vector<8x32xf32>
    %1813 = arith.negf %1812 : vector<8x32xf32>
    %1814 = math.exp %1813 : vector<8x32xf32>
    %cst_489 = arith.constant 1.000000e+00 : f32
    %1815 = vector.broadcast %cst_489 : f32 to vector<8x32xf32>
    %1816 = arith.addf %1815, %1814 : vector<8x32xf32>
    %1817 = arith.divf %1815, %1816 : vector<8x32xf32>
    %1818 = vector.extract_strided_slice %1808 {offsets = [0, 32], sizes = [8, 32], strides = [1, 1]} : vector<8x96xf32> to vector<8x32xf32>
    %1819 = vector.extract_strided_slice %1807 {offsets = [0, 32], sizes = [8, 32], strides = [1, 1]} : vector<8x192xf32> to vector<8x32xf32>
    %1820 = arith.addf %1818, %1819 : vector<8x32xf32>
    %1821 = arith.negf %1820 : vector<8x32xf32>
    %1822 = math.exp %1821 : vector<8x32xf32>
    %cst_490 = arith.constant 1.000000e+00 : f32
    %1823 = vector.broadcast %cst_490 : f32 to vector<8x32xf32>
    %1824 = arith.addf %1823, %1822 : vector<8x32xf32>
    %1825 = arith.divf %1823, %1824 : vector<8x32xf32>
    %1826 = vector.extract_strided_slice %1808 {offsets = [0, 64], sizes = [8, 32], strides = [1, 1]} : vector<8x96xf32> to vector<8x32xf32>
    %1827 = vector.extract_strided_slice %1807 {offsets = [0, 64], sizes = [8, 32], strides = [1, 1]} : vector<8x192xf32> to vector<8x32xf32>
    %1828 = arith.mulf %1817, %1827 : vector<8x32xf32>
    %1829 = arith.addf %1826, %1828 : vector<8x32xf32>
    %1830 = math.tanh %1829 : vector<8x32xf32>
    %cst_491 = arith.constant 1.000000e+00 : f32
    %1831 = vector.broadcast %cst_491 : f32 to vector<8x32xf32>
    %1832 = arith.subf %1831, %1825 : vector<8x32xf32>
    %1833 = arith.mulf %1832, %1830 : vector<8x32xf32>
    %1834 = vector.extract_strided_slice %1804 {offsets = [0, 0], sizes = [8, 32], strides = [1, 1]} : vector<8x64xf32> to vector<8x32xf32>
    %1835 = arith.mulf %1825, %1834 : vector<8x32xf32>
    %1836 = arith.addf %1833, %1835 : vector<8x32xf32>
    %1837 = vector.extract_strided_slice %1809 {offsets = [0, 0], sizes = [8, 32], strides = [1, 1]} : vector<8x96xf32> to vector<8x32xf32>
    %1838 = vector.extract_strided_slice %1807 {offsets = [0, 96], sizes = [8, 32], strides = [1, 1]} : vector<8x192xf32> to vector<8x32xf32>
    %1839 = arith.addf %1837, %1838 : vector<8x32xf32>
    %1840 = arith.negf %1839 : vector<8x32xf32>
    %1841 = math.exp %1840 : vector<8x32xf32>
    %cst_492 = arith.constant 1.000000e+00 : f32
    %1842 = vector.broadcast %cst_492 : f32 to vector<8x32xf32>
    %1843 = arith.addf %1842, %1841 : vector<8x32xf32>
    %1844 = arith.divf %1842, %1843 : vector<8x32xf32>
    %1845 = vector.extract_strided_slice %1809 {offsets = [0, 32], sizes = [8, 32], strides = [1, 1]} : vector<8x96xf32> to vector<8x32xf32>
    %1846 = vector.extract_strided_slice %1807 {offsets = [0, 128], sizes = [8, 32], strides = [1, 1]} : vector<8x192xf32> to vector<8x32xf32>
    %1847 = arith.addf %1845, %1846 : vector<8x32xf32>
    %1848 = arith.negf %1847 : vector<8x32xf32>
    %1849 = math.exp %1848 : vector<8x32xf32>
    %cst_493 = arith.constant 1.000000e+00 : f32
    %1850 = vector.broadcast %cst_493 : f32 to vector<8x32xf32>
    %1851 = arith.addf %1850, %1849 : vector<8x32xf32>
    %1852 = arith.divf %1850, %1851 : vector<8x32xf32>
    %1853 = vector.extract_strided_slice %1809 {offsets = [0, 64], sizes = [8, 32], strides = [1, 1]} : vector<8x96xf32> to vector<8x32xf32>
    %1854 = vector.extract_strided_slice %1807 {offsets = [0, 160], sizes = [8, 32], strides = [1, 1]} : vector<8x192xf32> to vector<8x32xf32>
    %1855 = arith.mulf %1844, %1854 : vector<8x32xf32>
    %1856 = arith.addf %1853, %1855 : vector<8x32xf32>
    %1857 = math.tanh %1856 : vector<8x32xf32>
    %cst_494 = arith.constant 1.000000e+00 : f32
    %1858 = vector.broadcast %cst_494 : f32 to vector<8x32xf32>
    %1859 = arith.subf %1858, %1852 : vector<8x32xf32>
    %1860 = arith.mulf %1859, %1857 : vector<8x32xf32>
    %1861 = vector.extract_strided_slice %1804 {offsets = [0, 32], sizes = [8, 32], strides = [1, 1]} : vector<8x64xf32> to vector<8x32xf32>
    %1862 = arith.mulf %1852, %1861 : vector<8x32xf32>
    %1863 = arith.addf %1860, %1862 : vector<8x32xf32>
    %c96_495 = arith.constant 96 : index
    %c0_496 = arith.constant 0 : index
    %1864 = vector.load %arg22[%c96_495, %c0_496] : memref<128x64xf32, #tpu.memory_space<vmem>>, vector<8x32xf32>
    tpu.vector_store %arg22[%c96_495, %c0_496], %1836 {strides = array<i32>} : memref<128x64xf32, #tpu.memory_space<vmem>>, vector<8x32xf32>,
    %c24_497 = arith.constant 24 : index
    %c32_498 = arith.constant 32 : index
    %1865 = vector.load %arg22[%c24_497, %c32_498] : memref<128x64xf32, #tpu.memory_space<vmem>>, vector<8x32xf32>
    tpu.vector_store %arg22[%c24_497, %c32_498], %1863 {strides = array<i32>} : memref<128x64xf32, #tpu.memory_space<vmem>>, vector<8x32xf32>,
    %1866 = tpu.concatenate %1836, %1863 in 1 : vector<8x32xf32>, vector<8x32xf32> -> vector<8x64xf32>
    %cst_499 = arith.constant dense<0.000000e+00> : vector<8x192xf32>
    %1867 = tpu.matmul %1866, %1058, %cst_499 {dimension_numbers = #tpu.dot_dimension_numbers<[1], [0], [0], [1], [0, 0, 1, 1], [], []>} : vector<8x64xf32>, vector<64x192xf32>, vector<8x192xf32> -> vector<8x192xf32>
    %1868 = vector.broadcast %1059 : vector<1x192xf32> to vector<8x192xf32>
    %1869 = arith.addf %1867, %1868 : vector<8x192xf32>
    %c104_500 = arith.constant 104 : index
    %c0_501 = arith.constant 0 : index
    %1870 = vector.load %arg20[%c104_500, %c0_501] : memref<128x96xf32, #tpu.memory_space<vmem>>, vector<8x96xf32>
    %c16_502 = arith.constant 16 : index
    %c0_503 = arith.constant 0 : index
    %1871 = vector.load %arg21[%c16_502, %c0_503] : memref<128x96xf32, #tpu.memory_space<vmem>>, vector<8x96xf32>
    %1872 = vector.extract_strided_slice %1870 {offsets = [0, 0], sizes = [8, 32], strides = [1, 1]} : vector<8x96xf32> to vector<8x32xf32>
    %1873 = vector.extract_strided_slice %1869 {offsets = [0, 0], sizes = [8, 32], strides = [1, 1]} : vector<8x192xf32> to vector<8x32xf32>
    %1874 = arith.addf %1872, %1873 : vector<8x32xf32>
    %1875 = arith.negf %1874 : vector<8x32xf32>
    %1876 = math.exp %1875 : vector<8x32xf32>
    %cst_504 = arith.constant 1.000000e+00 : f32
    %1877 = vector.broadcast %cst_504 : f32 to vector<8x32xf32>
    %1878 = arith.addf %1877, %1876 : vector<8x32xf32>
    %1879 = arith.divf %1877, %1878 : vector<8x32xf32>
    %1880 = vector.extract_strided_slice %1870 {offsets = [0, 32], sizes = [8, 32], strides = [1, 1]} : vector<8x96xf32> to vector<8x32xf32>
    %1881 = vector.extract_strided_slice %1869 {offsets = [0, 32], sizes = [8, 32], strides = [1, 1]} : vector<8x192xf32> to vector<8x32xf32>
    %1882 = arith.addf %1880, %1881 : vector<8x32xf32>
    %1883 = arith.negf %1882 : vector<8x32xf32>
    %1884 = math.exp %1883 : vector<8x32xf32>
    %cst_505 = arith.constant 1.000000e+00 : f32
    %1885 = vector.broadcast %cst_505 : f32 to vector<8x32xf32>
    %1886 = arith.addf %1885, %1884 : vector<8x32xf32>
    %1887 = arith.divf %1885, %1886 : vector<8x32xf32>
    %1888 = vector.extract_strided_slice %1870 {offsets = [0, 64], sizes = [8, 32], strides = [1, 1]} : vector<8x96xf32> to vector<8x32xf32>
    %1889 = vector.extract_strided_slice %1869 {offsets = [0, 64], sizes = [8, 32], strides = [1, 1]} : vector<8x192xf32> to vector<8x32xf32>
    %1890 = arith.mulf %1879, %1889 : vector<8x32xf32>
    %1891 = arith.addf %1888, %1890 : vector<8x32xf32>
    %1892 = math.tanh %1891 : vector<8x32xf32>
    %cst_506 = arith.constant 1.000000e+00 : f32
    %1893 = vector.broadcast %cst_506 : f32 to vector<8x32xf32>
    %1894 = arith.subf %1893, %1887 : vector<8x32xf32>
    %1895 = arith.mulf %1894, %1892 : vector<8x32xf32>
    %1896 = vector.extract_strided_slice %1866 {offsets = [0, 0], sizes = [8, 32], strides = [1, 1]} : vector<8x64xf32> to vector<8x32xf32>
    %1897 = arith.mulf %1887, %1896 : vector<8x32xf32>
    %1898 = arith.addf %1895, %1897 : vector<8x32xf32>
    %1899 = vector.extract_strided_slice %1871 {offsets = [0, 0], sizes = [8, 32], strides = [1, 1]} : vector<8x96xf32> to vector<8x32xf32>
    %1900 = vector.extract_strided_slice %1869 {offsets = [0, 96], sizes = [8, 32], strides = [1, 1]} : vector<8x192xf32> to vector<8x32xf32>
    %1901 = arith.addf %1899, %1900 : vector<8x32xf32>
    %1902 = arith.negf %1901 : vector<8x32xf32>
    %1903 = math.exp %1902 : vector<8x32xf32>
    %cst_507 = arith.constant 1.000000e+00 : f32
    %1904 = vector.broadcast %cst_507 : f32 to vector<8x32xf32>
    %1905 = arith.addf %1904, %1903 : vector<8x32xf32>
    %1906 = arith.divf %1904, %1905 : vector<8x32xf32>
    %1907 = vector.extract_strided_slice %1871 {offsets = [0, 32], sizes = [8, 32], strides = [1, 1]} : vector<8x96xf32> to vector<8x32xf32>
    %1908 = vector.extract_strided_slice %1869 {offsets = [0, 128], sizes = [8, 32], strides = [1, 1]} : vector<8x192xf32> to vector<8x32xf32>
    %1909 = arith.addf %1907, %1908 : vector<8x32xf32>
    %1910 = arith.negf %1909 : vector<8x32xf32>
    %1911 = math.exp %1910 : vector<8x32xf32>
    %cst_508 = arith.constant 1.000000e+00 : f32
    %1912 = vector.broadcast %cst_508 : f32 to vector<8x32xf32>
    %1913 = arith.addf %1912, %1911 : vector<8x32xf32>
    %1914 = arith.divf %1912, %1913 : vector<8x32xf32>
    %1915 = vector.extract_strided_slice %1871 {offsets = [0, 64], sizes = [8, 32], strides = [1, 1]} : vector<8x96xf32> to vector<8x32xf32>
    %1916 = vector.extract_strided_slice %1869 {offsets = [0, 160], sizes = [8, 32], strides = [1, 1]} : vector<8x192xf32> to vector<8x32xf32>
    %1917 = arith.mulf %1906, %1916 : vector<8x32xf32>
    %1918 = arith.addf %1915, %1917 : vector<8x32xf32>
    %1919 = math.tanh %1918 : vector<8x32xf32>
    %cst_509 = arith.constant 1.000000e+00 : f32
    %1920 = vector.broadcast %cst_509 : f32 to vector<8x32xf32>
    %1921 = arith.subf %1920, %1914 : vector<8x32xf32>
    %1922 = arith.mulf %1921, %1919 : vector<8x32xf32>
    %1923 = vector.extract_strided_slice %1866 {offsets = [0, 32], sizes = [8, 32], strides = [1, 1]} : vector<8x64xf32> to vector<8x32xf32>
    %1924 = arith.mulf %1914, %1923 : vector<8x32xf32>
    %1925 = arith.addf %1922, %1924 : vector<8x32xf32>
    %c104_510 = arith.constant 104 : index
    %c0_511 = arith.constant 0 : index
    %1926 = vector.load %arg22[%c104_510, %c0_511] : memref<128x64xf32, #tpu.memory_space<vmem>>, vector<8x32xf32>
    tpu.vector_store %arg22[%c104_510, %c0_511], %1898 {strides = array<i32>} : memref<128x64xf32, #tpu.memory_space<vmem>>, vector<8x32xf32>,
    %c16_512 = arith.constant 16 : index
    %c32_513 = arith.constant 32 : index
    %1927 = vector.load %arg22[%c16_512, %c32_513] : memref<128x64xf32, #tpu.memory_space<vmem>>, vector<8x32xf32>
    tpu.vector_store %arg22[%c16_512, %c32_513], %1925 {strides = array<i32>} : memref<128x64xf32, #tpu.memory_space<vmem>>, vector<8x32xf32>,
    %1928 = tpu.concatenate %1898, %1925 in 1 : vector<8x32xf32>, vector<8x32xf32> -> vector<8x64xf32>
    %cst_514 = arith.constant dense<0.000000e+00> : vector<8x192xf32>
    %1929 = tpu.matmul %1928, %1058, %cst_514 {dimension_numbers = #tpu.dot_dimension_numbers<[1], [0], [0], [1], [0, 0, 1, 1], [], []>} : vector<8x64xf32>, vector<64x192xf32>, vector<8x192xf32> -> vector<8x192xf32>
    %1930 = vector.broadcast %1059 : vector<1x192xf32> to vector<8x192xf32>
    %1931 = arith.addf %1929, %1930 : vector<8x192xf32>
    %c112_515 = arith.constant 112 : index
    %c0_516 = arith.constant 0 : index
    %1932 = vector.load %arg20[%c112_515, %c0_516] : memref<128x96xf32, #tpu.memory_space<vmem>>, vector<8x96xf32>
    %c8_517 = arith.constant 8 : index
    %c0_518 = arith.constant 0 : index
    %1933 = vector.load %arg21[%c8_517, %c0_518] : memref<128x96xf32, #tpu.memory_space<vmem>>, vector<8x96xf32>
    %1934 = vector.extract_strided_slice %1932 {offsets = [0, 0], sizes = [8, 32], strides = [1, 1]} : vector<8x96xf32> to vector<8x32xf32>
    %1935 = vector.extract_strided_slice %1931 {offsets = [0, 0], sizes = [8, 32], strides = [1, 1]} : vector<8x192xf32> to vector<8x32xf32>
    %1936 = arith.addf %1934, %1935 : vector<8x32xf32>
    %1937 = arith.negf %1936 : vector<8x32xf32>
    %1938 = math.exp %1937 : vector<8x32xf32>
    %cst_519 = arith.constant 1.000000e+00 : f32
    %1939 = vector.broadcast %cst_519 : f32 to vector<8x32xf32>
    %1940 = arith.addf %1939, %1938 : vector<8x32xf32>
    %1941 = arith.divf %1939, %1940 : vector<8x32xf32>
    %1942 = vector.extract_strided_slice %1932 {offsets = [0, 32], sizes = [8, 32], strides = [1, 1]} : vector<8x96xf32> to vector<8x32xf32>
    %1943 = vector.extract_strided_slice %1931 {offsets = [0, 32], sizes = [8, 32], strides = [1, 1]} : vector<8x192xf32> to vector<8x32xf32>
    %1944 = arith.addf %1942, %1943 : vector<8x32xf32>
    %1945 = arith.negf %1944 : vector<8x32xf32>
    %1946 = math.exp %1945 : vector<8x32xf32>
    %cst_520 = arith.constant 1.000000e+00 : f32
    %1947 = vector.broadcast %cst_520 : f32 to vector<8x32xf32>
    %1948 = arith.addf %1947, %1946 : vector<8x32xf32>
    %1949 = arith.divf %1947, %1948 : vector<8x32xf32>
    %1950 = vector.extract_strided_slice %1932 {offsets = [0, 64], sizes = [8, 32], strides = [1, 1]} : vector<8x96xf32> to vector<8x32xf32>
    %1951 = vector.extract_strided_slice %1931 {offsets = [0, 64], sizes = [8, 32], strides = [1, 1]} : vector<8x192xf32> to vector<8x32xf32>
    %1952 = arith.mulf %1941, %1951 : vector<8x32xf32>
    %1953 = arith.addf %1950, %1952 : vector<8x32xf32>
    %1954 = math.tanh %1953 : vector<8x32xf32>
    %cst_521 = arith.constant 1.000000e+00 : f32
    %1955 = vector.broadcast %cst_521 : f32 to vector<8x32xf32>
    %1956 = arith.subf %1955, %1949 : vector<8x32xf32>
    %1957 = arith.mulf %1956, %1954 : vector<8x32xf32>
    %1958 = vector.extract_strided_slice %1928 {offsets = [0, 0], sizes = [8, 32], strides = [1, 1]} : vector<8x64xf32> to vector<8x32xf32>
    %1959 = arith.mulf %1949, %1958 : vector<8x32xf32>
    %1960 = arith.addf %1957, %1959 : vector<8x32xf32>
    %1961 = vector.extract_strided_slice %1933 {offsets = [0, 0], sizes = [8, 32], strides = [1, 1]} : vector<8x96xf32> to vector<8x32xf32>
    %1962 = vector.extract_strided_slice %1931 {offsets = [0, 96], sizes = [8, 32], strides = [1, 1]} : vector<8x192xf32> to vector<8x32xf32>
    %1963 = arith.addf %1961, %1962 : vector<8x32xf32>
    %1964 = arith.negf %1963 : vector<8x32xf32>
    %1965 = math.exp %1964 : vector<8x32xf32>
    %cst_522 = arith.constant 1.000000e+00 : f32
    %1966 = vector.broadcast %cst_522 : f32 to vector<8x32xf32>
    %1967 = arith.addf %1966, %1965 : vector<8x32xf32>
    %1968 = arith.divf %1966, %1967 : vector<8x32xf32>
    %1969 = vector.extract_strided_slice %1933 {offsets = [0, 32], sizes = [8, 32], strides = [1, 1]} : vector<8x96xf32> to vector<8x32xf32>
    %1970 = vector.extract_strided_slice %1931 {offsets = [0, 128], sizes = [8, 32], strides = [1, 1]} : vector<8x192xf32> to vector<8x32xf32>
    %1971 = arith.addf %1969, %1970 : vector<8x32xf32>
    %1972 = arith.negf %1971 : vector<8x32xf32>
    %1973 = math.exp %1972 : vector<8x32xf32>
    %cst_523 = arith.constant 1.000000e+00 : f32
    %1974 = vector.broadcast %cst_523 : f32 to vector<8x32xf32>
    %1975 = arith.addf %1974, %1973 : vector<8x32xf32>
    %1976 = arith.divf %1974, %1975 : vector<8x32xf32>
    %1977 = vector.extract_strided_slice %1933 {offsets = [0, 64], sizes = [8, 32], strides = [1, 1]} : vector<8x96xf32> to vector<8x32xf32>
    %1978 = vector.extract_strided_slice %1931 {offsets = [0, 160], sizes = [8, 32], strides = [1, 1]} : vector<8x192xf32> to vector<8x32xf32>
    %1979 = arith.mulf %1968, %1978 : vector<8x32xf32>
    %1980 = arith.addf %1977, %1979 : vector<8x32xf32>
    %1981 = math.tanh %1980 : vector<8x32xf32>
    %cst_524 = arith.constant 1.000000e+00 : f32
    %1982 = vector.broadcast %cst_524 : f32 to vector<8x32xf32>
    %1983 = arith.subf %1982, %1976 : vector<8x32xf32>
    %1984 = arith.mulf %1983, %1981 : vector<8x32xf32>
    %1985 = vector.extract_strided_slice %1928 {offsets = [0, 32], sizes = [8, 32], strides = [1, 1]} : vector<8x64xf32> to vector<8x32xf32>
    %1986 = arith.mulf %1976, %1985 : vector<8x32xf32>
    %1987 = arith.addf %1984, %1986 : vector<8x32xf32>
    %c112_525 = arith.constant 112 : index
    %c0_526 = arith.constant 0 : index
    %1988 = vector.load %arg22[%c112_525, %c0_526] : memref<128x64xf32, #tpu.memory_space<vmem>>, vector<8x32xf32>
    tpu.vector_store %arg22[%c112_525, %c0_526], %1960 {strides = array<i32>} : memref<128x64xf32, #tpu.memory_space<vmem>>, vector<8x32xf32>,
    %c8_527 = arith.constant 8 : index
    %c32_528 = arith.constant 32 : index
    %1989 = vector.load %arg22[%c8_527, %c32_528] : memref<128x64xf32, #tpu.memory_space<vmem>>, vector<8x32xf32>
    tpu.vector_store %arg22[%c8_527, %c32_528], %1987 {strides = array<i32>} : memref<128x64xf32, #tpu.memory_space<vmem>>, vector<8x32xf32>,
    %1990 = tpu.concatenate %1960, %1987 in 1 : vector<8x32xf32>, vector<8x32xf32> -> vector<8x64xf32>
    %cst_529 = arith.constant dense<0.000000e+00> : vector<8x192xf32>
    %1991 = tpu.matmul %1990, %1058, %cst_529 {dimension_numbers = #tpu.dot_dimension_numbers<[1], [0], [0], [1], [0, 0, 1, 1], [], []>} : vector<8x64xf32>, vector<64x192xf32>, vector<8x192xf32> -> vector<8x192xf32>
    %1992 = vector.broadcast %1059 : vector<1x192xf32> to vector<8x192xf32>
    %1993 = arith.addf %1991, %1992 : vector<8x192xf32>
    %c120_530 = arith.constant 120 : index
    %c0_531 = arith.constant 0 : index
    %1994 = vector.load %arg20[%c120_530, %c0_531] : memref<128x96xf32, #tpu.memory_space<vmem>>, vector<8x96xf32>
    %c0_532 = arith.constant 0 : index
    %c0_533 = arith.constant 0 : index
    %1995 = vector.load %arg21[%c0_532, %c0_533] : memref<128x96xf32, #tpu.memory_space<vmem>>, vector<8x96xf32>
    %1996 = vector.extract_strided_slice %1994 {offsets = [0, 0], sizes = [8, 32], strides = [1, 1]} : vector<8x96xf32> to vector<8x32xf32>
    %1997 = vector.extract_strided_slice %1993 {offsets = [0, 0], sizes = [8, 32], strides = [1, 1]} : vector<8x192xf32> to vector<8x32xf32>
    %1998 = arith.addf %1996, %1997 : vector<8x32xf32>
    %1999 = arith.negf %1998 : vector<8x32xf32>
    %2000 = math.exp %1999 : vector<8x32xf32>
    %cst_534 = arith.constant 1.000000e+00 : f32
    %2001 = vector.broadcast %cst_534 : f32 to vector<8x32xf32>
    %2002 = arith.addf %2001, %2000 : vector<8x32xf32>
    %2003 = arith.divf %2001, %2002 : vector<8x32xf32>
    %2004 = vector.extract_strided_slice %1994 {offsets = [0, 32], sizes = [8, 32], strides = [1, 1]} : vector<8x96xf32> to vector<8x32xf32>
    %2005 = vector.extract_strided_slice %1993 {offsets = [0, 32], sizes = [8, 32], strides = [1, 1]} : vector<8x192xf32> to vector<8x32xf32>
    %2006 = arith.addf %2004, %2005 : vector<8x32xf32>
    %2007 = arith.negf %2006 : vector<8x32xf32>
    %2008 = math.exp %2007 : vector<8x32xf32>
    %cst_535 = arith.constant 1.000000e+00 : f32
    %2009 = vector.broadcast %cst_535 : f32 to vector<8x32xf32>
    %2010 = arith.addf %2009, %2008 : vector<8x32xf32>
    %2011 = arith.divf %2009, %2010 : vector<8x32xf32>
    %2012 = vector.extract_strided_slice %1994 {offsets = [0, 64], sizes = [8, 32], strides = [1, 1]} : vector<8x96xf32> to vector<8x32xf32>
    %2013 = vector.extract_strided_slice %1993 {offsets = [0, 64], sizes = [8, 32], strides = [1, 1]} : vector<8x192xf32> to vector<8x32xf32>
    %2014 = arith.mulf %2003, %2013 : vector<8x32xf32>
    %2015 = arith.addf %2012, %2014 : vector<8x32xf32>
    %2016 = math.tanh %2015 : vector<8x32xf32>
    %cst_536 = arith.constant 1.000000e+00 : f32
    %2017 = vector.broadcast %cst_536 : f32 to vector<8x32xf32>
    %2018 = arith.subf %2017, %2011 : vector<8x32xf32>
    %2019 = arith.mulf %2018, %2016 : vector<8x32xf32>
    %2020 = vector.extract_strided_slice %1990 {offsets = [0, 0], sizes = [8, 32], strides = [1, 1]} : vector<8x64xf32> to vector<8x32xf32>
    %2021 = arith.mulf %2011, %2020 : vector<8x32xf32>
    %2022 = arith.addf %2019, %2021 : vector<8x32xf32>
    %2023 = vector.extract_strided_slice %1995 {offsets = [0, 0], sizes = [8, 32], strides = [1, 1]} : vector<8x96xf32> to vector<8x32xf32>
    %2024 = vector.extract_strided_slice %1993 {offsets = [0, 96], sizes = [8, 32], strides = [1, 1]} : vector<8x192xf32> to vector<8x32xf32>
    %2025 = arith.addf %2023, %2024 : vector<8x32xf32>
    %2026 = arith.negf %2025 : vector<8x32xf32>
    %2027 = math.exp %2026 : vector<8x32xf32>
    %cst_537 = arith.constant 1.000000e+00 : f32
    %2028 = vector.broadcast %cst_537 : f32 to vector<8x32xf32>
    %2029 = arith.addf %2028, %2027 : vector<8x32xf32>
    %2030 = arith.divf %2028, %2029 : vector<8x32xf32>
    %2031 = vector.extract_strided_slice %1995 {offsets = [0, 32], sizes = [8, 32], strides = [1, 1]} : vector<8x96xf32> to vector<8x32xf32>
    %2032 = vector.extract_strided_slice %1993 {offsets = [0, 128], sizes = [8, 32], strides = [1, 1]} : vector<8x192xf32> to vector<8x32xf32>
    %2033 = arith.addf %2031, %2032 : vector<8x32xf32>
    %2034 = arith.negf %2033 : vector<8x32xf32>
    %2035 = math.exp %2034 : vector<8x32xf32>
    %cst_538 = arith.constant 1.000000e+00 : f32
    %2036 = vector.broadcast %cst_538 : f32 to vector<8x32xf32>
    %2037 = arith.addf %2036, %2035 : vector<8x32xf32>
    %2038 = arith.divf %2036, %2037 : vector<8x32xf32>
    %2039 = vector.extract_strided_slice %1995 {offsets = [0, 64], sizes = [8, 32], strides = [1, 1]} : vector<8x96xf32> to vector<8x32xf32>
    %2040 = vector.extract_strided_slice %1993 {offsets = [0, 160], sizes = [8, 32], strides = [1, 1]} : vector<8x192xf32> to vector<8x32xf32>
    %2041 = arith.mulf %2030, %2040 : vector<8x32xf32>
    %2042 = arith.addf %2039, %2041 : vector<8x32xf32>
    %2043 = math.tanh %2042 : vector<8x32xf32>
    %cst_539 = arith.constant 1.000000e+00 : f32
    %2044 = vector.broadcast %cst_539 : f32 to vector<8x32xf32>
    %2045 = arith.subf %2044, %2038 : vector<8x32xf32>
    %2046 = arith.mulf %2045, %2043 : vector<8x32xf32>
    %2047 = vector.extract_strided_slice %1990 {offsets = [0, 32], sizes = [8, 32], strides = [1, 1]} : vector<8x64xf32> to vector<8x32xf32>
    %2048 = arith.mulf %2038, %2047 : vector<8x32xf32>
    %2049 = arith.addf %2046, %2048 : vector<8x32xf32>
    %c120_540 = arith.constant 120 : index
    %c0_541 = arith.constant 0 : index
    %2050 = vector.load %arg22[%c120_540, %c0_541] : memref<128x64xf32, #tpu.memory_space<vmem>>, vector<8x32xf32>
    tpu.vector_store %arg22[%c120_540, %c0_541], %2022 {strides = array<i32>} : memref<128x64xf32, #tpu.memory_space<vmem>>, vector<8x32xf32>,
    %c0_542 = arith.constant 0 : index
    %c32_543 = arith.constant 32 : index
    %2051 = vector.load %arg22[%c0_542, %c32_543] : memref<128x64xf32, #tpu.memory_space<vmem>>, vector<8x32xf32>
    tpu.vector_store %arg22[%c0_542, %c32_543], %2049 {strides = array<i32>} : memref<128x64xf32, #tpu.memory_space<vmem>>, vector<8x32xf32>,
    %c0_544 = arith.constant 0 : index
    %c0_545 = arith.constant 0 : index
    %2052 = vector.load %arg22[%c0_544, %c0_545] : memref<128x64xf32, #tpu.memory_space<vmem>>, vector<128x64xf32>
    %c0_546 = arith.constant 0 : index
    %c0_547 = arith.constant 0 : index
    %2053 = vector.load %arg16[%c0_546, %c0_547] : memref<64x1xf32, #tpu.memory_space<vmem>>, vector<64x1xf32>
    %cst_548 = arith.constant dense<0.000000e+00> : vector<128x1xf32>
    %2054 = tpu.matmul %2052, %2053, %cst_548 {dimension_numbers = #tpu.dot_dimension_numbers<[1], [0], [0], [1], [0, 0, 1, 1], [], []>} : vector<128x64xf32>, vector<64x1xf32>, vector<128x1xf32> -> vector<128x1xf32>
    %c0_549 = arith.constant 0 : index
    %c0_550 = arith.constant 0 : index
    %2055 = vector.load %arg17[%c0_549, %c0_550] : memref<1x1xf32, #tpu.memory_space<vmem>>, vector<1x1xf32>
    %2056 = vector.broadcast %2055 : vector<1x1xf32> to vector<128x1xf32>
    %2057 = arith.addf %2054, %2056 : vector<128x1xf32>
    %2058 = arith.negf %2057 : vector<128x1xf32>
    %2059 = math.exp %2058 : vector<128x1xf32>
    %cst_551 = arith.constant 1.000000e+00 : f32
    %2060 = vector.broadcast %cst_551 : f32 to vector<128x1xf32>
    %2061 = arith.addf %2060, %2059 : vector<128x1xf32>
    %2062 = arith.divf %2060, %2061 : vector<128x1xf32>
    %2063 = vector.shape_cast %2062 : vector<128x1xf32> to vector<16x8x1xf32>
    %c0_552 = arith.constant 0 : index
    %c0_553 = arith.constant 0 : index
    %c0_554 = arith.constant 0 : index
    %2064 = vector.load %arg18[%c0_552, %c0_553, %c0_554] : memref<16x8x1xf32, #tpu.memory_space<vmem>>, vector<16x8x1xf32>
    tpu.vector_store %arg18[%c0_552, %c0_553, %c0_554], %2063 {strides = array<i32>} : memref<16x8x1xf32, #tpu.memory_space<vmem>>, vector<16x8x1xf32>,
    return
  }
  func.func @transform_0(%arg0: i32) -> (i32, i32) {
    %c0_i32 = arith.constant 0 : i32
    %c0_i32_0 = arith.constant 0 : i32
    return %arg0, %c0_i32 : i32, i32
  }
  func.func @transform_1(%arg0: i32) -> (i32, i32) {
    %c0_i32 = arith.constant 0 : i32
    %c0_i32_0 = arith.constant 0 : i32
    %c0_i32_1 = arith.constant 0 : i32
    return %c0_i32, %c0_i32_0 : i32, i32
  }
  func.func @transform_2(%arg0: i32) -> (i32, i32) {
    %c0_i32 = arith.constant 0 : i32
    %c0_i32_0 = arith.constant 0 : i32
    %c0_i32_1 = arith.constant 0 : i32
    return %c0_i32, %c0_i32_0 : i32, i32
  }
  func.func @transform_3(%arg0: i32) -> (i32, i32) {
    %c0_i32 = arith.constant 0 : i32
    %c0_i32_0 = arith.constant 0 : i32
    %c0_i32_1 = arith.constant 0 : i32
    return %c0_i32, %c0_i32_0 : i32, i32
  }
  func.func @transform_4(%arg0: i32) -> (i32, i32) {
    %c0_i32 = arith.constant 0 : i32
    %c0_i32_0 = arith.constant 0 : i32
    %c0_i32_1 = arith.constant 0 : i32
    return %c0_i32, %c0_i32_0 : i32, i32
  }
  func.func @transform_5(%arg0: i32) -> (i32, i32) {
    %c0_i32 = arith.constant 0 : i32
    %c0_i32_0 = arith.constant 0 : i32
    %c0_i32_1 = arith.constant 0 : i32
    return %c0_i32, %c0_i32_0 : i32, i32
  }
  func.func @transform_6(%arg0: i32) -> (i32, i32) {
    %c0_i32 = arith.constant 0 : i32
    %c0_i32_0 = arith.constant 0 : i32
    %c0_i32_1 = arith.constant 0 : i32
    return %c0_i32, %c0_i32_0 : i32, i32
  }
  func.func @transform_7(%arg0: i32) -> (i32, i32) {
    %c0_i32 = arith.constant 0 : i32
    %c0_i32_0 = arith.constant 0 : i32
    %c0_i32_1 = arith.constant 0 : i32
    return %c0_i32, %c0_i32_0 : i32, i32
  }
  func.func @transform_8(%arg0: i32) -> (i32, i32) {
    %c0_i32 = arith.constant 0 : i32
    %c0_i32_0 = arith.constant 0 : i32
    %c0_i32_1 = arith.constant 0 : i32
    return %c0_i32, %c0_i32_0 : i32, i32
  }
  func.func @transform_9(%arg0: i32) -> (i32, i32) {
    %c0_i32 = arith.constant 0 : i32
    %c0_i32_0 = arith.constant 0 : i32
    %c0_i32_1 = arith.constant 0 : i32
    return %c0_i32, %c0_i32_0 : i32, i32
  }
  func.func @transform_10(%arg0: i32) -> (i32, i32) {
    %c0_i32 = arith.constant 0 : i32
    %c0_i32_0 = arith.constant 0 : i32
    %c0_i32_1 = arith.constant 0 : i32
    return %c0_i32, %c0_i32_0 : i32, i32
  }
  func.func @transform_11(%arg0: i32) -> (i32, i32) {
    %c0_i32 = arith.constant 0 : i32
    %c0_i32_0 = arith.constant 0 : i32
    %c0_i32_1 = arith.constant 0 : i32
    return %c0_i32, %c0_i32_0 : i32, i32
  }
  func.func @transform_12(%arg0: i32) -> (i32, i32) {
    %c0_i32 = arith.constant 0 : i32
    %c0_i32_0 = arith.constant 0 : i32
    %c0_i32_1 = arith.constant 0 : i32
    return %c0_i32, %c0_i32_0 : i32, i32
  }
  func.func @transform_13(%arg0: i32) -> (i32, i32) {
    %c0_i32 = arith.constant 0 : i32
    %c0_i32_0 = arith.constant 0 : i32
    %c0_i32_1 = arith.constant 0 : i32
    return %c0_i32, %c0_i32_0 : i32, i32
  }
  func.func @transform_14(%arg0: i32) -> (i32, i32) {
    %c0_i32 = arith.constant 0 : i32
    %c0_i32_0 = arith.constant 0 : i32
    %c0_i32_1 = arith.constant 0 : i32
    return %c0_i32, %c0_i32_0 : i32, i32
  }
  func.func @transform_15(%arg0: i32) -> (i32, i32) {
    %c0_i32 = arith.constant 0 : i32
    %c0_i32_0 = arith.constant 0 : i32
    %c0_i32_1 = arith.constant 0 : i32
    return %c0_i32, %c0_i32_0 : i32, i32
  }
  func.func @transform_16(%arg0: i32) -> (i32, i32) {
    %c0_i32 = arith.constant 0 : i32
    %c0_i32_0 = arith.constant 0 : i32
    %c0_i32_1 = arith.constant 0 : i32
    return %c0_i32, %c0_i32_0 : i32, i32
  }
  func.func @transform_17(%arg0: i32) -> (i32, i32, i32) {
    %c0_i32 = arith.constant 0 : i32
    %c0_i32_0 = arith.constant 0 : i32
    %c0_i32_1 = arith.constant 0 : i32
    return %c0_i32, %arg0, %c0_i32_0 : i32, i32, i32
  }
}

</mosaic_0001>

<llo_original>
// kernel: _lambda_.1
$region0: #{_lambda_.1}
  #allocation0 [shape = 'u32[]', space=smem, size = 0x4, offset = 0x4, fixed_abs, tag = 'smem constant byte address 0x4 - core index']
  #allocation1 [shape = 'u32[144,128]{1,0:T(1,128)}', space=vmem, size = 0x12000, scoped, tag = 'internal scratch']
  #allocation2 [shape = 'f32[128,2]{1,0:T(8,128)}', space=vmem, size = 0x10000, scoped, tag = 'scratch operand']
  #allocation3 [shape = 'f32[128,96]{1,0:T(8,128)}', space=vmem, size = 0x10000, scoped, tag = 'scratch operand']
  #allocation4 [shape = 'f32[128,96]{1,0:T(8,128)}', space=vmem, size = 0x10000, scoped, tag = 'scratch operand']
  #allocation5 [shape = 'f32[128,64]{1,0:T(8,128)}', space=vmem, size = 0x10000, scoped, tag = 'scratch operand']
  #allocation6 [shape = 'f32[1,1]{1,0:T(1,128)S(1)}', space=vmem, size = 0x200, scoped, tag = 'scoped memory for _lambda_.1']
  %s0 = inlined_call_operand.vmem [shape: f32[8,32], index: 0, kind: input, shape index: {}]
  %s1 = inlined_call_operand.vmem [shape: f32[32,32], index: 1, kind: input, shape index: {}]
  %s2 = inlined_call_operand.vmem [shape: f32[1,32], index: 2, kind: input, shape index: {}]
  %s3 = inlined_call_operand.vmem [shape: f32[2,96], index: 3, kind: input, shape index: {}]
  %s4 = inlined_call_operand.vmem [shape: f32[2,96], index: 4, kind: input, shape index: {}]
  %s5 = inlined_call_operand.vmem [shape: f32[1,96], index: 5, kind: input, shape index: {}]
  %s6 = inlined_call_operand.vmem [shape: f32[1,96], index: 6, kind: input, shape index: {}]
  %s7 = inlined_call_operand.hbm [shape: f32[64,192], index: 7, kind: input, shape index: {}]
  %s8 = inlined_call_operand.vmem [shape: f32[1,192], index: 8, kind: input, shape index: {}]
  %s9 = inlined_call_operand.vmem [shape: f32[64,96], index: 9, kind: input, shape index: {}]
  %s10 = inlined_call_operand.hbm [shape: f32[64,96], index: 10, kind: input, shape index: {}]
  %s11 = inlined_call_operand.hbm [shape: f32[1,96], index: 11, kind: input, shape index: {}]
  %s12 = inlined_call_operand.hbm [shape: f32[1,96], index: 12, kind: input, shape index: {}]
  %s13 = inlined_call_operand.hbm [shape: f32[64,192], index: 13, kind: input, shape index: {}]
  %s14 = inlined_call_operand.vmem [shape: f32[1,192], index: 14, kind: input, shape index: {}]
  %s15 = inlined_call_operand.vmem [shape: f32[64,1], index: 15, kind: input, shape index: {}]
  %s16 = inlined_call_operand.<no memory space> [shape: f32[1,1], index: 16, kind: input, shape index: {}]
  %s17 = inlined_call_operand.vmem [shape: f32[16,8,1], index: 17, kind: output, shape index: {}]
  %s18 = sld [smem:[#allocation0]]
  $region98: #{_lambda_.1} parent=0
    _
  %s20 = ssub.s32 1, %s18
  %s21 = scalar_select 0, %s20, %s18
  %v22 = vstv %s16
  %23 = vst [vmem:[#allocation6] sm:$0x1] %v22
  $region1: #{_lambda_.1} parent=0
    #allocation7 [shape = 'u8[65536]{0}', space=vmem, size = 0x10000, scoped, tag = 'input window, operand 7, single buffered']
    #allocation8 [shape = 's32[1]{0}', space=sflag, size = 0x4, scoped, tag = 'scoped memory for _lambda_.1']
    #allocation9 [shape = 'u8[32768]{0}', space=vmem, size = 0x8000, scoped, tag = 'input window, operand 10, single buffered']
    #allocation10 [shape = 's32[1]{0}', space=sflag, size = 0x4, scoped, tag = 'scoped memory for _lambda_.1']
    #allocation11 [shape = 'u8[512]{0}', space=vmem, size = 0x400, scoped, tag = 'input window, operand 11, single buffered']
    #allocation12 [shape = 'u8[512]{0}', space=vmem, size = 0x400, scoped, tag = 'input window, operand 12, single buffered']
    #allocation13 [shape = 's32[1]{0}', space=sflag, size = 0x4, scoped, tag = 'scoped memory for _lambda_.1']
    #allocation14 [shape = 'u8[65536]{0}', space=vmem, size = 0x10000, scoped, tag = 'input window, operand 13, single buffered']
    %24 = vsyncpa [#allocation8], 0
    %25 = vsyncpa [#allocation10], 0
    %26 = vsyncpa [#allocation13], 0
    // Predicated region
    $region2: #{_lambda_.1} parent=1 // pred_check
      _
    $region3: #{_lambda_.1} parent=1 // pred_check_branch
      %28 = sbr.rel (0) target = $region5
    $region4: #{_lambda_.1} parent=1 // pred_region
      _
    $region5: #{_lambda_.1} parent=1 // pred_fallthru
      _
    // Predicated region
    $region6: #{_lambda_.1} parent=1 // pred_check
      _
    $region7: #{_lambda_.1} parent=1 // pred_check_branch
      %30 = sbr.rel (0) target = $region9
    $region8: #{_lambda_.1} parent=1 // pred_region
      _
    $region9: #{_lambda_.1} parent=1 // pred_fallthru
      _
    // Predicated region
    $region10: #{_lambda_.1} parent=1 // pred_check
      _
    $region11: #{_lambda_.1} parent=1 // pred_check_branch
      %32 = sbr.rel (0) target = $region13
    $region12: #{_lambda_.1} parent=1 // pred_region
      _
    $region13: #{_lambda_.1} parent=1 // pred_fallthru
      _
    // Predicated region
    $region14: #{_lambda_.1} parent=1 // pred_check
      _
    $region15: #{_lambda_.1} parent=1 // pred_check_branch
      %34 = sbr.rel (0) target = $region17
    $region16: #{_lambda_.1} parent=1 // pred_region
      _
    $region17: #{_lambda_.1} parent=1 // pred_fallthru
      _
    // Predicated region
    $region18: #{_lambda_.1} parent=1 // pred_check
      _
    $region19: #{_lambda_.1} parent=1 // pred_check_branch
      %36 = sbr.rel (0) target = $region21
    $region20: #{_lambda_.1} parent=1 // pred_region
      _
    $region21: #{_lambda_.1} parent=1 // pred_fallthru
      _
    // Predicated region
    $region22: #{_lambda_.1} parent=1 // pred_check
      _
    $region23: #{_lambda_.1} parent=1 // pred_check_branch
      %38 = sbr.rel (0) target = $region25
    $region24: #{_lambda_.1} parent=1 // pred_region
      _
    $region25: #{_lambda_.1} parent=1 // pred_fallthru
      _
    // Predicated region
    $region26: #{_lambda_.1} parent=1 // pred_check
      _
    $region27: #{_lambda_.1} parent=1 // pred_check_branch
      %40 = sbr.rel (0) target = $region29
    $region28: #{_lambda_.1} parent=1 // pred_region
      _
    $region29: #{_lambda_.1} parent=1 // pred_fallthru
      _
    // Predicated region
    $region30: #{_lambda_.1} parent=1 // pred_check
      _
    $region31: #{_lambda_.1} parent=1 // pred_check_branch
      %42 = sbr.rel (0) target = $region33
    $region32: #{_lambda_.1} parent=1 // pred_region
      %s44 = ssub.s32 2048, 2048
      %45 = vsyncadd [#allocation8], %s44
      %s46 = sshll.u32 [#allocation7], 4
      %s47 = int_to_ptr.vmem [resolvable:$true] %s46
      %52 = dma.hbm_to_vmem [thread:$0]  %s7, 2048, %s47, [#allocation8], 256, 256, 16
    $region33: #{_lambda_.1} parent=1 // pred_fallthru
      _
    // Predicated region
    $region34: #{_lambda_.1} parent=1 // pred_check
      _
    $region35: #{_lambda_.1} parent=1 // pred_check_branch
      %54 = sbr.rel (0) target = $region37
    $region36: #{_lambda_.1} parent=1 // pred_region
      _
    $region37: #{_lambda_.1} parent=1 // pred_fallthru
      _
    // Predicated region
    $region38: #{_lambda_.1} parent=1 // pred_check
      _
    $region39: #{_lambda_.1} parent=1 // pred_check_branch
      %56 = sbr.rel (0) target = $region41
    $region40: #{_lambda_.1} parent=1 // pred_region
      _
    $region41: #{_lambda_.1} parent=1 // pred_fallthru
      _
    // Predicated region
    $region42: #{_lambda_.1} parent=1 // pred_check
      _
    $region43: #{_lambda_.1} parent=1 // pred_check_branch
      %58 = sbr.rel (0) target = $region45
    $region44: #{_lambda_.1} parent=1 // pred_region
      %s60 = ssub.s32 1024, 1024
      %61 = vsyncadd [#allocation10], %s60
      %s62 = sshll.u32 [#allocation9], 4
      %s63 = int_to_ptr.vmem [resolvable:$true] %s62
      %68 = dma.hbm_to_vmem [thread:$0]  %s10, 1024, %s63, [#allocation10], 128, 128, 8
    $region45: #{_lambda_.1} parent=1 // pred_fallthru
      _
    // Predicated region
    $region46: #{_lambda_.1} parent=1 // pred_check
      _
    $region47: #{_lambda_.1} parent=1 // pred_check_branch
      %70 = sbr.rel (0) target = $region49
    $region48: #{_lambda_.1} parent=1 // pred_region
      %s72 = ssub.s32 16, 16
      %73 = vsyncadd [#allocation10], %s72
      %s75 = sshll.u32 [#allocation11], 4
      %s76 = int_to_ptr.vmem [resolvable:$true] %s75
      %78 = dma.hbm_to_vmem [thread:$0]  %s11, 16, %s76, [#allocation10]
    $region49: #{_lambda_.1} parent=1 // pred_fallthru
      _
    // Predicated region
    $region50: #{_lambda_.1} parent=1 // pred_check
      _
    $region51: #{_lambda_.1} parent=1 // pred_check_branch
      %80 = sbr.rel (0) target = $region53
    $region52: #{_lambda_.1} parent=1 // pred_region
      %s82 = ssub.s32 16, 16
      %83 = vsyncadd [#allocation13], %s82
      %s85 = sshll.u32 [#allocation12], 4
      %s86 = int_to_ptr.vmem [resolvable:$true] %s85
      %88 = dma.hbm_to_vmem [thread:$0]  %s12, 16, %s86, [#allocation13]
    $region53: #{_lambda_.1} parent=1 // pred_fallthru
      _
    // Predicated region
    $region54: #{_lambda_.1} parent=1 // pred_check
      _
    $region55: #{_lambda_.1} parent=1 // pred_check_branch
      %90 = sbr.rel (0) target = $region57
    $region56: #{_lambda_.1} parent=1 // pred_region
      %s92 = ssub.s32 2048, 2048
      %93 = vsyncadd [#allocation13], %s92
      %s94 = sshll.u32 [#allocation14], 4
      %s95 = int_to_ptr.vmem [resolvable:$true] %s94
      %100 = dma.hbm_to_vmem [thread:$0]  %s13, 2048, %s95, [#allocation13], 256, 256, 16
    $region57: #{_lambda_.1} parent=1 // pred_fallthru
      _
    // Predicated region
    $region58: #{_lambda_.1} parent=1 // pred_check
      _
    $region59: #{_lambda_.1} parent=1 // pred_check_branch
      %102 = sbr.rel (0) target = $region61
    $region60: #{_lambda_.1} parent=1 // pred_region
      _
    $region61: #{_lambda_.1} parent=1 // pred_fallthru
      _
    // Predicated region
    $region62: #{_lambda_.1} parent=1 // pred_check
      _
    $region63: #{_lambda_.1} parent=1 // pred_check_branch
      %104 = sbr.rel (0) target = $region65
    $region64: #{_lambda_.1} parent=1 // pred_region
      _
    $region65: #{_lambda_.1} parent=1 // pred_fallthru
      _
    // Predicated region
    $region66: #{_lambda_.1} parent=1 // pred_check
      _
    $region67: #{_lambda_.1} parent=1 // pred_check_branch
      %106 = sbr.rel (0) target = $region69
    $region68: #{_lambda_.1} parent=1 // pred_region
      _
    $region69: #{_lambda_.1} parent=1 // pred_fallthru
      _
    // Predicated region
    $region70: #{_lambda_.1} parent=1 // pred_check
      _
    $region71: #{_lambda_.1} parent=1 // pred_check_branch
      %108 = sbr.rel (0) target = $region73
    $region72: #{_lambda_.1} parent=1 // pred_region
      %109 = dma.done [#allocation8], 2048
    $region73: #{_lambda_.1} parent=1 // pred_fallthru
      _
    // Predicated region
    $region74: #{_lambda_.1} parent=1 // pred_check
      _
    $region75: #{_lambda_.1} parent=1 // pred_check_branch
      %111 = sbr.rel (0) target = $region77
    $region76: #{_lambda_.1} parent=1 // pred_region
      %112 = dma.done [#allocation10], 1024
    $region77: #{_lambda_.1} parent=1 // pred_fallthru
      _
    // Predicated region
    $region78: #{_lambda_.1} parent=1 // pred_check
      _
    $region79: #{_lambda_.1} parent=1 // pred_check_branch
      %114 = sbr.rel (0) target = $region81
    $region80: #{_lambda_.1} parent=1 // pred_region
      %115 = dma.done [#allocation10], 16
    $region81: #{_lambda_.1} parent=1 // pred_fallthru
      _
    // Predicated region
    $region82: #{_lambda_.1} parent=1 // pred_check
      _
    $region83: #{_lambda_.1} parent=1 // pred_check_branch
      %117 = sbr.rel (0) target = $region85
    $region84: #{_lambda_.1} parent=1 // pred_region
      %118 = dma.done [#allocation13], 16
    $region85: #{_lambda_.1} parent=1 // pred_fallthru
      _
    // Predicated region
    $region86: #{_lambda_.1} parent=1 // pred_check
      _
    $region87: #{_lambda_.1} parent=1 // pred_check_branch
      %120 = sbr.rel (0) target = $region89
    $region88: #{_lambda_.1} parent=1 // pred_region
      %121 = dma.done [#allocation13], 2048
    $region89: #{_lambda_.1} parent=1 // pred_fallthru
      _
    %v122 = vld [vmem:[%s0] sm:$0xff]
    %v123 = vld [vmem:[%s1] sm:$0xff]
    %v124 = vld [vmem:[%s1 + $0x8] sm:$0xff]
    %v125 = vld [vmem:[%s1 + $0x10] sm:$0xff]
    %v126 = vld [vmem:[%s1 + $0x18] sm:$0xff]
    %v127 = vld [vmem:[%s2] sm:$0x1]
    %v129 = vlaneseq
    %v130 = vshrl.u32 %v129, 7
    %v131 = vsub.s32 0, %v130
    %v132 = vrot.slane %v127, %v131
    %vm134 = vcmask 261120
    %v136 = vsel %vm134, %v122, 0
    %138 = vmatprep.subr.mxu0 0.0
    %139 = vmatpush1.msra.mxu0 0.0
    %140 = vmatprep.subr.mxu0 0.0
    %141 = vmatpush1.msra.mxu0 0.0
    %142 = vmatprep.subr.mxu0 0.0
    %143 = vmatpush1.msra.mxu0 0.0
    %144 = vmatprep.subr.mxu0 0.0
    %145 = vmatpush1.msra.mxu0 0.0
    %146 = vmatprep.subr.mxu0 0.0
    %147 = vmatpush1.msra.mxu0 0.0
    %148 = vmatprep.subr.mxu0 0.0
    %149 = vmatpush1.msra.mxu0 0.0
    %150 = vmatprep.subr.mxu0 0.0
    %151 = vmatpush1.msra.mxu0 0.0
    %152 = vmatprep.subr.mxu0 0.0
    %153 = vmatpush1.msra.mxu0 0.0
    %154 = vmatprep.subr.mxu0 0.0
    %155 = vmatpush1.msra.mxu0 0.0
    %156 = vmatprep.subr.mxu0 0.0
    %157 = vmatpush1.msra.mxu0 0.0
    %158 = vmatprep.subr.mxu0 0.0
    %159 = vmatpush1.msra.mxu0 0.0
    %160 = vmatprep.subr.mxu0 0.0
    %161 = vmatpush1.msra.mxu0 0.0
    %162 = vmatprep.subr.mxu0 0.0
    %163 = vmatpush1.msra.mxu0 %v126
    %164 = vmatprep.subr.mxu0 0.0
    %165 = vmatpush1.msra.mxu0 %v125
    %166 = vmatprep.subr.mxu0 0.0
    %167 = vmatpush1.msra.mxu0 %v124
    %168 = vmatprep.subr.mxu0 0.0
    %169 = vmatpush1.msra.mxu0 %v123
    %170 = vmatprep.subr.mxu0 0.0
    %171 = vmatpush2.msra.mxu0 0.0
    %172 = vmatprep.subr.mxu0 0.0
    %173 = vmatpush2.msra.mxu0 0.0
    %174 = vmatprep.subr.mxu0 0.0
    %175 = vmatpush2.msra.mxu0 0.0
    %176 = vmatprep.subr.mxu0 0.0
    %177 = vmatpush2.msra.mxu0 0.0
    %178 = vmatprep.subr.mxu0 0.0
    %179 = vmatpush2.msra.mxu0 0.0
    %180 = vmatprep.subr.mxu0 0.0
    %181 = vmatpush2.msra.mxu0 0.0
    %182 = vmatprep.subr.mxu0 0.0
    %183 = vmatpush2.msra.mxu0 0.0
    %184 = vmatprep.subr.mxu0 0.0
    %185 = vmatpush2.msra.mxu0 0.0
    %186 = vmatprep.subr.mxu0 0.0
    %187 = vmatpush2.msra.mxu0 0.0
    %188 = vmatprep.subr.mxu0 0.0
    %189 = vmatpush2.msra.mxu0 0.0
    %190 = vmatprep.subr.mxu0 0.0
    %191 = vmatpush2.msra.mxu0 0.0
    %192 = vmatprep.subr.mxu0 0.0
    %193 = vmatpush2.msra.mxu0 0.0
    %194 = vmatprep.subr.mxu0 0.0
    %195 = vmatpush2.msra.mxu0 0.0
    %196 = vmatprep.subr.mxu0 0.0
    %197 = vmatpush2.msra.mxu0 0.0
    %198 = vmatprep.subr.mxu0 0.0
    %199 = vmatpush2.msra.mxu0 0.0
    %200 = vmatprep.subr.mxu0 0.0
    %201 = vmatpush2.msra.mxu0 0.0
    %202 = vmatprep.mubr.f32.mxu0 0.0
    %203 = vmatmul.mubr.f32.gmra.mxu0 %v136
    %v204 = vpop.f32.mrf.mxu0
    %v205 = vadd.f32 %v132, %v204
    %v206 = vpop.f32.mrf.mxu0
    %207 = vdwg.mxu0
    %vm208 = vcmask 15360
    %209 = vst.msk [vmem:[#allocation2] sm:$0xff] %vm208, %v205
    %211 = vrot.lane.b32.xlu0 %v205, 126
    %v212 = vpop.permute.xlu0 %211
    %214 = vst.msk [vmem:[#allocation2 + $0x8] sm:$0xff] %vm208, %v212
    %215 = vrot.lane.b32.xlu0 %v205, 124
    %v216 = vpop.permute.xlu0 %215
    %218 = vst.msk [vmem:[#allocation2 + $0x10] sm:$0xff] %vm208, %v216
    %219 = vrot.lane.b32.xlu0 %v205, 122
    %v220 = vpop.permute.xlu0 %219
    %222 = vst.msk [vmem:[#allocation2 + $0x18] sm:$0xff] %vm208, %v220
    %223 = vrot.lane.b32.xlu0 %v205, 120
    %v224 = vpop.permute.xlu0 %223
    %226 = vst.msk [vmem:[#allocation2 + $0x20] sm:$0xff] %vm208, %v224
    %227 = vrot.lane.b32.xlu0 %v205, 118
    %v228 = vpop.permute.xlu0 %227
    %230 = vst.msk [vmem:[#allocation2 + $0x28] sm:$0xff] %vm208, %v228
    %231 = vrot.lane.b32.xlu0 %v205, 116
    %v232 = vpop.permute.xlu0 %231
    %234 = vst.msk [vmem:[#allocation2 + $0x30] sm:$0xff] %vm208, %v232
    %235 = vrot.lane.b32.xlu0 %v205, 114
    %v236 = vpop.permute.xlu0 %235
    %238 = vst.msk [vmem:[#allocation2 + $0x38] sm:$0xff] %vm208, %v236
    %239 = vrot.lane.b32.xlu0 %v205, 112
    %v240 = vpop.permute.xlu0 %239
    %242 = vst.msk [vmem:[#allocation2 + $0x40] sm:$0xff] %vm208, %v240
    %243 = vrot.lane.b32.xlu0 %v205, 110
    %v244 = vpop.permute.xlu0 %243
    %246 = vst.msk [vmem:[#allocation2 + $0x48] sm:$0xff] %vm208, %v244
    %247 = vrot.lane.b32.xlu0 %v205, 108
    %v248 = vpop.permute.xlu0 %247
    %250 = vst.msk [vmem:[#allocation2 + $0x50] sm:$0xff] %vm208, %v248
    %251 = vrot.lane.b32.xlu0 %v205, 106
    %v252 = vpop.permute.xlu0 %251
    %254 = vst.msk [vmem:[#allocation2 + $0x58] sm:$0xff] %vm208, %v252
    %255 = vrot.lane.b32.xlu0 %v205, 104
    %v256 = vpop.permute.xlu0 %255
    %258 = vst.msk [vmem:[#allocation2 + $0x60] sm:$0xff] %vm208, %v256
    %259 = vrot.lane.b32.xlu0 %v205, 102
    %v260 = vpop.permute.xlu0 %259
    %262 = vst.msk [vmem:[#allocation2 + $0x68] sm:$0xff] %vm208, %v260
    %263 = vrot.lane.b32.xlu0 %v205, 100
    %v264 = vpop.permute.xlu0 %263
    %266 = vst.msk [vmem:[#allocation2 + $0x70] sm:$0xff] %vm208, %v264
    %267 = vrot.lane.b32.xlu0 %v205, 98
    %v268 = vpop.permute.xlu0 %267
    %270 = vst.msk [vmem:[#allocation2 + $0x78] sm:$0xff] %vm208, %v268
    %v271 = vld [vmem:[#allocation2] sm:$0xff]
    %v272 = vld [vmem:[#allocation2 + $0x8] sm:$0xff]
    %v273 = vld [vmem:[#allocation2 + $0x10] sm:$0xff]
    %v274 = vld [vmem:[#allocation2 + $0x18] sm:$0xff]
    %v275 = vld [vmem:[#allocation2 + $0x20] sm:$0xff]
    %v276 = vld [vmem:[#allocation2 + $0x28] sm:$0xff]
    %v277 = vld [vmem:[#allocation2 + $0x30] sm:$0xff]
    %v278 = vld [vmem:[#allocation2 + $0x38] sm:$0xff]
    %v279 = vld [vmem:[#allocation2 + $0x40] sm:$0xff]
    %v280 = vld [vmem:[#allocation2 + $0x48] sm:$0xff]
    %v281 = vld [vmem:[#allocation2 + $0x50] sm:$0xff]
    %v282 = vld [vmem:[#allocation2 + $0x58] sm:$0xff]
    %v283 = vld [vmem:[#allocation2 + $0x60] sm:$0xff]
    %v284 = vld [vmem:[#allocation2 + $0x68] sm:$0xff]
    %v285 = vld [vmem:[#allocation2 + $0x70] sm:$0xff]
    %v286 = vld [vmem:[#allocation2 + $0x78] sm:$0xff]
    %v287 = vld [vmem:[%s3] sm:$0x3]
    %v288 = vld [vmem:[%s5] sm:$0x1]
    %v290 = vlaneseq
    %v291 = vshrl.u32 %v290, 7
    %v292 = vsub.s32 0, %v291
    %v293 = vrot.slane %v288, %v292
    %v296 = vsel %vm208, %v271, 0
    %v299 = vsel %vm208, %v272, 0
    %v302 = vsel %vm208, %v273, 0
    %v305 = vsel %vm208, %v274, 0
    %v308 = vsel %vm208, %v275, 0
    %v311 = vsel %vm208, %v276, 0
    %v314 = vsel %vm208, %v277, 0
    %v317 = vsel %vm208, %v278, 0
    %v320 = vsel %vm208, %v279, 0
    %v323 = vsel %vm208, %v280, 0
    %v326 = vsel %vm208, %v281, 0
    %v329 = vsel %vm208, %v282, 0
    %v332 = vsel %vm208, %v283, 0
    %v335 = vsel %vm208, %v284, 0
    %v338 = vsel %vm208, %v285, 0
    %v341 = vsel %vm208, %v286, 0
    %vm343 = vcmask 1041408
    %v345 = vsel %vm343, %v287, 0
    %347 = vmatprep.subr.mxu0 0.0
    %348 = vmatpush1.msra.mxu0 0.0
    %349 = vmatprep.subr.mxu0 0.0
    %350 = vmatpush1.msra.mxu0 0.0
    %351 = vmatprep.subr.mxu0 0.0
    %352 = vmatpush1.msra.mxu0 0.0
    %353 = vmatprep.subr.mxu0 0.0
    %354 = vmatpush1.msra.mxu0 0.0
    %355 = vmatprep.subr.mxu0 0.0
    %356 = vmatpush1.msra.mxu0 0.0
    %357 = vmatprep.subr.mxu0 0.0
    %358 = vmatpush1.msra.mxu0 0.0
    %359 = vmatprep.subr.mxu0 0.0
    %360 = vmatpush1.msra.mxu0 0.0
    %361 = vmatprep.subr.mxu0 0.0
    %362 = vmatpush1.msra.mxu0 0.0
    %363 = vmatprep.subr.mxu0 0.0
    %364 = vmatpush1.msra.mxu0 0.0
    %365 = vmatprep.subr.mxu0 0.0
    %366 = vmatpush1.msra.mxu0 0.0
    %367 = vmatprep.subr.mxu0 0.0
    %368 = vmatpush1.msra.mxu0 0.0
    %369 = vmatprep.subr.mxu0 0.0
    %370 = vmatpush1.msra.mxu0 0.0
    %371 = vmatprep.subr.mxu0 0.0
    %372 = vmatpush1.msra.mxu0 0.0
    %373 = vmatprep.subr.mxu0 0.0
    %374 = vmatpush1.msra.mxu0 0.0
    %375 = vmatprep.subr.mxu0 0.0
    %376 = vmatpush1.msra.mxu0 0.0
    %377 = vmatprep.subr.mxu0 0.0
    %378 = vmatpush1.msra.mxu0 %v345
    %379 = vmatprep.subr.mxu0 0.0
    %380 = vmatpush2.msra.mxu0 0.0
    %381 = vmatprep.subr.mxu0 0.0
    %382 = vmatpush2.msra.mxu0 0.0
    %383 = vmatprep.subr.mxu0 0.0
    %384 = vmatpush2.msra.mxu0 0.0
    %385 = vmatprep.subr.mxu0 0.0
    %386 = vmatpush2.msra.mxu0 0.0
    %387 = vmatprep.subr.mxu0 0.0
    %388 = vmatpush2.msra.mxu0 0.0
    %389 = vmatprep.subr.mxu0 0.0
    %390 = vmatpush2.msra.mxu0 0.0
    %391 = vmatprep.subr.mxu0 0.0
    %392 = vmatpush2.msra.mxu0 0.0
    %393 = vmatprep.subr.mxu0 0.0
    %394 = vmatpush2.msra.mxu0 0.0
    %395 = vmatprep.subr.mxu0 0.0
    %396 = vmatpush2.msra.mxu0 0.0
    %397 = vmatprep.subr.mxu0 0.0
    %398 = vmatpush2.msra.mxu0 0.0
    %399 = vmatprep.subr.mxu0 0.0
    %400 = vmatpush2.msra.mxu0 0.0
    %401 = vmatprep.subr.mxu0 0.0
    %402 = vmatpush2.msra.mxu0 0.0
    %403 = vmatprep.subr.mxu0 0.0
    %404 = vmatpush2.msra.mxu0 0.0
    %405 = vmatprep.subr.mxu0 0.0
    %406 = vmatpush2.msra.mxu0 0.0
    %407 = vmatprep.subr.mxu0 0.0
    %408 = vmatpush2.msra.mxu0 0.0
    %409 = vmatprep.subr.mxu0 0.0
    %410 = vmatpush2.msra.mxu0 0.0
    %411 = vmatprep.mubr.f32.mxu0 0.0
    %412 = vmatmul.mubr.f32.gmra.mxu0 %v296
    %v413 = vpop.f32.mrf.mxu0
    %v414 = vadd.f32 %v293, %v413
    %v415 = vpop.f32.mrf.mxu0
    %416 = vmatprep.mubr.f32.mxu0 0.0
    %417 = vmatmul.mubr.f32.gmra.mxu0 %v299
    %v418 = vpop.f32.mrf.mxu0
    %v419 = vadd.f32 %v293, %v418
    %v420 = vpop.f32.mrf.mxu0
    %421 = vmatprep.mubr.f32.mxu0 0.0
    %422 = vmatmul.mubr.f32.gmra.mxu0 %v302
    %v423 = vpop.f32.mrf.mxu0
    %v424 = vadd.f32 %v293, %v423
    %v425 = vpop.f32.mrf.mxu0
    %426 = vmatprep.mubr.f32.mxu0 0.0
    %427 = vmatmul.mubr.f32.gmra.mxu0 %v305
    %v428 = vpop.f32.mrf.mxu0
    %v429 = vadd.f32 %v293, %v428
    %v430 = vpop.f32.mrf.mxu0
    %431 = vmatprep.mubr.f32.mxu0 0.0
    %432 = vmatmul.mubr.f32.gmra.mxu0 %v308
    %v433 = vpop.f32.mrf.mxu0
    %v434 = vadd.f32 %v293, %v433
    %v435 = vpop.f32.mrf.mxu0
    %436 = vmatprep.mubr.f32.mxu0 0.0
    %437 = vmatmul.mubr.f32.gmra.mxu0 %v311
    %v438 = vpop.f32.mrf.mxu0
    %v439 = vadd.f32 %v293, %v438
    %v440 = vpop.f32.mrf.mxu0
    %441 = vmatprep.mubr.f32.mxu0 0.0
    %442 = vmatmul.mubr.f32.gmra.mxu0 %v314
    %v443 = vpop.f32.mrf.mxu0
    %v444 = vadd.f32 %v293, %v443
    %v445 = vpop.f32.mrf.mxu0
    %446 = vmatprep.mubr.f32.mxu0 0.0
    %447 = vmatmul.mubr.f32.gmra.mxu0 %v317
    %v448 = vpop.f32.mrf.mxu0
    %v449 = vadd.f32 %v293, %v448
    %v450 = vpop.f32.mrf.mxu0
    %451 = vmatprep.mubr.f32.mxu0 0.0
    %452 = vmatmul.mubr.f32.gmra.mxu0 %v320
    %v453 = vpop.f32.mrf.mxu0
    %v454 = vadd.f32 %v293, %v453
    %v455 = vpop.f32.mrf.mxu0
    %456 = vmatprep.mubr.f32.mxu0 0.0
    %457 = vmatmul.mubr.f32.gmra.mxu0 %v323
    %v458 = vpop.f32.mrf.mxu0
    %v459 = vadd.f32 %v293, %v458
    %v460 = vpop.f32.mrf.mxu0
    %461 = vmatprep.mubr.f32.mxu0 0.0
    %462 = vmatmul.mubr.f32.gmra.mxu0 %v326
    %v463 = vpop.f32.mrf.mxu0
    %v464 = vadd.f32 %v293, %v463
    %v465 = vpop.f32.mrf.mxu0
    %466 = vmatprep.mubr.f32.mxu0 0.0
    %467 = vmatmul.mubr.f32.gmra.mxu0 %v329
    %v468 = vpop.f32.mrf.mxu0
    %v469 = vadd.f32 %v293, %v468
    %v470 = vpop.f32.mrf.mxu0
    %471 = vmatprep.mubr.f32.mxu0 0.0
    %472 = vmatmul.mubr.f32.gmra.mxu0 %v332
    %v473 = vpop.f32.mrf.mxu0
    %v474 = vadd.f32 %v293, %v473
    %v475 = vpop.f32.mrf.mxu0
    %476 = vmatprep.mubr.f32.mxu0 0.0
    %477 = vmatmul.mubr.f32.gmra.mxu0 %v335
    %v478 = vpop.f32.mrf.mxu0
    %v479 = vadd.f32 %v293, %v478
    %v480 = vpop.f32.mrf.mxu0
    %481 = vmatprep.mubr.f32.mxu0 0.0
    %482 = vmatmul.mubr.f32.gmra.mxu0 %v338
    %v483 = vpop.f32.mrf.mxu0
    %v484 = vadd.f32 %v293, %v483
    %v485 = vpop.f32.mrf.mxu0
    %486 = vmatprep.mubr.f32.mxu0 0.0
    %487 = vmatmul.mubr.f32.gmra.mxu0 %v341
    %v488 = vpop.f32.mrf.mxu0
    %v489 = vadd.f32 %v293, %v488
    %v490 = vpop.f32.mrf.mxu0
    %491 = vdwg.mxu0
    %vm492 = vcmask 785408
    %493 = vst.msk [vmem:[#allocation3] sm:$0xff] %vm492, %v414
    %494 = vst.msk [vmem:[#allocation3 + $0x8] sm:$0xff] %vm492, %v419
    %495 = vst.msk [vmem:[#allocation3 + $0x10] sm:$0xff] %vm492, %v424
    %496 = vst.msk [vmem:[#allocation3 + $0x18] sm:$0xff] %vm492, %v429
    %497 = vst.msk [vmem:[#allocation3 + $0x20] sm:$0xff] %vm492, %v434
    %498 = vst.msk [vmem:[#allocation3 + $0x28] sm:$0xff] %vm492, %v439
    %499 = vst.msk [vmem:[#allocation3 + $0x30] sm:$0xff] %vm492, %v444
    %500 = vst.msk [vmem:[#allocation3 + $0x38] sm:$0xff] %vm492, %v449
    %501 = vst.msk [vmem:[#allocation3 + $0x40] sm:$0xff] %vm492, %v454
    %502 = vst.msk [vmem:[#allocation3 + $0x48] sm:$0xff] %vm492, %v459
    %503 = vst.msk [vmem:[#allocation3 + $0x50] sm:$0xff] %vm492, %v464
    %504 = vst.msk [vmem:[#allocation3 + $0x58] sm:$0xff] %vm492, %v469
    %505 = vst.msk [vmem:[#allocation3 + $0x60] sm:$0xff] %vm492, %v474
    %506 = vst.msk [vmem:[#allocation3 + $0x68] sm:$0xff] %vm492, %v479
    %507 = vst.msk [vmem:[#allocation3 + $0x70] sm:$0xff] %vm492, %v484
    %508 = vst.msk [vmem:[#allocation3 + $0x78] sm:$0xff] %vm492, %v489
    %v509 = vld [vmem:[%s4] sm:$0x3]
    %v510 = vld [vmem:[%s6] sm:$0x1]
    %v512 = vlaneseq
    %v513 = vshrl.u32 %v512, 7
    %v514 = vsub.s32 0, %v513
    %v515 = vrot.slane %v510, %v514
    %v518 = vsel %vm343, %v509, 0
    %520 = vmatprep.subr.mxu0 0.0
    %521 = vmatpush1.msra.mxu0 0.0
    %522 = vmatprep.subr.mxu0 0.0
    %523 = vmatpush1.msra.mxu0 0.0
    %524 = vmatprep.subr.mxu0 0.0
    %525 = vmatpush1.msra.mxu0 0.0
    %526 = vmatprep.subr.mxu0 0.0
    %527 = vmatpush1.msra.mxu0 0.0
    %528 = vmatprep.subr.mxu0 0.0
    %529 = vmatpush1.msra.mxu0 0.0
    %530 = vmatprep.subr.mxu0 0.0
    %531 = vmatpush1.msra.mxu0 0.0
    %532 = vmatprep.subr.mxu0 0.0
    %533 = vmatpush1.msra.mxu0 0.0
    %534 = vmatprep.subr.mxu0 0.0
    %535 = vmatpush1.msra.mxu0 0.0
    %536 = vmatprep.subr.mxu0 0.0
    %537 = vmatpush1.msra.mxu0 0.0
    %538 = vmatprep.subr.mxu0 0.0
    %539 = vmatpush1.msra.mxu0 0.0
    %540 = vmatprep.subr.mxu0 0.0
    %541 = vmatpush1.msra.mxu0 0.0
    %542 = vmatprep.subr.mxu0 0.0
    %543 = vmatpush1.msra.mxu0 0.0
    %544 = vmatprep.subr.mxu0 0.0
    %545 = vmatpush1.msra.mxu0 0.0
    %546 = vmatprep.subr.mxu0 0.0
    %547 = vmatpush1.msra.mxu0 0.0
    %548 = vmatprep.subr.mxu0 0.0
    %549 = vmatpush1.msra.mxu0 0.0
    %550 = vmatprep.subr.mxu0 0.0
    %551 = vmatpush1.msra.mxu0 %v518
    %552 = vmatprep.subr.mxu0 0.0
    %553 = vmatpush2.msra.mxu0 0.0
    %554 = vmatprep.subr.mxu0 0.0
    %555 = vmatpush2.msra.mxu0 0.0
    %556 = vmatprep.subr.mxu0 0.0
    %557 = vmatpush2.msra.mxu0 0.0
    %558 = vmatprep.subr.mxu0 0.0
    %559 = vmatpush2.msra.mxu0 0.0
    %560 = vmatprep.subr.mxu0 0.0
    %561 = vmatpush2.msra.mxu0 0.0
    %562 = vmatprep.subr.mxu0 0.0
    %563 = vmatpush2.msra.mxu0 0.0
    %564 = vmatprep.subr.mxu0 0.0
    %565 = vmatpush2.msra.mxu0 0.0
    %566 = vmatprep.subr.mxu0 0.0
    %567 = vmatpush2.msra.mxu0 0.0
    %568 = vmatprep.subr.mxu0 0.0
    %569 = vmatpush2.msra.mxu0 0.0
    %570 = vmatprep.subr.mxu0 0.0
    %571 = vmatpush2.msra.mxu0 0.0
    %572 = vmatprep.subr.mxu0 0.0
    %573 = vmatpush2.msra.mxu0 0.0
    %574 = vmatprep.subr.mxu0 0.0
    %575 = vmatpush2.msra.mxu0 0.0
    %576 = vmatprep.subr.mxu0 0.0
    %577 = vmatpush2.msra.mxu0 0.0
    %578 = vmatprep.subr.mxu0 0.0
    %579 = vmatpush2.msra.mxu0 0.0
    %580 = vmatprep.subr.mxu0 0.0
    %581 = vmatpush2.msra.mxu0 0.0
    %582 = vmatprep.subr.mxu0 0.0
    %583 = vmatpush2.msra.mxu0 0.0
    %584 = vmatprep.mubr.f32.mxu0 0.0
    %585 = vmatmul.mubr.f32.gmra.mxu0 %v296
    %v586 = vpop.f32.mrf.mxu0
    %v587 = vadd.f32 %v515, %v586
    %v588 = vpop.f32.mrf.mxu0
    %589 = vmatprep.mubr.f32.mxu0 0.0
    %590 = vmatmul.mubr.f32.gmra.mxu0 %v299
    %v591 = vpop.f32.mrf.mxu0
    %v592 = vadd.f32 %v515, %v591
    %v593 = vpop.f32.mrf.mxu0
    %594 = vmatprep.mubr.f32.mxu0 0.0
    %595 = vmatmul.mubr.f32.gmra.mxu0 %v302
    %v596 = vpop.f32.mrf.mxu0
    %v597 = vadd.f32 %v515, %v596
    %v598 = vpop.f32.mrf.mxu0
    %599 = vmatprep.mubr.f32.mxu0 0.0
    %600 = vmatmul.mubr.f32.gmra.mxu0 %v305
    %v601 = vpop.f32.mrf.mxu0
    %v602 = vadd.f32 %v515, %v601
    %v603 = vpop.f32.mrf.mxu0
    %604 = vmatprep.mubr.f32.mxu0 0.0
    %605 = vmatmul.mubr.f32.gmra.mxu0 %v308
    %v606 = vpop.f32.mrf.mxu0
    %v607 = vadd.f32 %v515, %v606
    %v608 = vpop.f32.mrf.mxu0
    %609 = vmatprep.mubr.f32.mxu0 0.0
    %610 = vmatmul.mubr.f32.gmra.mxu0 %v311
    %v611 = vpop.f32.mrf.mxu0
    %v612 = vadd.f32 %v515, %v611
    %v613 = vpop.f32.mrf.mxu0
    %614 = vmatprep.mubr.f32.mxu0 0.0
    %615 = vmatmul.mubr.f32.gmra.mxu0 %v314
    %v616 = vpop.f32.mrf.mxu0
    %v617 = vadd.f32 %v515, %v616
    %v618 = vpop.f32.mrf.mxu0
    %619 = vmatprep.mubr.f32.mxu0 0.0
    %620 = vmatmul.mubr.f32.gmra.mxu0 %v317
    %v621 = vpop.f32.mrf.mxu0
    %v622 = vadd.f32 %v515, %v621
    %v623 = vpop.f32.mrf.mxu0
    %624 = vmatprep.mubr.f32.mxu0 0.0
    %625 = vmatmul.mubr.f32.gmra.mxu0 %v320
    %v626 = vpop.f32.mrf.mxu0
    %v627 = vadd.f32 %v515, %v626
    %v628 = vpop.f32.mrf.mxu0
    %629 = vmatprep.mubr.f32.mxu0 0.0
    %630 = vmatmul.mubr.f32.gmra.mxu0 %v323
    %v631 = vpop.f32.mrf.mxu0
    %v632 = vadd.f32 %v515, %v631
    %v633 = vpop.f32.mrf.mxu0
    %634 = vmatprep.mubr.f32.mxu0 0.0
    %635 = vmatmul.mubr.f32.gmra.mxu0 %v326
    %v636 = vpop.f32.mrf.mxu0
    %v637 = vadd.f32 %v515, %v636
    %v638 = vpop.f32.mrf.mxu0
    %639 = vmatprep.mubr.f32.mxu0 0.0
    %640 = vmatmul.mubr.f32.gmra.mxu0 %v329
    %v641 = vpop.f32.mrf.mxu0
    %v642 = vadd.f32 %v515, %v641
    %v643 = vpop.f32.mrf.mxu0
    %644 = vmatprep.mubr.f32.mxu0 0.0
    %645 = vmatmul.mubr.f32.gmra.mxu0 %v332
    %v646 = vpop.f32.mrf.mxu0
    %v647 = vadd.f32 %v515, %v646
    %v648 = vpop.f32.mrf.mxu0
    %649 = vmatprep.mubr.f32.mxu0 0.0
    %650 = vmatmul.mubr.f32.gmra.mxu0 %v335
    %v651 = vpop.f32.mrf.mxu0
    %v652 = vadd.f32 %v515, %v651
    %v653 = vpop.f32.mrf.mxu0
    %654 = vmatprep.mubr.f32.mxu0 0.0
    %655 = vmatmul.mubr.f32.gmra.mxu0 %v338
    %v656 = vpop.f32.mrf.mxu0
    %v657 = vadd.f32 %v515, %v656
    %v658 = vpop.f32.mrf.mxu0
    %659 = vmatprep.mubr.f32.mxu0 0.0
    %660 = vmatmul.mubr.f32.gmra.mxu0 %v341
    %v661 = vpop.f32.mrf.mxu0
    %v662 = vadd.f32 %v515, %v661
    %v663 = vpop.f32.mrf.mxu0
    %664 = vdwg.mxu0
    %665 = vst.msk [vmem:[#allocation4] sm:$0xff] %vm492, %v587
    %666 = vst.msk [vmem:[#allocation4 + $0x8] sm:$0xff] %vm492, %v592
    %667 = vst.msk [vmem:[#allocation4 + $0x10] sm:$0xff] %vm492, %v597
    %668 = vst.msk [vmem:[#allocation4 + $0x18] sm:$0xff] %vm492, %v602
    %669 = vst.msk [vmem:[#allocation4 + $0x20] sm:$0xff] %vm492, %v607
    %670 = vst.msk [vmem:[#allocation4 + $0x28] sm:$0xff] %vm492, %v612
    %671 = vst.msk [vmem:[#allocation4 + $0x30] sm:$0xff] %vm492, %v617
    %672 = vst.msk [vmem:[#allocation4 + $0x38] sm:$0xff] %vm492, %v622
    %673 = vst.msk [vmem:[#allocation4 + $0x40] sm:$0xff] %vm492, %v627
    %674 = vst.msk [vmem:[#allocation4 + $0x48] sm:$0xff] %vm492, %v632
    %675 = vst.msk [vmem:[#allocation4 + $0x50] sm:$0xff] %vm492, %v637
    %676 = vst.msk [vmem:[#allocation4 + $0x58] sm:$0xff] %vm492, %v642
    %677 = vst.msk [vmem:[#allocation4 + $0x60] sm:$0xff] %vm492, %v647
    %678 = vst.msk [vmem:[#allocation4 + $0x68] sm:$0xff] %vm492, %v652
    %679 = vst.msk [vmem:[#allocation4 + $0x70] sm:$0xff] %vm492, %v657
    %680 = vst.msk [vmem:[#allocation4 + $0x78] sm:$0xff] %vm492, %v662
    %v681 = vld [vmem:[#allocation7] sm:$0xff]
    %v682 = vld [vmem:[#allocation7 + $0x8] sm:$0xff]
    %v683 = vld [vmem:[#allocation7 + $0x10] sm:$0xff]
    %v684 = vld [vmem:[#allocation7 + $0x18] sm:$0xff]
    %v685 = vld [vmem:[#allocation7 + $0x20] sm:$0xff]
    %v686 = vld [vmem:[#allocation7 + $0x28] sm:$0xff]
    %v687 = vld [vmem:[#allocation7 + $0x30] sm:$0xff]
    %v688 = vld [vmem:[#allocation7 + $0x38] sm:$0xff]
    %v689 = vld [vmem:[#allocation7 + $0x40] sm:$0xff]
    %v690 = vld [vmem:[#allocation7 + $0x48] sm:$0xff]
    %v691 = vld [vmem:[#allocation7 + $0x50] sm:$0xff]
    %v692 = vld [vmem:[#allocation7 + $0x58] sm:$0xff]
    %v693 = vld [vmem:[#allocation7 + $0x60] sm:$0xff]
    %v694 = vld [vmem:[#allocation7 + $0x68] sm:$0xff]
    %v695 = vld [vmem:[#allocation7 + $0x70] sm:$0xff]
    %v696 = vld [vmem:[#allocation7 + $0x78] sm:$0xff]
    %v697 = vld [vmem:[%s8] sm:$0x3]
    %v699 = vlaneseq
    %v700 = vshrl.u32 %v699, 7
    %v701 = vsub.s32 0, %v700
    %v702 = vrot.slane %v697, %v701
    %v703 = vlaneseq
    %v704 = vshrl.u32 %v703, 7
    %v705 = vsub.s32 1, %v704
    %v706 = vrot.slane %v697, %v705
    %vm709 = vcmask 523264
    %v711 = vsel %vm709, 0.0, 0
    %713 = vmatprep.subr.mxu0 0.0
    %714 = vmatpush1.msra.mxu0 0.0
    %715 = vmatprep.subr.mxu0 0.0
    %716 = vmatpush1.msra.mxu0 0.0
    %717 = vmatprep.subr.mxu0 0.0
    %718 = vmatpush1.msra.mxu0 0.0
    %719 = vmatprep.subr.mxu0 0.0
    %720 = vmatpush1.msra.mxu0 0.0
    %721 = vmatprep.subr.mxu0 0.0
    %722 = vmatpush1.msra.mxu0 0.0
    %723 = vmatprep.subr.mxu0 0.0
    %724 = vmatpush1.msra.mxu0 0.0
    %725 = vmatprep.subr.mxu0 0.0
    %726 = vmatpush1.msra.mxu0 0.0
    %727 = vmatprep.subr.mxu0 0.0
    %728 = vmatpush1.msra.mxu0 0.0
    %729 = vmatprep.subr.mxu0 %v696
    %730 = vmatpush1.msra.mxu0 %v695
    %731 = vmatprep.subr.mxu0 %v694
    %732 = vmatpush1.msra.mxu0 %v693
    %733 = vmatprep.subr.mxu0 %v692
    %734 = vmatpush1.msra.mxu0 %v691
    %735 = vmatprep.subr.mxu0 %v690
    %736 = vmatpush1.msra.mxu0 %v689
    %737 = vmatprep.subr.mxu0 %v688
    %738 = vmatpush1.msra.mxu0 %v687
    %739 = vmatprep.subr.mxu0 %v686
    %740 = vmatpush1.msra.mxu0 %v685
    %741 = vmatprep.subr.mxu0 %v684
    %742 = vmatpush1.msra.mxu0 %v683
    %743 = vmatprep.subr.mxu0 %v682
    %744 = vmatpush1.msra.mxu0 %v681
    %745 = vmatprep.subr.mxu0 0.0
    %746 = vmatpush2.msra.mxu0 0.0
    %747 = vmatprep.subr.mxu0 0.0
    %748 = vmatpush2.msra.mxu0 0.0
    %749 = vmatprep.subr.mxu0 0.0
    %750 = vmatpush2.msra.mxu0 0.0
    %751 = vmatprep.subr.mxu0 0.0
    %752 = vmatpush2.msra.mxu0 0.0
    %753 = vmatprep.subr.mxu0 0.0
    %754 = vmatpush2.msra.mxu0 0.0
    %755 = vmatprep.subr.mxu0 0.0
    %756 = vmatpush2.msra.mxu0 0.0
    %757 = vmatprep.subr.mxu0 0.0
    %758 = vmatpush2.msra.mxu0 0.0
    %759 = vmatprep.subr.mxu0 0.0
    %760 = vmatpush2.msra.mxu0 0.0
    %761 = vmatprep.subr.mxu0 0.0
    %762 = vmatpush2.msra.mxu0 0.0
    %763 = vmatprep.subr.mxu0 0.0
    %764 = vmatpush2.msra.mxu0 0.0
    %765 = vmatprep.subr.mxu0 0.0
    %766 = vmatpush2.msra.mxu0 0.0
    %767 = vmatprep.subr.mxu0 0.0
    %768 = vmatpush2.msra.mxu0 0.0
    %769 = vmatprep.subr.mxu0 0.0
    %770 = vmatpush2.msra.mxu0 0.0
    %771 = vmatprep.subr.mxu0 0.0
    %772 = vmatpush2.msra.mxu0 0.0
    %773 = vmatprep.subr.mxu0 0.0
    %774 = vmatpush2.msra.mxu0 0.0
    %775 = vmatprep.subr.mxu0 0.0
    %776 = vmatpush2.msra.mxu0 0.0
    %777 = vmatprep.mubr.f32.mxu0 0.0
    %778 = vmatmul.mubr.f32.gmra.mxu0 %v711
    %v779 = vpop.f32.mrf.mxu0
    %v780 = vadd.f32 %v702, %v779
    %v781 = vpop.f32.mrf.mxu0
    %v782 = vadd.f32 %v706, %v781
    %783 = vdwg.mxu0
    %v784 = vld [vmem:[#allocation3] sm:$0xff]
    %v785 = vld [vmem:[#allocation4 + $0x78] sm:$0xff]
    %v786 = vadd.f32 %v784, %v780
    %v787 = vxor.u32 %v786, 2147483648
    %v788 = vmul.f32 %v787, 1.442695
    %v789 = vpow.pop %v788
    %v790 = vadd.f32 %v789, 1.0
    %v791 = vrcp.pop %v790
    %v792 = vmul.f32 1.0, %v791
    %794 = vrot.lane.b32.xlu0 %v780, 64
    %v795 = vpop.permute.xlu0 %794
    %v797 = vmul.f32 %v792, %v795
    %799 = vrot.lane.b32.xlu0 %v797, 64
    %v800 = vpop.permute.xlu0 %799
    %v802 = vadd.f32 %v784, %v800
    %v803 = vtanh.pop %v802
    %v804 = vsub.f32 1.0, %v792
    %806 = vrot.lane.b32.xlu0 %v803, 96
    %v807 = vpop.permute.xlu0 %806
    %v809 = vmul.f32 %v804, %v807
    %v810 = vmul.f32 %v792, 0.0
    %v811 = vadd.f32 %v809, %v810
    %812 = vrot.lane.b32.xlu0 %v780, 32
    %v813 = vpop.permute.xlu0 %812
    %v815 = vadd.f32 %v785, %v813
    %v816 = vxor.u32 %v815, 2147483648
    %v817 = vmul.f32 %v816, 1.442695
    %v818 = vpow.pop %v817
    %v819 = vadd.f32 %v818, 1.0
    %v820 = vrcp.pop %v819
    %v821 = vmul.f32 1.0, %v820
    %823 = vrot.lane.b32.xlu0 %v782, 32
    %v824 = vpop.permute.xlu0 %823
    %v826 = vadd.f32 %v785, %v824
    %v827 = vxor.u32 %v826, 2147483648
    %v828 = vmul.f32 %v827, 1.442695
    %v829 = vpow.pop %v828
    %v830 = vadd.f32 %v829, 1.0
    %v831 = vrcp.pop %v830
    %v832 = vmul.f32 1.0, %v831
    %833 = vrot.lane.b32.xlu0 %v782, 96
    %v834 = vpop.permute.xlu0 %833
    %v836 = vmul.f32 %v821, %v834
    %838 = vrot.lane.b32.xlu0 %v836, 64
    %v839 = vpop.permute.xlu0 %838
    %v841 = vadd.f32 %v785, %v839
    %v842 = vtanh.pop %v841
    %v843 = vsub.f32 1.0, %v832
    %845 = vrot.lane.b32.xlu0 %v842, 96
    %v846 = vpop.permute.xlu0 %845
    %v848 = vmul.f32 %v843, %v846
    %v849 = vmul.f32 %v832, 0.0
    %v850 = vadd.f32 %v848, %v849
    %852 = vrot.lane.b32.xlu0 %v811, 96
    %v853 = vpop.permute.xlu0 %852
    %855 = vst.msk [vmem:[#allocation5] sm:$0xff] %vm134, %v853
    %vm856 = vcmask 523520
    %857 = vst.msk [vmem:[#allocation5 + $0x78] sm:$0xff] %vm856, %v850
    %v858 = vsel %vm134, %v853, %v850
    %v860 = vsel %vm709, %v858, 0
    %862 = vmatprep.subr.mxu0 0.0
    %863 = vmatpush1.msra.mxu0 0.0
    %864 = vmatprep.subr.mxu0 0.0
    %865 = vmatpush1.msra.mxu0 0.0
    %866 = vmatprep.subr.mxu0 0.0
    %867 = vmatpush1.msra.mxu0 0.0
    %868 = vmatprep.subr.mxu0 0.0
    %869 = vmatpush1.msra.mxu0 0.0
    %870 = vmatprep.subr.mxu0 0.0
    %871 = vmatpush1.msra.mxu0 0.0
    %872 = vmatprep.subr.mxu0 0.0
    %873 = vmatpush1.msra.mxu0 0.0
    %874 = vmatprep.subr.mxu0 0.0
    %875 = vmatpush1.msra.mxu0 0.0
    %876 = vmatprep.subr.mxu0 0.0
    %877 = vmatpush1.msra.mxu0 0.0
    %878 = vmatprep.subr.mxu0 %v696
    %879 = vmatpush1.msra.mxu0 %v695
    %880 = vmatprep.subr.mxu0 %v694
    %881 = vmatpush1.msra.mxu0 %v693
    %882 = vmatprep.subr.mxu0 %v692
    %883 = vmatpush1.msra.mxu0 %v691
    %884 = vmatprep.subr.mxu0 %v690
    %885 = vmatpush1.msra.mxu0 %v689
    %886 = vmatprep.subr.mxu0 %v688
    %887 = vmatpush1.msra.mxu0 %v687
    %888 = vmatprep.subr.mxu0 %v686
    %889 = vmatpush1.msra.mxu0 %v685
    %890 = vmatprep.subr.mxu0 %v684
    %891 = vmatpush1.msra.mxu0 %v683
    %892 = vmatprep.subr.mxu0 %v682
    %893 = vmatpush1.msra.mxu0 %v681
    %894 = vmatprep.subr.mxu0 0.0
    %895 = vmatpush2.msra.mxu0 0.0
    %896 = vmatprep.subr.mxu0 0.0
    %897 = vmatpush2.msra.mxu0 0.0
    %898 = vmatprep.subr.mxu0 0.0
    %899 = vmatpush2.msra.mxu0 0.0
    %900 = vmatprep.subr.mxu0 0.0
    %901 = vmatpush2.msra.mxu0 0.0
    %902 = vmatprep.subr.mxu0 0.0
    %903 = vmatpush2.msra.mxu0 0.0
    %904 = vmatprep.subr.mxu0 0.0
    %905 = vmatpush2.msra.mxu0 0.0
    %906 = vmatprep.subr.mxu0 0.0
    %907 = vmatpush2.msra.mxu0 0.0
    %908 = vmatprep.subr.mxu0 0.0
    %909 = vmatpush2.msra.mxu0 0.0
    %910 = vmatprep.subr.mxu0 0.0
    %911 = vmatpush2.msra.mxu0 0.0
    %912 = vmatprep.subr.mxu0 0.0
    %913 = vmatpush2.msra.mxu0 0.0
    %914 = vmatprep.subr.mxu0 0.0
    %915 = vmatpush2.msra.mxu0 0.0
    %916 = vmatprep.subr.mxu0 0.0
    %917 = vmatpush2.msra.mxu0 0.0
    %918 = vmatprep.subr.mxu0 0.0
    %919 = vmatpush2.msra.mxu0 0.0
    %920 = vmatprep.subr.mxu0 0.0
    %921 = vmatpush2.msra.mxu0 0.0
    %922 = vmatprep.subr.mxu0 0.0
    %923 = vmatpush2.msra.mxu0 0.0
    %924 = vmatprep.subr.mxu0 0.0
    %925 = vmatpush2.msra.mxu0 0.0
    %926 = vmatprep.mubr.f32.mxu0 0.0
    %927 = vmatmul.mubr.f32.gmra.mxu0 %v860
    %v928 = vpop.f32.mrf.mxu0
    %v929 = vadd.f32 %v702, %v928
    %v930 = vpop.f32.mrf.mxu0
    %v931 = vadd.f32 %v706, %v930
    %932 = vdwg.mxu0
    %v933 = vld [vmem:[#allocation3 + $0x8] sm:$0xff]
    %v934 = vld [vmem:[#allocation4 + $0x70] sm:$0xff]
    %v935 = vadd.f32 %v933, %v929
    %v936 = vxor.u32 %v935, 2147483648
    %v937 = vmul.f32 %v936, 1.442695
    %v938 = vpow.pop %v937
    %v939 = vadd.f32 %v938, 1.0
    %v940 = vrcp.pop %v939
    %v941 = vmul.f32 1.0, %v940
    %943 = vrot.lane.b32.xlu0 %v929, 64
    %v944 = vpop.permute.xlu0 %943
    %v946 = vmul.f32 %v941, %v944
    %948 = vrot.lane.b32.xlu0 %v946, 64
    %v949 = vpop.permute.xlu0 %948
    %v951 = vadd.f32 %v933, %v949
    %v952 = vtanh.pop %v951
    %v953 = vsub.f32 1.0, %v941
    %955 = vrot.lane.b32.xlu0 %v952, 96
    %v956 = vpop.permute.xlu0 %955
    %v958 = vmul.f32 %v953, %v956
    %959 = vrot.lane.b32.xlu0 %v858, 32
    %v960 = vpop.permute.xlu0 %959
    %v962 = vmul.f32 %v941, %v960
    %v963 = vadd.f32 %v958, %v962
    %964 = vrot.lane.b32.xlu0 %v929, 32
    %v965 = vpop.permute.xlu0 %964
    %v967 = vadd.f32 %v934, %v965
    %v968 = vxor.u32 %v967, 2147483648
    %v969 = vmul.f32 %v968, 1.442695
    %v970 = vpow.pop %v969
    %v971 = vadd.f32 %v970, 1.0
    %v972 = vrcp.pop %v971
    %v973 = vmul.f32 1.0, %v972
    %975 = vrot.lane.b32.xlu0 %v931, 32
    %v976 = vpop.permute.xlu0 %975
    %v978 = vadd.f32 %v934, %v976
    %v979 = vxor.u32 %v978, 2147483648
    %v980 = vmul.f32 %v979, 1.442695
    %v981 = vpow.pop %v980
    %v982 = vadd.f32 %v981, 1.0
    %v983 = vrcp.pop %v982
    %v984 = vmul.f32 1.0, %v983
    %985 = vrot.lane.b32.xlu0 %v931, 96
    %v986 = vpop.permute.xlu0 %985
    %v988 = vmul.f32 %v973, %v986
    %990 = vrot.lane.b32.xlu0 %v988, 64
    %v991 = vpop.permute.xlu0 %990
    %v993 = vadd.f32 %v934, %v991
    %v994 = vtanh.pop %v993
    %v995 = vsub.f32 1.0, %v984
    %997 = vrot.lane.b32.xlu0 %v994, 96
    %v998 = vpop.permute.xlu0 %997
    %v1000 = vmul.f32 %v995, %v998
    %v1001 = vmul.f32 %v984, %v858
    %v1002 = vadd.f32 %v1000, %v1001
    %1004 = vrot.lane.b32.xlu0 %v963, 96
    %v1005 = vpop.permute.xlu0 %1004
    %1007 = vst.msk [vmem:[#allocation5 + $0x8] sm:$0xff] %vm134, %v1005
    %1008 = vst.msk [vmem:[#allocation5 + $0x70] sm:$0xff] %vm856, %v1002
    %v1009 = vsel %vm134, %v1005, %v1002
    %v1011 = vsel %vm709, %v1009, 0
    %1013 = vmatprep.subr.mxu0 0.0
    %1014 = vmatpush1.msra.mxu0 0.0
    %1015 = vmatprep.subr.mxu0 0.0
    %1016 = vmatpush1.msra.mxu0 0.0
    %1017 = vmatprep.subr.mxu0 0.0
    %1018 = vmatpush1.msra.mxu0 0.0
    %1019 = vmatprep.subr.mxu0 0.0
    %1020 = vmatpush1.msra.mxu0 0.0
    %1021 = vmatprep.subr.mxu0 0.0
    %1022 = vmatpush1.msra.mxu0 0.0
    %1023 = vmatprep.subr.mxu0 0.0
    %1024 = vmatpush1.msra.mxu0 0.0
    %1025 = vmatprep.subr.mxu0 0.0
    %1026 = vmatpush1.msra.mxu0 0.0
    %1027 = vmatprep.subr.mxu0 0.0
    %1028 = vmatpush1.msra.mxu0 0.0
    %1029 = vmatprep.subr.mxu0 %v696
    %1030 = vmatpush1.msra.mxu0 %v695
    %1031 = vmatprep.subr.mxu0 %v694
    %1032 = vmatpush1.msra.mxu0 %v693
    %1033 = vmatprep.subr.mxu0 %v692
    %1034 = vmatpush1.msra.mxu0 %v691
    %1035 = vmatprep.subr.mxu0 %v690
    %1036 = vmatpush1.msra.mxu0 %v689
    %1037 = vmatprep.subr.mxu0 %v688
    %1038 = vmatpush1.msra.mxu0 %v687
    %1039 = vmatprep.subr.mxu0 %v686
    %1040 = vmatpush1.msra.mxu0 %v685
    %1041 = vmatprep.subr.mxu0 %v684
    %1042 = vmatpush1.msra.mxu0 %v683
    %1043 = vmatprep.subr.mxu0 %v682
    %1044 = vmatpush1.msra.mxu0 %v681
    %1045 = vmatprep.subr.mxu0 0.0
    %1046 = vmatpush2.msra.mxu0 0.0
    %1047 = vmatprep.subr.mxu0 0.0
    %1048 = vmatpush2.msra.mxu0 0.0
    %1049 = vmatprep.subr.mxu0 0.0
    %1050 = vmatpush2.msra.mxu0 0.0
    %1051 = vmatprep.subr.mxu0 0.0
    %1052 = vmatpush2.msra.mxu0 0.0
    %1053 = vmatprep.subr.mxu0 0.0
    %1054 = vmatpush2.msra.mxu0 0.0
    %1055 = vmatprep.subr.mxu0 0.0
    %1056 = vmatpush2.msra.mxu0 0.0
    %1057 = vmatprep.subr.mxu0 0.0
    %1058 = vmatpush2.msra.mxu0 0.0
    %1059 = vmatprep.subr.mxu0 0.0
    %1060 = vmatpush2.msra.mxu0 0.0
    %1061 = vmatprep.subr.mxu0 0.0
    %1062 = vmatpush2.msra.mxu0 0.0
    %1063 = vmatprep.subr.mxu0 0.0
    %1064 = vmatpush2.msra.mxu0 0.0
    %1065 = vmatprep.subr.mxu0 0.0
    %1066 = vmatpush2.msra.mxu0 0.0
    %1067 = vmatprep.subr.mxu0 0.0
    %1068 = vmatpush2.msra.mxu0 0.0
    %1069 = vmatprep.subr.mxu0 0.0
    %1070 = vmatpush2.msra.mxu0 0.0
    %1071 = vmatprep.subr.mxu0 0.0
    %1072 = vmatpush2.msra.mxu0 0.0
    %1073 = vmatprep.subr.mxu0 0.0
    %1074 = vmatpush2.msra.mxu0 0.0
    %1075 = vmatprep.subr.mxu0 0.0
    %1076 = vmatpush2.msra.mxu0 0.0
    %1077 = vmatprep.mubr.f32.mxu0 0.0
    %1078 = vmatmul.mubr.f32.gmra.mxu0 %v1011
    %v1079 = vpop.f32.mrf.mxu0
    %v1080 = vadd.f32 %v702, %v1079
    %v1081 = vpop.f32.mrf.mxu0
    %v1082 = vadd.f32 %v706, %v1081
    %1083 = vdwg.mxu0
    %v1084 = vld [vmem:[#allocation3 + $0x10] sm:$0xff]
    %v1085 = vld [vmem:[#allocation4 + $0x68] sm:$0xff]
    %v1086 = vadd.f32 %v1084, %v1080
    %v1087 = vxor.u32 %v1086, 2147483648
    %v1088 = vmul.f32 %v1087, 1.442695
    %v1089 = vpow.pop %v1088
    %v1090 = vadd.f32 %v1089, 1.0
    %v1091 = vrcp.pop %v1090
    %v1092 = vmul.f32 1.0, %v1091
    %1094 = vrot.lane.b32.xlu0 %v1080, 64
    %v1095 = vpop.permute.xlu0 %1094
    %v1097 = vmul.f32 %v1092, %v1095
    %1099 = vrot.lane.b32.xlu0 %v1097, 64
    %v1100 = vpop.permute.xlu0 %1099
    %v1102 = vadd.f32 %v1084, %v1100
    %v1103 = vtanh.pop %v1102
    %v1104 = vsub.f32 1.0, %v1092
    %1106 = vrot.lane.b32.xlu0 %v1103, 96
    %v1107 = vpop.permute.xlu0 %1106
    %v1109 = vmul.f32 %v1104, %v1107
    %1110 = vrot.lane.b32.xlu0 %v1009, 32
    %v1111 = vpop.permute.xlu0 %1110
    %v1113 = vmul.f32 %v1092, %v1111
    %v1114 = vadd.f32 %v1109, %v1113
    %1115 = vrot.lane.b32.xlu0 %v1080, 32
    %v1116 = vpop.permute.xlu0 %1115
    %v1118 = vadd.f32 %v1085, %v1116
    %v1119 = vxor.u32 %v1118, 2147483648
    %v1120 = vmul.f32 %v1119, 1.442695
    %v1121 = vpow.pop %v1120
    %v1122 = vadd.f32 %v1121, 1.0
    %v1123 = vrcp.pop %v1122
    %v1124 = vmul.f32 1.0, %v1123
    %1126 = vrot.lane.b32.xlu0 %v1082, 32
    %v1127 = vpop.permute.xlu0 %1126
    %v1129 = vadd.f32 %v1085, %v1127
    %v1130 = vxor.u32 %v1129, 2147483648
    %v1131 = vmul.f32 %v1130, 1.442695
    %v1132 = vpow.pop %v1131
    %v1133 = vadd.f32 %v1132, 1.0
    %v1134 = vrcp.pop %v1133
    %v1135 = vmul.f32 1.0, %v1134
    %1136 = vrot.lane.b32.xlu0 %v1082, 96
    %v1137 = vpop.permute.xlu0 %1136
    %v1139 = vmul.f32 %v1124, %v1137
    %1141 = vrot.lane.b32.xlu0 %v1139, 64
    %v1142 = vpop.permute.xlu0 %1141
    %v1144 = vadd.f32 %v1085, %v1142
    %v1145 = vtanh.pop %v1144
    %v1146 = vsub.f32 1.0, %v1135
    %1148 = vrot.lane.b32.xlu0 %v1145, 96
    %v1149 = vpop.permute.xlu0 %1148
    %v1151 = vmul.f32 %v1146, %v1149
    %v1152 = vmul.f32 %v1135, %v1009
    %v1153 = vadd.f32 %v1151, %v1152
    %1155 = vrot.lane.b32.xlu0 %v1114, 96
    %v1156 = vpop.permute.xlu0 %1155
    %1158 = vst.msk [vmem:[#allocation5 + $0x10] sm:$0xff] %vm134, %v1156
    %1159 = vst.msk [vmem:[#allocation5 + $0x68] sm:$0xff] %vm856, %v1153
    %v1160 = vsel %vm134, %v1156, %v1153
    %v1162 = vsel %vm709, %v1160, 0
    %1164 = vmatprep.subr.mxu0 0.0
    %1165 = vmatpush1.msra.mxu0 0.0
    %1166 = vmatprep.subr.mxu0 0.0
    %1167 = vmatpush1.msra.mxu0 0.0
    %1168 = vmatprep.subr.mxu0 0.0
    %1169 = vmatpush1.msra.mxu0 0.0
    %1170 = vmatprep.subr.mxu0 0.0
    %1171 = vmatpush1.msra.mxu0 0.0
    %1172 = vmatprep.subr.mxu0 0.0
    %1173 = vmatpush1.msra.mxu0 0.0
    %1174 = vmatprep.subr.mxu0 0.0
    %1175 = vmatpush1.msra.mxu0 0.0
    %1176 = vmatprep.subr.mxu0 0.0
    %1177 = vmatpush1.msra.mxu0 0.0
    %1178 = vmatprep.subr.mxu0 0.0
    %1179 = vmatpush1.msra.mxu0 0.0
    %1180 = vmatprep.subr.mxu0 %v696
    %1181 = vmatpush1.msra.mxu0 %v695
    %1182 = vmatprep.subr.mxu0 %v694
    %1183 = vmatpush1.msra.mxu0 %v693
    %1184 = vmatprep.subr.mxu0 %v692
    %1185 = vmatpush1.msra.mxu0 %v691
    %1186 = vmatprep.subr.mxu0 %v690
    %1187 = vmatpush1.msra.mxu0 %v689
    %1188 = vmatprep.subr.mxu0 %v688
    %1189 = vmatpush1.msra.mxu0 %v687
    %1190 = vmatprep.subr.mxu0 %v686
    %1191 = vmatpush1.msra.mxu0 %v685
    %1192 = vmatprep.subr.mxu0 %v684
    %1193 = vmatpush1.msra.mxu0 %v683
    %1194 = vmatprep.subr.mxu0 %v682
    %1195 = vmatpush1.msra.mxu0 %v681
    %1196 = vmatprep.subr.mxu0 0.0
    %1197 = vmatpush2.msra.mxu0 0.0
    %1198 = vmatprep.subr.mxu0 0.0
    %1199 = vmatpush2.msra.mxu0 0.0
    %1200 = vmatprep.subr.mxu0 0.0
    %1201 = vmatpush2.msra.mxu0 0.0
    %1202 = vmatprep.subr.mxu0 0.0
    %1203 = vmatpush2.msra.mxu0 0.0
    %1204 = vmatprep.subr.mxu0 0.0
    %1205 = vmatpush2.msra.mxu0 0.0
    %1206 = vmatprep.subr.mxu0 0.0
    %1207 = vmatpush2.msra.mxu0 0.0
    %1208 = vmatprep.subr.mxu0 0.0
    %1209 = vmatpush2.msra.mxu0 0.0
    %1210 = vmatprep.subr.mxu0 0.0
    %1211 = vmatpush2.msra.mxu0 0.0
    %1212 = vmatprep.subr.mxu0 0.0
    %1213 = vmatpush2.msra.mxu0 0.0
    %1214 = vmatprep.subr.mxu0 0.0
    %1215 = vmatpush2.msra.mxu0 0.0
    %1216 = vmatprep.subr.mxu0 0.0
    %1217 = vmatpush2.msra.mxu0 0.0
    %1218 = vmatprep.subr.mxu0 0.0
    %1219 = vmatpush2.msra.mxu0 0.0
    %1220 = vmatprep.subr.mxu0 0.0
    %1221 = vmatpush2.msra.mxu0 0.0
    %1222 = vmatprep.subr.mxu0 0.0
    %1223 = vmatpush2.msra.mxu0 0.0
    %1224 = vmatprep.subr.mxu0 0.0
    %1225 = vmatpush2.msra.mxu0 0.0
    %1226 = vmatprep.subr.mxu0 0.0
    %1227 = vmatpush2.msra.mxu0 0.0
    %1228 = vmatprep.mubr.f32.mxu0 0.0
    %1229 = vmatmul.mubr.f32.gmra.mxu0 %v1162
    %v1230 = vpop.f32.mrf.mxu0
    %v1231 = vadd.f32 %v702, %v1230
    %v1232 = vpop.f32.mrf.mxu0
    %v1233 = vadd.f32 %v706, %v1232
    %1234 = vdwg.mxu0
    %v1235 = vld [vmem:[#allocation3 + $0x18] sm:$0xff]
    %v1236 = vld [vmem:[#allocation4 + $0x60] sm:$0xff]
    %v1237 = vadd.f32 %v1235, %v1231
    %v1238 = vxor.u32 %v1237, 2147483648
    %v1239 = vmul.f32 %v1238, 1.442695
    %v1240 = vpow.pop %v1239
    %v1241 = vadd.f32 %v1240, 1.0
    %v1242 = vrcp.pop %v1241
    %v1243 = vmul.f32 1.0, %v1242
    %1245 = vrot.lane.b32.xlu0 %v1231, 64
    %v1246 = vpop.permute.xlu0 %1245
    %v1248 = vmul.f32 %v1243, %v1246
    %1250 = vrot.lane.b32.xlu0 %v1248, 64
    %v1251 = vpop.permute.xlu0 %1250
    %v1253 = vadd.f32 %v1235, %v1251
    %v1254 = vtanh.pop %v1253
    %v1255 = vsub.f32 1.0, %v1243
    %1257 = vrot.lane.b32.xlu0 %v1254, 96
    %v1258 = vpop.permute.xlu0 %1257
    %v1260 = vmul.f32 %v1255, %v1258
    %1261 = vrot.lane.b32.xlu0 %v1160, 32
    %v1262 = vpop.permute.xlu0 %1261
    %v1264 = vmul.f32 %v1243, %v1262
    %v1265 = vadd.f32 %v1260, %v1264
    %1266 = vrot.lane.b32.xlu0 %v1231, 32
    %v1267 = vpop.permute.xlu0 %1266
    %v1269 = vadd.f32 %v1236, %v1267
    %v1270 = vxor.u32 %v1269, 2147483648
    %v1271 = vmul.f32 %v1270, 1.442695
    %v1272 = vpow.pop %v1271
    %v1273 = vadd.f32 %v1272, 1.0
    %v1274 = vrcp.pop %v1273
    %v1275 = vmul.f32 1.0, %v1274
    %1277 = vrot.lane.b32.xlu0 %v1233, 32
    %v1278 = vpop.permute.xlu0 %1277
    %v1280 = vadd.f32 %v1236, %v1278
    %v1281 = vxor.u32 %v1280, 2147483648
    %v1282 = vmul.f32 %v1281, 1.442695
    %v1283 = vpow.pop %v1282
    %v1284 = vadd.f32 %v1283, 1.0
    %v1285 = vrcp.pop %v1284
    %v1286 = vmul.f32 1.0, %v1285
    %1287 = vrot.lane.b32.xlu0 %v1233, 96
    %v1288 = vpop.permute.xlu0 %1287
    %v1290 = vmul.f32 %v1275, %v1288
    %1292 = vrot.lane.b32.xlu0 %v1290, 64
    %v1293 = vpop.permute.xlu0 %1292
    %v1295 = vadd.f32 %v1236, %v1293
    %v1296 = vtanh.pop %v1295
    %v1297 = vsub.f32 1.0, %v1286
    %1299 = vrot.lane.b32.xlu0 %v1296, 96
    %v1300 = vpop.permute.xlu0 %1299
    %v1302 = vmul.f32 %v1297, %v1300
    %v1303 = vmul.f32 %v1286, %v1160
    %v1304 = vadd.f32 %v1302, %v1303
    %1306 = vrot.lane.b32.xlu0 %v1265, 96
    %v1307 = vpop.permute.xlu0 %1306
    %1309 = vst.msk [vmem:[#allocation5 + $0x18] sm:$0xff] %vm134, %v1307
    %1310 = vst.msk [vmem:[#allocation5 + $0x60] sm:$0xff] %vm856, %v1304
    %v1311 = vsel %vm134, %v1307, %v1304
    %v1313 = vsel %vm709, %v1311, 0
    %1315 = vmatprep.subr.mxu0 0.0
    %1316 = vmatpush1.msra.mxu0 0.0
    %1317 = vmatprep.subr.mxu0 0.0
    %1318 = vmatpush1.msra.mxu0 0.0
    %1319 = vmatprep.subr.mxu0 0.0
    %1320 = vmatpush1.msra.mxu0 0.0
    %1321 = vmatprep.subr.mxu0 0.0
    %1322 = vmatpush1.msra.mxu0 0.0
    %1323 = vmatprep.subr.mxu0 0.0
    %1324 = vmatpush1.msra.mxu0 0.0
    %1325 = vmatprep.subr.mxu0 0.0
    %1326 = vmatpush1.msra.mxu0 0.0
    %1327 = vmatprep.subr.mxu0 0.0
    %1328 = vmatpush1.msra.mxu0 0.0
    %1329 = vmatprep.subr.mxu0 0.0
    %1330 = vmatpush1.msra.mxu0 0.0
    %1331 = vmatprep.subr.mxu0 %v696
    %1332 = vmatpush1.msra.mxu0 %v695
    %1333 = vmatprep.subr.mxu0 %v694
    %1334 = vmatpush1.msra.mxu0 %v693
    %1335 = vmatprep.subr.mxu0 %v692
    %1336 = vmatpush1.msra.mxu0 %v691
    %1337 = vmatprep.subr.mxu0 %v690
    %1338 = vmatpush1.msra.mxu0 %v689
    %1339 = vmatprep.subr.mxu0 %v688
    %1340 = vmatpush1.msra.mxu0 %v687
    %1341 = vmatprep.subr.mxu0 %v686
    %1342 = vmatpush1.msra.mxu0 %v685
    %1343 = vmatprep.subr.mxu0 %v684
    %1344 = vmatpush1.msra.mxu0 %v683
    %1345 = vmatprep.subr.mxu0 %v682
    %1346 = vmatpush1.msra.mxu0 %v681
    %1347 = vmatprep.subr.mxu0 0.0
    %1348 = vmatpush2.msra.mxu0 0.0
    %1349 = vmatprep.subr.mxu0 0.0
    %1350 = vmatpush2.msra.mxu0 0.0
    %1351 = vmatprep.subr.mxu0 0.0
    %1352 = vmatpush2.msra.mxu0 0.0
    %1353 = vmatprep.subr.mxu0 0.0
    %1354 = vmatpush2.msra.mxu0 0.0
    %1355 = vmatprep.subr.mxu0 0.0
    %1356 = vmatpush2.msra.mxu0 0.0
    %1357 = vmatprep.subr.mxu0 0.0
    %1358 = vmatpush2.msra.mxu0 0.0
    %1359 = vmatprep.subr.mxu0 0.0
    %1360 = vmatpush2.msra.mxu0 0.0
    %1361 = vmatprep.subr.mxu0 0.0
    %1362 = vmatpush2.msra.mxu0 0.0
    %1363 = vmatprep.subr.mxu0 0.0
    %1364 = vmatpush2.msra.mxu0 0.0
    %1365 = vmatprep.subr.mxu0 0.0
    %1366 = vmatpush2.msra.mxu0 0.0
    %1367 = vmatprep.subr.mxu0 0.0
    %1368 = vmatpush2.msra.mxu0 0.0
    %1369 = vmatprep.subr.mxu0 0.0
    %1370 = vmatpush2.msra.mxu0 0.0
    %1371 = vmatprep.subr.mxu0 0.0
    %1372 = vmatpush2.msra.mxu0 0.0
    %1373 = vmatprep.subr.mxu0 0.0
    %1374 = vmatpush2.msra.mxu0 0.0
    %1375 = vmatprep.subr.mxu0 0.0
    %1376 = vmatpush2.msra.mxu0 0.0
    %1377 = vmatprep.subr.mxu0 0.0
    %1378 = vmatpush2.msra.mxu0 0.0
    %1379 = vmatprep.mubr.f32.mxu0 0.0
    %1380 = vmatmul.mubr.f32.gmra.mxu0 %v1313
    %v1381 = vpop.f32.mrf.mxu0
    %v1382 = vadd.f32 %v702, %v1381
    %v1383 = vpop.f32.mrf.mxu0
    %v1384 = vadd.f32 %v706, %v1383
    %1385 = vdwg.mxu0
    %v1386 = vld [vmem:[#allocation3 + $0x20] sm:$0xff]
    %v1387 = vld [vmem:[#allocation4 + $0x58] sm:$0xff]
    %v1388 = vadd.f32 %v1386, %v1382
    %v1389 = vxor.u32 %v1388, 2147483648
    %v1390 = vmul.f32 %v1389, 1.442695
    %v1391 = vpow.pop %v1390
    %v1392 = vadd.f32 %v1391, 1.0
    %v1393 = vrcp.pop %v1392
    %v1394 = vmul.f32 1.0, %v1393
    %1396 = vrot.lane.b32.xlu0 %v1382, 64
    %v1397 = vpop.permute.xlu0 %1396
    %v1399 = vmul.f32 %v1394, %v1397
    %1401 = vrot.lane.b32.xlu0 %v1399, 64
    %v1402 = vpop.permute.xlu0 %1401
    %v1404 = vadd.f32 %v1386, %v1402
    %v1405 = vtanh.pop %v1404
    %v1406 = vsub.f32 1.0, %v1394
    %1408 = vrot.lane.b32.xlu0 %v1405, 96
    %v1409 = vpop.permute.xlu0 %1408
    %v1411 = vmul.f32 %v1406, %v1409
    %1412 = vrot.lane.b32.xlu0 %v1311, 32
    %v1413 = vpop.permute.xlu0 %1412
    %v1415 = vmul.f32 %v1394, %v1413
    %v1416 = vadd.f32 %v1411, %v1415
    %1417 = vrot.lane.b32.xlu0 %v1382, 32
    %v1418 = vpop.permute.xlu0 %1417
    %v1420 = vadd.f32 %v1387, %v1418
    %v1421 = vxor.u32 %v1420, 2147483648
    %v1422 = vmul.f32 %v1421, 1.442695
    %v1423 = vpow.pop %v1422
    %v1424 = vadd.f32 %v1423, 1.0
    %v1425 = vrcp.pop %v1424
    %v1426 = vmul.f32 1.0, %v1425
    %1428 = vrot.lane.b32.xlu0 %v1384, 32
    %v1429 = vpop.permute.xlu0 %1428
    %v1431 = vadd.f32 %v1387, %v1429
    %v1432 = vxor.u32 %v1431, 2147483648
    %v1433 = vmul.f32 %v1432, 1.442695
    %v1434 = vpow.pop %v1433
    %v1435 = vadd.f32 %v1434, 1.0
    %v1436 = vrcp.pop %v1435
    %v1437 = vmul.f32 1.0, %v1436
    %1438 = vrot.lane.b32.xlu0 %v1384, 96
    %v1439 = vpop.permute.xlu0 %1438
    %v1441 = vmul.f32 %v1426, %v1439
    %1443 = vrot.lane.b32.xlu0 %v1441, 64
    %v1444 = vpop.permute.xlu0 %1443
    %v1446 = vadd.f32 %v1387, %v1444
    %v1447 = vtanh.pop %v1446
    %v1448 = vsub.f32 1.0, %v1437
    %1450 = vrot.lane.b32.xlu0 %v1447, 96
    %v1451 = vpop.permute.xlu0 %1450
    %v1453 = vmul.f32 %v1448, %v1451
    %v1454 = vmul.f32 %v1437, %v1311
    %v1455 = vadd.f32 %v1453, %v1454
    %1457 = vrot.lane.b32.xlu0 %v1416, 96
    %v1458 = vpop.permute.xlu0 %1457
    %1460 = vst.msk [vmem:[#allocation5 + $0x20] sm:$0xff] %vm134, %v1458
    %1461 = vst.msk [vmem:[#allocation5 + $0x58] sm:$0xff] %vm856, %v1455
    %v1462 = vsel %vm134, %v1458, %v1455
    %v1464 = vsel %vm709, %v1462, 0
    %1466 = vmatprep.subr.mxu0 0.0
    %1467 = vmatpush1.msra.mxu0 0.0
    %1468 = vmatprep.subr.mxu0 0.0
    %1469 = vmatpush1.msra.mxu0 0.0
    %1470 = vmatprep.subr.mxu0 0.0
    %1471 = vmatpush1.msra.mxu0 0.0
    %1472 = vmatprep.subr.mxu0 0.0
    %1473 = vmatpush1.msra.mxu0 0.0
    %1474 = vmatprep.subr.mxu0 0.0
    %1475 = vmatpush1.msra.mxu0 0.0
    %1476 = vmatprep.subr.mxu0 0.0
    %1477 = vmatpush1.msra.mxu0 0.0
    %1478 = vmatprep.subr.mxu0 0.0
    %1479 = vmatpush1.msra.mxu0 0.0
    %1480 = vmatprep.subr.mxu0 0.0
    %1481 = vmatpush1.msra.mxu0 0.0
    %1482 = vmatprep.subr.mxu0 %v696
    %1483 = vmatpush1.msra.mxu0 %v695
    %1484 = vmatprep.subr.mxu0 %v694
    %1485 = vmatpush1.msra.mxu0 %v693
    %1486 = vmatprep.subr.mxu0 %v692
    %1487 = vmatpush1.msra.mxu0 %v691
    %1488 = vmatprep.subr.mxu0 %v690
    %1489 = vmatpush1.msra.mxu0 %v689
    %1490 = vmatprep.subr.mxu0 %v688
    %1491 = vmatpush1.msra.mxu0 %v687
    %1492 = vmatprep.subr.mxu0 %v686
    %1493 = vmatpush1.msra.mxu0 %v685
    %1494 = vmatprep.subr.mxu0 %v684
    %1495 = vmatpush1.msra.mxu0 %v683
    %1496 = vmatprep.subr.mxu0 %v682
    %1497 = vmatpush1.msra.mxu0 %v681
    %1498 = vmatprep.subr.mxu0 0.0
    %1499 = vmatpush2.msra.mxu0 0.0
    %1500 = vmatprep.subr.mxu0 0.0
    %1501 = vmatpush2.msra.mxu0 0.0
    %1502 = vmatprep.subr.mxu0 0.0
    %1503 = vmatpush2.msra.mxu0 0.0
    %1504 = vmatprep.subr.mxu0 0.0
    %1505 = vmatpush2.msra.mxu0 0.0
    %1506 = vmatprep.subr.mxu0 0.0
    %1507 = vmatpush2.msra.mxu0 0.0
    %1508 = vmatprep.subr.mxu0 0.0
    %1509 = vmatpush2.msra.mxu0 0.0
    %1510 = vmatprep.subr.mxu0 0.0
    %1511 = vmatpush2.msra.mxu0 0.0
    %1512 = vmatprep.subr.mxu0 0.0
    %1513 = vmatpush2.msra.mxu0 0.0
    %1514 = vmatprep.subr.mxu0 0.0
    %1515 = vmatpush2.msra.mxu0 0.0
    %1516 = vmatprep.subr.mxu0 0.0
    %1517 = vmatpush2.msra.mxu0 0.0
    %1518 = vmatprep.subr.mxu0 0.0
    %1519 = vmatpush2.msra.mxu0 0.0
    %1520 = vmatprep.subr.mxu0 0.0
    %1521 = vmatpush2.msra.mxu0 0.0
    %1522 = vmatprep.subr.mxu0 0.0
    %1523 = vmatpush2.msra.mxu0 0.0
    %1524 = vmatprep.subr.mxu0 0.0
    %1525 = vmatpush2.msra.mxu0 0.0
    %1526 = vmatprep.subr.mxu0 0.0
    %1527 = vmatpush2.msra.mxu0 0.0
    %1528 = vmatprep.subr.mxu0 0.0
    %1529 = vmatpush2.msra.mxu0 0.0
    %1530 = vmatprep.mubr.f32.mxu0 0.0
    %1531 = vmatmul.mubr.f32.gmra.mxu0 %v1464
    %v1532 = vpop.f32.mrf.mxu0
    %v1533 = vadd.f32 %v702, %v1532
    %v1534 = vpop.f32.mrf.mxu0
    %v1535 = vadd.f32 %v706, %v1534
    %1536 = vdwg.mxu0
    %v1537 = vld [vmem:[#allocation3 + $0x28] sm:$0xff]
    %v1538 = vld [vmem:[#allocation4 + $0x50] sm:$0xff]
    %v1539 = vadd.f32 %v1537, %v1533
    %v1540 = vxor.u32 %v1539, 2147483648
    %v1541 = vmul.f32 %v1540, 1.442695
    %v1542 = vpow.pop %v1541
    %v1543 = vadd.f32 %v1542, 1.0
    %v1544 = vrcp.pop %v1543
    %v1545 = vmul.f32 1.0, %v1544
    %1547 = vrot.lane.b32.xlu0 %v1533, 64
    %v1548 = vpop.permute.xlu0 %1547
    %v1550 = vmul.f32 %v1545, %v1548
    %1552 = vrot.lane.b32.xlu0 %v1550, 64
    %v1553 = vpop.permute.xlu0 %1552
    %v1555 = vadd.f32 %v1537, %v1553
    %v1556 = vtanh.pop %v1555
    %v1557 = vsub.f32 1.0, %v1545
    %1559 = vrot.lane.b32.xlu0 %v1556, 96
    %v1560 = vpop.permute.xlu0 %1559
    %v1562 = vmul.f32 %v1557, %v1560
    %1563 = vrot.lane.b32.xlu0 %v1462, 32
    %v1564 = vpop.permute.xlu0 %1563
    %v1566 = vmul.f32 %v1545, %v1564
    %v1567 = vadd.f32 %v1562, %v1566
    %1568 = vrot.lane.b32.xlu0 %v1533, 32
    %v1569 = vpop.permute.xlu0 %1568
    %v1571 = vadd.f32 %v1538, %v1569
    %v1572 = vxor.u32 %v1571, 2147483648
    %v1573 = vmul.f32 %v1572, 1.442695
    %v1574 = vpow.pop %v1573
    %v1575 = vadd.f32 %v1574, 1.0
    %v1576 = vrcp.pop %v1575
    %v1577 = vmul.f32 1.0, %v1576
    %1579 = vrot.lane.b32.xlu0 %v1535, 32
    %v1580 = vpop.permute.xlu0 %1579
    %v1582 = vadd.f32 %v1538, %v1580
    %v1583 = vxor.u32 %v1582, 2147483648
    %v1584 = vmul.f32 %v1583, 1.442695
    %v1585 = vpow.pop %v1584
    %v1586 = vadd.f32 %v1585, 1.0
    %v1587 = vrcp.pop %v1586
    %v1588 = vmul.f32 1.0, %v1587
    %1589 = vrot.lane.b32.xlu0 %v1535, 96
    %v1590 = vpop.permute.xlu0 %1589
    %v1592 = vmul.f32 %v1577, %v1590
    %1594 = vrot.lane.b32.xlu0 %v1592, 64
    %v1595 = vpop.permute.xlu0 %1594
    %v1597 = vadd.f32 %v1538, %v1595
    %v1598 = vtanh.pop %v1597
    %v1599 = vsub.f32 1.0, %v1588
    %1601 = vrot.lane.b32.xlu0 %v1598, 96
    %v1602 = vpop.permute.xlu0 %1601
    %v1604 = vmul.f32 %v1599, %v1602
    %v1605 = vmul.f32 %v1588, %v1462
    %v1606 = vadd.f32 %v1604, %v1605
    %1608 = vrot.lane.b32.xlu0 %v1567, 96
    %v1609 = vpop.permute.xlu0 %1608
    %1611 = vst.msk [vmem:[#allocation5 + $0x28] sm:$0xff] %vm134, %v1609
    %1612 = vst.msk [vmem:[#allocation5 + $0x50] sm:$0xff] %vm856, %v1606
    %v1613 = vsel %vm134, %v1609, %v1606
    %v1615 = vsel %vm709, %v1613, 0
    %1617 = vmatprep.subr.mxu0 0.0
    %1618 = vmatpush1.msra.mxu0 0.0
    %1619 = vmatprep.subr.mxu0 0.0
    %1620 = vmatpush1.msra.mxu0 0.0
    %1621 = vmatprep.subr.mxu0 0.0
    %1622 = vmatpush1.msra.mxu0 0.0
    %1623 = vmatprep.subr.mxu0 0.0
    %1624 = vmatpush1.msra.mxu0 0.0
    %1625 = vmatprep.subr.mxu0 0.0
    %1626 = vmatpush1.msra.mxu0 0.0
    %1627 = vmatprep.subr.mxu0 0.0
    %1628 = vmatpush1.msra.mxu0 0.0
    %1629 = vmatprep.subr.mxu0 0.0
    %1630 = vmatpush1.msra.mxu0 0.0
    %1631 = vmatprep.subr.mxu0 0.0
    %1632 = vmatpush1.msra.mxu0 0.0
    %1633 = vmatprep.subr.mxu0 %v696
    %1634 = vmatpush1.msra.mxu0 %v695
    %1635 = vmatprep.subr.mxu0 %v694
    %1636 = vmatpush1.msra.mxu0 %v693
    %1637 = vmatprep.subr.mxu0 %v692
    %1638 = vmatpush1.msra.mxu0 %v691
    %1639 = vmatprep.subr.mxu0 %v690
    %1640 = vmatpush1.msra.mxu0 %v689
    %1641 = vmatprep.subr.mxu0 %v688
    %1642 = vmatpush1.msra.mxu0 %v687
    %1643 = vmatprep.subr.mxu0 %v686
    %1644 = vmatpush1.msra.mxu0 %v685
    %1645 = vmatprep.subr.mxu0 %v684
    %1646 = vmatpush1.msra.mxu0 %v683
    %1647 = vmatprep.subr.mxu0 %v682
    %1648 = vmatpush1.msra.mxu0 %v681
    %1649 = vmatprep.subr.mxu0 0.0
    %1650 = vmatpush2.msra.mxu0 0.0
    %1651 = vmatprep.subr.mxu0 0.0
    %1652 = vmatpush2.msra.mxu0 0.0
    %1653 = vmatprep.subr.mxu0 0.0
    %1654 = vmatpush2.msra.mxu0 0.0
    %1655 = vmatprep.subr.mxu0 0.0
    %1656 = vmatpush2.msra.mxu0 0.0
    %1657 = vmatprep.subr.mxu0 0.0
    %1658 = vmatpush2.msra.mxu0 0.0
    %1659 = vmatprep.subr.mxu0 0.0
    %1660 = vmatpush2.msra.mxu0 0.0
    %1661 = vmatprep.subr.mxu0 0.0
    %1662 = vmatpush2.msra.mxu0 0.0
    %1663 = vmatprep.subr.mxu0 0.0
    %1664 = vmatpush2.msra.mxu0 0.0
    %1665 = vmatprep.subr.mxu0 0.0
    %1666 = vmatpush2.msra.mxu0 0.0
    %1667 = vmatprep.subr.mxu0 0.0
    %1668 = vmatpush2.msra.mxu0 0.0
    %1669 = vmatprep.subr.mxu0 0.0
    %1670 = vmatpush2.msra.mxu0 0.0
    %1671 = vmatprep.subr.mxu0 0.0
    %1672 = vmatpush2.msra.mxu0 0.0
    %1673 = vmatprep.subr.mxu0 0.0
    %1674 = vmatpush2.msra.mxu0 0.0
    %1675 = vmatprep.subr.mxu0 0.0
    %1676 = vmatpush2.msra.mxu0 0.0
    %1677 = vmatprep.subr.mxu0 0.0
    %1678 = vmatpush2.msra.mxu0 0.0
    %1679 = vmatprep.subr.mxu0 0.0
    %1680 = vmatpush2.msra.mxu0 0.0
    %1681 = vmatprep.mubr.f32.mxu0 0.0
    %1682 = vmatmul.mubr.f32.gmra.mxu0 %v1615
    %v1683 = vpop.f32.mrf.mxu0
    %v1684 = vadd.f32 %v702, %v1683
    %v1685 = vpop.f32.mrf.mxu0
    %v1686 = vadd.f32 %v706, %v1685
    %1687 = vdwg.mxu0
    %v1688 = vld [vmem:[#allocation3 + $0x30] sm:$0xff]
    %v1689 = vld [vmem:[#allocation4 + $0x48] sm:$0xff]
    %v1690 = vadd.f32 %v1688, %v1684
    %v1691 = vxor.u32 %v1690, 2147483648
    %v1692 = vmul.f32 %v1691, 1.442695
    %v1693 = vpow.pop %v1692
    %v1694 = vadd.f32 %v1693, 1.0
    %v1695 = vrcp.pop %v1694
    %v1696 = vmul.f32 1.0, %v1695
    %1698 = vrot.lane.b32.xlu0 %v1684, 64
    %v1699 = vpop.permute.xlu0 %1698
    %v1701 = vmul.f32 %v1696, %v1699
    %1703 = vrot.lane.b32.xlu0 %v1701, 64
    %v1704 = vpop.permute.xlu0 %1703
    %v1706 = vadd.f32 %v1688, %v1704
    %v1707 = vtanh.pop %v1706
    %v1708 = vsub.f32 1.0, %v1696
    %1710 = vrot.lane.b32.xlu0 %v1707, 96
    %v1711 = vpop.permute.xlu0 %1710
    %v1713 = vmul.f32 %v1708, %v1711
    %1714 = vrot.lane.b32.xlu0 %v1613, 32
    %v1715 = vpop.permute.xlu0 %1714
    %v1717 = vmul.f32 %v1696, %v1715
    %v1718 = vadd.f32 %v1713, %v1717
    %1719 = vrot.lane.b32.xlu0 %v1684, 32
    %v1720 = vpop.permute.xlu0 %1719
    %v1722 = vadd.f32 %v1689, %v1720
    %v1723 = vxor.u32 %v1722, 2147483648
    %v1724 = vmul.f32 %v1723, 1.442695
    %v1725 = vpow.pop %v1724
    %v1726 = vadd.f32 %v1725, 1.0
    %v1727 = vrcp.pop %v1726
    %v1728 = vmul.f32 1.0, %v1727
    %1730 = vrot.lane.b32.xlu0 %v1686, 32
    %v1731 = vpop.permute.xlu0 %1730
    %v1733 = vadd.f32 %v1689, %v1731
    %v1734 = vxor.u32 %v1733, 2147483648
    %v1735 = vmul.f32 %v1734, 1.442695
    %v1736 = vpow.pop %v1735
    %v1737 = vadd.f32 %v1736, 1.0
    %v1738 = vrcp.pop %v1737
    %v1739 = vmul.f32 1.0, %v1738
    %1740 = vrot.lane.b32.xlu0 %v1686, 96
    %v1741 = vpop.permute.xlu0 %1740
    %v1743 = vmul.f32 %v1728, %v1741
    %1745 = vrot.lane.b32.xlu0 %v1743, 64
    %v1746 = vpop.permute.xlu0 %1745
    %v1748 = vadd.f32 %v1689, %v1746
    %v1749 = vtanh.pop %v1748
    %v1750 = vsub.f32 1.0, %v1739
    %1752 = vrot.lane.b32.xlu0 %v1749, 96
    %v1753 = vpop.permute.xlu0 %1752
    %v1755 = vmul.f32 %v1750, %v1753
    %v1756 = vmul.f32 %v1739, %v1613
    %v1757 = vadd.f32 %v1755, %v1756
    %1759 = vrot.lane.b32.xlu0 %v1718, 96
    %v1760 = vpop.permute.xlu0 %1759
    %1762 = vst.msk [vmem:[#allocation5 + $0x30] sm:$0xff] %vm134, %v1760
    %1763 = vst.msk [vmem:[#allocation5 + $0x48] sm:$0xff] %vm856, %v1757
    %v1764 = vsel %vm134, %v1760, %v1757
    %v1766 = vsel %vm709, %v1764, 0
    %1768 = vmatprep.subr.mxu0 0.0
    %1769 = vmatpush1.msra.mxu0 0.0
    %1770 = vmatprep.subr.mxu0 0.0
    %1771 = vmatpush1.msra.mxu0 0.0
    %1772 = vmatprep.subr.mxu0 0.0
    %1773 = vmatpush1.msra.mxu0 0.0
    %1774 = vmatprep.subr.mxu0 0.0
    %1775 = vmatpush1.msra.mxu0 0.0
    %1776 = vmatprep.subr.mxu0 0.0
    %1777 = vmatpush1.msra.mxu0 0.0
    %1778 = vmatprep.subr.mxu0 0.0
    %1779 = vmatpush1.msra.mxu0 0.0
    %1780 = vmatprep.subr.mxu0 0.0
    %1781 = vmatpush1.msra.mxu0 0.0
    %1782 = vmatprep.subr.mxu0 0.0
    %1783 = vmatpush1.msra.mxu0 0.0
    %1784 = vmatprep.subr.mxu0 %v696
    %1785 = vmatpush1.msra.mxu0 %v695
    %1786 = vmatprep.subr.mxu0 %v694
    %1787 = vmatpush1.msra.mxu0 %v693
    %1788 = vmatprep.subr.mxu0 %v692
    %1789 = vmatpush1.msra.mxu0 %v691
    %1790 = vmatprep.subr.mxu0 %v690
    %1791 = vmatpush1.msra.mxu0 %v689
    %1792 = vmatprep.subr.mxu0 %v688
    %1793 = vmatpush1.msra.mxu0 %v687
    %1794 = vmatprep.subr.mxu0 %v686
    %1795 = vmatpush1.msra.mxu0 %v685
    %1796 = vmatprep.subr.mxu0 %v684
    %1797 = vmatpush1.msra.mxu0 %v683
    %1798 = vmatprep.subr.mxu0 %v682
    %1799 = vmatpush1.msra.mxu0 %v681
    %1800 = vmatprep.subr.mxu0 0.0
    %1801 = vmatpush2.msra.mxu0 0.0
    %1802 = vmatprep.subr.mxu0 0.0
    %1803 = vmatpush2.msra.mxu0 0.0
    %1804 = vmatprep.subr.mxu0 0.0
    %1805 = vmatpush2.msra.mxu0 0.0
    %1806 = vmatprep.subr.mxu0 0.0
    %1807 = vmatpush2.msra.mxu0 0.0
    %1808 = vmatprep.subr.mxu0 0.0
    %1809 = vmatpush2.msra.mxu0 0.0
    %1810 = vmatprep.subr.mxu0 0.0
    %1811 = vmatpush2.msra.mxu0 0.0
    %1812 = vmatprep.subr.mxu0 0.0
    %1813 = vmatpush2.msra.mxu0 0.0
    %1814 = vmatprep.subr.mxu0 0.0
    %1815 = vmatpush2.msra.mxu0 0.0
    %1816 = vmatprep.subr.mxu0 0.0
    %1817 = vmatpush2.msra.mxu0 0.0
    %1818 = vmatprep.subr.mxu0 0.0
    %1819 = vmatpush2.msra.mxu0 0.0
    %1820 = vmatprep.subr.mxu0 0.0
    %1821 = vmatpush2.msra.mxu0 0.0
    %1822 = vmatprep.subr.mxu0 0.0
    %1823 = vmatpush2.msra.mxu0 0.0
    %1824 = vmatprep.subr.mxu0 0.0
    %1825 = vmatpush2.msra.mxu0 0.0
    %1826 = vmatprep.subr.mxu0 0.0
    %1827 = vmatpush2.msra.mxu0 0.0
    %1828 = vmatprep.subr.mxu0 0.0
    %1829 = vmatpush2.msra.mxu0 0.0
    %1830 = vmatprep.subr.mxu0 0.0
    %1831 = vmatpush2.msra.mxu0 0.0
    %1832 = vmatprep.mubr.f32.mxu0 0.0
    %1833 = vmatmul.mubr.f32.gmra.mxu0 %v1766
    %v1834 = vpop.f32.mrf.mxu0
    %v1835 = vadd.f32 %v702, %v1834
    %v1836 = vpop.f32.mrf.mxu0
    %v1837 = vadd.f32 %v706, %v1836
    %1838 = vdwg.mxu0
    %v1839 = vld [vmem:[#allocation3 + $0x38] sm:$0xff]
    %v1840 = vld [vmem:[#allocation4 + $0x40] sm:$0xff]
    %v1841 = vadd.f32 %v1839, %v1835
    %v1842 = vxor.u32 %v1841, 2147483648
    %v1843 = vmul.f32 %v1842, 1.442695
    %v1844 = vpow.pop %v1843
    %v1845 = vadd.f32 %v1844, 1.0
    %v1846 = vrcp.pop %v1845
    %v1847 = vmul.f32 1.0, %v1846
    %1849 = vrot.lane.b32.xlu0 %v1835, 64
    %v1850 = vpop.permute.xlu0 %1849
    %v1852 = vmul.f32 %v1847, %v1850
    %1854 = vrot.lane.b32.xlu0 %v1852, 64
    %v1855 = vpop.permute.xlu0 %1854
    %v1857 = vadd.f32 %v1839, %v1855
    %v1858 = vtanh.pop %v1857
    %v1859 = vsub.f32 1.0, %v1847
    %1861 = vrot.lane.b32.xlu0 %v1858, 96
    %v1862 = vpop.permute.xlu0 %1861
    %v1864 = vmul.f32 %v1859, %v1862
    %1865 = vrot.lane.b32.xlu0 %v1764, 32
    %v1866 = vpop.permute.xlu0 %1865
    %v1868 = vmul.f32 %v1847, %v1866
    %v1869 = vadd.f32 %v1864, %v1868
    %1870 = vrot.lane.b32.xlu0 %v1835, 32
    %v1871 = vpop.permute.xlu0 %1870
    %v1873 = vadd.f32 %v1840, %v1871
    %v1874 = vxor.u32 %v1873, 2147483648
    %v1875 = vmul.f32 %v1874, 1.442695
    %v1876 = vpow.pop %v1875
    %v1877 = vadd.f32 %v1876, 1.0
    %v1878 = vrcp.pop %v1877
    %v1879 = vmul.f32 1.0, %v1878
    %1881 = vrot.lane.b32.xlu0 %v1837, 32
    %v1882 = vpop.permute.xlu0 %1881
    %v1884 = vadd.f32 %v1840, %v1882
    %v1885 = vxor.u32 %v1884, 2147483648
    %v1886 = vmul.f32 %v1885, 1.442695
    %v1887 = vpow.pop %v1886
    %v1888 = vadd.f32 %v1887, 1.0
    %v1889 = vrcp.pop %v1888
    %v1890 = vmul.f32 1.0, %v1889
    %1891 = vrot.lane.b32.xlu0 %v1837, 96
    %v1892 = vpop.permute.xlu0 %1891
    %v1894 = vmul.f32 %v1879, %v1892
    %1896 = vrot.lane.b32.xlu0 %v1894, 64
    %v1897 = vpop.permute.xlu0 %1896
    %v1899 = vadd.f32 %v1840, %v1897
    %v1900 = vtanh.pop %v1899
    %v1901 = vsub.f32 1.0, %v1890
    %1903 = vrot.lane.b32.xlu0 %v1900, 96
    %v1904 = vpop.permute.xlu0 %1903
    %v1906 = vmul.f32 %v1901, %v1904
    %v1907 = vmul.f32 %v1890, %v1764
    %v1908 = vadd.f32 %v1906, %v1907
    %1910 = vrot.lane.b32.xlu0 %v1869, 96
    %v1911 = vpop.permute.xlu0 %1910
    %1913 = vst.msk [vmem:[#allocation5 + $0x38] sm:$0xff] %vm134, %v1911
    %1914 = vst.msk [vmem:[#allocation5 + $0x40] sm:$0xff] %vm856, %v1908
    %v1915 = vsel %vm134, %v1911, %v1908
    %v1917 = vsel %vm709, %v1915, 0
    %1919 = vmatprep.subr.mxu0 0.0
    %1920 = vmatpush1.msra.mxu0 0.0
    %1921 = vmatprep.subr.mxu0 0.0
    %1922 = vmatpush1.msra.mxu0 0.0
    %1923 = vmatprep.subr.mxu0 0.0
    %1924 = vmatpush1.msra.mxu0 0.0
    %1925 = vmatprep.subr.mxu0 0.0
    %1926 = vmatpush1.msra.mxu0 0.0
    %1927 = vmatprep.subr.mxu0 0.0
    %1928 = vmatpush1.msra.mxu0 0.0
    %1929 = vmatprep.subr.mxu0 0.0
    %1930 = vmatpush1.msra.mxu0 0.0
    %1931 = vmatprep.subr.mxu0 0.0
    %1932 = vmatpush1.msra.mxu0 0.0
    %1933 = vmatprep.subr.mxu0 0.0
    %1934 = vmatpush1.msra.mxu0 0.0
    %1935 = vmatprep.subr.mxu0 %v696
    %1936 = vmatpush1.msra.mxu0 %v695
    %1937 = vmatprep.subr.mxu0 %v694
    %1938 = vmatpush1.msra.mxu0 %v693
    %1939 = vmatprep.subr.mxu0 %v692
    %1940 = vmatpush1.msra.mxu0 %v691
    %1941 = vmatprep.subr.mxu0 %v690
    %1942 = vmatpush1.msra.mxu0 %v689
    %1943 = vmatprep.subr.mxu0 %v688
    %1944 = vmatpush1.msra.mxu0 %v687
    %1945 = vmatprep.subr.mxu0 %v686
    %1946 = vmatpush1.msra.mxu0 %v685
    %1947 = vmatprep.subr.mxu0 %v684
    %1948 = vmatpush1.msra.mxu0 %v683
    %1949 = vmatprep.subr.mxu0 %v682
    %1950 = vmatpush1.msra.mxu0 %v681
    %1951 = vmatprep.subr.mxu0 0.0
    %1952 = vmatpush2.msra.mxu0 0.0
    %1953 = vmatprep.subr.mxu0 0.0
    %1954 = vmatpush2.msra.mxu0 0.0
    %1955 = vmatprep.subr.mxu0 0.0
    %1956 = vmatpush2.msra.mxu0 0.0
    %1957 = vmatprep.subr.mxu0 0.0
    %1958 = vmatpush2.msra.mxu0 0.0
    %1959 = vmatprep.subr.mxu0 0.0
    %1960 = vmatpush2.msra.mxu0 0.0
    %1961 = vmatprep.subr.mxu0 0.0
    %1962 = vmatpush2.msra.mxu0 0.0
    %1963 = vmatprep.subr.mxu0 0.0
    %1964 = vmatpush2.msra.mxu0 0.0
    %1965 = vmatprep.subr.mxu0 0.0
    %1966 = vmatpush2.msra.mxu0 0.0
    %1967 = vmatprep.subr.mxu0 0.0
    %1968 = vmatpush2.msra.mxu0 0.0
    %1969 = vmatprep.subr.mxu0 0.0
    %1970 = vmatpush2.msra.mxu0 0.0
    %1971 = vmatprep.subr.mxu0 0.0
    %1972 = vmatpush2.msra.mxu0 0.0
    %1973 = vmatprep.subr.mxu0 0.0
    %1974 = vmatpush2.msra.mxu0 0.0
    %1975 = vmatprep.subr.mxu0 0.0
    %1976 = vmatpush2.msra.mxu0 0.0
    %1977 = vmatprep.subr.mxu0 0.0
    %1978 = vmatpush2.msra.mxu0 0.0
    %1979 = vmatprep.subr.mxu0 0.0
    %1980 = vmatpush2.msra.mxu0 0.0
    %1981 = vmatprep.subr.mxu0 0.0
    %1982 = vmatpush2.msra.mxu0 0.0
    %1983 = vmatprep.mubr.f32.mxu0 0.0
    %1984 = vmatmul.mubr.f32.gmra.mxu0 %v1917
    %v1985 = vpop.f32.mrf.mxu0
    %v1986 = vadd.f32 %v702, %v1985
    %v1987 = vpop.f32.mrf.mxu0
    %v1988 = vadd.f32 %v706, %v1987
    %1989 = vdwg.mxu0
    %v1990 = vld [vmem:[#allocation3 + $0x40] sm:$0xff]
    %v1991 = vld [vmem:[#allocation4 + $0x38] sm:$0xff]
    %v1992 = vadd.f32 %v1990, %v1986
    %v1993 = vxor.u32 %v1992, 2147483648
    %v1994 = vmul.f32 %v1993, 1.442695
    %v1995 = vpow.pop %v1994
    %v1996 = vadd.f32 %v1995, 1.0
    %v1997 = vrcp.pop %v1996
    %v1998 = vmul.f32 1.0, %v1997
    %2000 = vrot.lane.b32.xlu0 %v1986, 64
    %v2001 = vpop.permute.xlu0 %2000
    %v2003 = vmul.f32 %v1998, %v2001
    %2005 = vrot.lane.b32.xlu0 %v2003, 64
    %v2006 = vpop.permute.xlu0 %2005
    %v2008 = vadd.f32 %v1990, %v2006
    %v2009 = vtanh.pop %v2008
    %v2010 = vsub.f32 1.0, %v1998
    %2012 = vrot.lane.b32.xlu0 %v2009, 96
    %v2013 = vpop.permute.xlu0 %2012
    %v2015 = vmul.f32 %v2010, %v2013
    %2016 = vrot.lane.b32.xlu0 %v1915, 32
    %v2017 = vpop.permute.xlu0 %2016
    %v2019 = vmul.f32 %v1998, %v2017
    %v2020 = vadd.f32 %v2015, %v2019
    %2021 = vrot.lane.b32.xlu0 %v1986, 32
    %v2022 = vpop.permute.xlu0 %2021
    %v2024 = vadd.f32 %v1991, %v2022
    %v2025 = vxor.u32 %v2024, 2147483648
    %v2026 = vmul.f32 %v2025, 1.442695
    %v2027 = vpow.pop %v2026
    %v2028 = vadd.f32 %v2027, 1.0
    %v2029 = vrcp.pop %v2028
    %v2030 = vmul.f32 1.0, %v2029
    %2032 = vrot.lane.b32.xlu0 %v1988, 32
    %v2033 = vpop.permute.xlu0 %2032
    %v2035 = vadd.f32 %v1991, %v2033
    %v2036 = vxor.u32 %v2035, 2147483648
    %v2037 = vmul.f32 %v2036, 1.442695
    %v2038 = vpow.pop %v2037
    %v2039 = vadd.f32 %v2038, 1.0
    %v2040 = vrcp.pop %v2039
    %v2041 = vmul.f32 1.0, %v2040
    %2042 = vrot.lane.b32.xlu0 %v1988, 96
    %v2043 = vpop.permute.xlu0 %2042
    %v2045 = vmul.f32 %v2030, %v2043
    %2047 = vrot.lane.b32.xlu0 %v2045, 64
    %v2048 = vpop.permute.xlu0 %2047
    %v2050 = vadd.f32 %v1991, %v2048
    %v2051 = vtanh.pop %v2050
    %v2052 = vsub.f32 1.0, %v2041
    %2054 = vrot.lane.b32.xlu0 %v2051, 96
    %v2055 = vpop.permute.xlu0 %2054
    %v2057 = vmul.f32 %v2052, %v2055
    %v2058 = vmul.f32 %v2041, %v1915
    %v2059 = vadd.f32 %v2057, %v2058
    %2061 = vrot.lane.b32.xlu0 %v2020, 96
    %v2062 = vpop.permute.xlu0 %2061
    %2064 = vst.msk [vmem:[#allocation5 + $0x40] sm:$0xff] %vm134, %v2062
    %2065 = vst.msk [vmem:[#allocation5 + $0x38] sm:$0xff] %vm856, %v2059
    %v2066 = vsel %vm134, %v2062, %v2059
    %v2068 = vsel %vm709, %v2066, 0
    %2070 = vmatprep.subr.mxu0 0.0
    %2071 = vmatpush1.msra.mxu0 0.0
    %2072 = vmatprep.subr.mxu0 0.0
    %2073 = vmatpush1.msra.mxu0 0.0
    %2074 = vmatprep.subr.mxu0 0.0
    %2075 = vmatpush1.msra.mxu0 0.0
    %2076 = vmatprep.subr.mxu0 0.0
    %2077 = vmatpush1.msra.mxu0 0.0
    %2078 = vmatprep.subr.mxu0 0.0
    %2079 = vmatpush1.msra.mxu0 0.0
    %2080 = vmatprep.subr.mxu0 0.0
    %2081 = vmatpush1.msra.mxu0 0.0
    %2082 = vmatprep.subr.mxu0 0.0
    %2083 = vmatpush1.msra.mxu0 0.0
    %2084 = vmatprep.subr.mxu0 0.0
    %2085 = vmatpush1.msra.mxu0 0.0
    %2086 = vmatprep.subr.mxu0 %v696
    %2087 = vmatpush1.msra.mxu0 %v695
    %2088 = vmatprep.subr.mxu0 %v694
    %2089 = vmatpush1.msra.mxu0 %v693
    %2090 = vmatprep.subr.mxu0 %v692
    %2091 = vmatpush1.msra.mxu0 %v691
    %2092 = vmatprep.subr.mxu0 %v690
    %2093 = vmatpush1.msra.mxu0 %v689
    %2094 = vmatprep.subr.mxu0 %v688
    %2095 = vmatpush1.msra.mxu0 %v687
    %2096 = vmatprep.subr.mxu0 %v686
    %2097 = vmatpush1.msra.mxu0 %v685
    %2098 = vmatprep.subr.mxu0 %v684
    %2099 = vmatpush1.msra.mxu0 %v683
    %2100 = vmatprep.subr.mxu0 %v682
    %2101 = vmatpush1.msra.mxu0 %v681
    %2102 = vmatprep.subr.mxu0 0.0
    %2103 = vmatpush2.msra.mxu0 0.0
    %2104 = vmatprep.subr.mxu0 0.0
    %2105 = vmatpush2.msra.mxu0 0.0
    %2106 = vmatprep.subr.mxu0 0.0
    %2107 = vmatpush2.msra.mxu0 0.0
    %2108 = vmatprep.subr.mxu0 0.0
    %2109 = vmatpush2.msra.mxu0 0.0
    %2110 = vmatprep.subr.mxu0 0.0
    %2111 = vmatpush2.msra.mxu0 0.0
    %2112 = vmatprep.subr.mxu0 0.0
    %2113 = vmatpush2.msra.mxu0 0.0
    %2114 = vmatprep.subr.mxu0 0.0
    %2115 = vmatpush2.msra.mxu0 0.0
    %2116 = vmatprep.subr.mxu0 0.0
    %2117 = vmatpush2.msra.mxu0 0.0
    %2118 = vmatprep.subr.mxu0 0.0
    %2119 = vmatpush2.msra.mxu0 0.0
    %2120 = vmatprep.subr.mxu0 0.0
    %2121 = vmatpush2.msra.mxu0 0.0
    %2122 = vmatprep.subr.mxu0 0.0
    %2123 = vmatpush2.msra.mxu0 0.0
    %2124 = vmatprep.subr.mxu0 0.0
    %2125 = vmatpush2.msra.mxu0 0.0
    %2126 = vmatprep.subr.mxu0 0.0
    %2127 = vmatpush2.msra.mxu0 0.0
    %2128 = vmatprep.subr.mxu0 0.0
    %2129 = vmatpush2.msra.mxu0 0.0
    %2130 = vmatprep.subr.mxu0 0.0
    %2131 = vmatpush2.msra.mxu0 0.0
    %2132 = vmatprep.subr.mxu0 0.0
    %2133 = vmatpush2.msra.mxu0 0.0
    %2134 = vmatprep.mubr.f32.mxu0 0.0
    %2135 = vmatmul.mubr.f32.gmra.mxu0 %v2068
    %v2136 = vpop.f32.mrf.mxu0
    %v2137 = vadd.f32 %v702, %v2136
    %v2138 = vpop.f32.mrf.mxu0
    %v2139 = vadd.f32 %v706, %v2138
    %2140 = vdwg.mxu0
    %v2141 = vld [vmem:[#allocation3 + $0x48] sm:$0xff]
    %v2142 = vld [vmem:[#allocation4 + $0x30] sm:$0xff]
    %v2143 = vadd.f32 %v2141, %v2137
    %v2144 = vxor.u32 %v2143, 2147483648
    %v2145 = vmul.f32 %v2144, 1.442695
    %v2146 = vpow.pop %v2145
    %v2147 = vadd.f32 %v2146, 1.0
    %v2148 = vrcp.pop %v2147
    %v2149 = vmul.f32 1.0, %v2148
    %2151 = vrot.lane.b32.xlu0 %v2137, 64
    %v2152 = vpop.permute.xlu0 %2151
    %v2154 = vmul.f32 %v2149, %v2152
    %2156 = vrot.lane.b32.xlu0 %v2154, 64
    %v2157 = vpop.permute.xlu0 %2156
    %v2159 = vadd.f32 %v2141, %v2157
    %v2160 = vtanh.pop %v2159
    %v2161 = vsub.f32 1.0, %v2149
    %2163 = vrot.lane.b32.xlu0 %v2160, 96
    %v2164 = vpop.permute.xlu0 %2163
    %v2166 = vmul.f32 %v2161, %v2164
    %2167 = vrot.lane.b32.xlu0 %v2066, 32
    %v2168 = vpop.permute.xlu0 %2167
    %v2170 = vmul.f32 %v2149, %v2168
    %v2171 = vadd.f32 %v2166, %v2170
    %2172 = vrot.lane.b32.xlu0 %v2137, 32
    %v2173 = vpop.permute.xlu0 %2172
    %v2175 = vadd.f32 %v2142, %v2173
    %v2176 = vxor.u32 %v2175, 2147483648
    %v2177 = vmul.f32 %v2176, 1.442695
    %v2178 = vpow.pop %v2177
    %v2179 = vadd.f32 %v2178, 1.0
    %v2180 = vrcp.pop %v2179
    %v2181 = vmul.f32 1.0, %v2180
    %2183 = vrot.lane.b32.xlu0 %v2139, 32
    %v2184 = vpop.permute.xlu0 %2183
    %v2186 = vadd.f32 %v2142, %v2184
    %v2187 = vxor.u32 %v2186, 2147483648
    %v2188 = vmul.f32 %v2187, 1.442695
    %v2189 = vpow.pop %v2188
    %v2190 = vadd.f32 %v2189, 1.0
    %v2191 = vrcp.pop %v2190
    %v2192 = vmul.f32 1.0, %v2191
    %2193 = vrot.lane.b32.xlu0 %v2139, 96
    %v2194 = vpop.permute.xlu0 %2193
    %v2196 = vmul.f32 %v2181, %v2194
    %2198 = vrot.lane.b32.xlu0 %v2196, 64
    %v2199 = vpop.permute.xlu0 %2198
    %v2201 = vadd.f32 %v2142, %v2199
    %v2202 = vtanh.pop %v2201
    %v2203 = vsub.f32 1.0, %v2192
    %2205 = vrot.lane.b32.xlu0 %v2202, 96
    %v2206 = vpop.permute.xlu0 %2205
    %v2208 = vmul.f32 %v2203, %v2206
    %v2209 = vmul.f32 %v2192, %v2066
    %v2210 = vadd.f32 %v2208, %v2209
    %2212 = vrot.lane.b32.xlu0 %v2171, 96
    %v2213 = vpop.permute.xlu0 %2212
    %2215 = vst.msk [vmem:[#allocation5 + $0x48] sm:$0xff] %vm134, %v2213
    %2216 = vst.msk [vmem:[#allocation5 + $0x30] sm:$0xff] %vm856, %v2210
    %v2217 = vsel %vm134, %v2213, %v2210
    %v2219 = vsel %vm709, %v2217, 0
    %2221 = vmatprep.subr.mxu0 0.0
    %2222 = vmatpush1.msra.mxu0 0.0
    %2223 = vmatprep.subr.mxu0 0.0
    %2224 = vmatpush1.msra.mxu0 0.0
    %2225 = vmatprep.subr.mxu0 0.0
    %2226 = vmatpush1.msra.mxu0 0.0
    %2227 = vmatprep.subr.mxu0 0.0
    %2228 = vmatpush1.msra.mxu0 0.0
    %2229 = vmatprep.subr.mxu0 0.0
    %2230 = vmatpush1.msra.mxu0 0.0
    %2231 = vmatprep.subr.mxu0 0.0
    %2232 = vmatpush1.msra.mxu0 0.0
    %2233 = vmatprep.subr.mxu0 0.0
    %2234 = vmatpush1.msra.mxu0 0.0
    %2235 = vmatprep.subr.mxu0 0.0
    %2236 = vmatpush1.msra.mxu0 0.0
    %2237 = vmatprep.subr.mxu0 %v696
    %2238 = vmatpush1.msra.mxu0 %v695
    %2239 = vmatprep.subr.mxu0 %v694
    %2240 = vmatpush1.msra.mxu0 %v693
    %2241 = vmatprep.subr.mxu0 %v692
    %2242 = vmatpush1.msra.mxu0 %v691
    %2243 = vmatprep.subr.mxu0 %v690
    %2244 = vmatpush1.msra.mxu0 %v689
    %2245 = vmatprep.subr.mxu0 %v688
    %2246 = vmatpush1.msra.mxu0 %v687
    %2247 = vmatprep.subr.mxu0 %v686
    %2248 = vmatpush1.msra.mxu0 %v685
    %2249 = vmatprep.subr.mxu0 %v684
    %2250 = vmatpush1.msra.mxu0 %v683
    %2251 = vmatprep.subr.mxu0 %v682
    %2252 = vmatpush1.msra.mxu0 %v681
    %2253 = vmatprep.subr.mxu0 0.0
    %2254 = vmatpush2.msra.mxu0 0.0
    %2255 = vmatprep.subr.mxu0 0.0
    %2256 = vmatpush2.msra.mxu0 0.0
    %2257 = vmatprep.subr.mxu0 0.0
    %2258 = vmatpush2.msra.mxu0 0.0
    %2259 = vmatprep.subr.mxu0 0.0
    %2260 = vmatpush2.msra.mxu0 0.0
    %2261 = vmatprep.subr.mxu0 0.0
    %2262 = vmatpush2.msra.mxu0 0.0
    %2263 = vmatprep.subr.mxu0 0.0
    %2264 = vmatpush2.msra.mxu0 0.0
    %2265 = vmatprep.subr.mxu0 0.0
    %2266 = vmatpush2.msra.mxu0 0.0
    %2267 = vmatprep.subr.mxu0 0.0
    %2268 = vmatpush2.msra.mxu0 0.0
    %2269 = vmatprep.subr.mxu0 0.0
    %2270 = vmatpush2.msra.mxu0 0.0
    %2271 = vmatprep.subr.mxu0 0.0
    %2272 = vmatpush2.msra.mxu0 0.0
    %2273 = vmatprep.subr.mxu0 0.0
    %2274 = vmatpush2.msra.mxu0 0.0
    %2275 = vmatprep.subr.mxu0 0.0
    %2276 = vmatpush2.msra.mxu0 0.0
    %2277 = vmatprep.subr.mxu0 0.0
    %2278 = vmatpush2.msra.mxu0 0.0
    %2279 = vmatprep.subr.mxu0 0.0
    %2280 = vmatpush2.msra.mxu0 0.0
    %2281 = vmatprep.subr.mxu0 0.0
    %2282 = vmatpush2.msra.mxu0 0.0
    %2283 = vmatprep.subr.mxu0 0.0
    %2284 = vmatpush2.msra.mxu0 0.0
    %2285 = vmatprep.mubr.f32.mxu0 0.0
    %2286 = vmatmul.mubr.f32.gmra.mxu0 %v2219
    %v2287 = vpop.f32.mrf.mxu0
    %v2288 = vadd.f32 %v702, %v2287
    %v2289 = vpop.f32.mrf.mxu0
    %v2290 = vadd.f32 %v706, %v2289
    %2291 = vdwg.mxu0
    %v2292 = vld [vmem:[#allocation3 + $0x50] sm:$0xff]
    %v2293 = vld [vmem:[#allocation4 + $0x28] sm:$0xff]
    %v2294 = vadd.f32 %v2292, %v2288
    %v2295 = vxor.u32 %v2294, 2147483648
    %v2296 = vmul.f32 %v2295, 1.442695
    %v2297 = vpow.pop %v2296
    %v2298 = vadd.f32 %v2297, 1.0
    %v2299 = vrcp.pop %v2298
    %v2300 = vmul.f32 1.0, %v2299
    %2302 = vrot.lane.b32.xlu0 %v2288, 64
    %v2303 = vpop.permute.xlu0 %2302
    %v2305 = vmul.f32 %v2300, %v2303
    %2307 = vrot.lane.b32.xlu0 %v2305, 64
    %v2308 = vpop.permute.xlu0 %2307
    %v2310 = vadd.f32 %v2292, %v2308
    %v2311 = vtanh.pop %v2310
    %v2312 = vsub.f32 1.0, %v2300
    %2314 = vrot.lane.b32.xlu0 %v2311, 96
    %v2315 = vpop.permute.xlu0 %2314
    %v2317 = vmul.f32 %v2312, %v2315
    %2318 = vrot.lane.b32.xlu0 %v2217, 32
    %v2319 = vpop.permute.xlu0 %2318
    %v2321 = vmul.f32 %v2300, %v2319
    %v2322 = vadd.f32 %v2317, %v2321
    %2323 = vrot.lane.b32.xlu0 %v2288, 32
    %v2324 = vpop.permute.xlu0 %2323
    %v2326 = vadd.f32 %v2293, %v2324
    %v2327 = vxor.u32 %v2326, 2147483648
    %v2328 = vmul.f32 %v2327, 1.442695
    %v2329 = vpow.pop %v2328
    %v2330 = vadd.f32 %v2329, 1.0
    %v2331 = vrcp.pop %v2330
    %v2332 = vmul.f32 1.0, %v2331
    %2334 = vrot.lane.b32.xlu0 %v2290, 32
    %v2335 = vpop.permute.xlu0 %2334
    %v2337 = vadd.f32 %v2293, %v2335
    %v2338 = vxor.u32 %v2337, 2147483648
    %v2339 = vmul.f32 %v2338, 1.442695
    %v2340 = vpow.pop %v2339
    %v2341 = vadd.f32 %v2340, 1.0
    %v2342 = vrcp.pop %v2341
    %v2343 = vmul.f32 1.0, %v2342
    %2344 = vrot.lane.b32.xlu0 %v2290, 96
    %v2345 = vpop.permute.xlu0 %2344
    %v2347 = vmul.f32 %v2332, %v2345
    %2349 = vrot.lane.b32.xlu0 %v2347, 64
    %v2350 = vpop.permute.xlu0 %2349
    %v2352 = vadd.f32 %v2293, %v2350
    %v2353 = vtanh.pop %v2352
    %v2354 = vsub.f32 1.0, %v2343
    %2356 = vrot.lane.b32.xlu0 %v2353, 96
    %v2357 = vpop.permute.xlu0 %2356
    %v2359 = vmul.f32 %v2354, %v2357
    %v2360 = vmul.f32 %v2343, %v2217
    %v2361 = vadd.f32 %v2359, %v2360
    %2363 = vrot.lane.b32.xlu0 %v2322, 96
    %v2364 = vpop.permute.xlu0 %2363
    %2366 = vst.msk [vmem:[#allocation5 + $0x50] sm:$0xff] %vm134, %v2364
    %2367 = vst.msk [vmem:[#allocation5 + $0x28] sm:$0xff] %vm856, %v2361
    %v2368 = vsel %vm134, %v2364, %v2361
    %v2370 = vsel %vm709, %v2368, 0
    %2372 = vmatprep.subr.mxu0 0.0
    %2373 = vmatpush1.msra.mxu0 0.0
    %2374 = vmatprep.subr.mxu0 0.0
    %2375 = vmatpush1.msra.mxu0 0.0
    %2376 = vmatprep.subr.mxu0 0.0
    %2377 = vmatpush1.msra.mxu0 0.0
    %2378 = vmatprep.subr.mxu0 0.0
    %2379 = vmatpush1.msra.mxu0 0.0
    %2380 = vmatprep.subr.mxu0 0.0
    %2381 = vmatpush1.msra.mxu0 0.0
    %2382 = vmatprep.subr.mxu0 0.0
    %2383 = vmatpush1.msra.mxu0 0.0
    %2384 = vmatprep.subr.mxu0 0.0
    %2385 = vmatpush1.msra.mxu0 0.0
    %2386 = vmatprep.subr.mxu0 0.0
    %2387 = vmatpush1.msra.mxu0 0.0
    %2388 = vmatprep.subr.mxu0 %v696
    %2389 = vmatpush1.msra.mxu0 %v695
    %2390 = vmatprep.subr.mxu0 %v694
    %2391 = vmatpush1.msra.mxu0 %v693
    %2392 = vmatprep.subr.mxu0 %v692
    %2393 = vmatpush1.msra.mxu0 %v691
    %2394 = vmatprep.subr.mxu0 %v690
    %2395 = vmatpush1.msra.mxu0 %v689
    %2396 = vmatprep.subr.mxu0 %v688
    %2397 = vmatpush1.msra.mxu0 %v687
    %2398 = vmatprep.subr.mxu0 %v686
    %2399 = vmatpush1.msra.mxu0 %v685
    %2400 = vmatprep.subr.mxu0 %v684
    %2401 = vmatpush1.msra.mxu0 %v683
    %2402 = vmatprep.subr.mxu0 %v682
    %2403 = vmatpush1.msra.mxu0 %v681
    %2404 = vmatprep.subr.mxu0 0.0
    %2405 = vmatpush2.msra.mxu0 0.0
    %2406 = vmatprep.subr.mxu0 0.0
    %2407 = vmatpush2.msra.mxu0 0.0
    %2408 = vmatprep.subr.mxu0 0.0
    %2409 = vmatpush2.msra.mxu0 0.0
    %2410 = vmatprep.subr.mxu0 0.0
    %2411 = vmatpush2.msra.mxu0 0.0
    %2412 = vmatprep.subr.mxu0 0.0
    %2413 = vmatpush2.msra.mxu0 0.0
    %2414 = vmatprep.subr.mxu0 0.0
    %2415 = vmatpush2.msra.mxu0 0.0
    %2416 = vmatprep.subr.mxu0 0.0
    %2417 = vmatpush2.msra.mxu0 0.0
    %2418 = vmatprep.subr.mxu0 0.0
    %2419 = vmatpush2.msra.mxu0 0.0
    %2420 = vmatprep.subr.mxu0 0.0
    %2421 = vmatpush2.msra.mxu0 0.0
    %2422 = vmatprep.subr.mxu0 0.0
    %2423 = vmatpush2.msra.mxu0 0.0
    %2424 = vmatprep.subr.mxu0 0.0
    %2425 = vmatpush2.msra.mxu0 0.0
    %2426 = vmatprep.subr.mxu0 0.0
    %2427 = vmatpush2.msra.mxu0 0.0
    %2428 = vmatprep.subr.mxu0 0.0
    %2429 = vmatpush2.msra.mxu0 0.0
    %2430 = vmatprep.subr.mxu0 0.0
    %2431 = vmatpush2.msra.mxu0 0.0
    %2432 = vmatprep.subr.mxu0 0.0
    %2433 = vmatpush2.msra.mxu0 0.0
    %2434 = vmatprep.subr.mxu0 0.0
    %2435 = vmatpush2.msra.mxu0 0.0
    %2436 = vmatprep.mubr.f32.mxu0 0.0
    %2437 = vmatmul.mubr.f32.gmra.mxu0 %v2370
    %v2438 = vpop.f32.mrf.mxu0
    %v2439 = vadd.f32 %v702, %v2438
    %v2440 = vpop.f32.mrf.mxu0
    %v2441 = vadd.f32 %v706, %v2440
    %2442 = vdwg.mxu0
    %v2443 = vld [vmem:[#allocation3 + $0x58] sm:$0xff]
    %v2444 = vld [vmem:[#allocation4 + $0x20] sm:$0xff]
    %v2445 = vadd.f32 %v2443, %v2439
    %v2446 = vxor.u32 %v2445, 2147483648
    %v2447 = vmul.f32 %v2446, 1.442695
    %v2448 = vpow.pop %v2447
    %v2449 = vadd.f32 %v2448, 1.0
    %v2450 = vrcp.pop %v2449
    %v2451 = vmul.f32 1.0, %v2450
    %2453 = vrot.lane.b32.xlu0 %v2439, 64
    %v2454 = vpop.permute.xlu0 %2453
    %v2456 = vmul.f32 %v2451, %v2454
    %2458 = vrot.lane.b32.xlu0 %v2456, 64
    %v2459 = vpop.permute.xlu0 %2458
    %v2461 = vadd.f32 %v2443, %v2459
    %v2462 = vtanh.pop %v2461
    %v2463 = vsub.f32 1.0, %v2451
    %2465 = vrot.lane.b32.xlu0 %v2462, 96
    %v2466 = vpop.permute.xlu0 %2465
    %v2468 = vmul.f32 %v2463, %v2466
    %2469 = vrot.lane.b32.xlu0 %v2368, 32
    %v2470 = vpop.permute.xlu0 %2469
    %v2472 = vmul.f32 %v2451, %v2470
    %v2473 = vadd.f32 %v2468, %v2472
    %2474 = vrot.lane.b32.xlu0 %v2439, 32
    %v2475 = vpop.permute.xlu0 %2474
    %v2477 = vadd.f32 %v2444, %v2475
    %v2478 = vxor.u32 %v2477, 2147483648
    %v2479 = vmul.f32 %v2478, 1.442695
    %v2480 = vpow.pop %v2479
    %v2481 = vadd.f32 %v2480, 1.0
    %v2482 = vrcp.pop %v2481
    %v2483 = vmul.f32 1.0, %v2482
    %2485 = vrot.lane.b32.xlu0 %v2441, 32
    %v2486 = vpop.permute.xlu0 %2485
    %v2488 = vadd.f32 %v2444, %v2486
    %v2489 = vxor.u32 %v2488, 2147483648
    %v2490 = vmul.f32 %v2489, 1.442695
    %v2491 = vpow.pop %v2490
    %v2492 = vadd.f32 %v2491, 1.0
    %v2493 = vrcp.pop %v2492
    %v2494 = vmul.f32 1.0, %v2493
    %2495 = vrot.lane.b32.xlu0 %v2441, 96
    %v2496 = vpop.permute.xlu0 %2495
    %v2498 = vmul.f32 %v2483, %v2496
    %2500 = vrot.lane.b32.xlu0 %v2498, 64
    %v2501 = vpop.permute.xlu0 %2500
    %v2503 = vadd.f32 %v2444, %v2501
    %v2504 = vtanh.pop %v2503
    %v2505 = vsub.f32 1.0, %v2494
    %2507 = vrot.lane.b32.xlu0 %v2504, 96
    %v2508 = vpop.permute.xlu0 %2507
    %v2510 = vmul.f32 %v2505, %v2508
    %v2511 = vmul.f32 %v2494, %v2368
    %v2512 = vadd.f32 %v2510, %v2511
    %2514 = vrot.lane.b32.xlu0 %v2473, 96
    %v2515 = vpop.permute.xlu0 %2514
    %2517 = vst.msk [vmem:[#allocation5 + $0x58] sm:$0xff] %vm134, %v2515
    %2518 = vst.msk [vmem:[#allocation5 + $0x20] sm:$0xff] %vm856, %v2512
    %v2519 = vsel %vm134, %v2515, %v2512
    %v2521 = vsel %vm709, %v2519, 0
    %2523 = vmatprep.subr.mxu0 0.0
    %2524 = vmatpush1.msra.mxu0 0.0
    %2525 = vmatprep.subr.mxu0 0.0
    %2526 = vmatpush1.msra.mxu0 0.0
    %2527 = vmatprep.subr.mxu0 0.0
    %2528 = vmatpush1.msra.mxu0 0.0
    %2529 = vmatprep.subr.mxu0 0.0
    %2530 = vmatpush1.msra.mxu0 0.0
    %2531 = vmatprep.subr.mxu0 0.0
    %2532 = vmatpush1.msra.mxu0 0.0
    %2533 = vmatprep.subr.mxu0 0.0
    %2534 = vmatpush1.msra.mxu0 0.0
    %2535 = vmatprep.subr.mxu0 0.0
    %2536 = vmatpush1.msra.mxu0 0.0
    %2537 = vmatprep.subr.mxu0 0.0
    %2538 = vmatpush1.msra.mxu0 0.0
    %2539 = vmatprep.subr.mxu0 %v696
    %2540 = vmatpush1.msra.mxu0 %v695
    %2541 = vmatprep.subr.mxu0 %v694
    %2542 = vmatpush1.msra.mxu0 %v693
    %2543 = vmatprep.subr.mxu0 %v692
    %2544 = vmatpush1.msra.mxu0 %v691
    %2545 = vmatprep.subr.mxu0 %v690
    %2546 = vmatpush1.msra.mxu0 %v689
    %2547 = vmatprep.subr.mxu0 %v688
    %2548 = vmatpush1.msra.mxu0 %v687
    %2549 = vmatprep.subr.mxu0 %v686
    %2550 = vmatpush1.msra.mxu0 %v685
    %2551 = vmatprep.subr.mxu0 %v684
    %2552 = vmatpush1.msra.mxu0 %v683
    %2553 = vmatprep.subr.mxu0 %v682
    %2554 = vmatpush1.msra.mxu0 %v681
    %2555 = vmatprep.subr.mxu0 0.0
    %2556 = vmatpush2.msra.mxu0 0.0
    %2557 = vmatprep.subr.mxu0 0.0
    %2558 = vmatpush2.msra.mxu0 0.0
    %2559 = vmatprep.subr.mxu0 0.0
    %2560 = vmatpush2.msra.mxu0 0.0
    %2561 = vmatprep.subr.mxu0 0.0
    %2562 = vmatpush2.msra.mxu0 0.0
    %2563 = vmatprep.subr.mxu0 0.0
    %2564 = vmatpush2.msra.mxu0 0.0
    %2565 = vmatprep.subr.mxu0 0.0
    %2566 = vmatpush2.msra.mxu0 0.0
    %2567 = vmatprep.subr.mxu0 0.0
    %2568 = vmatpush2.msra.mxu0 0.0
    %2569 = vmatprep.subr.mxu0 0.0
    %2570 = vmatpush2.msra.mxu0 0.0
    %2571 = vmatprep.subr.mxu0 0.0
    %2572 = vmatpush2.msra.mxu0 0.0
    %2573 = vmatprep.subr.mxu0 0.0
    %2574 = vmatpush2.msra.mxu0 0.0
    %2575 = vmatprep.subr.mxu0 0.0
    %2576 = vmatpush2.msra.mxu0 0.0
    %2577 = vmatprep.subr.mxu0 0.0
    %2578 = vmatpush2.msra.mxu0 0.0
    %2579 = vmatprep.subr.mxu0 0.0
    %2580 = vmatpush2.msra.mxu0 0.0
    %2581 = vmatprep.subr.mxu0 0.0
    %2582 = vmatpush2.msra.mxu0 0.0
    %2583 = vmatprep.subr.mxu0 0.0
    %2584 = vmatpush2.msra.mxu0 0.0
    %2585 = vmatprep.subr.mxu0 0.0
    %2586 = vmatpush2.msra.mxu0 0.0
    %2587 = vmatprep.mubr.f32.mxu0 0.0
    %2588 = vmatmul.mubr.f32.gmra.mxu0 %v2521
    %v2589 = vpop.f32.mrf.mxu0
    %v2590 = vadd.f32 %v702, %v2589
    %v2591 = vpop.f32.mrf.mxu0
    %v2592 = vadd.f32 %v706, %v2591
    %2593 = vdwg.mxu0
    %v2594 = vld [vmem:[#allocation3 + $0x60] sm:$0xff]
    %v2595 = vld [vmem:[#allocation4 + $0x18] sm:$0xff]
    %v2596 = vadd.f32 %v2594, %v2590
    %v2597 = vxor.u32 %v2596, 2147483648
    %v2598 = vmul.f32 %v2597, 1.442695
    %v2599 = vpow.pop %v2598
    %v2600 = vadd.f32 %v2599, 1.0
    %v2601 = vrcp.pop %v2600
    %v2602 = vmul.f32 1.0, %v2601
    %2604 = vrot.lane.b32.xlu0 %v2590, 64
    %v2605 = vpop.permute.xlu0 %2604
    %v2607 = vmul.f32 %v2602, %v2605
    %2609 = vrot.lane.b32.xlu0 %v2607, 64
    %v2610 = vpop.permute.xlu0 %2609
    %v2612 = vadd.f32 %v2594, %v2610
    %v2613 = vtanh.pop %v2612
    %v2614 = vsub.f32 1.0, %v2602
    %2616 = vrot.lane.b32.xlu0 %v2613, 96
    %v2617 = vpop.permute.xlu0 %2616
    %v2619 = vmul.f32 %v2614, %v2617
    %2620 = vrot.lane.b32.xlu0 %v2519, 32
    %v2621 = vpop.permute.xlu0 %2620
    %v2623 = vmul.f32 %v2602, %v2621
    %v2624 = vadd.f32 %v2619, %v2623
    %2625 = vrot.lane.b32.xlu0 %v2590, 32
    %v2626 = vpop.permute.xlu0 %2625
    %v2628 = vadd.f32 %v2595, %v2626
    %v2629 = vxor.u32 %v2628, 2147483648
    %v2630 = vmul.f32 %v2629, 1.442695
    %v2631 = vpow.pop %v2630
    %v2632 = vadd.f32 %v2631, 1.0
    %v2633 = vrcp.pop %v2632
    %v2634 = vmul.f32 1.0, %v2633
    %2636 = vrot.lane.b32.xlu0 %v2592, 32
    %v2637 = vpop.permute.xlu0 %2636
    %v2639 = vadd.f32 %v2595, %v2637
    %v2640 = vxor.u32 %v2639, 2147483648
    %v2641 = vmul.f32 %v2640, 1.442695
    %v2642 = vpow.pop %v2641
    %v2643 = vadd.f32 %v2642, 1.0
    %v2644 = vrcp.pop %v2643
    %v2645 = vmul.f32 1.0, %v2644
    %2646 = vrot.lane.b32.xlu0 %v2592, 96
    %v2647 = vpop.permute.xlu0 %2646
    %v2649 = vmul.f32 %v2634, %v2647
    %2651 = vrot.lane.b32.xlu0 %v2649, 64
    %v2652 = vpop.permute.xlu0 %2651
    %v2654 = vadd.f32 %v2595, %v2652
    %v2655 = vtanh.pop %v2654
    %v2656 = vsub.f32 1.0, %v2645
    %2658 = vrot.lane.b32.xlu0 %v2655, 96
    %v2659 = vpop.permute.xlu0 %2658
    %v2661 = vmul.f32 %v2656, %v2659
    %v2662 = vmul.f32 %v2645, %v2519
    %v2663 = vadd.f32 %v2661, %v2662
    %2665 = vrot.lane.b32.xlu0 %v2624, 96
    %v2666 = vpop.permute.xlu0 %2665
    %2668 = vst.msk [vmem:[#allocation5 + $0x60] sm:$0xff] %vm134, %v2666
    %2669 = vst.msk [vmem:[#allocation5 + $0x18] sm:$0xff] %vm856, %v2663
    %v2670 = vsel %vm134, %v2666, %v2663
    %v2672 = vsel %vm709, %v2670, 0
    %2674 = vmatprep.subr.mxu0 0.0
    %2675 = vmatpush1.msra.mxu0 0.0
    %2676 = vmatprep.subr.mxu0 0.0
    %2677 = vmatpush1.msra.mxu0 0.0
    %2678 = vmatprep.subr.mxu0 0.0
    %2679 = vmatpush1.msra.mxu0 0.0
    %2680 = vmatprep.subr.mxu0 0.0
    %2681 = vmatpush1.msra.mxu0 0.0
    %2682 = vmatprep.subr.mxu0 0.0
    %2683 = vmatpush1.msra.mxu0 0.0
    %2684 = vmatprep.subr.mxu0 0.0
    %2685 = vmatpush1.msra.mxu0 0.0
    %2686 = vmatprep.subr.mxu0 0.0
    %2687 = vmatpush1.msra.mxu0 0.0
    %2688 = vmatprep.subr.mxu0 0.0
    %2689 = vmatpush1.msra.mxu0 0.0
    %2690 = vmatprep.subr.mxu0 %v696
    %2691 = vmatpush1.msra.mxu0 %v695
    %2692 = vmatprep.subr.mxu0 %v694
    %2693 = vmatpush1.msra.mxu0 %v693
    %2694 = vmatprep.subr.mxu0 %v692
    %2695 = vmatpush1.msra.mxu0 %v691
    %2696 = vmatprep.subr.mxu0 %v690
    %2697 = vmatpush1.msra.mxu0 %v689
    %2698 = vmatprep.subr.mxu0 %v688
    %2699 = vmatpush1.msra.mxu0 %v687
    %2700 = vmatprep.subr.mxu0 %v686
    %2701 = vmatpush1.msra.mxu0 %v685
    %2702 = vmatprep.subr.mxu0 %v684
    %2703 = vmatpush1.msra.mxu0 %v683
    %2704 = vmatprep.subr.mxu0 %v682
    %2705 = vmatpush1.msra.mxu0 %v681
    %2706 = vmatprep.subr.mxu0 0.0
    %2707 = vmatpush2.msra.mxu0 0.0
    %2708 = vmatprep.subr.mxu0 0.0
    %2709 = vmatpush2.msra.mxu0 0.0
    %2710 = vmatprep.subr.mxu0 0.0
    %2711 = vmatpush2.msra.mxu0 0.0
    %2712 = vmatprep.subr.mxu0 0.0
    %2713 = vmatpush2.msra.mxu0 0.0
    %2714 = vmatprep.subr.mxu0 0.0
    %2715 = vmatpush2.msra.mxu0 0.0
    %2716 = vmatprep.subr.mxu0 0.0
    %2717 = vmatpush2.msra.mxu0 0.0
    %2718 = vmatprep.subr.mxu0 0.0
    %2719 = vmatpush2.msra.mxu0 0.0
    %2720 = vmatprep.subr.mxu0 0.0
    %2721 = vmatpush2.msra.mxu0 0.0
    %2722 = vmatprep.subr.mxu0 0.0
    %2723 = vmatpush2.msra.mxu0 0.0
    %2724 = vmatprep.subr.mxu0 0.0
    %2725 = vmatpush2.msra.mxu0 0.0
    %2726 = vmatprep.subr.mxu0 0.0
    %2727 = vmatpush2.msra.mxu0 0.0
    %2728 = vmatprep.subr.mxu0 0.0
    %2729 = vmatpush2.msra.mxu0 0.0
    %2730 = vmatprep.subr.mxu0 0.0
    %2731 = vmatpush2.msra.mxu0 0.0
    %2732 = vmatprep.subr.mxu0 0.0
    %2733 = vmatpush2.msra.mxu0 0.0
    %2734 = vmatprep.subr.mxu0 0.0
    %2735 = vmatpush2.msra.mxu0 0.0
    %2736 = vmatprep.subr.mxu0 0.0
    %2737 = vmatpush2.msra.mxu0 0.0
    %2738 = vmatprep.mubr.f32.mxu0 0.0
    %2739 = vmatmul.mubr.f32.gmra.mxu0 %v2672
    %v2740 = vpop.f32.mrf.mxu0
    %v2741 = vadd.f32 %v702, %v2740
    %v2742 = vpop.f32.mrf.mxu0
    %v2743 = vadd.f32 %v706, %v2742
    %2744 = vdwg.mxu0
    %v2745 = vld [vmem:[#allocation3 + $0x68] sm:$0xff]
    %v2746 = vld [vmem:[#allocation4 + $0x10] sm:$0xff]
    %v2747 = vadd.f32 %v2745, %v2741
    %v2748 = vxor.u32 %v2747, 2147483648
    %v2749 = vmul.f32 %v2748, 1.442695
    %v2750 = vpow.pop %v2749
    %v2751 = vadd.f32 %v2750, 1.0
    %v2752 = vrcp.pop %v2751
    %v2753 = vmul.f32 1.0, %v2752
    %2755 = vrot.lane.b32.xlu0 %v2741, 64
    %v2756 = vpop.permute.xlu0 %2755
    %v2758 = vmul.f32 %v2753, %v2756
    %2760 = vrot.lane.b32.xlu0 %v2758, 64
    %v2761 = vpop.permute.xlu0 %2760
    %v2763 = vadd.f32 %v2745, %v2761
    %v2764 = vtanh.pop %v2763
    %v2765 = vsub.f32 1.0, %v2753
    %2767 = vrot.lane.b32.xlu0 %v2764, 96
    %v2768 = vpop.permute.xlu0 %2767
    %v2770 = vmul.f32 %v2765, %v2768
    %2771 = vrot.lane.b32.xlu0 %v2670, 32
    %v2772 = vpop.permute.xlu0 %2771
    %v2774 = vmul.f32 %v2753, %v2772
    %v2775 = vadd.f32 %v2770, %v2774
    %2776 = vrot.lane.b32.xlu0 %v2741, 32
    %v2777 = vpop.permute.xlu0 %2776
    %v2779 = vadd.f32 %v2746, %v2777
    %v2780 = vxor.u32 %v2779, 2147483648
    %v2781 = vmul.f32 %v2780, 1.442695
    %v2782 = vpow.pop %v2781
    %v2783 = vadd.f32 %v2782, 1.0
    %v2784 = vrcp.pop %v2783
    %v2785 = vmul.f32 1.0, %v2784
    %2787 = vrot.lane.b32.xlu0 %v2743, 32
    %v2788 = vpop.permute.xlu0 %2787
    %v2790 = vadd.f32 %v2746, %v2788
    %v2791 = vxor.u32 %v2790, 2147483648
    %v2792 = vmul.f32 %v2791, 1.442695
    %v2793 = vpow.pop %v2792
    %v2794 = vadd.f32 %v2793, 1.0
    %v2795 = vrcp.pop %v2794
    %v2796 = vmul.f32 1.0, %v2795
    %2797 = vrot.lane.b32.xlu0 %v2743, 96
    %v2798 = vpop.permute.xlu0 %2797
    %v2800 = vmul.f32 %v2785, %v2798
    %2802 = vrot.lane.b32.xlu0 %v2800, 64
    %v2803 = vpop.permute.xlu0 %2802
    %v2805 = vadd.f32 %v2746, %v2803
    %v2806 = vtanh.pop %v2805
    %v2807 = vsub.f32 1.0, %v2796
    %2809 = vrot.lane.b32.xlu0 %v2806, 96
    %v2810 = vpop.permute.xlu0 %2809
    %v2812 = vmul.f32 %v2807, %v2810
    %v2813 = vmul.f32 %v2796, %v2670
    %v2814 = vadd.f32 %v2812, %v2813
    %2816 = vrot.lane.b32.xlu0 %v2775, 96
    %v2817 = vpop.permute.xlu0 %2816
    %2819 = vst.msk [vmem:[#allocation5 + $0x68] sm:$0xff] %vm134, %v2817
    %2820 = vst.msk [vmem:[#allocation5 + $0x10] sm:$0xff] %vm856, %v2814
    %v2821 = vsel %vm134, %v2817, %v2814
    %v2823 = vsel %vm709, %v2821, 0
    %2825 = vmatprep.subr.mxu0 0.0
    %2826 = vmatpush1.msra.mxu0 0.0
    %2827 = vmatprep.subr.mxu0 0.0
    %2828 = vmatpush1.msra.mxu0 0.0
    %2829 = vmatprep.subr.mxu0 0.0
    %2830 = vmatpush1.msra.mxu0 0.0
    %2831 = vmatprep.subr.mxu0 0.0
    %2832 = vmatpush1.msra.mxu0 0.0
    %2833 = vmatprep.subr.mxu0 0.0
    %2834 = vmatpush1.msra.mxu0 0.0
    %2835 = vmatprep.subr.mxu0 0.0
    %2836 = vmatpush1.msra.mxu0 0.0
    %2837 = vmatprep.subr.mxu0 0.0
    %2838 = vmatpush1.msra.mxu0 0.0
    %2839 = vmatprep.subr.mxu0 0.0
    %2840 = vmatpush1.msra.mxu0 0.0
    %2841 = vmatprep.subr.mxu0 %v696
    %2842 = vmatpush1.msra.mxu0 %v695
    %2843 = vmatprep.subr.mxu0 %v694
    %2844 = vmatpush1.msra.mxu0 %v693
    %2845 = vmatprep.subr.mxu0 %v692
    %2846 = vmatpush1.msra.mxu0 %v691
    %2847 = vmatprep.subr.mxu0 %v690
    %2848 = vmatpush1.msra.mxu0 %v689
    %2849 = vmatprep.subr.mxu0 %v688
    %2850 = vmatpush1.msra.mxu0 %v687
    %2851 = vmatprep.subr.mxu0 %v686
    %2852 = vmatpush1.msra.mxu0 %v685
    %2853 = vmatprep.subr.mxu0 %v684
    %2854 = vmatpush1.msra.mxu0 %v683
    %2855 = vmatprep.subr.mxu0 %v682
    %2856 = vmatpush1.msra.mxu0 %v681
    %2857 = vmatprep.subr.mxu0 0.0
    %2858 = vmatpush2.msra.mxu0 0.0
    %2859 = vmatprep.subr.mxu0 0.0
    %2860 = vmatpush2.msra.mxu0 0.0
    %2861 = vmatprep.subr.mxu0 0.0
    %2862 = vmatpush2.msra.mxu0 0.0
    %2863 = vmatprep.subr.mxu0 0.0
    %2864 = vmatpush2.msra.mxu0 0.0
    %2865 = vmatprep.subr.mxu0 0.0
    %2866 = vmatpush2.msra.mxu0 0.0
    %2867 = vmatprep.subr.mxu0 0.0
    %2868 = vmatpush2.msra.mxu0 0.0
    %2869 = vmatprep.subr.mxu0 0.0
    %2870 = vmatpush2.msra.mxu0 0.0
    %2871 = vmatprep.subr.mxu0 0.0
    %2872 = vmatpush2.msra.mxu0 0.0
    %2873 = vmatprep.subr.mxu0 0.0
    %2874 = vmatpush2.msra.mxu0 0.0
    %2875 = vmatprep.subr.mxu0 0.0
    %2876 = vmatpush2.msra.mxu0 0.0
    %2877 = vmatprep.subr.mxu0 0.0
    %2878 = vmatpush2.msra.mxu0 0.0
    %2879 = vmatprep.subr.mxu0 0.0
    %2880 = vmatpush2.msra.mxu0 0.0
    %2881 = vmatprep.subr.mxu0 0.0
    %2882 = vmatpush2.msra.mxu0 0.0
    %2883 = vmatprep.subr.mxu0 0.0
    %2884 = vmatpush2.msra.mxu0 0.0
    %2885 = vmatprep.subr.mxu0 0.0
    %2886 = vmatpush2.msra.mxu0 0.0
    %2887 = vmatprep.subr.mxu0 0.0
    %2888 = vmatpush2.msra.mxu0 0.0
    %2889 = vmatprep.mubr.f32.mxu0 0.0
    %2890 = vmatmul.mubr.f32.gmra.mxu0 %v2823
    %v2891 = vpop.f32.mrf.mxu0
    %v2892 = vadd.f32 %v702, %v2891
    %v2893 = vpop.f32.mrf.mxu0
    %v2894 = vadd.f32 %v706, %v2893
    %2895 = vdwg.mxu0
    %v2896 = vld [vmem:[#allocation3 + $0x70] sm:$0xff]
    %v2897 = vld [vmem:[#allocation4 + $0x8] sm:$0xff]
    %v2898 = vadd.f32 %v2896, %v2892
    %v2899 = vxor.u32 %v2898, 2147483648
    %v2900 = vmul.f32 %v2899, 1.442695
    %v2901 = vpow.pop %v2900
    %v2902 = vadd.f32 %v2901, 1.0
    %v2903 = vrcp.pop %v2902
    %v2904 = vmul.f32 1.0, %v2903
    %2906 = vrot.lane.b32.xlu0 %v2892, 64
    %v2907 = vpop.permute.xlu0 %2906
    %v2909 = vmul.f32 %v2904, %v2907
    %2911 = vrot.lane.b32.xlu0 %v2909, 64
    %v2912 = vpop.permute.xlu0 %2911
    %v2914 = vadd.f32 %v2896, %v2912
    %v2915 = vtanh.pop %v2914
    %v2916 = vsub.f32 1.0, %v2904
    %2918 = vrot.lane.b32.xlu0 %v2915, 96
    %v2919 = vpop.permute.xlu0 %2918
    %v2921 = vmul.f32 %v2916, %v2919
    %2922 = vrot.lane.b32.xlu0 %v2821, 32
    %v2923 = vpop.permute.xlu0 %2922
    %v2925 = vmul.f32 %v2904, %v2923
    %v2926 = vadd.f32 %v2921, %v2925
    %2927 = vrot.lane.b32.xlu0 %v2892, 32
    %v2928 = vpop.permute.xlu0 %2927
    %v2930 = vadd.f32 %v2897, %v2928
    %v2931 = vxor.u32 %v2930, 2147483648
    %v2932 = vmul.f32 %v2931, 1.442695
    %v2933 = vpow.pop %v2932
    %v2934 = vadd.f32 %v2933, 1.0
    %v2935 = vrcp.pop %v2934
    %v2936 = vmul.f32 1.0, %v2935
    %2938 = vrot.lane.b32.xlu0 %v2894, 32
    %v2939 = vpop.permute.xlu0 %2938
    %v2941 = vadd.f32 %v2897, %v2939
    %v2942 = vxor.u32 %v2941, 2147483648
    %v2943 = vmul.f32 %v2942, 1.442695
    %v2944 = vpow.pop %v2943
    %v2945 = vadd.f32 %v2944, 1.0
    %v2946 = vrcp.pop %v2945
    %v2947 = vmul.f32 1.0, %v2946
    %2948 = vrot.lane.b32.xlu0 %v2894, 96
    %v2949 = vpop.permute.xlu0 %2948
    %v2951 = vmul.f32 %v2936, %v2949
    %2953 = vrot.lane.b32.xlu0 %v2951, 64
    %v2954 = vpop.permute.xlu0 %2953
    %v2956 = vadd.f32 %v2897, %v2954
    %v2957 = vtanh.pop %v2956
    %v2958 = vsub.f32 1.0, %v2947
    %2960 = vrot.lane.b32.xlu0 %v2957, 96
    %v2961 = vpop.permute.xlu0 %2960
    %v2963 = vmul.f32 %v2958, %v2961
    %v2964 = vmul.f32 %v2947, %v2821
    %v2965 = vadd.f32 %v2963, %v2964
    %2967 = vrot.lane.b32.xlu0 %v2926, 96
    %v2968 = vpop.permute.xlu0 %2967
    %2970 = vst.msk [vmem:[#allocation5 + $0x70] sm:$0xff] %vm134, %v2968
    %2971 = vst.msk [vmem:[#allocation5 + $0x8] sm:$0xff] %vm856, %v2965
    %v2972 = vsel %vm134, %v2968, %v2965
    %v2974 = vsel %vm709, %v2972, 0
    %2976 = vmatprep.subr.mxu0 0.0
    %2977 = vmatpush1.msra.mxu0 0.0
    %2978 = vmatprep.subr.mxu0 0.0
    %2979 = vmatpush1.msra.mxu0 0.0
    %2980 = vmatprep.subr.mxu0 0.0
    %2981 = vmatpush1.msra.mxu0 0.0
    %2982 = vmatprep.subr.mxu0 0.0
    %2983 = vmatpush1.msra.mxu0 0.0
    %2984 = vmatprep.subr.mxu0 0.0
    %2985 = vmatpush1.msra.mxu0 0.0
    %2986 = vmatprep.subr.mxu0 0.0
    %2987 = vmatpush1.msra.mxu0 0.0
    %2988 = vmatprep.subr.mxu0 0.0
    %2989 = vmatpush1.msra.mxu0 0.0
    %2990 = vmatprep.subr.mxu0 0.0
    %2991 = vmatpush1.msra.mxu0 0.0
    %2992 = vmatprep.subr.mxu0 %v696
    %2993 = vmatpush1.msra.mxu0 %v695
    %2994 = vmatprep.subr.mxu0 %v694
    %2995 = vmatpush1.msra.mxu0 %v693
    %2996 = vmatprep.subr.mxu0 %v692
    %2997 = vmatpush1.msra.mxu0 %v691
    %2998 = vmatprep.subr.mxu0 %v690
    %2999 = vmatpush1.msra.mxu0 %v689
    %3000 = vmatprep.subr.mxu0 %v688
    %3001 = vmatpush1.msra.mxu0 %v687
    %3002 = vmatprep.subr.mxu0 %v686
    %3003 = vmatpush1.msra.mxu0 %v685
    %3004 = vmatprep.subr.mxu0 %v684
    %3005 = vmatpush1.msra.mxu0 %v683
    %3006 = vmatprep.subr.mxu0 %v682
    %3007 = vmatpush1.msra.mxu0 %v681
    %3008 = vmatprep.subr.mxu0 0.0
    %3009 = vmatpush2.msra.mxu0 0.0
    %3010 = vmatprep.subr.mxu0 0.0
    %3011 = vmatpush2.msra.mxu0 0.0
    %3012 = vmatprep.subr.mxu0 0.0
    %3013 = vmatpush2.msra.mxu0 0.0
    %3014 = vmatprep.subr.mxu0 0.0
    %3015 = vmatpush2.msra.mxu0 0.0
    %3016 = vmatprep.subr.mxu0 0.0
    %3017 = vmatpush2.msra.mxu0 0.0
    %3018 = vmatprep.subr.mxu0 0.0
    %3019 = vmatpush2.msra.mxu0 0.0
    %3020 = vmatprep.subr.mxu0 0.0
    %3021 = vmatpush2.msra.mxu0 0.0
    %3022 = vmatprep.subr.mxu0 0.0
    %3023 = vmatpush2.msra.mxu0 0.0
    %3024 = vmatprep.subr.mxu0 0.0
    %3025 = vmatpush2.msra.mxu0 0.0
    %3026 = vmatprep.subr.mxu0 0.0
    %3027 = vmatpush2.msra.mxu0 0.0
    %3028 = vmatprep.subr.mxu0 0.0
    %3029 = vmatpush2.msra.mxu0 0.0
    %3030 = vmatprep.subr.mxu0 0.0
    %3031 = vmatpush2.msra.mxu0 0.0
    %3032 = vmatprep.subr.mxu0 0.0
    %3033 = vmatpush2.msra.mxu0 0.0
    %3034 = vmatprep.subr.mxu0 0.0
    %3035 = vmatpush2.msra.mxu0 0.0
    %3036 = vmatprep.subr.mxu0 0.0
    %3037 = vmatpush2.msra.mxu0 0.0
    %3038 = vmatprep.subr.mxu0 0.0
    %3039 = vmatpush2.msra.mxu0 0.0
    %3040 = vmatprep.mubr.f32.mxu0 0.0
    %3041 = vmatmul.mubr.f32.gmra.mxu0 %v2974
    %v3042 = vpop.f32.mrf.mxu0
    %v3043 = vadd.f32 %v702, %v3042
    %v3044 = vpop.f32.mrf.mxu0
    %v3045 = vadd.f32 %v706, %v3044
    %3046 = vdwg.mxu0
    %v3047 = vld [vmem:[#allocation3 + $0x78] sm:$0xff]
    %v3048 = vld [vmem:[#allocation4] sm:$0xff]
    %v3049 = vadd.f32 %v3047, %v3043
    %v3050 = vxor.u32 %v3049, 2147483648
    %v3051 = vmul.f32 %v3050, 1.442695
    %v3052 = vpow.pop %v3051
    %v3053 = vadd.f32 %v3052, 1.0
    %v3054 = vrcp.pop %v3053
    %v3055 = vmul.f32 1.0, %v3054
    %3057 = vrot.lane.b32.xlu0 %v3043, 64
    %v3058 = vpop.permute.xlu0 %3057
    %v3060 = vmul.f32 %v3055, %v3058
    %3062 = vrot.lane.b32.xlu0 %v3060, 64
    %v3063 = vpop.permute.xlu0 %3062
    %v3065 = vadd.f32 %v3047, %v3063
    %v3066 = vtanh.pop %v3065
    %v3067 = vsub.f32 1.0, %v3055
    %3069 = vrot.lane.b32.xlu0 %v3066, 96
    %v3070 = vpop.permute.xlu0 %3069
    %v3072 = vmul.f32 %v3067, %v3070
    %3073 = vrot.lane.b32.xlu0 %v2972, 32
    %v3074 = vpop.permute.xlu0 %3073
    %v3076 = vmul.f32 %v3055, %v3074
    %v3077 = vadd.f32 %v3072, %v3076
    %3078 = vrot.lane.b32.xlu0 %v3043, 32
    %v3079 = vpop.permute.xlu0 %3078
    %v3081 = vadd.f32 %v3048, %v3079
    %v3082 = vxor.u32 %v3081, 2147483648
    %v3083 = vmul.f32 %v3082, 1.442695
    %v3084 = vpow.pop %v3083
    %v3085 = vadd.f32 %v3084, 1.0
    %v3086 = vrcp.pop %v3085
    %v3087 = vmul.f32 1.0, %v3086
    %3089 = vrot.lane.b32.xlu0 %v3045, 32
    %v3090 = vpop.permute.xlu0 %3089
    %v3092 = vadd.f32 %v3048, %v3090
    %v3093 = vxor.u32 %v3092, 2147483648
    %v3094 = vmul.f32 %v3093, 1.442695
    %v3095 = vpow.pop %v3094
    %v3096 = vadd.f32 %v3095, 1.0
    %v3097 = vrcp.pop %v3096
    %v3098 = vmul.f32 1.0, %v3097
    %3099 = vrot.lane.b32.xlu0 %v3045, 96
    %v3100 = vpop.permute.xlu0 %3099
    %v3102 = vmul.f32 %v3087, %v3100
    %3104 = vrot.lane.b32.xlu0 %v3102, 64
    %v3105 = vpop.permute.xlu0 %3104
    %v3107 = vadd.f32 %v3048, %v3105
    %v3108 = vtanh.pop %v3107
    %v3109 = vsub.f32 1.0, %v3098
    %3111 = vrot.lane.b32.xlu0 %v3108, 96
    %v3112 = vpop.permute.xlu0 %3111
    %v3114 = vmul.f32 %v3109, %v3112
    %v3115 = vmul.f32 %v3098, %v2972
    %v3116 = vadd.f32 %v3114, %v3115
    %3118 = vrot.lane.b32.xlu0 %v3077, 96
    %v3119 = vpop.permute.xlu0 %3118
    %3121 = vst.msk [vmem:[#allocation5 + $0x78] sm:$0xff] %vm134, %v3119
    %3122 = vst.msk [vmem:[#allocation5] sm:$0xff] %vm856, %v3116
    %v3123 = vld [vmem:[#allocation5] sm:$0xff]
    %v3124 = vld [vmem:[#allocation5 + $0x8] sm:$0xff]
    %v3125 = vld [vmem:[#allocation5 + $0x10] sm:$0xff]
    %v3126 = vld [vmem:[#allocation5 + $0x18] sm:$0xff]
    %v3127 = vld [vmem:[#allocation5 + $0x20] sm:$0xff]
    %v3128 = vld [vmem:[#allocation5 + $0x28] sm:$0xff]
    %v3129 = vld [vmem:[#allocation5 + $0x30] sm:$0xff]
    %v3130 = vld [vmem:[#allocation5 + $0x38] sm:$0xff]
    %v3131 = vld [vmem:[#allocation5 + $0x40] sm:$0xff]
    %v3132 = vld [vmem:[#allocation5 + $0x48] sm:$0xff]
    %v3133 = vld [vmem:[#allocation5 + $0x50] sm:$0xff]
    %v3134 = vld [vmem:[#allocation5 + $0x58] sm:$0xff]
    %v3135 = vld [vmem:[#allocation5 + $0x60] sm:$0xff]
    %v3136 = vld [vmem:[#allocation5 + $0x68] sm:$0xff]
    %v3137 = vld [vmem:[#allocation5 + $0x70] sm:$0xff]
    %v3138 = vld [vmem:[#allocation5 + $0x78] sm:$0xff]
    %v3139 = vld [vmem:[%s9] sm:$0xff]
    %v3140 = vld [vmem:[%s9 + $0x8] sm:$0xff]
    %v3141 = vld [vmem:[%s9 + $0x10] sm:$0xff]
    %v3142 = vld [vmem:[%s9 + $0x18] sm:$0xff]
    %v3143 = vld [vmem:[%s9 + $0x20] sm:$0xff]
    %v3144 = vld [vmem:[%s9 + $0x28] sm:$0xff]
    %v3145 = vld [vmem:[%s9 + $0x30] sm:$0xff]
    %v3146 = vld [vmem:[%s9 + $0x38] sm:$0xff]
    %v3147 = vld [vmem:[#allocation11] sm:$0x1]
    %v3149 = vlaneseq
    %v3150 = vshrl.u32 %v3149, 7
    %v3151 = vsub.s32 0, %v3150
    %v3152 = vrot.slane %v3147, %v3151
    %v3155 = vsel %vm709, %v3123, 0
    %v3158 = vsel %vm709, %v3124, 0
    %v3161 = vsel %vm709, %v3125, 0
    %v3164 = vsel %vm709, %v3126, 0
    %v3167 = vsel %vm709, %v3127, 0
    %v3170 = vsel %vm709, %v3128, 0
    %v3173 = vsel %vm709, %v3129, 0
    %v3176 = vsel %vm709, %v3130, 0
    %v3179 = vsel %vm709, %v3131, 0
    %v3182 = vsel %vm709, %v3132, 0
    %v3185 = vsel %vm709, %v3133, 0
    %v3188 = vsel %vm709, %v3134, 0
    %v3191 = vsel %vm709, %v3135, 0
    %v3194 = vsel %vm709, %v3136, 0
    %v3197 = vsel %vm709, %v3137, 0
    %v3200 = vsel %vm709, %v3138, 0
    %3202 = vmatprep.subr.mxu0 0.0
    %3203 = vmatpush1.msra.mxu0 0.0
    %3204 = vmatprep.subr.mxu0 0.0
    %3205 = vmatpush1.msra.mxu0 0.0
    %3206 = vmatprep.subr.mxu0 0.0
    %3207 = vmatpush1.msra.mxu0 0.0
    %3208 = vmatprep.subr.mxu0 0.0
    %3209 = vmatpush1.msra.mxu0 0.0
    %3210 = vmatprep.subr.mxu0 0.0
    %3211 = vmatpush1.msra.mxu0 0.0
    %3212 = vmatprep.subr.mxu0 0.0
    %3213 = vmatpush1.msra.mxu0 0.0
    %3214 = vmatprep.subr.mxu0 0.0
    %3215 = vmatpush1.msra.mxu0 0.0
    %3216 = vmatprep.subr.mxu0 0.0
    %3217 = vmatpush1.msra.mxu0 0.0
    %3218 = vmatprep.subr.mxu0 0.0
    %3219 = vmatpush1.msra.mxu0 %v3146
    %3220 = vmatprep.subr.mxu0 0.0
    %3221 = vmatpush1.msra.mxu0 %v3145
    %3222 = vmatprep.subr.mxu0 0.0
    %3223 = vmatpush1.msra.mxu0 %v3144
    %3224 = vmatprep.subr.mxu0 0.0
    %3225 = vmatpush1.msra.mxu0 %v3143
    %3226 = vmatprep.subr.mxu0 0.0
    %3227 = vmatpush1.msra.mxu0 %v3142
    %3228 = vmatprep.subr.mxu0 0.0
    %3229 = vmatpush1.msra.mxu0 %v3141
    %3230 = vmatprep.subr.mxu0 0.0
    %3231 = vmatpush1.msra.mxu0 %v3140
    %3232 = vmatprep.subr.mxu0 0.0
    %3233 = vmatpush1.msra.mxu0 %v3139
    %3234 = vmatprep.subr.mxu0 0.0
    %3235 = vmatpush2.msra.mxu0 0.0
    %3236 = vmatprep.subr.mxu0 0.0
    %3237 = vmatpush2.msra.mxu0 0.0
    %3238 = vmatprep.subr.mxu0 0.0
    %3239 = vmatpush2.msra.mxu0 0.0
    %3240 = vmatprep.subr.mxu0 0.0
    %3241 = vmatpush2.msra.mxu0 0.0
    %3242 = vmatprep.subr.mxu0 0.0
    %3243 = vmatpush2.msra.mxu0 0.0
    %3244 = vmatprep.subr.mxu0 0.0
    %3245 = vmatpush2.msra.mxu0 0.0
    %3246 = vmatprep.subr.mxu0 0.0
    %3247 = vmatpush2.msra.mxu0 0.0
    %3248 = vmatprep.subr.mxu0 0.0
    %3249 = vmatpush2.msra.mxu0 0.0
    %3250 = vmatprep.subr.mxu0 0.0
    %3251 = vmatpush2.msra.mxu0 0.0
    %3252 = vmatprep.subr.mxu0 0.0
    %3253 = vmatpush2.msra.mxu0 0.0
    %3254 = vmatprep.subr.mxu0 0.0
    %3255 = vmatpush2.msra.mxu0 0.0
    %3256 = vmatprep.subr.mxu0 0.0
    %3257 = vmatpush2.msra.mxu0 0.0
    %3258 = vmatprep.subr.mxu0 0.0
    %3259 = vmatpush2.msra.mxu0 0.0
    %3260 = vmatprep.subr.mxu0 0.0
    %3261 = vmatpush2.msra.mxu0 0.0
    %3262 = vmatprep.subr.mxu0 0.0
    %3263 = vmatpush2.msra.mxu0 0.0
    %3264 = vmatprep.subr.mxu0 0.0
    %3265 = vmatpush2.msra.mxu0 0.0
    %3266 = vmatprep.mubr.f32.mxu0 0.0
    %3267 = vmatmul.mubr.f32.gmra.mxu0 %v3155
    %v3268 = vpop.f32.mrf.mxu0
    %v3269 = vadd.f32 %v3152, %v3268
    %v3270 = vpop.f32.mrf.mxu0
    %3271 = vmatprep.mubr.f32.mxu0 0.0
    %3272 = vmatmul.mubr.f32.gmra.mxu0 %v3158
    %v3273 = vpop.f32.mrf.mxu0
    %v3274 = vadd.f32 %v3152, %v3273
    %v3275 = vpop.f32.mrf.mxu0
    %3276 = vmatprep.mubr.f32.mxu0 0.0
    %3277 = vmatmul.mubr.f32.gmra.mxu0 %v3161
    %v3278 = vpop.f32.mrf.mxu0
    %v3279 = vadd.f32 %v3152, %v3278
    %v3280 = vpop.f32.mrf.mxu0
    %3281 = vmatprep.mubr.f32.mxu0 0.0
    %3282 = vmatmul.mubr.f32.gmra.mxu0 %v3164
    %v3283 = vpop.f32.mrf.mxu0
    %v3284 = vadd.f32 %v3152, %v3283
    %v3285 = vpop.f32.mrf.mxu0
    %3286 = vmatprep.mubr.f32.mxu0 0.0
    %3287 = vmatmul.mubr.f32.gmra.mxu0 %v3167
    %v3288 = vpop.f32.mrf.mxu0
    %v3289 = vadd.f32 %v3152, %v3288
    %v3290 = vpop.f32.mrf.mxu0
    %3291 = vmatprep.mubr.f32.mxu0 0.0
    %3292 = vmatmul.mubr.f32.gmra.mxu0 %v3170
    %v3293 = vpop.f32.mrf.mxu0
    %v3294 = vadd.f32 %v3152, %v3293
    %v3295 = vpop.f32.mrf.mxu0
    %3296 = vmatprep.mubr.f32.mxu0 0.0
    %3297 = vmatmul.mubr.f32.gmra.mxu0 %v3173
    %v3298 = vpop.f32.mrf.mxu0
    %v3299 = vadd.f32 %v3152, %v3298
    %v3300 = vpop.f32.mrf.mxu0
    %3301 = vmatprep.mubr.f32.mxu0 0.0
    %3302 = vmatmul.mubr.f32.gmra.mxu0 %v3176
    %v3303 = vpop.f32.mrf.mxu0
    %v3304 = vadd.f32 %v3152, %v3303
    %v3305 = vpop.f32.mrf.mxu0
    %3306 = vmatprep.mubr.f32.mxu0 0.0
    %3307 = vmatmul.mubr.f32.gmra.mxu0 %v3179
    %v3308 = vpop.f32.mrf.mxu0
    %v3309 = vadd.f32 %v3152, %v3308
    %v3310 = vpop.f32.mrf.mxu0
    %3311 = vmatprep.mubr.f32.mxu0 0.0
    %3312 = vmatmul.mubr.f32.gmra.mxu0 %v3182
    %v3313 = vpop.f32.mrf.mxu0
    %v3314 = vadd.f32 %v3152, %v3313
    %v3315 = vpop.f32.mrf.mxu0
    %3316 = vmatprep.mubr.f32.mxu0 0.0
    %3317 = vmatmul.mubr.f32.gmra.mxu0 %v3185
    %v3318 = vpop.f32.mrf.mxu0
    %v3319 = vadd.f32 %v3152, %v3318
    %v3320 = vpop.f32.mrf.mxu0
    %3321 = vmatprep.mubr.f32.mxu0 0.0
    %3322 = vmatmul.mubr.f32.gmra.mxu0 %v3188
    %v3323 = vpop.f32.mrf.mxu0
    %v3324 = vadd.f32 %v3152, %v3323
    %v3325 = vpop.f32.mrf.mxu0
    %3326 = vmatprep.mubr.f32.mxu0 0.0
    %3327 = vmatmul.mubr.f32.gmra.mxu0 %v3191
    %v3328 = vpop.f32.mrf.mxu0
    %v3329 = vadd.f32 %v3152, %v3328
    %v3330 = vpop.f32.mrf.mxu0
    %3331 = vmatprep.mubr.f32.mxu0 0.0
    %3332 = vmatmul.mubr.f32.gmra.mxu0 %v3194
    %v3333 = vpop.f32.mrf.mxu0
    %v3334 = vadd.f32 %v3152, %v3333
    %v3335 = vpop.f32.mrf.mxu0
    %3336 = vmatprep.mubr.f32.mxu0 0.0
    %3337 = vmatmul.mubr.f32.gmra.mxu0 %v3197
    %v3338 = vpop.f32.mrf.mxu0
    %v3339 = vadd.f32 %v3152, %v3338
    %v3340 = vpop.f32.mrf.mxu0
    %3341 = vmatprep.mubr.f32.mxu0 0.0
    %3342 = vmatmul.mubr.f32.gmra.mxu0 %v3200
    %v3343 = vpop.f32.mrf.mxu0
    %v3344 = vadd.f32 %v3152, %v3343
    %v3345 = vpop.f32.mrf.mxu0
    %3346 = vdwg.mxu0
    %3347 = vst.msk [vmem:[#allocation3] sm:$0xff] %vm492, %v3269
    %3348 = vst.msk [vmem:[#allocation3 + $0x8] sm:$0xff] %vm492, %v3274
    %3349 = vst.msk [vmem:[#allocation3 + $0x10] sm:$0xff] %vm492, %v3279
    %3350 = vst.msk [vmem:[#allocation3 + $0x18] sm:$0xff] %vm492, %v3284
    %3351 = vst.msk [vmem:[#allocation3 + $0x20] sm:$0xff] %vm492, %v3289
    %3352 = vst.msk [vmem:[#allocation3 + $0x28] sm:$0xff] %vm492, %v3294
    %3353 = vst.msk [vmem:[#allocation3 + $0x30] sm:$0xff] %vm492, %v3299
    %3354 = vst.msk [vmem:[#allocation3 + $0x38] sm:$0xff] %vm492, %v3304
    %3355 = vst.msk [vmem:[#allocation3 + $0x40] sm:$0xff] %vm492, %v3309
    %3356 = vst.msk [vmem:[#allocation3 + $0x48] sm:$0xff] %vm492, %v3314
    %3357 = vst.msk [vmem:[#allocation3 + $0x50] sm:$0xff] %vm492, %v3319
    %3358 = vst.msk [vmem:[#allocation3 + $0x58] sm:$0xff] %vm492, %v3324
    %3359 = vst.msk [vmem:[#allocation3 + $0x60] sm:$0xff] %vm492, %v3329
    %3360 = vst.msk [vmem:[#allocation3 + $0x68] sm:$0xff] %vm492, %v3334
    %3361 = vst.msk [vmem:[#allocation3 + $0x70] sm:$0xff] %vm492, %v3339
    %3362 = vst.msk [vmem:[#allocation3 + $0x78] sm:$0xff] %vm492, %v3344
    %v3363 = vld [vmem:[#allocation9] sm:$0xff]
    %v3364 = vld [vmem:[#allocation9 + $0x8] sm:$0xff]
    %v3365 = vld [vmem:[#allocation9 + $0x10] sm:$0xff]
    %v3366 = vld [vmem:[#allocation9 + $0x18] sm:$0xff]
    %v3367 = vld [vmem:[#allocation9 + $0x20] sm:$0xff]
    %v3368 = vld [vmem:[#allocation9 + $0x28] sm:$0xff]
    %v3369 = vld [vmem:[#allocation9 + $0x30] sm:$0xff]
    %v3370 = vld [vmem:[#allocation9 + $0x38] sm:$0xff]
    %v3371 = vld [vmem:[#allocation12] sm:$0x1]
    %v3373 = vlaneseq
    %v3374 = vshrl.u32 %v3373, 7
    %v3375 = vsub.s32 0, %v3374
    %v3376 = vrot.slane %v3371, %v3375
    %3378 = vmatprep.subr.mxu0 0.0
    %3379 = vmatpush1.msra.mxu0 0.0
    %3380 = vmatprep.subr.mxu0 0.0
    %3381 = vmatpush1.msra.mxu0 0.0
    %3382 = vmatprep.subr.mxu0 0.0
    %3383 = vmatpush1.msra.mxu0 0.0
    %3384 = vmatprep.subr.mxu0 0.0
    %3385 = vmatpush1.msra.mxu0 0.0
    %3386 = vmatprep.subr.mxu0 0.0
    %3387 = vmatpush1.msra.mxu0 0.0
    %3388 = vmatprep.subr.mxu0 0.0
    %3389 = vmatpush1.msra.mxu0 0.0
    %3390 = vmatprep.subr.mxu0 0.0
    %3391 = vmatpush1.msra.mxu0 0.0
    %3392 = vmatprep.subr.mxu0 0.0
    %3393 = vmatpush1.msra.mxu0 0.0
    %3394 = vmatprep.subr.mxu0 0.0
    %3395 = vmatpush1.msra.mxu0 %v3370
    %3396 = vmatprep.subr.mxu0 0.0
    %3397 = vmatpush1.msra.mxu0 %v3369
    %3398 = vmatprep.subr.mxu0 0.0
    %3399 = vmatpush1.msra.mxu0 %v3368
    %3400 = vmatprep.subr.mxu0 0.0
    %3401 = vmatpush1.msra.mxu0 %v3367
    %3402 = vmatprep.subr.mxu0 0.0
    %3403 = vmatpush1.msra.mxu0 %v3366
    %3404 = vmatprep.subr.mxu0 0.0
    %3405 = vmatpush1.msra.mxu0 %v3365
    %3406 = vmatprep.subr.mxu0 0.0
    %3407 = vmatpush1.msra.mxu0 %v3364
    %3408 = vmatprep.subr.mxu0 0.0
    %3409 = vmatpush1.msra.mxu0 %v3363
    %3410 = vmatprep.subr.mxu0 0.0
    %3411 = vmatpush2.msra.mxu0 0.0
    %3412 = vmatprep.subr.mxu0 0.0
    %3413 = vmatpush2.msra.mxu0 0.0
    %3414 = vmatprep.subr.mxu0 0.0
    %3415 = vmatpush2.msra.mxu0 0.0
    %3416 = vmatprep.subr.mxu0 0.0
    %3417 = vmatpush2.msra.mxu0 0.0
    %3418 = vmatprep.subr.mxu0 0.0
    %3419 = vmatpush2.msra.mxu0 0.0
    %3420 = vmatprep.subr.mxu0 0.0
    %3421 = vmatpush2.msra.mxu0 0.0
    %3422 = vmatprep.subr.mxu0 0.0
    %3423 = vmatpush2.msra.mxu0 0.0
    %3424 = vmatprep.subr.mxu0 0.0
    %3425 = vmatpush2.msra.mxu0 0.0
    %3426 = vmatprep.subr.mxu0 0.0
    %3427 = vmatpush2.msra.mxu0 0.0
    %3428 = vmatprep.subr.mxu0 0.0
    %3429 = vmatpush2.msra.mxu0 0.0
    %3430 = vmatprep.subr.mxu0 0.0
    %3431 = vmatpush2.msra.mxu0 0.0
    %3432 = vmatprep.subr.mxu0 0.0
    %3433 = vmatpush2.msra.mxu0 0.0
    %3434 = vmatprep.subr.mxu0 0.0
    %3435 = vmatpush2.msra.mxu0 0.0
    %3436 = vmatprep.subr.mxu0 0.0
    %3437 = vmatpush2.msra.mxu0 0.0
    %3438 = vmatprep.subr.mxu0 0.0
    %3439 = vmatpush2.msra.mxu0 0.0
    %3440 = vmatprep.subr.mxu0 0.0
    %3441 = vmatpush2.msra.mxu0 0.0
    %3442 = vmatprep.mubr.f32.mxu0 0.0
    %3443 = vmatmul.mubr.f32.gmra.mxu0 %v3155
    %v3444 = vpop.f32.mrf.mxu0
    %v3445 = vadd.f32 %v3376, %v3444
    %v3446 = vpop.f32.mrf.mxu0
    %3447 = vmatprep.mubr.f32.mxu0 0.0
    %3448 = vmatmul.mubr.f32.gmra.mxu0 %v3158
    %v3449 = vpop.f32.mrf.mxu0
    %v3450 = vadd.f32 %v3376, %v3449
    %v3451 = vpop.f32.mrf.mxu0
    %3452 = vmatprep.mubr.f32.mxu0 0.0
    %3453 = vmatmul.mubr.f32.gmra.mxu0 %v3161
    %v3454 = vpop.f32.mrf.mxu0
    %v3455 = vadd.f32 %v3376, %v3454
    %v3456 = vpop.f32.mrf.mxu0
    %3457 = vmatprep.mubr.f32.mxu0 0.0
    %3458 = vmatmul.mubr.f32.gmra.mxu0 %v3164
    %v3459 = vpop.f32.mrf.mxu0
    %v3460 = vadd.f32 %v3376, %v3459
    %v3461 = vpop.f32.mrf.mxu0
    %3462 = vmatprep.mubr.f32.mxu0 0.0
    %3463 = vmatmul.mubr.f32.gmra.mxu0 %v3167
    %v3464 = vpop.f32.mrf.mxu0
    %v3465 = vadd.f32 %v3376, %v3464
    %v3466 = vpop.f32.mrf.mxu0
    %3467 = vmatprep.mubr.f32.mxu0 0.0
    %3468 = vmatmul.mubr.f32.gmra.mxu0 %v3170
    %v3469 = vpop.f32.mrf.mxu0
    %v3470 = vadd.f32 %v3376, %v3469
    %v3471 = vpop.f32.mrf.mxu0
    %3472 = vmatprep.mubr.f32.mxu0 0.0
    %3473 = vmatmul.mubr.f32.gmra.mxu0 %v3173
    %v3474 = vpop.f32.mrf.mxu0
    %v3475 = vadd.f32 %v3376, %v3474
    %v3476 = vpop.f32.mrf.mxu0
    %3477 = vmatprep.mubr.f32.mxu0 0.0
    %3478 = vmatmul.mubr.f32.gmra.mxu0 %v3176
    %v3479 = vpop.f32.mrf.mxu0
    %v3480 = vadd.f32 %v3376, %v3479
    %v3481 = vpop.f32.mrf.mxu0
    %3482 = vmatprep.mubr.f32.mxu0 0.0
    %3483 = vmatmul.mubr.f32.gmra.mxu0 %v3179
    %v3484 = vpop.f32.mrf.mxu0
    %v3485 = vadd.f32 %v3376, %v3484
    %v3486 = vpop.f32.mrf.mxu0
    %3487 = vmatprep.mubr.f32.mxu0 0.0
    %3488 = vmatmul.mubr.f32.gmra.mxu0 %v3182
    %v3489 = vpop.f32.mrf.mxu0
    %v3490 = vadd.f32 %v3376, %v3489
    %v3491 = vpop.f32.mrf.mxu0
    %3492 = vmatprep.mubr.f32.mxu0 0.0
    %3493 = vmatmul.mubr.f32.gmra.mxu0 %v3185
    %v3494 = vpop.f32.mrf.mxu0
    %v3495 = vadd.f32 %v3376, %v3494
    %v3496 = vpop.f32.mrf.mxu0
    %3497 = vmatprep.mubr.f32.mxu0 0.0
    %3498 = vmatmul.mubr.f32.gmra.mxu0 %v3188
    %v3499 = vpop.f32.mrf.mxu0
    %v3500 = vadd.f32 %v3376, %v3499
    %v3501 = vpop.f32.mrf.mxu0
    %3502 = vmatprep.mubr.f32.mxu0 0.0
    %3503 = vmatmul.mubr.f32.gmra.mxu0 %v3191
    %v3504 = vpop.f32.mrf.mxu0
    %v3505 = vadd.f32 %v3376, %v3504
    %v3506 = vpop.f32.mrf.mxu0
    %3507 = vmatprep.mubr.f32.mxu0 0.0
    %3508 = vmatmul.mubr.f32.gmra.mxu0 %v3194
    %v3509 = vpop.f32.mrf.mxu0
    %v3510 = vadd.f32 %v3376, %v3509
    %v3511 = vpop.f32.mrf.mxu0
    %3512 = vmatprep.mubr.f32.mxu0 0.0
    %3513 = vmatmul.mubr.f32.gmra.mxu0 %v3197
    %v3514 = vpop.f32.mrf.mxu0
    %v3515 = vadd.f32 %v3376, %v3514
    %v3516 = vpop.f32.mrf.mxu0
    %3517 = vmatprep.mubr.f32.mxu0 0.0
    %3518 = vmatmul.mubr.f32.gmra.mxu0 %v3200
    %v3519 = vpop.f32.mrf.mxu0
    %v3520 = vadd.f32 %v3376, %v3519
    %v3521 = vpop.f32.mrf.mxu0
    %3522 = vdwg.mxu0
    %3523 = vst.msk [vmem:[#allocation4] sm:$0xff] %vm492, %v3445
    %3524 = vst.msk [vmem:[#allocation4 + $0x8] sm:$0xff] %vm492, %v3450
    %3525 = vst.msk [vmem:[#allocation4 + $0x10] sm:$0xff] %vm492, %v3455
    %3526 = vst.msk [vmem:[#allocation4 + $0x18] sm:$0xff] %vm492, %v3460
    %3527 = vst.msk [vmem:[#allocation4 + $0x20] sm:$0xff] %vm492, %v3465
    %3528 = vst.msk [vmem:[#allocation4 + $0x28] sm:$0xff] %vm492, %v3470
    %3529 = vst.msk [vmem:[#allocation4 + $0x30] sm:$0xff] %vm492, %v3475
    %3530 = vst.msk [vmem:[#allocation4 + $0x38] sm:$0xff] %vm492, %v3480
    %3531 = vst.msk [vmem:[#allocation4 + $0x40] sm:$0xff] %vm492, %v3485
    %3532 = vst.msk [vmem:[#allocation4 + $0x48] sm:$0xff] %vm492, %v3490
    %3533 = vst.msk [vmem:[#allocation4 + $0x50] sm:$0xff] %vm492, %v3495
    %3534 = vst.msk [vmem:[#allocation4 + $0x58] sm:$0xff] %vm492, %v3500
    %3535 = vst.msk [vmem:[#allocation4 + $0x60] sm:$0xff] %vm492, %v3505
    %3536 = vst.msk [vmem:[#allocation4 + $0x68] sm:$0xff] %vm492, %v3510
    %3537 = vst.msk [vmem:[#allocation4 + $0x70] sm:$0xff] %vm492, %v3515
    %3538 = vst.msk [vmem:[#allocation4 + $0x78] sm:$0xff] %vm492, %v3520
    %v3539 = vld [vmem:[#allocation14] sm:$0xff]
    %v3540 = vld [vmem:[#allocation14 + $0x8] sm:$0xff]
    %v3541 = vld [vmem:[#allocation14 + $0x10] sm:$0xff]
    %v3542 = vld [vmem:[#allocation14 + $0x18] sm:$0xff]
    %v3543 = vld [vmem:[#allocation14 + $0x20] sm:$0xff]
    %v3544 = vld [vmem:[#allocation14 + $0x28] sm:$0xff]
    %v3545 = vld [vmem:[#allocation14 + $0x30] sm:$0xff]
    %v3546 = vld [vmem:[#allocation14 + $0x38] sm:$0xff]
    %v3547 = vld [vmem:[#allocation14 + $0x40] sm:$0xff]
    %v3548 = vld [vmem:[#allocation14 + $0x48] sm:$0xff]
    %v3549 = vld [vmem:[#allocation14 + $0x50] sm:$0xff]
    %v3550 = vld [vmem:[#allocation14 + $0x58] sm:$0xff]
    %v3551 = vld [vmem:[#allocation14 + $0x60] sm:$0xff]
    %v3552 = vld [vmem:[#allocation14 + $0x68] sm:$0xff]
    %v3553 = vld [vmem:[#allocation14 + $0x70] sm:$0xff]
    %v3554 = vld [vmem:[#allocation14 + $0x78] sm:$0xff]
    %v3555 = vld [vmem:[%s14] sm:$0x3]
    %v3557 = vlaneseq
    %v3558 = vshrl.u32 %v3557, 7
    %v3559 = vsub.s32 0, %v3558
    %v3560 = vrot.slane %v3555, %v3559
    %v3561 = vlaneseq
    %v3562 = vshrl.u32 %v3561, 7
    %v3563 = vsub.s32 1, %v3562
    %v3564 = vrot.slane %v3555, %v3563
    %3567 = vmatprep.subr.mxu0 0.0
    %3568 = vmatpush1.msra.mxu0 0.0
    %3569 = vmatprep.subr.mxu0 0.0
    %3570 = vmatpush1.msra.mxu0 0.0
    %3571 = vmatprep.subr.mxu0 0.0
    %3572 = vmatpush1.msra.mxu0 0.0
    %3573 = vmatprep.subr.mxu0 0.0
    %3574 = vmatpush1.msra.mxu0 0.0
    %3575 = vmatprep.subr.mxu0 0.0
    %3576 = vmatpush1.msra.mxu0 0.0
    %3577 = vmatprep.subr.mxu0 0.0
    %3578 = vmatpush1.msra.mxu0 0.0
    %3579 = vmatprep.subr.mxu0 0.0
    %3580 = vmatpush1.msra.mxu0 0.0
    %3581 = vmatprep.subr.mxu0 0.0
    %3582 = vmatpush1.msra.mxu0 0.0
    %3583 = vmatprep.subr.mxu0 %v3554
    %3584 = vmatpush1.msra.mxu0 %v3553
    %3585 = vmatprep.subr.mxu0 %v3552
    %3586 = vmatpush1.msra.mxu0 %v3551
    %3587 = vmatprep.subr.mxu0 %v3550
    %3588 = vmatpush1.msra.mxu0 %v3549
    %3589 = vmatprep.subr.mxu0 %v3548
    %3590 = vmatpush1.msra.mxu0 %v3547
    %3591 = vmatprep.subr.mxu0 %v3546
    %3592 = vmatpush1.msra.mxu0 %v3545
    %3593 = vmatprep.subr.mxu0 %v3544
    %3594 = vmatpush1.msra.mxu0 %v3543
    %3595 = vmatprep.subr.mxu0 %v3542
    %3596 = vmatpush1.msra.mxu0 %v3541
    %3597 = vmatprep.subr.mxu0 %v3540
    %3598 = vmatpush1.msra.mxu0 %v3539
    %3599 = vmatprep.subr.mxu0 0.0
    %3600 = vmatpush2.msra.mxu0 0.0
    %3601 = vmatprep.subr.mxu0 0.0
    %3602 = vmatpush2.msra.mxu0 0.0
    %3603 = vmatprep.subr.mxu0 0.0
    %3604 = vmatpush2.msra.mxu0 0.0
    %3605 = vmatprep.subr.mxu0 0.0
    %3606 = vmatpush2.msra.mxu0 0.0
    %3607 = vmatprep.subr.mxu0 0.0
    %3608 = vmatpush2.msra.mxu0 0.0
    %3609 = vmatprep.subr.mxu0 0.0
    %3610 = vmatpush2.msra.mxu0 0.0
    %3611 = vmatprep.subr.mxu0 0.0
    %3612 = vmatpush2.msra.mxu0 0.0
    %3613 = vmatprep.subr.mxu0 0.0
    %3614 = vmatpush2.msra.mxu0 0.0
    %3615 = vmatprep.subr.mxu0 0.0
    %3616 = vmatpush2.msra.mxu0 0.0
    %3617 = vmatprep.subr.mxu0 0.0
    %3618 = vmatpush2.msra.mxu0 0.0
    %3619 = vmatprep.subr.mxu0 0.0
    %3620 = vmatpush2.msra.mxu0 0.0
    %3621 = vmatprep.subr.mxu0 0.0
    %3622 = vmatpush2.msra.mxu0 0.0
    %3623 = vmatprep.subr.mxu0 0.0
    %3624 = vmatpush2.msra.mxu0 0.0
    %3625 = vmatprep.subr.mxu0 0.0
    %3626 = vmatpush2.msra.mxu0 0.0
    %3627 = vmatprep.subr.mxu0 0.0
    %3628 = vmatpush2.msra.mxu0 0.0
    %3629 = vmatprep.subr.mxu0 0.0
    %3630 = vmatpush2.msra.mxu0 0.0
    %3631 = vmatprep.mubr.f32.mxu0 0.0
    %3632 = vmatmul.mubr.f32.gmra.mxu0 %v711
    %v3633 = vpop.f32.mrf.mxu0
    %v3634 = vadd.f32 %v3560, %v3633
    %v3635 = vpop.f32.mrf.mxu0
    %v3636 = vadd.f32 %v3564, %v3635
    %3637 = vdwg.mxu0
    %v3638 = vld [vmem:[#allocation3] sm:$0xff]
    %v3639 = vld [vmem:[#allocation4 + $0x78] sm:$0xff]
    %v3640 = vadd.f32 %v3638, %v3634
    %v3641 = vxor.u32 %v3640, 2147483648
    %v3642 = vmul.f32 %v3641, 1.442695
    %v3643 = vpow.pop %v3642
    %v3644 = vadd.f32 %v3643, 1.0
    %v3645 = vrcp.pop %v3644
    %v3646 = vmul.f32 1.0, %v3645
    %3648 = vrot.lane.b32.xlu0 %v3634, 64
    %v3649 = vpop.permute.xlu0 %3648
    %v3651 = vmul.f32 %v3646, %v3649
    %3653 = vrot.lane.b32.xlu0 %v3651, 64
    %v3654 = vpop.permute.xlu0 %3653
    %v3656 = vadd.f32 %v3638, %v3654
    %v3657 = vtanh.pop %v3656
    %v3658 = vsub.f32 1.0, %v3646
    %3660 = vrot.lane.b32.xlu0 %v3657, 96
    %v3661 = vpop.permute.xlu0 %3660
    %v3663 = vmul.f32 %v3658, %v3661
    %v3664 = vmul.f32 %v3646, 0.0
    %v3665 = vadd.f32 %v3663, %v3664
    %3666 = vrot.lane.b32.xlu0 %v3634, 32
    %v3667 = vpop.permute.xlu0 %3666
    %v3669 = vadd.f32 %v3639, %v3667
    %v3670 = vxor.u32 %v3669, 2147483648
    %v3671 = vmul.f32 %v3670, 1.442695
    %v3672 = vpow.pop %v3671
    %v3673 = vadd.f32 %v3672, 1.0
    %v3674 = vrcp.pop %v3673
    %v3675 = vmul.f32 1.0, %v3674
    %3677 = vrot.lane.b32.xlu0 %v3636, 32
    %v3678 = vpop.permute.xlu0 %3677
    %v3680 = vadd.f32 %v3639, %v3678
    %v3681 = vxor.u32 %v3680, 2147483648
    %v3682 = vmul.f32 %v3681, 1.442695
    %v3683 = vpow.pop %v3682
    %v3684 = vadd.f32 %v3683, 1.0
    %v3685 = vrcp.pop %v3684
    %v3686 = vmul.f32 1.0, %v3685
    %3687 = vrot.lane.b32.xlu0 %v3636, 96
    %v3688 = vpop.permute.xlu0 %3687
    %v3690 = vmul.f32 %v3675, %v3688
    %3692 = vrot.lane.b32.xlu0 %v3690, 64
    %v3693 = vpop.permute.xlu0 %3692
    %v3695 = vadd.f32 %v3639, %v3693
    %v3696 = vtanh.pop %v3695
    %v3697 = vsub.f32 1.0, %v3686
    %3699 = vrot.lane.b32.xlu0 %v3696, 96
    %v3700 = vpop.permute.xlu0 %3699
    %v3702 = vmul.f32 %v3697, %v3700
    %v3703 = vmul.f32 %v3686, 0.0
    %v3704 = vadd.f32 %v3702, %v3703
    %3706 = vrot.lane.b32.xlu0 %v3665, 96
    %v3707 = vpop.permute.xlu0 %3706
    %3709 = vst.msk [vmem:[#allocation5] sm:$0xff] %vm134, %v3707
    %3710 = vst.msk [vmem:[#allocation5 + $0x78] sm:$0xff] %vm856, %v3704
    %v3711 = vsel %vm134, %v3707, %v3704
    %v3713 = vsel %vm709, %v3711, 0
    %3715 = vmatprep.subr.mxu0 0.0
    %3716 = vmatpush1.msra.mxu0 0.0
    %3717 = vmatprep.subr.mxu0 0.0
    %3718 = vmatpush1.msra.mxu0 0.0
    %3719 = vmatprep.subr.mxu0 0.0
    %3720 = vmatpush1.msra.mxu0 0.0
    %3721 = vmatprep.subr.mxu0 0.0
    %3722 = vmatpush1.msra.mxu0 0.0
    %3723 = vmatprep.subr.mxu0 0.0
    %3724 = vmatpush1.msra.mxu0 0.0
    %3725 = vmatprep.subr.mxu0 0.0
    %3726 = vmatpush1.msra.mxu0 0.0
    %3727 = vmatprep.subr.mxu0 0.0
    %3728 = vmatpush1.msra.mxu0 0.0
    %3729 = vmatprep.subr.mxu0 0.0
    %3730 = vmatpush1.msra.mxu0 0.0
    %3731 = vmatprep.subr.mxu0 %v3554
    %3732 = vmatpush1.msra.mxu0 %v3553
    %3733 = vmatprep.subr.mxu0 %v3552
    %3734 = vmatpush1.msra.mxu0 %v3551
    %3735 = vmatprep.subr.mxu0 %v3550
    %3736 = vmatpush1.msra.mxu0 %v3549
    %3737 = vmatprep.subr.mxu0 %v3548
    %3738 = vmatpush1.msra.mxu0 %v3547
    %3739 = vmatprep.subr.mxu0 %v3546
    %3740 = vmatpush1.msra.mxu0 %v3545
    %3741 = vmatprep.subr.mxu0 %v3544
    %3742 = vmatpush1.msra.mxu0 %v3543
    %3743 = vmatprep.subr.mxu0 %v3542
    %3744 = vmatpush1.msra.mxu0 %v3541
    %3745 = vmatprep.subr.mxu0 %v3540
    %3746 = vmatpush1.msra.mxu0 %v3539
    %3747 = vmatprep.subr.mxu0 0.0
    %3748 = vmatpush2.msra.mxu0 0.0
    %3749 = vmatprep.subr.mxu0 0.0
    %3750 = vmatpush2.msra.mxu0 0.0
    %3751 = vmatprep.subr.mxu0 0.0
    %3752 = vmatpush2.msra.mxu0 0.0
    %3753 = vmatprep.subr.mxu0 0.0
    %3754 = vmatpush2.msra.mxu0 0.0
    %3755 = vmatprep.subr.mxu0 0.0
    %3756 = vmatpush2.msra.mxu0 0.0
    %3757 = vmatprep.subr.mxu0 0.0
    %3758 = vmatpush2.msra.mxu0 0.0
    %3759 = vmatprep.subr.mxu0 0.0
    %3760 = vmatpush2.msra.mxu0 0.0
    %3761 = vmatprep.subr.mxu0 0.0
    %3762 = vmatpush2.msra.mxu0 0.0
    %3763 = vmatprep.subr.mxu0 0.0
    %3764 = vmatpush2.msra.mxu0 0.0
    %3765 = vmatprep.subr.mxu0 0.0
    %3766 = vmatpush2.msra.mxu0 0.0
    %3767 = vmatprep.subr.mxu0 0.0
    %3768 = vmatpush2.msra.mxu0 0.0
    %3769 = vmatprep.subr.mxu0 0.0
    %3770 = vmatpush2.msra.mxu0 0.0
    %3771 = vmatprep.subr.mxu0 0.0
    %3772 = vmatpush2.msra.mxu0 0.0
    %3773 = vmatprep.subr.mxu0 0.0
    %3774 = vmatpush2.msra.mxu0 0.0
    %3775 = vmatprep.subr.mxu0 0.0
    %3776 = vmatpush2.msra.mxu0 0.0
    %3777 = vmatprep.subr.mxu0 0.0
    %3778 = vmatpush2.msra.mxu0 0.0
    %3779 = vmatprep.mubr.f32.mxu0 0.0
    %3780 = vmatmul.mubr.f32.gmra.mxu0 %v3713
    %v3781 = vpop.f32.mrf.mxu0
    %v3782 = vadd.f32 %v3560, %v3781
    %v3783 = vpop.f32.mrf.mxu0
    %v3784 = vadd.f32 %v3564, %v3783
    %3785 = vdwg.mxu0
    %v3786 = vld [vmem:[#allocation3 + $0x8] sm:$0xff]
    %v3787 = vld [vmem:[#allocation4 + $0x70] sm:$0xff]
    %v3788 = vadd.f32 %v3786, %v3782
    %v3789 = vxor.u32 %v3788, 2147483648
    %v3790 = vmul.f32 %v3789, 1.442695
    %v3791 = vpow.pop %v3790
    %v3792 = vadd.f32 %v3791, 1.0
    %v3793 = vrcp.pop %v3792
    %v3794 = vmul.f32 1.0, %v3793
    %3796 = vrot.lane.b32.xlu0 %v3782, 64
    %v3797 = vpop.permute.xlu0 %3796
    %v3799 = vmul.f32 %v3794, %v3797
    %3801 = vrot.lane.b32.xlu0 %v3799, 64
    %v3802 = vpop.permute.xlu0 %3801
    %v3804 = vadd.f32 %v3786, %v3802
    %v3805 = vtanh.pop %v3804
    %v3806 = vsub.f32 1.0, %v3794
    %3808 = vrot.lane.b32.xlu0 %v3805, 96
    %v3809 = vpop.permute.xlu0 %3808
    %v3811 = vmul.f32 %v3806, %v3809
    %3812 = vrot.lane.b32.xlu0 %v3711, 32
    %v3813 = vpop.permute.xlu0 %3812
    %v3815 = vmul.f32 %v3794, %v3813
    %v3816 = vadd.f32 %v3811, %v3815
    %3817 = vrot.lane.b32.xlu0 %v3782, 32
    %v3818 = vpop.permute.xlu0 %3817
    %v3820 = vadd.f32 %v3787, %v3818
    %v3821 = vxor.u32 %v3820, 2147483648
    %v3822 = vmul.f32 %v3821, 1.442695
    %v3823 = vpow.pop %v3822
    %v3824 = vadd.f32 %v3823, 1.0
    %v3825 = vrcp.pop %v3824
    %v3826 = vmul.f32 1.0, %v3825
    %3828 = vrot.lane.b32.xlu0 %v3784, 32
    %v3829 = vpop.permute.xlu0 %3828
    %v3831 = vadd.f32 %v3787, %v3829
    %v3832 = vxor.u32 %v3831, 2147483648
    %v3833 = vmul.f32 %v3832, 1.442695
    %v3834 = vpow.pop %v3833
    %v3835 = vadd.f32 %v3834, 1.0
    %v3836 = vrcp.pop %v3835
    %v3837 = vmul.f32 1.0, %v3836
    %3838 = vrot.lane.b32.xlu0 %v3784, 96
    %v3839 = vpop.permute.xlu0 %3838
    %v3841 = vmul.f32 %v3826, %v3839
    %3843 = vrot.lane.b32.xlu0 %v3841, 64
    %v3844 = vpop.permute.xlu0 %3843
    %v3846 = vadd.f32 %v3787, %v3844
    %v3847 = vtanh.pop %v3846
    %v3848 = vsub.f32 1.0, %v3837
    %3850 = vrot.lane.b32.xlu0 %v3847, 96
    %v3851 = vpop.permute.xlu0 %3850
    %v3853 = vmul.f32 %v3848, %v3851
    %v3854 = vmul.f32 %v3837, %v3711
    %v3855 = vadd.f32 %v3853, %v3854
    %3857 = vrot.lane.b32.xlu0 %v3816, 96
    %v3858 = vpop.permute.xlu0 %3857
    %3860 = vst.msk [vmem:[#allocation5 + $0x8] sm:$0xff] %vm134, %v3858
    %3861 = vst.msk [vmem:[#allocation5 + $0x70] sm:$0xff] %vm856, %v3855
    %v3862 = vsel %vm134, %v3858, %v3855
    %v3864 = vsel %vm709, %v3862, 0
    %3866 = vmatprep.subr.mxu0 0.0
    %3867 = vmatpush1.msra.mxu0 0.0
    %3868 = vmatprep.subr.mxu0 0.0
    %3869 = vmatpush1.msra.mxu0 0.0
    %3870 = vmatprep.subr.mxu0 0.0
    %3871 = vmatpush1.msra.mxu0 0.0
    %3872 = vmatprep.subr.mxu0 0.0
    %3873 = vmatpush1.msra.mxu0 0.0
    %3874 = vmatprep.subr.mxu0 0.0
    %3875 = vmatpush1.msra.mxu0 0.0
    %3876 = vmatprep.subr.mxu0 0.0
    %3877 = vmatpush1.msra.mxu0 0.0
    %3878 = vmatprep.subr.mxu0 0.0
    %3879 = vmatpush1.msra.mxu0 0.0
    %3880 = vmatprep.subr.mxu0 0.0
    %3881 = vmatpush1.msra.mxu0 0.0
    %3882 = vmatprep.subr.mxu0 %v3554
    %3883 = vmatpush1.msra.mxu0 %v3553
    %3884 = vmatprep.subr.mxu0 %v3552
    %3885 = vmatpush1.msra.mxu0 %v3551
    %3886 = vmatprep.subr.mxu0 %v3550
    %3887 = vmatpush1.msra.mxu0 %v3549
    %3888 = vmatprep.subr.mxu0 %v3548
    %3889 = vmatpush1.msra.mxu0 %v3547
    %3890 = vmatprep.subr.mxu0 %v3546
    %3891 = vmatpush1.msra.mxu0 %v3545
    %3892 = vmatprep.subr.mxu0 %v3544
    %3893 = vmatpush1.msra.mxu0 %v3543
    %3894 = vmatprep.subr.mxu0 %v3542
    %3895 = vmatpush1.msra.mxu0 %v3541
    %3896 = vmatprep.subr.mxu0 %v3540
    %3897 = vmatpush1.msra.mxu0 %v3539
    %3898 = vmatprep.subr.mxu0 0.0
    %3899 = vmatpush2.msra.mxu0 0.0
    %3900 = vmatprep.subr.mxu0 0.0
    %3901 = vmatpush2.msra.mxu0 0.0
    %3902 = vmatprep.subr.mxu0 0.0
    %3903 = vmatpush2.msra.mxu0 0.0
    %3904 = vmatprep.subr.mxu0 0.0
    %3905 = vmatpush2.msra.mxu0 0.0
    %3906 = vmatprep.subr.mxu0 0.0
    %3907 = vmatpush2.msra.mxu0 0.0
    %3908 = vmatprep.subr.mxu0 0.0
    %3909 = vmatpush2.msra.mxu0 0.0
    %3910 = vmatprep.subr.mxu0 0.0
    %3911 = vmatpush2.msra.mxu0 0.0
    %3912 = vmatprep.subr.mxu0 0.0
    %3913 = vmatpush2.msra.mxu0 0.0
    %3914 = vmatprep.subr.mxu0 0.0
    %3915 = vmatpush2.msra.mxu0 0.0
    %3916 = vmatprep.subr.mxu0 0.0
    %3917 = vmatpush2.msra.mxu0 0.0
    %3918 = vmatprep.subr.mxu0 0.0
    %3919 = vmatpush2.msra.mxu0 0.0
    %3920 = vmatprep.subr.mxu0 0.0
    %3921 = vmatpush2.msra.mxu0 0.0
    %3922 = vmatprep.subr.mxu0 0.0
    %3923 = vmatpush2.msra.mxu0 0.0
    %3924 = vmatprep.subr.mxu0 0.0
    %3925 = vmatpush2.msra.mxu0 0.0
    %3926 = vmatprep.subr.mxu0 0.0
    %3927 = vmatpush2.msra.mxu0 0.0
    %3928 = vmatprep.subr.mxu0 0.0
    %3929 = vmatpush2.msra.mxu0 0.0
    %3930 = vmatprep.mubr.f32.mxu0 0.0
    %3931 = vmatmul.mubr.f32.gmra.mxu0 %v3864
    %v3932 = vpop.f32.mrf.mxu0
    %v3933 = vadd.f32 %v3560, %v3932
    %v3934 = vpop.f32.mrf.mxu0
    %v3935 = vadd.f32 %v3564, %v3934
    %3936 = vdwg.mxu0
    %v3937 = vld [vmem:[#allocation3 + $0x10] sm:$0xff]
    %v3938 = vld [vmem:[#allocation4 + $0x68] sm:$0xff]
    %v3939 = vadd.f32 %v3937, %v3933
    %v3940 = vxor.u32 %v3939, 2147483648
    %v3941 = vmul.f32 %v3940, 1.442695
    %v3942 = vpow.pop %v3941
    %v3943 = vadd.f32 %v3942, 1.0
    %v3944 = vrcp.pop %v3943
    %v3945 = vmul.f32 1.0, %v3944
    %3947 = vrot.lane.b32.xlu0 %v3933, 64
    %v3948 = vpop.permute.xlu0 %3947
    %v3950 = vmul.f32 %v3945, %v3948
    %3952 = vrot.lane.b32.xlu0 %v3950, 64
    %v3953 = vpop.permute.xlu0 %3952
    %v3955 = vadd.f32 %v3937, %v3953
    %v3956 = vtanh.pop %v3955
    %v3957 = vsub.f32 1.0, %v3945
    %3959 = vrot.lane.b32.xlu0 %v3956, 96
    %v3960 = vpop.permute.xlu0 %3959
    %v3962 = vmul.f32 %v3957, %v3960
    %3963 = vrot.lane.b32.xlu0 %v3862, 32
    %v3964 = vpop.permute.xlu0 %3963
    %v3966 = vmul.f32 %v3945, %v3964
    %v3967 = vadd.f32 %v3962, %v3966
    %3968 = vrot.lane.b32.xlu0 %v3933, 32
    %v3969 = vpop.permute.xlu0 %3968
    %v3971 = vadd.f32 %v3938, %v3969
    %v3972 = vxor.u32 %v3971, 2147483648
    %v3973 = vmul.f32 %v3972, 1.442695
    %v3974 = vpow.pop %v3973
    %v3975 = vadd.f32 %v3974, 1.0
    %v3976 = vrcp.pop %v3975
    %v3977 = vmul.f32 1.0, %v3976
    %3979 = vrot.lane.b32.xlu0 %v3935, 32
    %v3980 = vpop.permute.xlu0 %3979
    %v3982 = vadd.f32 %v3938, %v3980
    %v3983 = vxor.u32 %v3982, 2147483648
    %v3984 = vmul.f32 %v3983, 1.442695
    %v3985 = vpow.pop %v3984
    %v3986 = vadd.f32 %v3985, 1.0
    %v3987 = vrcp.pop %v3986
    %v3988 = vmul.f32 1.0, %v3987
    %3989 = vrot.lane.b32.xlu0 %v3935, 96
    %v3990 = vpop.permute.xlu0 %3989
    %v3992 = vmul.f32 %v3977, %v3990
    %3994 = vrot.lane.b32.xlu0 %v3992, 64
    %v3995 = vpop.permute.xlu0 %3994
    %v3997 = vadd.f32 %v3938, %v3995
    %v3998 = vtanh.pop %v3997
    %v3999 = vsub.f32 1.0, %v3988
    %4001 = vrot.lane.b32.xlu0 %v3998, 96
    %v4002 = vpop.permute.xlu0 %4001
    %v4004 = vmul.f32 %v3999, %v4002
    %v4005 = vmul.f32 %v3988, %v3862
    %v4006 = vadd.f32 %v4004, %v4005
    %4008 = vrot.lane.b32.xlu0 %v3967, 96
    %v4009 = vpop.permute.xlu0 %4008
    %4011 = vst.msk [vmem:[#allocation5 + $0x10] sm:$0xff] %vm134, %v4009
    %4012 = vst.msk [vmem:[#allocation5 + $0x68] sm:$0xff] %vm856, %v4006
    %v4013 = vsel %vm134, %v4009, %v4006
    %v4015 = vsel %vm709, %v4013, 0
    %4017 = vmatprep.subr.mxu0 0.0
    %4018 = vmatpush1.msra.mxu0 0.0
    %4019 = vmatprep.subr.mxu0 0.0
    %4020 = vmatpush1.msra.mxu0 0.0
    %4021 = vmatprep.subr.mxu0 0.0
    %4022 = vmatpush1.msra.mxu0 0.0
    %4023 = vmatprep.subr.mxu0 0.0
    %4024 = vmatpush1.msra.mxu0 0.0
    %4025 = vmatprep.subr.mxu0 0.0
    %4026 = vmatpush1.msra.mxu0 0.0
    %4027 = vmatprep.subr.mxu0 0.0
    %4028 = vmatpush1.msra.mxu0 0.0
    %4029 = vmatprep.subr.mxu0 0.0
    %4030 = vmatpush1.msra.mxu0 0.0
    %4031 = vmatprep.subr.mxu0 0.0
    %4032 = vmatpush1.msra.mxu0 0.0
    %4033 = vmatprep.subr.mxu0 %v3554
    %4034 = vmatpush1.msra.mxu0 %v3553
    %4035 = vmatprep.subr.mxu0 %v3552
    %4036 = vmatpush1.msra.mxu0 %v3551
    %4037 = vmatprep.subr.mxu0 %v3550
    %4038 = vmatpush1.msra.mxu0 %v3549
    %4039 = vmatprep.subr.mxu0 %v3548
    %4040 = vmatpush1.msra.mxu0 %v3547
    %4041 = vmatprep.subr.mxu0 %v3546
    %4042 = vmatpush1.msra.mxu0 %v3545
    %4043 = vmatprep.subr.mxu0 %v3544
    %4044 = vmatpush1.msra.mxu0 %v3543
    %4045 = vmatprep.subr.mxu0 %v3542
    %4046 = vmatpush1.msra.mxu0 %v3541
    %4047 = vmatprep.subr.mxu0 %v3540
    %4048 = vmatpush1.msra.mxu0 %v3539
    %4049 = vmatprep.subr.mxu0 0.0
    %4050 = vmatpush2.msra.mxu0 0.0
    %4051 = vmatprep.subr.mxu0 0.0
    %4052 = vmatpush2.msra.mxu0 0.0
    %4053 = vmatprep.subr.mxu0 0.0
    %4054 = vmatpush2.msra.mxu0 0.0
    %4055 = vmatprep.subr.mxu0 0.0
    %4056 = vmatpush2.msra.mxu0 0.0
    %4057 = vmatprep.subr.mxu0 0.0
    %4058 = vmatpush2.msra.mxu0 0.0
    %4059 = vmatprep.subr.mxu0 0.0
    %4060 = vmatpush2.msra.mxu0 0.0
    %4061 = vmatprep.subr.mxu0 0.0
    %4062 = vmatpush2.msra.mxu0 0.0
    %4063 = vmatprep.subr.mxu0 0.0
    %4064 = vmatpush2.msra.mxu0 0.0
    %4065 = vmatprep.subr.mxu0 0.0
    %4066 = vmatpush2.msra.mxu0 0.0
    %4067 = vmatprep.subr.mxu0 0.0
    %4068 = vmatpush2.msra.mxu0 0.0
    %4069 = vmatprep.subr.mxu0 0.0
    %4070 = vmatpush2.msra.mxu0 0.0
    %4071 = vmatprep.subr.mxu0 0.0
    %4072 = vmatpush2.msra.mxu0 0.0
    %4073 = vmatprep.subr.mxu0 0.0
    %4074 = vmatpush2.msra.mxu0 0.0
    %4075 = vmatprep.subr.mxu0 0.0
    %4076 = vmatpush2.msra.mxu0 0.0
    %4077 = vmatprep.subr.mxu0 0.0
    %4078 = vmatpush2.msra.mxu0 0.0
    %4079 = vmatprep.subr.mxu0 0.0
    %4080 = vmatpush2.msra.mxu0 0.0
    %4081 = vmatprep.mubr.f32.mxu0 0.0
    %4082 = vmatmul.mubr.f32.gmra.mxu0 %v4015
    %v4083 = vpop.f32.mrf.mxu0
    %v4084 = vadd.f32 %v3560, %v4083
    %v4085 = vpop.f32.mrf.mxu0
    %v4086 = vadd.f32 %v3564, %v4085
    %4087 = vdwg.mxu0
    %v4088 = vld [vmem:[#allocation3 + $0x18] sm:$0xff]
    %v4089 = vld [vmem:[#allocation4 + $0x60] sm:$0xff]
    %v4090 = vadd.f32 %v4088, %v4084
    %v4091 = vxor.u32 %v4090, 2147483648
    %v4092 = vmul.f32 %v4091, 1.442695
    %v4093 = vpow.pop %v4092
    %v4094 = vadd.f32 %v4093, 1.0
    %v4095 = vrcp.pop %v4094
    %v4096 = vmul.f32 1.0, %v4095
    %4098 = vrot.lane.b32.xlu0 %v4084, 64
    %v4099 = vpop.permute.xlu0 %4098
    %v4101 = vmul.f32 %v4096, %v4099
    %4103 = vrot.lane.b32.xlu0 %v4101, 64
    %v4104 = vpop.permute.xlu0 %4103
    %v4106 = vadd.f32 %v4088, %v4104
    %v4107 = vtanh.pop %v4106
    %v4108 = vsub.f32 1.0, %v4096
    %4110 = vrot.lane.b32.xlu0 %v4107, 96
    %v4111 = vpop.permute.xlu0 %4110
    %v4113 = vmul.f32 %v4108, %v4111
    %4114 = vrot.lane.b32.xlu0 %v4013, 32
    %v4115 = vpop.permute.xlu0 %4114
    %v4117 = vmul.f32 %v4096, %v4115
    %v4118 = vadd.f32 %v4113, %v4117
    %4119 = vrot.lane.b32.xlu0 %v4084, 32
    %v4120 = vpop.permute.xlu0 %4119
    %v4122 = vadd.f32 %v4089, %v4120
    %v4123 = vxor.u32 %v4122, 2147483648
    %v4124 = vmul.f32 %v4123, 1.442695
    %v4125 = vpow.pop %v4124
    %v4126 = vadd.f32 %v4125, 1.0
    %v4127 = vrcp.pop %v4126
    %v4128 = vmul.f32 1.0, %v4127
    %4130 = vrot.lane.b32.xlu0 %v4086, 32
    %v4131 = vpop.permute.xlu0 %4130
    %v4133 = vadd.f32 %v4089, %v4131
    %v4134 = vxor.u32 %v4133, 2147483648
    %v4135 = vmul.f32 %v4134, 1.442695
    %v4136 = vpow.pop %v4135
    %v4137 = vadd.f32 %v4136, 1.0
    %v4138 = vrcp.pop %v4137
    %v4139 = vmul.f32 1.0, %v4138
    %4140 = vrot.lane.b32.xlu0 %v4086, 96
    %v4141 = vpop.permute.xlu0 %4140
    %v4143 = vmul.f32 %v4128, %v4141
    %4145 = vrot.lane.b32.xlu0 %v4143, 64
    %v4146 = vpop.permute.xlu0 %4145
    %v4148 = vadd.f32 %v4089, %v4146
    %v4149 = vtanh.pop %v4148
    %v4150 = vsub.f32 1.0, %v4139
    %4152 = vrot.lane.b32.xlu0 %v4149, 96
    %v4153 = vpop.permute.xlu0 %4152
    %v4155 = vmul.f32 %v4150, %v4153
    %v4156 = vmul.f32 %v4139, %v4013
    %v4157 = vadd.f32 %v4155, %v4156
    %4159 = vrot.lane.b32.xlu0 %v4118, 96
    %v4160 = vpop.permute.xlu0 %4159
    %4162 = vst.msk [vmem:[#allocation5 + $0x18] sm:$0xff] %vm134, %v4160
    %4163 = vst.msk [vmem:[#allocation5 + $0x60] sm:$0xff] %vm856, %v4157
    %v4164 = vsel %vm134, %v4160, %v4157
    %v4166 = vsel %vm709, %v4164, 0
    %4168 = vmatprep.subr.mxu0 0.0
    %4169 = vmatpush1.msra.mxu0 0.0
    %4170 = vmatprep.subr.mxu0 0.0
    %4171 = vmatpush1.msra.mxu0 0.0
    %4172 = vmatprep.subr.mxu0 0.0
    %4173 = vmatpush1.msra.mxu0 0.0
    %4174 = vmatprep.subr.mxu0 0.0
    %4175 = vmatpush1.msra.mxu0 0.0
    %4176 = vmatprep.subr.mxu0 0.0
    %4177 = vmatpush1.msra.mxu0 0.0
    %4178 = vmatprep.subr.mxu0 0.0
    %4179 = vmatpush1.msra.mxu0 0.0
    %4180 = vmatprep.subr.mxu0 0.0
    %4181 = vmatpush1.msra.mxu0 0.0
    %4182 = vmatprep.subr.mxu0 0.0
    %4183 = vmatpush1.msra.mxu0 0.0
    %4184 = vmatprep.subr.mxu0 %v3554
    %4185 = vmatpush1.msra.mxu0 %v3553
    %4186 = vmatprep.subr.mxu0 %v3552
    %4187 = vmatpush1.msra.mxu0 %v3551
    %4188 = vmatprep.subr.mxu0 %v3550
    %4189 = vmatpush1.msra.mxu0 %v3549
    %4190 = vmatprep.subr.mxu0 %v3548
    %4191 = vmatpush1.msra.mxu0 %v3547
    %4192 = vmatprep.subr.mxu0 %v3546
    %4193 = vmatpush1.msra.mxu0 %v3545
    %4194 = vmatprep.subr.mxu0 %v3544
    %4195 = vmatpush1.msra.mxu0 %v3543
    %4196 = vmatprep.subr.mxu0 %v3542
    %4197 = vmatpush1.msra.mxu0 %v3541
    %4198 = vmatprep.subr.mxu0 %v3540
    %4199 = vmatpush1.msra.mxu0 %v3539
    %4200 = vmatprep.subr.mxu0 0.0
    %4201 = vmatpush2.msra.mxu0 0.0
    %4202 = vmatprep.subr.mxu0 0.0
    %4203 = vmatpush2.msra.mxu0 0.0
    %4204 = vmatprep.subr.mxu0 0.0
    %4205 = vmatpush2.msra.mxu0 0.0
    %4206 = vmatprep.subr.mxu0 0.0
    %4207 = vmatpush2.msra.mxu0 0.0
    %4208 = vmatprep.subr.mxu0 0.0
    %4209 = vmatpush2.msra.mxu0 0.0
    %4210 = vmatprep.subr.mxu0 0.0
    %4211 = vmatpush2.msra.mxu0 0.0
    %4212 = vmatprep.subr.mxu0 0.0
    %4213 = vmatpush2.msra.mxu0 0.0
    %4214 = vmatprep.subr.mxu0 0.0
    %4215 = vmatpush2.msra.mxu0 0.0
    %4216 = vmatprep.subr.mxu0 0.0
    %4217 = vmatpush2.msra.mxu0 0.0
    %4218 = vmatprep.subr.mxu0 0.0
    %4219 = vmatpush2.msra.mxu0 0.0
    %4220 = vmatprep.subr.mxu0 0.0
    %4221 = vmatpush2.msra.mxu0 0.0
    %4222 = vmatprep.subr.mxu0 0.0
    %4223 = vmatpush2.msra.mxu0 0.0
    %4224 = vmatprep.subr.mxu0 0.0
    %4225 = vmatpush2.msra.mxu0 0.0
    %4226 = vmatprep.subr.mxu0 0.0
    %4227 = vmatpush2.msra.mxu0 0.0
    %4228 = vmatprep.subr.mxu0 0.0
    %4229 = vmatpush2.msra.mxu0 0.0
    %4230 = vmatprep.subr.mxu0 0.0
    %4231 = vmatpush2.msra.mxu0 0.0
    %4232 = vmatprep.mubr.f32.mxu0 0.0
    %4233 = vmatmul.mubr.f32.gmra.mxu0 %v4166
    %v4234 = vpop.f32.mrf.mxu0
    %v4235 = vadd.f32 %v3560, %v4234
    %v4236 = vpop.f32.mrf.mxu0
    %v4237 = vadd.f32 %v3564, %v4236
    %4238 = vdwg.mxu0
    %v4239 = vld [vmem:[#allocation3 + $0x20] sm:$0xff]
    %v4240 = vld [vmem:[#allocation4 + $0x58] sm:$0xff]
    %v4241 = vadd.f32 %v4239, %v4235
    %v4242 = vxor.u32 %v4241, 2147483648
    %v4243 = vmul.f32 %v4242, 1.442695
    %v4244 = vpow.pop %v4243
    %v4245 = vadd.f32 %v4244, 1.0
    %v4246 = vrcp.pop %v4245
    %v4247 = vmul.f32 1.0, %v4246
    %4249 = vrot.lane.b32.xlu0 %v4235, 64
    %v4250 = vpop.permute.xlu0 %4249
    %v4252 = vmul.f32 %v4247, %v4250
    %4254 = vrot.lane.b32.xlu0 %v4252, 64
    %v4255 = vpop.permute.xlu0 %4254
    %v4257 = vadd.f32 %v4239, %v4255
    %v4258 = vtanh.pop %v4257
    %v4259 = vsub.f32 1.0, %v4247
    %4261 = vrot.lane.b32.xlu0 %v4258, 96
    %v4262 = vpop.permute.xlu0 %4261
    %v4264 = vmul.f32 %v4259, %v4262
    %4265 = vrot.lane.b32.xlu0 %v4164, 32
    %v4266 = vpop.permute.xlu0 %4265
    %v4268 = vmul.f32 %v4247, %v4266
    %v4269 = vadd.f32 %v4264, %v4268
    %4270 = vrot.lane.b32.xlu0 %v4235, 32
    %v4271 = vpop.permute.xlu0 %4270
    %v4273 = vadd.f32 %v4240, %v4271
    %v4274 = vxor.u32 %v4273, 2147483648
    %v4275 = vmul.f32 %v4274, 1.442695
    %v4276 = vpow.pop %v4275
    %v4277 = vadd.f32 %v4276, 1.0
    %v4278 = vrcp.pop %v4277
    %v4279 = vmul.f32 1.0, %v4278
    %4281 = vrot.lane.b32.xlu0 %v4237, 32
    %v4282 = vpop.permute.xlu0 %4281
    %v4284 = vadd.f32 %v4240, %v4282
    %v4285 = vxor.u32 %v4284, 2147483648
    %v4286 = vmul.f32 %v4285, 1.442695
    %v4287 = vpow.pop %v4286
    %v4288 = vadd.f32 %v4287, 1.0
    %v4289 = vrcp.pop %v4288
    %v4290 = vmul.f32 1.0, %v4289
    %4291 = vrot.lane.b32.xlu0 %v4237, 96
    %v4292 = vpop.permute.xlu0 %4291
    %v4294 = vmul.f32 %v4279, %v4292
    %4296 = vrot.lane.b32.xlu0 %v4294, 64
    %v4297 = vpop.permute.xlu0 %4296
    %v4299 = vadd.f32 %v4240, %v4297
    %v4300 = vtanh.pop %v4299
    %v4301 = vsub.f32 1.0, %v4290
    %4303 = vrot.lane.b32.xlu0 %v4300, 96
    %v4304 = vpop.permute.xlu0 %4303
    %v4306 = vmul.f32 %v4301, %v4304
    %v4307 = vmul.f32 %v4290, %v4164
    %v4308 = vadd.f32 %v4306, %v4307
    %4310 = vrot.lane.b32.xlu0 %v4269, 96
    %v4311 = vpop.permute.xlu0 %4310
    %4313 = vst.msk [vmem:[#allocation5 + $0x20] sm:$0xff] %vm134, %v4311
    %4314 = vst.msk [vmem:[#allocation5 + $0x58] sm:$0xff] %vm856, %v4308
    %v4315 = vsel %vm134, %v4311, %v4308
    %v4317 = vsel %vm709, %v4315, 0
    %4319 = vmatprep.subr.mxu0 0.0
    %4320 = vmatpush1.msra.mxu0 0.0
    %4321 = vmatprep.subr.mxu0 0.0
    %4322 = vmatpush1.msra.mxu0 0.0
    %4323 = vmatprep.subr.mxu0 0.0
    %4324 = vmatpush1.msra.mxu0 0.0
    %4325 = vmatprep.subr.mxu0 0.0
    %4326 = vmatpush1.msra.mxu0 0.0
    %4327 = vmatprep.subr.mxu0 0.0
    %4328 = vmatpush1.msra.mxu0 0.0
    %4329 = vmatprep.subr.mxu0 0.0
    %4330 = vmatpush1.msra.mxu0 0.0
    %4331 = vmatprep.subr.mxu0 0.0
    %4332 = vmatpush1.msra.mxu0 0.0
    %4333 = vmatprep.subr.mxu0 0.0
    %4334 = vmatpush1.msra.mxu0 0.0
    %4335 = vmatprep.subr.mxu0 %v3554
    %4336 = vmatpush1.msra.mxu0 %v3553
    %4337 = vmatprep.subr.mxu0 %v3552
    %4338 = vmatpush1.msra.mxu0 %v3551
    %4339 = vmatprep.subr.mxu0 %v3550
    %4340 = vmatpush1.msra.mxu0 %v3549
    %4341 = vmatprep.subr.mxu0 %v3548
    %4342 = vmatpush1.msra.mxu0 %v3547
    %4343 = vmatprep.subr.mxu0 %v3546
    %4344 = vmatpush1.msra.mxu0 %v3545
    %4345 = vmatprep.subr.mxu0 %v3544
    %4346 = vmatpush1.msra.mxu0 %v3543
    %4347 = vmatprep.subr.mxu0 %v3542
    %4348 = vmatpush1.msra.mxu0 %v3541
    %4349 = vmatprep.subr.mxu0 %v3540
    %4350 = vmatpush1.msra.mxu0 %v3539
    %4351 = vmatprep.subr.mxu0 0.0
    %4352 = vmatpush2.msra.mxu0 0.0
    %4353 = vmatprep.subr.mxu0 0.0
    %4354 = vmatpush2.msra.mxu0 0.0
    %4355 = vmatprep.subr.mxu0 0.0
    %4356 = vmatpush2.msra.mxu0 0.0
    %4357 = vmatprep.subr.mxu0 0.0
    %4358 = vmatpush2.msra.mxu0 0.0
    %4359 = vmatprep.subr.mxu0 0.0
    %4360 = vmatpush2.msra.mxu0 0.0
    %4361 = vmatprep.subr.mxu0 0.0
    %4362 = vmatpush2.msra.mxu0 0.0
    %4363 = vmatprep.subr.mxu0 0.0
    %4364 = vmatpush2.msra.mxu0 0.0
    %4365 = vmatprep.subr.mxu0 0.0
    %4366 = vmatpush2.msra.mxu0 0.0
    %4367 = vmatprep.subr.mxu0 0.0
    %4368 = vmatpush2.msra.mxu0 0.0
    %4369 = vmatprep.subr.mxu0 0.0
    %4370 = vmatpush2.msra.mxu0 0.0
    %4371 = vmatprep.subr.mxu0 0.0
    %4372 = vmatpush2.msra.mxu0 0.0
    %4373 = vmatprep.subr.mxu0 0.0
    %4374 = vmatpush2.msra.mxu0 0.0
    %4375 = vmatprep.subr.mxu0 0.0
    %4376 = vmatpush2.msra.mxu0 0.0
    %4377 = vmatprep.subr.mxu0 0.0
    %4378 = vmatpush2.msra.mxu0 0.0
    %4379 = vmatprep.subr.mxu0 0.0
    %4380 = vmatpush2.msra.mxu0 0.0
    %4381 = vmatprep.subr.mxu0 0.0
    %4382 = vmatpush2.msra.mxu0 0.0
    %4383 = vmatprep.mubr.f32.mxu0 0.0
    %4384 = vmatmul.mubr.f32.gmra.mxu0 %v4317
    %v4385 = vpop.f32.mrf.mxu0
    %v4386 = vadd.f32 %v3560, %v4385
    %v4387 = vpop.f32.mrf.mxu0
    %v4388 = vadd.f32 %v3564, %v4387
    %4389 = vdwg.mxu0
    %v4390 = vld [vmem:[#allocation3 + $0x28] sm:$0xff]
    %v4391 = vld [vmem:[#allocation4 + $0x50] sm:$0xff]
    %v4392 = vadd.f32 %v4390, %v4386
    %v4393 = vxor.u32 %v4392, 2147483648
    %v4394 = vmul.f32 %v4393, 1.442695
    %v4395 = vpow.pop %v4394
    %v4396 = vadd.f32 %v4395, 1.0
    %v4397 = vrcp.pop %v4396
    %v4398 = vmul.f32 1.0, %v4397
    %4400 = vrot.lane.b32.xlu0 %v4386, 64
    %v4401 = vpop.permute.xlu0 %4400
    %v4403 = vmul.f32 %v4398, %v4401
    %4405 = vrot.lane.b32.xlu0 %v4403, 64
    %v4406 = vpop.permute.xlu0 %4405
    %v4408 = vadd.f32 %v4390, %v4406
    %v4409 = vtanh.pop %v4408
    %v4410 = vsub.f32 1.0, %v4398
    %4412 = vrot.lane.b32.xlu0 %v4409, 96
    %v4413 = vpop.permute.xlu0 %4412
    %v4415 = vmul.f32 %v4410, %v4413
    %4416 = vrot.lane.b32.xlu0 %v4315, 32
    %v4417 = vpop.permute.xlu0 %4416
    %v4419 = vmul.f32 %v4398, %v4417
    %v4420 = vadd.f32 %v4415, %v4419
    %4421 = vrot.lane.b32.xlu0 %v4386, 32
    %v4422 = vpop.permute.xlu0 %4421
    %v4424 = vadd.f32 %v4391, %v4422
    %v4425 = vxor.u32 %v4424, 2147483648
    %v4426 = vmul.f32 %v4425, 1.442695
    %v4427 = vpow.pop %v4426
    %v4428 = vadd.f32 %v4427, 1.0
    %v4429 = vrcp.pop %v4428
    %v4430 = vmul.f32 1.0, %v4429
    %4432 = vrot.lane.b32.xlu0 %v4388, 32
    %v4433 = vpop.permute.xlu0 %4432
    %v4435 = vadd.f32 %v4391, %v4433
    %v4436 = vxor.u32 %v4435, 2147483648
    %v4437 = vmul.f32 %v4436, 1.442695
    %v4438 = vpow.pop %v4437
    %v4439 = vadd.f32 %v4438, 1.0
    %v4440 = vrcp.pop %v4439
    %v4441 = vmul.f32 1.0, %v4440
    %4442 = vrot.lane.b32.xlu0 %v4388, 96
    %v4443 = vpop.permute.xlu0 %4442
    %v4445 = vmul.f32 %v4430, %v4443
    %4447 = vrot.lane.b32.xlu0 %v4445, 64
    %v4448 = vpop.permute.xlu0 %4447
    %v4450 = vadd.f32 %v4391, %v4448
    %v4451 = vtanh.pop %v4450
    %v4452 = vsub.f32 1.0, %v4441
    %4454 = vrot.lane.b32.xlu0 %v4451, 96
    %v4455 = vpop.permute.xlu0 %4454
    %v4457 = vmul.f32 %v4452, %v4455
    %v4458 = vmul.f32 %v4441, %v4315
    %v4459 = vadd.f32 %v4457, %v4458
    %4461 = vrot.lane.b32.xlu0 %v4420, 96
    %v4462 = vpop.permute.xlu0 %4461
    %4464 = vst.msk [vmem:[#allocation5 + $0x28] sm:$0xff] %vm134, %v4462
    %4465 = vst.msk [vmem:[#allocation5 + $0x50] sm:$0xff] %vm856, %v4459
    %v4466 = vsel %vm134, %v4462, %v4459
    %v4468 = vsel %vm709, %v4466, 0
    %4470 = vmatprep.subr.mxu0 0.0
    %4471 = vmatpush1.msra.mxu0 0.0
    %4472 = vmatprep.subr.mxu0 0.0
    %4473 = vmatpush1.msra.mxu0 0.0
    %4474 = vmatprep.subr.mxu0 0.0
    %4475 = vmatpush1.msra.mxu0 0.0
    %4476 = vmatprep.subr.mxu0 0.0
    %4477 = vmatpush1.msra.mxu0 0.0
    %4478 = vmatprep.subr.mxu0 0.0
    %4479 = vmatpush1.msra.mxu0 0.0
    %4480 = vmatprep.subr.mxu0 0.0
    %4481 = vmatpush1.msra.mxu0 0.0
    %4482 = vmatprep.subr.mxu0 0.0
    %4483 = vmatpush1.msra.mxu0 0.0
    %4484 = vmatprep.subr.mxu0 0.0
    %4485 = vmatpush1.msra.mxu0 0.0
    %4486 = vmatprep.subr.mxu0 %v3554
    %4487 = vmatpush1.msra.mxu0 %v3553
    %4488 = vmatprep.subr.mxu0 %v3552
    %4489 = vmatpush1.msra.mxu0 %v3551
    %4490 = vmatprep.subr.mxu0 %v3550
    %4491 = vmatpush1.msra.mxu0 %v3549
    %4492 = vmatprep.subr.mxu0 %v3548
    %4493 = vmatpush1.msra.mxu0 %v3547
    %4494 = vmatprep.subr.mxu0 %v3546
    %4495 = vmatpush1.msra.mxu0 %v3545
    %4496 = vmatprep.subr.mxu0 %v3544
    %4497 = vmatpush1.msra.mxu0 %v3543
    %4498 = vmatprep.subr.mxu0 %v3542
    %4499 = vmatpush1.msra.mxu0 %v3541
    %4500 = vmatprep.subr.mxu0 %v3540
    %4501 = vmatpush1.msra.mxu0 %v3539
    %4502 = vmatprep.subr.mxu0 0.0
    %4503 = vmatpush2.msra.mxu0 0.0
    %4504 = vmatprep.subr.mxu0 0.0
    %4505 = vmatpush2.msra.mxu0 0.0
    %4506 = vmatprep.subr.mxu0 0.0
    %4507 = vmatpush2.msra.mxu0 0.0
    %4508 = vmatprep.subr.mxu0 0.0
    %4509 = vmatpush2.msra.mxu0 0.0
    %4510 = vmatprep.subr.mxu0 0.0
    %4511 = vmatpush2.msra.mxu0 0.0
    %4512 = vmatprep.subr.mxu0 0.0
    %4513 = vmatpush2.msra.mxu0 0.0
    %4514 = vmatprep.subr.mxu0 0.0
    %4515 = vmatpush2.msra.mxu0 0.0
    %4516 = vmatprep.subr.mxu0 0.0
    %4517 = vmatpush2.msra.mxu0 0.0
    %4518 = vmatprep.subr.mxu0 0.0
    %4519 = vmatpush2.msra.mxu0 0.0
    %4520 = vmatprep.subr.mxu0 0.0
    %4521 = vmatpush2.msra.mxu0 0.0
    %4522 = vmatprep.subr.mxu0 0.0
    %4523 = vmatpush2.msra.mxu0 0.0
    %4524 = vmatprep.subr.mxu0 0.0
    %4525 = vmatpush2.msra.mxu0 0.0
    %4526 = vmatprep.subr.mxu0 0.0
    %4527 = vmatpush2.msra.mxu0 0.0
    %4528 = vmatprep.subr.mxu0 0.0
    %4529 = vmatpush2.msra.mxu0 0.0
    %4530 = vmatprep.subr.mxu0 0.0
    %4531 = vmatpush2.msra.mxu0 0.0
    %4532 = vmatprep.subr.mxu0 0.0
    %4533 = vmatpush2.msra.mxu0 0.0
    %4534 = vmatprep.mubr.f32.mxu0 0.0
    %4535 = vmatmul.mubr.f32.gmra.mxu0 %v4468
    %v4536 = vpop.f32.mrf.mxu0
    %v4537 = vadd.f32 %v3560, %v4536
    %v4538 = vpop.f32.mrf.mxu0
    %v4539 = vadd.f32 %v3564, %v4538
    %4540 = vdwg.mxu0
    %v4541 = vld [vmem:[#allocation3 + $0x30] sm:$0xff]
    %v4542 = vld [vmem:[#allocation4 + $0x48] sm:$0xff]
    %v4543 = vadd.f32 %v4541, %v4537
    %v4544 = vxor.u32 %v4543, 2147483648
    %v4545 = vmul.f32 %v4544, 1.442695
    %v4546 = vpow.pop %v4545
    %v4547 = vadd.f32 %v4546, 1.0
    %v4548 = vrcp.pop %v4547
    %v4549 = vmul.f32 1.0, %v4548
    %4551 = vrot.lane.b32.xlu0 %v4537, 64
    %v4552 = vpop.permute.xlu0 %4551
    %v4554 = vmul.f32 %v4549, %v4552
    %4556 = vrot.lane.b32.xlu0 %v4554, 64
    %v4557 = vpop.permute.xlu0 %4556
    %v4559 = vadd.f32 %v4541, %v4557
    %v4560 = vtanh.pop %v4559
    %v4561 = vsub.f32 1.0, %v4549
    %4563 = vrot.lane.b32.xlu0 %v4560, 96
    %v4564 = vpop.permute.xlu0 %4563
    %v4566 = vmul.f32 %v4561, %v4564
    %4567 = vrot.lane.b32.xlu0 %v4466, 32
    %v4568 = vpop.permute.xlu0 %4567
    %v4570 = vmul.f32 %v4549, %v4568
    %v4571 = vadd.f32 %v4566, %v4570
    %4572 = vrot.lane.b32.xlu0 %v4537, 32
    %v4573 = vpop.permute.xlu0 %4572
    %v4575 = vadd.f32 %v4542, %v4573
    %v4576 = vxor.u32 %v4575, 2147483648
    %v4577 = vmul.f32 %v4576, 1.442695
    %v4578 = vpow.pop %v4577
    %v4579 = vadd.f32 %v4578, 1.0
    %v4580 = vrcp.pop %v4579
    %v4581 = vmul.f32 1.0, %v4580
    %4583 = vrot.lane.b32.xlu0 %v4539, 32
    %v4584 = vpop.permute.xlu0 %4583
    %v4586 = vadd.f32 %v4542, %v4584
    %v4587 = vxor.u32 %v4586, 2147483648
    %v4588 = vmul.f32 %v4587, 1.442695
    %v4589 = vpow.pop %v4588
    %v4590 = vadd.f32 %v4589, 1.0
    %v4591 = vrcp.pop %v4590
    %v4592 = vmul.f32 1.0, %v4591
    %4593 = vrot.lane.b32.xlu0 %v4539, 96
    %v4594 = vpop.permute.xlu0 %4593
    %v4596 = vmul.f32 %v4581, %v4594
    %4598 = vrot.lane.b32.xlu0 %v4596, 64
    %v4599 = vpop.permute.xlu0 %4598
    %v4601 = vadd.f32 %v4542, %v4599
    %v4602 = vtanh.pop %v4601
    %v4603 = vsub.f32 1.0, %v4592
    %4605 = vrot.lane.b32.xlu0 %v4602, 96
    %v4606 = vpop.permute.xlu0 %4605
    %v4608 = vmul.f32 %v4603, %v4606
    %v4609 = vmul.f32 %v4592, %v4466
    %v4610 = vadd.f32 %v4608, %v4609
    %4612 = vrot.lane.b32.xlu0 %v4571, 96
    %v4613 = vpop.permute.xlu0 %4612
    %4615 = vst.msk [vmem:[#allocation5 + $0x30] sm:$0xff] %vm134, %v4613
    %4616 = vst.msk [vmem:[#allocation5 + $0x48] sm:$0xff] %vm856, %v4610
    %v4617 = vsel %vm134, %v4613, %v4610
    %v4619 = vsel %vm709, %v4617, 0
    %4621 = vmatprep.subr.mxu0 0.0
    %4622 = vmatpush1.msra.mxu0 0.0
    %4623 = vmatprep.subr.mxu0 0.0
    %4624 = vmatpush1.msra.mxu0 0.0
    %4625 = vmatprep.subr.mxu0 0.0
    %4626 = vmatpush1.msra.mxu0 0.0
    %4627 = vmatprep.subr.mxu0 0.0
    %4628 = vmatpush1.msra.mxu0 0.0
    %4629 = vmatprep.subr.mxu0 0.0
    %4630 = vmatpush1.msra.mxu0 0.0
    %4631 = vmatprep.subr.mxu0 0.0
    %4632 = vmatpush1.msra.mxu0 0.0
    %4633 = vmatprep.subr.mxu0 0.0
    %4634 = vmatpush1.msra.mxu0 0.0
    %4635 = vmatprep.subr.mxu0 0.0
    %4636 = vmatpush1.msra.mxu0 0.0
    %4637 = vmatprep.subr.mxu0 %v3554
    %4638 = vmatpush1.msra.mxu0 %v3553
    %4639 = vmatprep.subr.mxu0 %v3552
    %4640 = vmatpush1.msra.mxu0 %v3551
    %4641 = vmatprep.subr.mxu0 %v3550
    %4642 = vmatpush1.msra.mxu0 %v3549
    %4643 = vmatprep.subr.mxu0 %v3548
    %4644 = vmatpush1.msra.mxu0 %v3547
    %4645 = vmatprep.subr.mxu0 %v3546
    %4646 = vmatpush1.msra.mxu0 %v3545
    %4647 = vmatprep.subr.mxu0 %v3544
    %4648 = vmatpush1.msra.mxu0 %v3543
    %4649 = vmatprep.subr.mxu0 %v3542
    %4650 = vmatpush1.msra.mxu0 %v3541
    %4651 = vmatprep.subr.mxu0 %v3540
    %4652 = vmatpush1.msra.mxu0 %v3539
    %4653 = vmatprep.subr.mxu0 0.0
    %4654 = vmatpush2.msra.mxu0 0.0
    %4655 = vmatprep.subr.mxu0 0.0
    %4656 = vmatpush2.msra.mxu0 0.0
    %4657 = vmatprep.subr.mxu0 0.0
    %4658 = vmatpush2.msra.mxu0 0.0
    %4659 = vmatprep.subr.mxu0 0.0
    %4660 = vmatpush2.msra.mxu0 0.0
    %4661 = vmatprep.subr.mxu0 0.0
    %4662 = vmatpush2.msra.mxu0 0.0
    %4663 = vmatprep.subr.mxu0 0.0
    %4664 = vmatpush2.msra.mxu0 0.0
    %4665 = vmatprep.subr.mxu0 0.0
    %4666 = vmatpush2.msra.mxu0 0.0
    %4667 = vmatprep.subr.mxu0 0.0
    %4668 = vmatpush2.msra.mxu0 0.0
    %4669 = vmatprep.subr.mxu0 0.0
    %4670 = vmatpush2.msra.mxu0 0.0
    %4671 = vmatprep.subr.mxu0 0.0
    %4672 = vmatpush2.msra.mxu0 0.0
    %4673 = vmatprep.subr.mxu0 0.0
    %4674 = vmatpush2.msra.mxu0 0.0
    %4675 = vmatprep.subr.mxu0 0.0
    %4676 = vmatpush2.msra.mxu0 0.0
    %4677 = vmatprep.subr.mxu0 0.0
    %4678 = vmatpush2.msra.mxu0 0.0
    %4679 = vmatprep.subr.mxu0 0.0
    %4680 = vmatpush2.msra.mxu0 0.0
    %4681 = vmatprep.subr.mxu0 0.0
    %4682 = vmatpush2.msra.mxu0 0.0
    %4683 = vmatprep.subr.mxu0 0.0
    %4684 = vmatpush2.msra.mxu0 0.0
    %4685 = vmatprep.mubr.f32.mxu0 0.0
    %4686 = vmatmul.mubr.f32.gmra.mxu0 %v4619
    %v4687 = vpop.f32.mrf.mxu0
    %v4688 = vadd.f32 %v3560, %v4687
    %v4689 = vpop.f32.mrf.mxu0
    %v4690 = vadd.f32 %v3564, %v4689
    %4691 = vdwg.mxu0
    %v4692 = vld [vmem:[#allocation3 + $0x38] sm:$0xff]
    %v4693 = vld [vmem:[#allocation4 + $0x40] sm:$0xff]
    %v4694 = vadd.f32 %v4692, %v4688
    %v4695 = vxor.u32 %v4694, 2147483648
    %v4696 = vmul.f32 %v4695, 1.442695
    %v4697 = vpow.pop %v4696
    %v4698 = vadd.f32 %v4697, 1.0
    %v4699 = vrcp.pop %v4698
    %v4700 = vmul.f32 1.0, %v4699
    %4702 = vrot.lane.b32.xlu0 %v4688, 64
    %v4703 = vpop.permute.xlu0 %4702
    %v4705 = vmul.f32 %v4700, %v4703
    %4707 = vrot.lane.b32.xlu0 %v4705, 64
    %v4708 = vpop.permute.xlu0 %4707
    %v4710 = vadd.f32 %v4692, %v4708
    %v4711 = vtanh.pop %v4710
    %v4712 = vsub.f32 1.0, %v4700
    %4714 = vrot.lane.b32.xlu0 %v4711, 96
    %v4715 = vpop.permute.xlu0 %4714
    %v4717 = vmul.f32 %v4712, %v4715
    %4718 = vrot.lane.b32.xlu0 %v4617, 32
    %v4719 = vpop.permute.xlu0 %4718
    %v4721 = vmul.f32 %v4700, %v4719
    %v4722 = vadd.f32 %v4717, %v4721
    %4723 = vrot.lane.b32.xlu0 %v4688, 32
    %v4724 = vpop.permute.xlu0 %4723
    %v4726 = vadd.f32 %v4693, %v4724
    %v4727 = vxor.u32 %v4726, 2147483648
    %v4728 = vmul.f32 %v4727, 1.442695
    %v4729 = vpow.pop %v4728
    %v4730 = vadd.f32 %v4729, 1.0
    %v4731 = vrcp.pop %v4730
    %v4732 = vmul.f32 1.0, %v4731
    %4734 = vrot.lane.b32.xlu0 %v4690, 32
    %v4735 = vpop.permute.xlu0 %4734
    %v4737 = vadd.f32 %v4693, %v4735
    %v4738 = vxor.u32 %v4737, 2147483648
    %v4739 = vmul.f32 %v4738, 1.442695
    %v4740 = vpow.pop %v4739
    %v4741 = vadd.f32 %v4740, 1.0
    %v4742 = vrcp.pop %v4741
    %v4743 = vmul.f32 1.0, %v4742
    %4744 = vrot.lane.b32.xlu0 %v4690, 96
    %v4745 = vpop.permute.xlu0 %4744
    %v4747 = vmul.f32 %v4732, %v4745
    %4749 = vrot.lane.b32.xlu0 %v4747, 64
    %v4750 = vpop.permute.xlu0 %4749
    %v4752 = vadd.f32 %v4693, %v4750
    %v4753 = vtanh.pop %v4752
    %v4754 = vsub.f32 1.0, %v4743
    %4756 = vrot.lane.b32.xlu0 %v4753, 96
    %v4757 = vpop.permute.xlu0 %4756
    %v4759 = vmul.f32 %v4754, %v4757
    %v4760 = vmul.f32 %v4743, %v4617
    %v4761 = vadd.f32 %v4759, %v4760
    %4763 = vrot.lane.b32.xlu0 %v4722, 96
    %v4764 = vpop.permute.xlu0 %4763
    %4766 = vst.msk [vmem:[#allocation5 + $0x38] sm:$0xff] %vm134, %v4764
    %4767 = vst.msk [vmem:[#allocation5 + $0x40] sm:$0xff] %vm856, %v4761
    %v4768 = vsel %vm134, %v4764, %v4761
    %v4770 = vsel %vm709, %v4768, 0
    %4772 = vmatprep.subr.mxu0 0.0
    %4773 = vmatpush1.msra.mxu0 0.0
    %4774 = vmatprep.subr.mxu0 0.0
    %4775 = vmatpush1.msra.mxu0 0.0
    %4776 = vmatprep.subr.mxu0 0.0
    %4777 = vmatpush1.msra.mxu0 0.0
    %4778 = vmatprep.subr.mxu0 0.0
    %4779 = vmatpush1.msra.mxu0 0.0
    %4780 = vmatprep.subr.mxu0 0.0
    %4781 = vmatpush1.msra.mxu0 0.0
    %4782 = vmatprep.subr.mxu0 0.0
    %4783 = vmatpush1.msra.mxu0 0.0
    %4784 = vmatprep.subr.mxu0 0.0
    %4785 = vmatpush1.msra.mxu0 0.0
    %4786 = vmatprep.subr.mxu0 0.0
    %4787 = vmatpush1.msra.mxu0 0.0
    %4788 = vmatprep.subr.mxu0 %v3554
    %4789 = vmatpush1.msra.mxu0 %v3553
    %4790 = vmatprep.subr.mxu0 %v3552
    %4791 = vmatpush1.msra.mxu0 %v3551
    %4792 = vmatprep.subr.mxu0 %v3550
    %4793 = vmatpush1.msra.mxu0 %v3549
    %4794 = vmatprep.subr.mxu0 %v3548
    %4795 = vmatpush1.msra.mxu0 %v3547
    %4796 = vmatprep.subr.mxu0 %v3546
    %4797 = vmatpush1.msra.mxu0 %v3545
    %4798 = vmatprep.subr.mxu0 %v3544
    %4799 = vmatpush1.msra.mxu0 %v3543
    %4800 = vmatprep.subr.mxu0 %v3542
    %4801 = vmatpush1.msra.mxu0 %v3541
    %4802 = vmatprep.subr.mxu0 %v3540
    %4803 = vmatpush1.msra.mxu0 %v3539
    %4804 = vmatprep.subr.mxu0 0.0
    %4805 = vmatpush2.msra.mxu0 0.0
    %4806 = vmatprep.subr.mxu0 0.0
    %4807 = vmatpush2.msra.mxu0 0.0
    %4808 = vmatprep.subr.mxu0 0.0
    %4809 = vmatpush2.msra.mxu0 0.0
    %4810 = vmatprep.subr.mxu0 0.0
    %4811 = vmatpush2.msra.mxu0 0.0
    %4812 = vmatprep.subr.mxu0 0.0
    %4813 = vmatpush2.msra.mxu0 0.0
    %4814 = vmatprep.subr.mxu0 0.0
    %4815 = vmatpush2.msra.mxu0 0.0
    %4816 = vmatprep.subr.mxu0 0.0
    %4817 = vmatpush2.msra.mxu0 0.0
    %4818 = vmatprep.subr.mxu0 0.0
    %4819 = vmatpush2.msra.mxu0 0.0
    %4820 = vmatprep.subr.mxu0 0.0
    %4821 = vmatpush2.msra.mxu0 0.0
    %4822 = vmatprep.subr.mxu0 0.0
    %4823 = vmatpush2.msra.mxu0 0.0
    %4824 = vmatprep.subr.mxu0 0.0
    %4825 = vmatpush2.msra.mxu0 0.0
    %4826 = vmatprep.subr.mxu0 0.0
    %4827 = vmatpush2.msra.mxu0 0.0
    %4828 = vmatprep.subr.mxu0 0.0
    %4829 = vmatpush2.msra.mxu0 0.0
    %4830 = vmatprep.subr.mxu0 0.0
    %4831 = vmatpush2.msra.mxu0 0.0
    %4832 = vmatprep.subr.mxu0 0.0
    %4833 = vmatpush2.msra.mxu0 0.0
    %4834 = vmatprep.subr.mxu0 0.0
    %4835 = vmatpush2.msra.mxu0 0.0
    %4836 = vmatprep.mubr.f32.mxu0 0.0
    %4837 = vmatmul.mubr.f32.gmra.mxu0 %v4770
    %v4838 = vpop.f32.mrf.mxu0
    %v4839 = vadd.f32 %v3560, %v4838
    %v4840 = vpop.f32.mrf.mxu0
    %v4841 = vadd.f32 %v3564, %v4840
    %4842 = vdwg.mxu0
    %v4843 = vld [vmem:[#allocation3 + $0x40] sm:$0xff]
    %v4844 = vld [vmem:[#allocation4 + $0x38] sm:$0xff]
    %v4845 = vadd.f32 %v4843, %v4839
    %v4846 = vxor.u32 %v4845, 2147483648
    %v4847 = vmul.f32 %v4846, 1.442695
    %v4848 = vpow.pop %v4847
    %v4849 = vadd.f32 %v4848, 1.0
    %v4850 = vrcp.pop %v4849
    %v4851 = vmul.f32 1.0, %v4850
    %4853 = vrot.lane.b32.xlu0 %v4839, 64
    %v4854 = vpop.permute.xlu0 %4853
    %v4856 = vmul.f32 %v4851, %v4854
    %4858 = vrot.lane.b32.xlu0 %v4856, 64
    %v4859 = vpop.permute.xlu0 %4858
    %v4861 = vadd.f32 %v4843, %v4859
    %v4862 = vtanh.pop %v4861
    %v4863 = vsub.f32 1.0, %v4851
    %4865 = vrot.lane.b32.xlu0 %v4862, 96
    %v4866 = vpop.permute.xlu0 %4865
    %v4868 = vmul.f32 %v4863, %v4866
    %4869 = vrot.lane.b32.xlu0 %v4768, 32
    %v4870 = vpop.permute.xlu0 %4869
    %v4872 = vmul.f32 %v4851, %v4870
    %v4873 = vadd.f32 %v4868, %v4872
    %4874 = vrot.lane.b32.xlu0 %v4839, 32
    %v4875 = vpop.permute.xlu0 %4874
    %v4877 = vadd.f32 %v4844, %v4875
    %v4878 = vxor.u32 %v4877, 2147483648
    %v4879 = vmul.f32 %v4878, 1.442695
    %v4880 = vpow.pop %v4879
    %v4881 = vadd.f32 %v4880, 1.0
    %v4882 = vrcp.pop %v4881
    %v4883 = vmul.f32 1.0, %v4882
    %4885 = vrot.lane.b32.xlu0 %v4841, 32
    %v4886 = vpop.permute.xlu0 %4885
    %v4888 = vadd.f32 %v4844, %v4886
    %v4889 = vxor.u32 %v4888, 2147483648
    %v4890 = vmul.f32 %v4889, 1.442695
    %v4891 = vpow.pop %v4890
    %v4892 = vadd.f32 %v4891, 1.0
    %v4893 = vrcp.pop %v4892
    %v4894 = vmul.f32 1.0, %v4893
    %4895 = vrot.lane.b32.xlu0 %v4841, 96
    %v4896 = vpop.permute.xlu0 %4895
    %v4898 = vmul.f32 %v4883, %v4896
    %4900 = vrot.lane.b32.xlu0 %v4898, 64
    %v4901 = vpop.permute.xlu0 %4900
    %v4903 = vadd.f32 %v4844, %v4901
    %v4904 = vtanh.pop %v4903
    %v4905 = vsub.f32 1.0, %v4894
    %4907 = vrot.lane.b32.xlu0 %v4904, 96
    %v4908 = vpop.permute.xlu0 %4907
    %v4910 = vmul.f32 %v4905, %v4908
    %v4911 = vmul.f32 %v4894, %v4768
    %v4912 = vadd.f32 %v4910, %v4911
    %4914 = vrot.lane.b32.xlu0 %v4873, 96
    %v4915 = vpop.permute.xlu0 %4914
    %4917 = vst.msk [vmem:[#allocation5 + $0x40] sm:$0xff] %vm134, %v4915
    %4918 = vst.msk [vmem:[#allocation5 + $0x38] sm:$0xff] %vm856, %v4912
    %v4919 = vsel %vm134, %v4915, %v4912
    %v4921 = vsel %vm709, %v4919, 0
    %4923 = vmatprep.subr.mxu0 0.0
    %4924 = vmatpush1.msra.mxu0 0.0
    %4925 = vmatprep.subr.mxu0 0.0
    %4926 = vmatpush1.msra.mxu0 0.0
    %4927 = vmatprep.subr.mxu0 0.0
    %4928 = vmatpush1.msra.mxu0 0.0
    %4929 = vmatprep.subr.mxu0 0.0
    %4930 = vmatpush1.msra.mxu0 0.0
    %4931 = vmatprep.subr.mxu0 0.0
    %4932 = vmatpush1.msra.mxu0 0.0
    %4933 = vmatprep.subr.mxu0 0.0
    %4934 = vmatpush1.msra.mxu0 0.0
    %4935 = vmatprep.subr.mxu0 0.0
    %4936 = vmatpush1.msra.mxu0 0.0
    %4937 = vmatprep.subr.mxu0 0.0
    %4938 = vmatpush1.msra.mxu0 0.0
    %4939 = vmatprep.subr.mxu0 %v3554
    %4940 = vmatpush1.msra.mxu0 %v3553
    %4941 = vmatprep.subr.mxu0 %v3552
    %4942 = vmatpush1.msra.mxu0 %v3551
    %4943 = vmatprep.subr.mxu0 %v3550
    %4944 = vmatpush1.msra.mxu0 %v3549
    %4945 = vmatprep.subr.mxu0 %v3548
    %4946 = vmatpush1.msra.mxu0 %v3547
    %4947 = vmatprep.subr.mxu0 %v3546
    %4948 = vmatpush1.msra.mxu0 %v3545
    %4949 = vmatprep.subr.mxu0 %v3544
    %4950 = vmatpush1.msra.mxu0 %v3543
    %4951 = vmatprep.subr.mxu0 %v3542
    %4952 = vmatpush1.msra.mxu0 %v3541
    %4953 = vmatprep.subr.mxu0 %v3540
    %4954 = vmatpush1.msra.mxu0 %v3539
    %4955 = vmatprep.subr.mxu0 0.0
    %4956 = vmatpush2.msra.mxu0 0.0
    %4957 = vmatprep.subr.mxu0 0.0
    %4958 = vmatpush2.msra.mxu0 0.0
    %4959 = vmatprep.subr.mxu0 0.0
    %4960 = vmatpush2.msra.mxu0 0.0
    %4961 = vmatprep.subr.mxu0 0.0
    %4962 = vmatpush2.msra.mxu0 0.0
    %4963 = vmatprep.subr.mxu0 0.0
    %4964 = vmatpush2.msra.mxu0 0.0
    %4965 = vmatprep.subr.mxu0 0.0
    %4966 = vmatpush2.msra.mxu0 0.0
    %4967 = vmatprep.subr.mxu0 0.0
    %4968 = vmatpush2.msra.mxu0 0.0
    %4969 = vmatprep.subr.mxu0 0.0
    %4970 = vmatpush2.msra.mxu0 0.0
    %4971 = vmatprep.subr.mxu0 0.0
    %4972 = vmatpush2.msra.mxu0 0.0
    %4973 = vmatprep.subr.mxu0 0.0
    %4974 = vmatpush2.msra.mxu0 0.0
    %4975 = vmatprep.subr.mxu0 0.0
    %4976 = vmatpush2.msra.mxu0 0.0
    %4977 = vmatprep.subr.mxu0 0.0
    %4978 = vmatpush2.msra.mxu0 0.0
    %4979 = vmatprep.subr.mxu0 0.0
    %4980 = vmatpush2.msra.mxu0 0.0
    %4981 = vmatprep.subr.mxu0 0.0
    %4982 = vmatpush2.msra.mxu0 0.0
    %4983 = vmatprep.subr.mxu0 0.0
    %4984 = vmatpush2.msra.mxu0 0.0
    %4985 = vmatprep.subr.mxu0 0.0
    %4986 = vmatpush2.msra.mxu0 0.0
    %4987 = vmatprep.mubr.f32.mxu0 0.0
    %4988 = vmatmul.mubr.f32.gmra.mxu0 %v4921
    %v4989 = vpop.f32.mrf.mxu0
    %v4990 = vadd.f32 %v3560, %v4989
    %v4991 = vpop.f32.mrf.mxu0
    %v4992 = vadd.f32 %v3564, %v4991
    %4993 = vdwg.mxu0
    %v4994 = vld [vmem:[#allocation3 + $0x48] sm:$0xff]
    %v4995 = vld [vmem:[#allocation4 + $0x30] sm:$0xff]
    %v4996 = vadd.f32 %v4994, %v4990
    %v4997 = vxor.u32 %v4996, 2147483648
    %v4998 = vmul.f32 %v4997, 1.442695
    %v4999 = vpow.pop %v4998
    %v5000 = vadd.f32 %v4999, 1.0
    %v5001 = vrcp.pop %v5000
    %v5002 = vmul.f32 1.0, %v5001
    %5004 = vrot.lane.b32.xlu0 %v4990, 64
    %v5005 = vpop.permute.xlu0 %5004
    %v5007 = vmul.f32 %v5002, %v5005
    %5009 = vrot.lane.b32.xlu0 %v5007, 64
    %v5010 = vpop.permute.xlu0 %5009
    %v5012 = vadd.f32 %v4994, %v5010
    %v5013 = vtanh.pop %v5012
    %v5014 = vsub.f32 1.0, %v5002
    %5016 = vrot.lane.b32.xlu0 %v5013, 96
    %v5017 = vpop.permute.xlu0 %5016
    %v5019 = vmul.f32 %v5014, %v5017
    %5020 = vrot.lane.b32.xlu0 %v4919, 32
    %v5021 = vpop.permute.xlu0 %5020
    %v5023 = vmul.f32 %v5002, %v5021
    %v5024 = vadd.f32 %v5019, %v5023
    %5025 = vrot.lane.b32.xlu0 %v4990, 32
    %v5026 = vpop.permute.xlu0 %5025
    %v5028 = vadd.f32 %v4995, %v5026
    %v5029 = vxor.u32 %v5028, 2147483648
    %v5030 = vmul.f32 %v5029, 1.442695
    %v5031 = vpow.pop %v5030
    %v5032 = vadd.f32 %v5031, 1.0
    %v5033 = vrcp.pop %v5032
    %v5034 = vmul.f32 1.0, %v5033
    %5036 = vrot.lane.b32.xlu0 %v4992, 32
    %v5037 = vpop.permute.xlu0 %5036
    %v5039 = vadd.f32 %v4995, %v5037
    %v5040 = vxor.u32 %v5039, 2147483648
    %v5041 = vmul.f32 %v5040, 1.442695
    %v5042 = vpow.pop %v5041
    %v5043 = vadd.f32 %v5042, 1.0
    %v5044 = vrcp.pop %v5043
    %v5045 = vmul.f32 1.0, %v5044
    %5046 = vrot.lane.b32.xlu0 %v4992, 96
    %v5047 = vpop.permute.xlu0 %5046
    %v5049 = vmul.f32 %v5034, %v5047
    %5051 = vrot.lane.b32.xlu0 %v5049, 64
    %v5052 = vpop.permute.xlu0 %5051
    %v5054 = vadd.f32 %v4995, %v5052
    %v5055 = vtanh.pop %v5054
    %v5056 = vsub.f32 1.0, %v5045
    %5058 = vrot.lane.b32.xlu0 %v5055, 96
    %v5059 = vpop.permute.xlu0 %5058
    %v5061 = vmul.f32 %v5056, %v5059
    %v5062 = vmul.f32 %v5045, %v4919
    %v5063 = vadd.f32 %v5061, %v5062
    %5065 = vrot.lane.b32.xlu0 %v5024, 96
    %v5066 = vpop.permute.xlu0 %5065
    %5068 = vst.msk [vmem:[#allocation5 + $0x48] sm:$0xff] %vm134, %v5066
    %5069 = vst.msk [vmem:[#allocation5 + $0x30] sm:$0xff] %vm856, %v5063
    %v5070 = vsel %vm134, %v5066, %v5063
    %v5072 = vsel %vm709, %v5070, 0
    %5074 = vmatprep.subr.mxu0 0.0
    %5075 = vmatpush1.msra.mxu0 0.0
    %5076 = vmatprep.subr.mxu0 0.0
    %5077 = vmatpush1.msra.mxu0 0.0
    %5078 = vmatprep.subr.mxu0 0.0
    %5079 = vmatpush1.msra.mxu0 0.0
    %5080 = vmatprep.subr.mxu0 0.0
    %5081 = vmatpush1.msra.mxu0 0.0
    %5082 = vmatprep.subr.mxu0 0.0
    %5083 = vmatpush1.msra.mxu0 0.0
    %5084 = vmatprep.subr.mxu0 0.0
    %5085 = vmatpush1.msra.mxu0 0.0
    %5086 = vmatprep.subr.mxu0 0.0
    %5087 = vmatpush1.msra.mxu0 0.0
    %5088 = vmatprep.subr.mxu0 0.0
    %5089 = vmatpush1.msra.mxu0 0.0
    %5090 = vmatprep.subr.mxu0 %v3554
    %5091 = vmatpush1.msra.mxu0 %v3553
    %5092 = vmatprep.subr.mxu0 %v3552
    %5093 = vmatpush1.msra.mxu0 %v3551
    %5094 = vmatprep.subr.mxu0 %v3550
    %5095 = vmatpush1.msra.mxu0 %v3549
    %5096 = vmatprep.subr.mxu0 %v3548
    %5097 = vmatpush1.msra.mxu0 %v3547
    %5098 = vmatprep.subr.mxu0 %v3546
    %5099 = vmatpush1.msra.mxu0 %v3545
    %5100 = vmatprep.subr.mxu0 %v3544
    %5101 = vmatpush1.msra.mxu0 %v3543
    %5102 = vmatprep.subr.mxu0 %v3542
    %5103 = vmatpush1.msra.mxu0 %v3541
    %5104 = vmatprep.subr.mxu0 %v3540
    %5105 = vmatpush1.msra.mxu0 %v3539
    %5106 = vmatprep.subr.mxu0 0.0
    %5107 = vmatpush2.msra.mxu0 0.0
    %5108 = vmatprep.subr.mxu0 0.0
    %5109 = vmatpush2.msra.mxu0 0.0
    %5110 = vmatprep.subr.mxu0 0.0
    %5111 = vmatpush2.msra.mxu0 0.0
    %5112 = vmatprep.subr.mxu0 0.0
    %5113 = vmatpush2.msra.mxu0 0.0
    %5114 = vmatprep.subr.mxu0 0.0
    %5115 = vmatpush2.msra.mxu0 0.0
    %5116 = vmatprep.subr.mxu0 0.0
    %5117 = vmatpush2.msra.mxu0 0.0
    %5118 = vmatprep.subr.mxu0 0.0
    %5119 = vmatpush2.msra.mxu0 0.0
    %5120 = vmatprep.subr.mxu0 0.0
    %5121 = vmatpush2.msra.mxu0 0.0
    %5122 = vmatprep.subr.mxu0 0.0
    %5123 = vmatpush2.msra.mxu0 0.0
    %5124 = vmatprep.subr.mxu0 0.0
    %5125 = vmatpush2.msra.mxu0 0.0
    %5126 = vmatprep.subr.mxu0 0.0
    %5127 = vmatpush2.msra.mxu0 0.0
    %5128 = vmatprep.subr.mxu0 0.0
    %5129 = vmatpush2.msra.mxu0 0.0
    %5130 = vmatprep.subr.mxu0 0.0
    %5131 = vmatpush2.msra.mxu0 0.0
    %5132 = vmatprep.subr.mxu0 0.0
    %5133 = vmatpush2.msra.mxu0 0.0
    %5134 = vmatprep.subr.mxu0 0.0
    %5135 = vmatpush2.msra.mxu0 0.0
    %5136 = vmatprep.subr.mxu0 0.0
    %5137 = vmatpush2.msra.mxu0 0.0
    %5138 = vmatprep.mubr.f32.mxu0 0.0
    %5139 = vmatmul.mubr.f32.gmra.mxu0 %v5072
    %v5140 = vpop.f32.mrf.mxu0
    %v5141 = vadd.f32 %v3560, %v5140
    %v5142 = vpop.f32.mrf.mxu0
    %v5143 = vadd.f32 %v3564, %v5142
    %5144 = vdwg.mxu0
    %v5145 = vld [vmem:[#allocation3 + $0x50] sm:$0xff]
    %v5146 = vld [vmem:[#allocation4 + $0x28] sm:$0xff]
    %v5147 = vadd.f32 %v5145, %v5141
    %v5148 = vxor.u32 %v5147, 2147483648
    %v5149 = vmul.f32 %v5148, 1.442695
    %v5150 = vpow.pop %v5149
    %v5151 = vadd.f32 %v5150, 1.0
    %v5152 = vrcp.pop %v5151
    %v5153 = vmul.f32 1.0, %v5152
    %5155 = vrot.lane.b32.xlu0 %v5141, 64
    %v5156 = vpop.permute.xlu0 %5155
    %v5158 = vmul.f32 %v5153, %v5156
    %5160 = vrot.lane.b32.xlu0 %v5158, 64
    %v5161 = vpop.permute.xlu0 %5160
    %v5163 = vadd.f32 %v5145, %v5161
    %v5164 = vtanh.pop %v5163
    %v5165 = vsub.f32 1.0, %v5153
    %5167 = vrot.lane.b32.xlu0 %v5164, 96
    %v5168 = vpop.permute.xlu0 %5167
    %v5170 = vmul.f32 %v5165, %v5168
    %5171 = vrot.lane.b32.xlu0 %v5070, 32
    %v5172 = vpop.permute.xlu0 %5171
    %v5174 = vmul.f32 %v5153, %v5172
    %v5175 = vadd.f32 %v5170, %v5174
    %5176 = vrot.lane.b32.xlu0 %v5141, 32
    %v5177 = vpop.permute.xlu0 %5176
    %v5179 = vadd.f32 %v5146, %v5177
    %v5180 = vxor.u32 %v5179, 2147483648
    %v5181 = vmul.f32 %v5180, 1.442695
    %v5182 = vpow.pop %v5181
    %v5183 = vadd.f32 %v5182, 1.0
    %v5184 = vrcp.pop %v5183
    %v5185 = vmul.f32 1.0, %v5184
    %5187 = vrot.lane.b32.xlu0 %v5143, 32
    %v5188 = vpop.permute.xlu0 %5187
    %v5190 = vadd.f32 %v5146, %v5188
    %v5191 = vxor.u32 %v5190, 2147483648
    %v5192 = vmul.f32 %v5191, 1.442695
    %v5193 = vpow.pop %v5192
    %v5194 = vadd.f32 %v5193, 1.0
    %v5195 = vrcp.pop %v5194
    %v5196 = vmul.f32 1.0, %v5195
    %5197 = vrot.lane.b32.xlu0 %v5143, 96
    %v5198 = vpop.permute.xlu0 %5197
    %v5200 = vmul.f32 %v5185, %v5198
    %5202 = vrot.lane.b32.xlu0 %v5200, 64
    %v5203 = vpop.permute.xlu0 %5202
    %v5205 = vadd.f32 %v5146, %v5203
    %v5206 = vtanh.pop %v5205
    %v5207 = vsub.f32 1.0, %v5196
    %5209 = vrot.lane.b32.xlu0 %v5206, 96
    %v5210 = vpop.permute.xlu0 %5209
    %v5212 = vmul.f32 %v5207, %v5210
    %v5213 = vmul.f32 %v5196, %v5070
    %v5214 = vadd.f32 %v5212, %v5213
    %5216 = vrot.lane.b32.xlu0 %v5175, 96
    %v5217 = vpop.permute.xlu0 %5216
    %5219 = vst.msk [vmem:[#allocation5 + $0x50] sm:$0xff] %vm134, %v5217
    %5220 = vst.msk [vmem:[#allocation5 + $0x28] sm:$0xff] %vm856, %v5214
    %v5221 = vsel %vm134, %v5217, %v5214
    %v5223 = vsel %vm709, %v5221, 0
    %5225 = vmatprep.subr.mxu0 0.0
    %5226 = vmatpush1.msra.mxu0 0.0
    %5227 = vmatprep.subr.mxu0 0.0
    %5228 = vmatpush1.msra.mxu0 0.0
    %5229 = vmatprep.subr.mxu0 0.0
    %5230 = vmatpush1.msra.mxu0 0.0
    %5231 = vmatprep.subr.mxu0 0.0
    %5232 = vmatpush1.msra.mxu0 0.0
    %5233 = vmatprep.subr.mxu0 0.0
    %5234 = vmatpush1.msra.mxu0 0.0
    %5235 = vmatprep.subr.mxu0 0.0
    %5236 = vmatpush1.msra.mxu0 0.0
    %5237 = vmatprep.subr.mxu0 0.0
    %5238 = vmatpush1.msra.mxu0 0.0
    %5239 = vmatprep.subr.mxu0 0.0
    %5240 = vmatpush1.msra.mxu0 0.0
    %5241 = vmatprep.subr.mxu0 %v3554
    %5242 = vmatpush1.msra.mxu0 %v3553
    %5243 = vmatprep.subr.mxu0 %v3552
    %5244 = vmatpush1.msra.mxu0 %v3551
    %5245 = vmatprep.subr.mxu0 %v3550
    %5246 = vmatpush1.msra.mxu0 %v3549
    %5247 = vmatprep.subr.mxu0 %v3548
    %5248 = vmatpush1.msra.mxu0 %v3547
    %5249 = vmatprep.subr.mxu0 %v3546
    %5250 = vmatpush1.msra.mxu0 %v3545
    %5251 = vmatprep.subr.mxu0 %v3544
    %5252 = vmatpush1.msra.mxu0 %v3543
    %5253 = vmatprep.subr.mxu0 %v3542
    %5254 = vmatpush1.msra.mxu0 %v3541
    %5255 = vmatprep.subr.mxu0 %v3540
    %5256 = vmatpush1.msra.mxu0 %v3539
    %5257 = vmatprep.subr.mxu0 0.0
    %5258 = vmatpush2.msra.mxu0 0.0
    %5259 = vmatprep.subr.mxu0 0.0
    %5260 = vmatpush2.msra.mxu0 0.0
    %5261 = vmatprep.subr.mxu0 0.0
    %5262 = vmatpush2.msra.mxu0 0.0
    %5263 = vmatprep.subr.mxu0 0.0
    %5264 = vmatpush2.msra.mxu0 0.0
    %5265 = vmatprep.subr.mxu0 0.0
    %5266 = vmatpush2.msra.mxu0 0.0
    %5267 = vmatprep.subr.mxu0 0.0
    %5268 = vmatpush2.msra.mxu0 0.0
    %5269 = vmatprep.subr.mxu0 0.0
    %5270 = vmatpush2.msra.mxu0 0.0
    %5271 = vmatprep.subr.mxu0 0.0
    %5272 = vmatpush2.msra.mxu0 0.0
    %5273 = vmatprep.subr.mxu0 0.0
    %5274 = vmatpush2.msra.mxu0 0.0
    %5275 = vmatprep.subr.mxu0 0.0
    %5276 = vmatpush2.msra.mxu0 0.0
    %5277 = vmatprep.subr.mxu0 0.0
    %5278 = vmatpush2.msra.mxu0 0.0
    %5279 = vmatprep.subr.mxu0 0.0
    %5280 = vmatpush2.msra.mxu0 0.0
    %5281 = vmatprep.subr.mxu0 0.0
    %5282 = vmatpush2.msra.mxu0 0.0
    %5283 = vmatprep.subr.mxu0 0.0
    %5284 = vmatpush2.msra.mxu0 0.0
    %5285 = vmatprep.subr.mxu0 0.0
    %5286 = vmatpush2.msra.mxu0 0.0
    %5287 = vmatprep.subr.mxu0 0.0
    %5288 = vmatpush2.msra.mxu0 0.0
    %5289 = vmatprep.mubr.f32.mxu0 0.0
    %5290 = vmatmul.mubr.f32.gmra.mxu0 %v5223
    %v5291 = vpop.f32.mrf.mxu0
    %v5292 = vadd.f32 %v3560, %v5291
    %v5293 = vpop.f32.mrf.mxu0
    %v5294 = vadd.f32 %v3564, %v5293
    %5295 = vdwg.mxu0
    %v5296 = vld [vmem:[#allocation3 + $0x58] sm:$0xff]
    %v5297 = vld [vmem:[#allocation4 + $0x20] sm:$0xff]
    %v5298 = vadd.f32 %v5296, %v5292
    %v5299 = vxor.u32 %v5298, 2147483648
    %v5300 = vmul.f32 %v5299, 1.442695
    %v5301 = vpow.pop %v5300
    %v5302 = vadd.f32 %v5301, 1.0
    %v5303 = vrcp.pop %v5302
    %v5304 = vmul.f32 1.0, %v5303
    %5306 = vrot.lane.b32.xlu0 %v5292, 64
    %v5307 = vpop.permute.xlu0 %5306
    %v5309 = vmul.f32 %v5304, %v5307
    %5311 = vrot.lane.b32.xlu0 %v5309, 64
    %v5312 = vpop.permute.xlu0 %5311
    %v5314 = vadd.f32 %v5296, %v5312
    %v5315 = vtanh.pop %v5314
    %v5316 = vsub.f32 1.0, %v5304
    %5318 = vrot.lane.b32.xlu0 %v5315, 96
    %v5319 = vpop.permute.xlu0 %5318
    %v5321 = vmul.f32 %v5316, %v5319
    %5322 = vrot.lane.b32.xlu0 %v5221, 32
    %v5323 = vpop.permute.xlu0 %5322
    %v5325 = vmul.f32 %v5304, %v5323
    %v5326 = vadd.f32 %v5321, %v5325
    %5327 = vrot.lane.b32.xlu0 %v5292, 32
    %v5328 = vpop.permute.xlu0 %5327
    %v5330 = vadd.f32 %v5297, %v5328
    %v5331 = vxor.u32 %v5330, 2147483648
    %v5332 = vmul.f32 %v5331, 1.442695
    %v5333 = vpow.pop %v5332
    %v5334 = vadd.f32 %v5333, 1.0
    %v5335 = vrcp.pop %v5334
    %v5336 = vmul.f32 1.0, %v5335
    %5338 = vrot.lane.b32.xlu0 %v5294, 32
    %v5339 = vpop.permute.xlu0 %5338
    %v5341 = vadd.f32 %v5297, %v5339
    %v5342 = vxor.u32 %v5341, 2147483648
    %v5343 = vmul.f32 %v5342, 1.442695
    %v5344 = vpow.pop %v5343
    %v5345 = vadd.f32 %v5344, 1.0
    %v5346 = vrcp.pop %v5345
    %v5347 = vmul.f32 1.0, %v5346
    %5348 = vrot.lane.b32.xlu0 %v5294, 96
    %v5349 = vpop.permute.xlu0 %5348
    %v5351 = vmul.f32 %v5336, %v5349
    %5353 = vrot.lane.b32.xlu0 %v5351, 64
    %v5354 = vpop.permute.xlu0 %5353
    %v5356 = vadd.f32 %v5297, %v5354
    %v5357 = vtanh.pop %v5356
    %v5358 = vsub.f32 1.0, %v5347
    %5360 = vrot.lane.b32.xlu0 %v5357, 96
    %v5361 = vpop.permute.xlu0 %5360
    %v5363 = vmul.f32 %v5358, %v5361
    %v5364 = vmul.f32 %v5347, %v5221
    %v5365 = vadd.f32 %v5363, %v5364
    %5367 = vrot.lane.b32.xlu0 %v5326, 96
    %v5368 = vpop.permute.xlu0 %5367
    %5370 = vst.msk [vmem:[#allocation5 + $0x58] sm:$0xff] %vm134, %v5368
    %5371 = vst.msk [vmem:[#allocation5 + $0x20] sm:$0xff] %vm856, %v5365
    %v5372 = vsel %vm134, %v5368, %v5365
    %v5374 = vsel %vm709, %v5372, 0
    %5376 = vmatprep.subr.mxu0 0.0
    %5377 = vmatpush1.msra.mxu0 0.0
    %5378 = vmatprep.subr.mxu0 0.0
    %5379 = vmatpush1.msra.mxu0 0.0
    %5380 = vmatprep.subr.mxu0 0.0
    %5381 = vmatpush1.msra.mxu0 0.0
    %5382 = vmatprep.subr.mxu0 0.0
    %5383 = vmatpush1.msra.mxu0 0.0
    %5384 = vmatprep.subr.mxu0 0.0
    %5385 = vmatpush1.msra.mxu0 0.0
    %5386 = vmatprep.subr.mxu0 0.0
    %5387 = vmatpush1.msra.mxu0 0.0
    %5388 = vmatprep.subr.mxu0 0.0
    %5389 = vmatpush1.msra.mxu0 0.0
    %5390 = vmatprep.subr.mxu0 0.0
    %5391 = vmatpush1.msra.mxu0 0.0
    %5392 = vmatprep.subr.mxu0 %v3554
    %5393 = vmatpush1.msra.mxu0 %v3553
    %5394 = vmatprep.subr.mxu0 %v3552
    %5395 = vmatpush1.msra.mxu0 %v3551
    %5396 = vmatprep.subr.mxu0 %v3550
    %5397 = vmatpush1.msra.mxu0 %v3549
    %5398 = vmatprep.subr.mxu0 %v3548
    %5399 = vmatpush1.msra.mxu0 %v3547
    %5400 = vmatprep.subr.mxu0 %v3546
    %5401 = vmatpush1.msra.mxu0 %v3545
    %5402 = vmatprep.subr.mxu0 %v3544
    %5403 = vmatpush1.msra.mxu0 %v3543
    %5404 = vmatprep.subr.mxu0 %v3542
    %5405 = vmatpush1.msra.mxu0 %v3541
    %5406 = vmatprep.subr.mxu0 %v3540
    %5407 = vmatpush1.msra.mxu0 %v3539
    %5408 = vmatprep.subr.mxu0 0.0
    %5409 = vmatpush2.msra.mxu0 0.0
    %5410 = vmatprep.subr.mxu0 0.0
    %5411 = vmatpush2.msra.mxu0 0.0
    %5412 = vmatprep.subr.mxu0 0.0
    %5413 = vmatpush2.msra.mxu0 0.0
    %5414 = vmatprep.subr.mxu0 0.0
    %5415 = vmatpush2.msra.mxu0 0.0
    %5416 = vmatprep.subr.mxu0 0.0
    %5417 = vmatpush2.msra.mxu0 0.0
    %5418 = vmatprep.subr.mxu0 0.0
    %5419 = vmatpush2.msra.mxu0 0.0
    %5420 = vmatprep.subr.mxu0 0.0
    %5421 = vmatpush2.msra.mxu0 0.0
    %5422 = vmatprep.subr.mxu0 0.0
    %5423 = vmatpush2.msra.mxu0 0.0
    %5424 = vmatprep.subr.mxu0 0.0
    %5425 = vmatpush2.msra.mxu0 0.0
    %5426 = vmatprep.subr.mxu0 0.0
    %5427 = vmatpush2.msra.mxu0 0.0
    %5428 = vmatprep.subr.mxu0 0.0
    %5429 = vmatpush2.msra.mxu0 0.0
    %5430 = vmatprep.subr.mxu0 0.0
    %5431 = vmatpush2.msra.mxu0 0.0
    %5432 = vmatprep.subr.mxu0 0.0
    %5433 = vmatpush2.msra.mxu0 0.0
    %5434 = vmatprep.subr.mxu0 0.0
    %5435 = vmatpush2.msra.mxu0 0.0
    %5436 = vmatprep.subr.mxu0 0.0
    %5437 = vmatpush2.msra.mxu0 0.0
    %5438 = vmatprep.subr.mxu0 0.0
    %5439 = vmatpush2.msra.mxu0 0.0
    %5440 = vmatprep.mubr.f32.mxu0 0.0
    %5441 = vmatmul.mubr.f32.gmra.mxu0 %v5374
    %v5442 = vpop.f32.mrf.mxu0
    %v5443 = vadd.f32 %v3560, %v5442
    %v5444 = vpop.f32.mrf.mxu0
    %v5445 = vadd.f32 %v3564, %v5444
    %5446 = vdwg.mxu0
    %v5447 = vld [vmem:[#allocation3 + $0x60] sm:$0xff]
    %v5448 = vld [vmem:[#allocation4 + $0x18] sm:$0xff]
    %v5449 = vadd.f32 %v5447, %v5443
    %v5450 = vxor.u32 %v5449, 2147483648
    %v5451 = vmul.f32 %v5450, 1.442695
    %v5452 = vpow.pop %v5451
    %v5453 = vadd.f32 %v5452, 1.0
    %v5454 = vrcp.pop %v5453
    %v5455 = vmul.f32 1.0, %v5454
    %5457 = vrot.lane.b32.xlu0 %v5443, 64
    %v5458 = vpop.permute.xlu0 %5457
    %v5460 = vmul.f32 %v5455, %v5458
    %5462 = vrot.lane.b32.xlu0 %v5460, 64
    %v5463 = vpop.permute.xlu0 %5462
    %v5465 = vadd.f32 %v5447, %v5463
    %v5466 = vtanh.pop %v5465
    %v5467 = vsub.f32 1.0, %v5455
    %5469 = vrot.lane.b32.xlu0 %v5466, 96
    %v5470 = vpop.permute.xlu0 %5469
    %v5472 = vmul.f32 %v5467, %v5470
    %5473 = vrot.lane.b32.xlu0 %v5372, 32
    %v5474 = vpop.permute.xlu0 %5473
    %v5476 = vmul.f32 %v5455, %v5474
    %v5477 = vadd.f32 %v5472, %v5476
    %5478 = vrot.lane.b32.xlu0 %v5443, 32
    %v5479 = vpop.permute.xlu0 %5478
    %v5481 = vadd.f32 %v5448, %v5479
    %v5482 = vxor.u32 %v5481, 2147483648
    %v5483 = vmul.f32 %v5482, 1.442695
    %v5484 = vpow.pop %v5483
    %v5485 = vadd.f32 %v5484, 1.0
    %v5486 = vrcp.pop %v5485
    %v5487 = vmul.f32 1.0, %v5486
    %5489 = vrot.lane.b32.xlu0 %v5445, 32
    %v5490 = vpop.permute.xlu0 %5489
    %v5492 = vadd.f32 %v5448, %v5490
    %v5493 = vxor.u32 %v5492, 2147483648
    %v5494 = vmul.f32 %v5493, 1.442695
    %v5495 = vpow.pop %v5494
    %v5496 = vadd.f32 %v5495, 1.0
    %v5497 = vrcp.pop %v5496
    %v5498 = vmul.f32 1.0, %v5497
    %5499 = vrot.lane.b32.xlu0 %v5445, 96
    %v5500 = vpop.permute.xlu0 %5499
    %v5502 = vmul.f32 %v5487, %v5500
    %5504 = vrot.lane.b32.xlu0 %v5502, 64
    %v5505 = vpop.permute.xlu0 %5504
    %v5507 = vadd.f32 %v5448, %v5505
    %v5508 = vtanh.pop %v5507
    %v5509 = vsub.f32 1.0, %v5498
    %5511 = vrot.lane.b32.xlu0 %v5508, 96
    %v5512 = vpop.permute.xlu0 %5511
    %v5514 = vmul.f32 %v5509, %v5512
    %v5515 = vmul.f32 %v5498, %v5372
    %v5516 = vadd.f32 %v5514, %v5515
    %5518 = vrot.lane.b32.xlu0 %v5477, 96
    %v5519 = vpop.permute.xlu0 %5518
    %5521 = vst.msk [vmem:[#allocation5 + $0x60] sm:$0xff] %vm134, %v5519
    %5522 = vst.msk [vmem:[#allocation5 + $0x18] sm:$0xff] %vm856, %v5516
    %v5523 = vsel %vm134, %v5519, %v5516
    %v5525 = vsel %vm709, %v5523, 0
    %5527 = vmatprep.subr.mxu0 0.0
    %5528 = vmatpush1.msra.mxu0 0.0
    %5529 = vmatprep.subr.mxu0 0.0
    %5530 = vmatpush1.msra.mxu0 0.0
    %5531 = vmatprep.subr.mxu0 0.0
    %5532 = vmatpush1.msra.mxu0 0.0
    %5533 = vmatprep.subr.mxu0 0.0
    %5534 = vmatpush1.msra.mxu0 0.0
    %5535 = vmatprep.subr.mxu0 0.0
    %5536 = vmatpush1.msra.mxu0 0.0
    %5537 = vmatprep.subr.mxu0 0.0
    %5538 = vmatpush1.msra.mxu0 0.0
    %5539 = vmatprep.subr.mxu0 0.0
    %5540 = vmatpush1.msra.mxu0 0.0
    %5541 = vmatprep.subr.mxu0 0.0
    %5542 = vmatpush1.msra.mxu0 0.0
    %5543 = vmatprep.subr.mxu0 %v3554
    %5544 = vmatpush1.msra.mxu0 %v3553
    %5545 = vmatprep.subr.mxu0 %v3552
    %5546 = vmatpush1.msra.mxu0 %v3551
    %5547 = vmatprep.subr.mxu0 %v3550
    %5548 = vmatpush1.msra.mxu0 %v3549
    %5549 = vmatprep.subr.mxu0 %v3548
    %5550 = vmatpush1.msra.mxu0 %v3547
    %5551 = vmatprep.subr.mxu0 %v3546
    %5552 = vmatpush1.msra.mxu0 %v3545
    %5553 = vmatprep.subr.mxu0 %v3544
    %5554 = vmatpush1.msra.mxu0 %v3543
    %5555 = vmatprep.subr.mxu0 %v3542
    %5556 = vmatpush1.msra.mxu0 %v3541
    %5557 = vmatprep.subr.mxu0 %v3540
    %5558 = vmatpush1.msra.mxu0 %v3539
    %5559 = vmatprep.subr.mxu0 0.0
    %5560 = vmatpush2.msra.mxu0 0.0
    %5561 = vmatprep.subr.mxu0 0.0
    %5562 = vmatpush2.msra.mxu0 0.0
    %5563 = vmatprep.subr.mxu0 0.0
    %5564 = vmatpush2.msra.mxu0 0.0
    %5565 = vmatprep.subr.mxu0 0.0
    %5566 = vmatpush2.msra.mxu0 0.0
    %5567 = vmatprep.subr.mxu0 0.0
    %5568 = vmatpush2.msra.mxu0 0.0
    %5569 = vmatprep.subr.mxu0 0.0
    %5570 = vmatpush2.msra.mxu0 0.0
    %5571 = vmatprep.subr.mxu0 0.0
    %5572 = vmatpush2.msra.mxu0 0.0
    %5573 = vmatprep.subr.mxu0 0.0
    %5574 = vmatpush2.msra.mxu0 0.0
    %5575 = vmatprep.subr.mxu0 0.0
    %5576 = vmatpush2.msra.mxu0 0.0
    %5577 = vmatprep.subr.mxu0 0.0
    %5578 = vmatpush2.msra.mxu0 0.0
    %5579 = vmatprep.subr.mxu0 0.0
    %5580 = vmatpush2.msra.mxu0 0.0
    %5581 = vmatprep.subr.mxu0 0.0
    %5582 = vmatpush2.msra.mxu0 0.0
    %5583 = vmatprep.subr.mxu0 0.0
    %5584 = vmatpush2.msra.mxu0 0.0
    %5585 = vmatprep.subr.mxu0 0.0
    %5586 = vmatpush2.msra.mxu0 0.0
    %5587 = vmatprep.subr.mxu0 0.0
    %5588 = vmatpush2.msra.mxu0 0.0
    %5589 = vmatprep.subr.mxu0 0.0
    %5590 = vmatpush2.msra.mxu0 0.0
    %5591 = vmatprep.mubr.f32.mxu0 0.0
    %5592 = vmatmul.mubr.f32.gmra.mxu0 %v5525
    %v5593 = vpop.f32.mrf.mxu0
    %v5594 = vadd.f32 %v3560, %v5593
    %v5595 = vpop.f32.mrf.mxu0
    %v5596 = vadd.f32 %v3564, %v5595
    %5597 = vdwg.mxu0
    %v5598 = vld [vmem:[#allocation3 + $0x68] sm:$0xff]
    %v5599 = vld [vmem:[#allocation4 + $0x10] sm:$0xff]
    %v5600 = vadd.f32 %v5598, %v5594
    %v5601 = vxor.u32 %v5600, 2147483648
    %v5602 = vmul.f32 %v5601, 1.442695
    %v5603 = vpow.pop %v5602
    %v5604 = vadd.f32 %v5603, 1.0
    %v5605 = vrcp.pop %v5604
    %v5606 = vmul.f32 1.0, %v5605
    %5608 = vrot.lane.b32.xlu0 %v5594, 64
    %v5609 = vpop.permute.xlu0 %5608
    %v5611 = vmul.f32 %v5606, %v5609
    %5613 = vrot.lane.b32.xlu0 %v5611, 64
    %v5614 = vpop.permute.xlu0 %5613
    %v5616 = vadd.f32 %v5598, %v5614
    %v5617 = vtanh.pop %v5616
    %v5618 = vsub.f32 1.0, %v5606
    %5620 = vrot.lane.b32.xlu0 %v5617, 96
    %v5621 = vpop.permute.xlu0 %5620
    %v5623 = vmul.f32 %v5618, %v5621
    %5624 = vrot.lane.b32.xlu0 %v5523, 32
    %v5625 = vpop.permute.xlu0 %5624
    %v5627 = vmul.f32 %v5606, %v5625
    %v5628 = vadd.f32 %v5623, %v5627
    %5629 = vrot.lane.b32.xlu0 %v5594, 32
    %v5630 = vpop.permute.xlu0 %5629
    %v5632 = vadd.f32 %v5599, %v5630
    %v5633 = vxor.u32 %v5632, 2147483648
    %v5634 = vmul.f32 %v5633, 1.442695
    %v5635 = vpow.pop %v5634
    %v5636 = vadd.f32 %v5635, 1.0
    %v5637 = vrcp.pop %v5636
    %v5638 = vmul.f32 1.0, %v5637
    %5640 = vrot.lane.b32.xlu0 %v5596, 32
    %v5641 = vpop.permute.xlu0 %5640
    %v5643 = vadd.f32 %v5599, %v5641
    %v5644 = vxor.u32 %v5643, 2147483648
    %v5645 = vmul.f32 %v5644, 1.442695
    %v5646 = vpow.pop %v5645
    %v5647 = vadd.f32 %v5646, 1.0
    %v5648 = vrcp.pop %v5647
    %v5649 = vmul.f32 1.0, %v5648
    %5650 = vrot.lane.b32.xlu0 %v5596, 96
    %v5651 = vpop.permute.xlu0 %5650
    %v5653 = vmul.f32 %v5638, %v5651
    %5655 = vrot.lane.b32.xlu0 %v5653, 64
    %v5656 = vpop.permute.xlu0 %5655
    %v5658 = vadd.f32 %v5599, %v5656
    %v5659 = vtanh.pop %v5658
    %v5660 = vsub.f32 1.0, %v5649
    %5662 = vrot.lane.b32.xlu0 %v5659, 96
    %v5663 = vpop.permute.xlu0 %5662
    %v5665 = vmul.f32 %v5660, %v5663
    %v5666 = vmul.f32 %v5649, %v5523
    %v5667 = vadd.f32 %v5665, %v5666
    %5669 = vrot.lane.b32.xlu0 %v5628, 96
    %v5670 = vpop.permute.xlu0 %5669
    %5672 = vst.msk [vmem:[#allocation5 + $0x68] sm:$0xff] %vm134, %v5670
    %5673 = vst.msk [vmem:[#allocation5 + $0x10] sm:$0xff] %vm856, %v5667
    %v5674 = vsel %vm134, %v5670, %v5667
    %v5676 = vsel %vm709, %v5674, 0
    %5678 = vmatprep.subr.mxu0 0.0
    %5679 = vmatpush1.msra.mxu0 0.0
    %5680 = vmatprep.subr.mxu0 0.0
    %5681 = vmatpush1.msra.mxu0 0.0
    %5682 = vmatprep.subr.mxu0 0.0
    %5683 = vmatpush1.msra.mxu0 0.0
    %5684 = vmatprep.subr.mxu0 0.0
    %5685 = vmatpush1.msra.mxu0 0.0
    %5686 = vmatprep.subr.mxu0 0.0
    %5687 = vmatpush1.msra.mxu0 0.0
    %5688 = vmatprep.subr.mxu0 0.0
    %5689 = vmatpush1.msra.mxu0 0.0
    %5690 = vmatprep.subr.mxu0 0.0
    %5691 = vmatpush1.msra.mxu0 0.0
    %5692 = vmatprep.subr.mxu0 0.0
    %5693 = vmatpush1.msra.mxu0 0.0
    %5694 = vmatprep.subr.mxu0 %v3554
    %5695 = vmatpush1.msra.mxu0 %v3553
    %5696 = vmatprep.subr.mxu0 %v3552
    %5697 = vmatpush1.msra.mxu0 %v3551
    %5698 = vmatprep.subr.mxu0 %v3550
    %5699 = vmatpush1.msra.mxu0 %v3549
    %5700 = vmatprep.subr.mxu0 %v3548
    %5701 = vmatpush1.msra.mxu0 %v3547
    %5702 = vmatprep.subr.mxu0 %v3546
    %5703 = vmatpush1.msra.mxu0 %v3545
    %5704 = vmatprep.subr.mxu0 %v3544
    %5705 = vmatpush1.msra.mxu0 %v3543
    %5706 = vmatprep.subr.mxu0 %v3542
    %5707 = vmatpush1.msra.mxu0 %v3541
    %5708 = vmatprep.subr.mxu0 %v3540
    %5709 = vmatpush1.msra.mxu0 %v3539
    %5710 = vmatprep.subr.mxu0 0.0
    %5711 = vmatpush2.msra.mxu0 0.0
    %5712 = vmatprep.subr.mxu0 0.0
    %5713 = vmatpush2.msra.mxu0 0.0
    %5714 = vmatprep.subr.mxu0 0.0
    %5715 = vmatpush2.msra.mxu0 0.0
    %5716 = vmatprep.subr.mxu0 0.0
    %5717 = vmatpush2.msra.mxu0 0.0
    %5718 = vmatprep.subr.mxu0 0.0
    %5719 = vmatpush2.msra.mxu0 0.0
    %5720 = vmatprep.subr.mxu0 0.0
    %5721 = vmatpush2.msra.mxu0 0.0
    %5722 = vmatprep.subr.mxu0 0.0
    %5723 = vmatpush2.msra.mxu0 0.0
    %5724 = vmatprep.subr.mxu0 0.0
    %5725 = vmatpush2.msra.mxu0 0.0
    %5726 = vmatprep.subr.mxu0 0.0
    %5727 = vmatpush2.msra.mxu0 0.0
    %5728 = vmatprep.subr.mxu0 0.0
    %5729 = vmatpush2.msra.mxu0 0.0
    %5730 = vmatprep.subr.mxu0 0.0
    %5731 = vmatpush2.msra.mxu0 0.0
    %5732 = vmatprep.subr.mxu0 0.0
    %5733 = vmatpush2.msra.mxu0 0.0
    %5734 = vmatprep.subr.mxu0 0.0
    %5735 = vmatpush2.msra.mxu0 0.0
    %5736 = vmatprep.subr.mxu0 0.0
    %5737 = vmatpush2.msra.mxu0 0.0
    %5738 = vmatprep.subr.mxu0 0.0
    %5739 = vmatpush2.msra.mxu0 0.0
    %5740 = vmatprep.subr.mxu0 0.0
    %5741 = vmatpush2.msra.mxu0 0.0
    %5742 = vmatprep.mubr.f32.mxu0 0.0
    %5743 = vmatmul.mubr.f32.gmra.mxu0 %v5676
    %v5744 = vpop.f32.mrf.mxu0
    %v5745 = vadd.f32 %v3560, %v5744
    %v5746 = vpop.f32.mrf.mxu0
    %v5747 = vadd.f32 %v3564, %v5746
    %5748 = vdwg.mxu0
    %v5749 = vld [vmem:[#allocation3 + $0x70] sm:$0xff]
    %v5750 = vld [vmem:[#allocation4 + $0x8] sm:$0xff]
    %v5751 = vadd.f32 %v5749, %v5745
    %v5752 = vxor.u32 %v5751, 2147483648
    %v5753 = vmul.f32 %v5752, 1.442695
    %v5754 = vpow.pop %v5753
    %v5755 = vadd.f32 %v5754, 1.0
    %v5756 = vrcp.pop %v5755
    %v5757 = vmul.f32 1.0, %v5756
    %5759 = vrot.lane.b32.xlu0 %v5745, 64
    %v5760 = vpop.permute.xlu0 %5759
    %v5762 = vmul.f32 %v5757, %v5760
    %5764 = vrot.lane.b32.xlu0 %v5762, 64
    %v5765 = vpop.permute.xlu0 %5764
    %v5767 = vadd.f32 %v5749, %v5765
    %v5768 = vtanh.pop %v5767
    %v5769 = vsub.f32 1.0, %v5757
    %5771 = vrot.lane.b32.xlu0 %v5768, 96
    %v5772 = vpop.permute.xlu0 %5771
    %v5774 = vmul.f32 %v5769, %v5772
    %5775 = vrot.lane.b32.xlu0 %v5674, 32
    %v5776 = vpop.permute.xlu0 %5775
    %v5778 = vmul.f32 %v5757, %v5776
    %v5779 = vadd.f32 %v5774, %v5778
    %5780 = vrot.lane.b32.xlu0 %v5745, 32
    %v5781 = vpop.permute.xlu0 %5780
    %v5783 = vadd.f32 %v5750, %v5781
    %v5784 = vxor.u32 %v5783, 2147483648
    %v5785 = vmul.f32 %v5784, 1.442695
    %v5786 = vpow.pop %v5785
    %v5787 = vadd.f32 %v5786, 1.0
    %v5788 = vrcp.pop %v5787
    %v5789 = vmul.f32 1.0, %v5788
    %5791 = vrot.lane.b32.xlu0 %v5747, 32
    %v5792 = vpop.permute.xlu0 %5791
    %v5794 = vadd.f32 %v5750, %v5792
    %v5795 = vxor.u32 %v5794, 2147483648
    %v5796 = vmul.f32 %v5795, 1.442695
    %v5797 = vpow.pop %v5796
    %v5798 = vadd.f32 %v5797, 1.0
    %v5799 = vrcp.pop %v5798
    %v5800 = vmul.f32 1.0, %v5799
    %5801 = vrot.lane.b32.xlu0 %v5747, 96
    %v5802 = vpop.permute.xlu0 %5801
    %v5804 = vmul.f32 %v5789, %v5802
    %5806 = vrot.lane.b32.xlu0 %v5804, 64
    %v5807 = vpop.permute.xlu0 %5806
    %v5809 = vadd.f32 %v5750, %v5807
    %v5810 = vtanh.pop %v5809
    %v5811 = vsub.f32 1.0, %v5800
    %5813 = vrot.lane.b32.xlu0 %v5810, 96
    %v5814 = vpop.permute.xlu0 %5813
    %v5816 = vmul.f32 %v5811, %v5814
    %v5817 = vmul.f32 %v5800, %v5674
    %v5818 = vadd.f32 %v5816, %v5817
    %5820 = vrot.lane.b32.xlu0 %v5779, 96
    %v5821 = vpop.permute.xlu0 %5820
    %5823 = vst.msk [vmem:[#allocation5 + $0x70] sm:$0xff] %vm134, %v5821
    %5824 = vst.msk [vmem:[#allocation5 + $0x8] sm:$0xff] %vm856, %v5818
    %v5825 = vsel %vm134, %v5821, %v5818
    %v5827 = vsel %vm709, %v5825, 0
    %5829 = vmatprep.subr.mxu0 0.0
    %5830 = vmatpush1.msra.mxu0 0.0
    %5831 = vmatprep.subr.mxu0 0.0
    %5832 = vmatpush1.msra.mxu0 0.0
    %5833 = vmatprep.subr.mxu0 0.0
    %5834 = vmatpush1.msra.mxu0 0.0
    %5835 = vmatprep.subr.mxu0 0.0
    %5836 = vmatpush1.msra.mxu0 0.0
    %5837 = vmatprep.subr.mxu0 0.0
    %5838 = vmatpush1.msra.mxu0 0.0
    %5839 = vmatprep.subr.mxu0 0.0
    %5840 = vmatpush1.msra.mxu0 0.0
    %5841 = vmatprep.subr.mxu0 0.0
    %5842 = vmatpush1.msra.mxu0 0.0
    %5843 = vmatprep.subr.mxu0 0.0
    %5844 = vmatpush1.msra.mxu0 0.0
    %5845 = vmatprep.subr.mxu0 %v3554
    %5846 = vmatpush1.msra.mxu0 %v3553
    %5847 = vmatprep.subr.mxu0 %v3552
    %5848 = vmatpush1.msra.mxu0 %v3551
    %5849 = vmatprep.subr.mxu0 %v3550
    %5850 = vmatpush1.msra.mxu0 %v3549
    %5851 = vmatprep.subr.mxu0 %v3548
    %5852 = vmatpush1.msra.mxu0 %v3547
    %5853 = vmatprep.subr.mxu0 %v3546
    %5854 = vmatpush1.msra.mxu0 %v3545
    %5855 = vmatprep.subr.mxu0 %v3544
    %5856 = vmatpush1.msra.mxu0 %v3543
    %5857 = vmatprep.subr.mxu0 %v3542
    %5858 = vmatpush1.msra.mxu0 %v3541
    %5859 = vmatprep.subr.mxu0 %v3540
    %5860 = vmatpush1.msra.mxu0 %v3539
    %5861 = vmatprep.subr.mxu0 0.0
    %5862 = vmatpush2.msra.mxu0 0.0
    %5863 = vmatprep.subr.mxu0 0.0
    %5864 = vmatpush2.msra.mxu0 0.0
    %5865 = vmatprep.subr.mxu0 0.0
    %5866 = vmatpush2.msra.mxu0 0.0
    %5867 = vmatprep.subr.mxu0 0.0
    %5868 = vmatpush2.msra.mxu0 0.0
    %5869 = vmatprep.subr.mxu0 0.0
    %5870 = vmatpush2.msra.mxu0 0.0
    %5871 = vmatprep.subr.mxu0 0.0
    %5872 = vmatpush2.msra.mxu0 0.0
    %5873 = vmatprep.subr.mxu0 0.0
    %5874 = vmatpush2.msra.mxu0 0.0
    %5875 = vmatprep.subr.mxu0 0.0
    %5876 = vmatpush2.msra.mxu0 0.0
    %5877 = vmatprep.subr.mxu0 0.0
    %5878 = vmatpush2.msra.mxu0 0.0
    %5879 = vmatprep.subr.mxu0 0.0
    %5880 = vmatpush2.msra.mxu0 0.0
    %5881 = vmatprep.subr.mxu0 0.0
    %5882 = vmatpush2.msra.mxu0 0.0
    %5883 = vmatprep.subr.mxu0 0.0
    %5884 = vmatpush2.msra.mxu0 0.0
    %5885 = vmatprep.subr.mxu0 0.0
    %5886 = vmatpush2.msra.mxu0 0.0
    %5887 = vmatprep.subr.mxu0 0.0
    %5888 = vmatpush2.msra.mxu0 0.0
    %5889 = vmatprep.subr.mxu0 0.0
    %5890 = vmatpush2.msra.mxu0 0.0
    %5891 = vmatprep.subr.mxu0 0.0
    %5892 = vmatpush2.msra.mxu0 0.0
    %5893 = vmatprep.mubr.f32.mxu0 0.0
    %5894 = vmatmul.mubr.f32.gmra.mxu0 %v5827
    %v5895 = vpop.f32.mrf.mxu0
    %v5896 = vadd.f32 %v3560, %v5895
    %v5897 = vpop.f32.mrf.mxu0
    %v5898 = vadd.f32 %v3564, %v5897
    %5899 = vdwg.mxu0
    %v5900 = vld [vmem:[#allocation3 + $0x78] sm:$0xff]
    %v5901 = vld [vmem:[#allocation4] sm:$0xff]
    %v5902 = vadd.f32 %v5900, %v5896
    %v5903 = vxor.u32 %v5902, 2147483648
    %v5904 = vmul.f32 %v5903, 1.442695
    %v5905 = vpow.pop %v5904
    %v5906 = vadd.f32 %v5905, 1.0
    %v5907 = vrcp.pop %v5906
    %v5908 = vmul.f32 1.0, %v5907
    %5910 = vrot.lane.b32.xlu0 %v5896, 64
    %v5911 = vpop.permute.xlu0 %5910
    %v5913 = vmul.f32 %v5908, %v5911
    %5915 = vrot.lane.b32.xlu0 %v5913, 64
    %v5916 = vpop.permute.xlu0 %5915
    %v5918 = vadd.f32 %v5900, %v5916
    %v5919 = vtanh.pop %v5918
    %v5920 = vsub.f32 1.0, %v5908
    %5922 = vrot.lane.b32.xlu0 %v5919, 96
    %v5923 = vpop.permute.xlu0 %5922
    %v5925 = vmul.f32 %v5920, %v5923
    %5926 = vrot.lane.b32.xlu0 %v5825, 32
    %v5927 = vpop.permute.xlu0 %5926
    %v5929 = vmul.f32 %v5908, %v5927
    %v5930 = vadd.f32 %v5925, %v5929
    %5931 = vrot.lane.b32.xlu0 %v5896, 32
    %v5932 = vpop.permute.xlu0 %5931
    %v5934 = vadd.f32 %v5901, %v5932
    %v5935 = vxor.u32 %v5934, 2147483648
    %v5936 = vmul.f32 %v5935, 1.442695
    %v5937 = vpow.pop %v5936
    %v5938 = vadd.f32 %v5937, 1.0
    %v5939 = vrcp.pop %v5938
    %v5940 = vmul.f32 1.0, %v5939
    %5942 = vrot.lane.b32.xlu0 %v5898, 32
    %v5943 = vpop.permute.xlu0 %5942
    %v5945 = vadd.f32 %v5901, %v5943
    %v5946 = vxor.u32 %v5945, 2147483648
    %v5947 = vmul.f32 %v5946, 1.442695
    %v5948 = vpow.pop %v5947
    %v5949 = vadd.f32 %v5948, 1.0
    %v5950 = vrcp.pop %v5949
    %v5951 = vmul.f32 1.0, %v5950
    %5952 = vrot.lane.b32.xlu0 %v5898, 96
    %v5953 = vpop.permute.xlu0 %5952
    %v5955 = vmul.f32 %v5940, %v5953
    %5957 = vrot.lane.b32.xlu0 %v5955, 64
    %v5958 = vpop.permute.xlu0 %5957
    %v5960 = vadd.f32 %v5901, %v5958
    %v5961 = vtanh.pop %v5960
    %v5962 = vsub.f32 1.0, %v5951
    %5964 = vrot.lane.b32.xlu0 %v5961, 96
    %v5965 = vpop.permute.xlu0 %5964
    %v5967 = vmul.f32 %v5962, %v5965
    %v5968 = vmul.f32 %v5951, %v5825
    %v5969 = vadd.f32 %v5967, %v5968
    %5971 = vrot.lane.b32.xlu0 %v5930, 96
    %v5972 = vpop.permute.xlu0 %5971
    %5974 = vst.msk [vmem:[#allocation5 + $0x78] sm:$0xff] %vm134, %v5972
    %5975 = vst.msk [vmem:[#allocation5] sm:$0xff] %vm856, %v5969
    %v5976 = vld [vmem:[#allocation5] sm:$0xff]
    %v5977 = vld [vmem:[#allocation5 + $0x8] sm:$0xff]
    %v5978 = vld [vmem:[#allocation5 + $0x10] sm:$0xff]
    %v5979 = vld [vmem:[#allocation5 + $0x18] sm:$0xff]
    %v5980 = vld [vmem:[#allocation5 + $0x20] sm:$0xff]
    %v5981 = vld [vmem:[#allocation5 + $0x28] sm:$0xff]
    %v5982 = vld [vmem:[#allocation5 + $0x30] sm:$0xff]
    %v5983 = vld [vmem:[#allocation5 + $0x38] sm:$0xff]
    %v5984 = vld [vmem:[#allocation5 + $0x40] sm:$0xff]
    %v5985 = vld [vmem:[#allocation5 + $0x48] sm:$0xff]
    %v5986 = vld [vmem:[#allocation5 + $0x50] sm:$0xff]
    %v5987 = vld [vmem:[#allocation5 + $0x58] sm:$0xff]
    %v5988 = vld [vmem:[#allocation5 + $0x60] sm:$0xff]
    %v5989 = vld [vmem:[#allocation5 + $0x68] sm:$0xff]
    %v5990 = vld [vmem:[#allocation5 + $0x70] sm:$0xff]
    %v5991 = vld [vmem:[#allocation5 + $0x78] sm:$0xff]
    %v5992 = vld [vmem:[%s15] sm:$0xff]
    %v5993 = vld [vmem:[%s15 + $0x8] sm:$0xff]
    %v5994 = vld [vmem:[%s15 + $0x10] sm:$0xff]
    %v5995 = vld [vmem:[%s15 + $0x18] sm:$0xff]
    %v5996 = vld [vmem:[%s15 + $0x20] sm:$0xff]
    %v5997 = vld [vmem:[%s15 + $0x28] sm:$0xff]
    %v5998 = vld [vmem:[%s15 + $0x30] sm:$0xff]
    %v5999 = vld [vmem:[%s15 + $0x38] sm:$0xff]
    %v6000 = vld [vmem:[#allocation6] sm:$0x1]
    %v6002 = vlaneseq
    %v6003 = vshrl.u32 %v6002, 7
    %v6004 = vsub.s32 0, %v6003
    %v6005 = vrot.slane %v6000, %v6004
    %v6008 = vsel %vm709, %v5976, 0
    %v6011 = vsel %vm709, %v5977, 0
    %v6014 = vsel %vm709, %v5978, 0
    %v6017 = vsel %vm709, %v5979, 0
    %v6020 = vsel %vm709, %v5980, 0
    %v6023 = vsel %vm709, %v5981, 0
    %v6026 = vsel %vm709, %v5982, 0
    %v6029 = vsel %vm709, %v5983, 0
    %v6032 = vsel %vm709, %v5984, 0
    %v6035 = vsel %vm709, %v5985, 0
    %v6038 = vsel %vm709, %v5986, 0
    %v6041 = vsel %vm709, %v5987, 0
    %v6044 = vsel %vm709, %v5988, 0
    %v6047 = vsel %vm709, %v5989, 0
    %v6050 = vsel %vm709, %v5990, 0
    %v6053 = vsel %vm709, %v5991, 0
    %6055 = vmatprep.subr.mxu0 0.0
    %6056 = vmatpush1.msra.mxu0 0.0
    %6057 = vmatprep.subr.mxu0 0.0
    %6058 = vmatpush1.msra.mxu0 0.0
    %6059 = vmatprep.subr.mxu0 0.0
    %6060 = vmatpush1.msra.mxu0 0.0
    %6061 = vmatprep.subr.mxu0 0.0
    %6062 = vmatpush1.msra.mxu0 0.0
    %6063 = vmatprep.subr.mxu0 0.0
    %6064 = vmatpush1.msra.mxu0 0.0
    %6065 = vmatprep.subr.mxu0 0.0
    %6066 = vmatpush1.msra.mxu0 0.0
    %6067 = vmatprep.subr.mxu0 0.0
    %6068 = vmatpush1.msra.mxu0 0.0
    %6069 = vmatprep.subr.mxu0 0.0
    %6070 = vmatpush1.msra.mxu0 0.0
    %6071 = vmatprep.subr.mxu0 0.0
    %6072 = vmatpush1.msra.mxu0 %v5999
    %6073 = vmatprep.subr.mxu0 0.0
    %6074 = vmatpush1.msra.mxu0 %v5998
    %6075 = vmatprep.subr.mxu0 0.0
    %6076 = vmatpush1.msra.mxu0 %v5997
    %6077 = vmatprep.subr.mxu0 0.0
    %6078 = vmatpush1.msra.mxu0 %v5996
    %6079 = vmatprep.subr.mxu0 0.0
    %6080 = vmatpush1.msra.mxu0 %v5995
    %6081 = vmatprep.subr.mxu0 0.0
    %6082 = vmatpush1.msra.mxu0 %v5994
    %6083 = vmatprep.subr.mxu0 0.0
    %6084 = vmatpush1.msra.mxu0 %v5993
    %6085 = vmatprep.subr.mxu0 0.0
    %6086 = vmatpush1.msra.mxu0 %v5992
    %6087 = vmatprep.subr.mxu0 0.0
    %6088 = vmatpush2.msra.mxu0 0.0
    %6089 = vmatprep.subr.mxu0 0.0
    %6090 = vmatpush2.msra.mxu0 0.0
    %6091 = vmatprep.subr.mxu0 0.0
    %6092 = vmatpush2.msra.mxu0 0.0
    %6093 = vmatprep.subr.mxu0 0.0
    %6094 = vmatpush2.msra.mxu0 0.0
    %6095 = vmatprep.subr.mxu0 0.0
    %6096 = vmatpush2.msra.mxu0 0.0
    %6097 = vmatprep.subr.mxu0 0.0
    %6098 = vmatpush2.msra.mxu0 0.0
    %6099 = vmatprep.subr.mxu0 0.0
    %6100 = vmatpush2.msra.mxu0 0.0
    %6101 = vmatprep.subr.mxu0 0.0
    %6102 = vmatpush2.msra.mxu0 0.0
    %6103 = vmatprep.subr.mxu0 0.0
    %6104 = vmatpush2.msra.mxu0 0.0
    %6105 = vmatprep.subr.mxu0 0.0
    %6106 = vmatpush2.msra.mxu0 0.0
    %6107 = vmatprep.subr.mxu0 0.0
    %6108 = vmatpush2.msra.mxu0 0.0
    %6109 = vmatprep.subr.mxu0 0.0
    %6110 = vmatpush2.msra.mxu0 0.0
    %6111 = vmatprep.subr.mxu0 0.0
    %6112 = vmatpush2.msra.mxu0 0.0
    %6113 = vmatprep.subr.mxu0 0.0
    %6114 = vmatpush2.msra.mxu0 0.0
    %6115 = vmatprep.subr.mxu0 0.0
    %6116 = vmatpush2.msra.mxu0 0.0
    %6117 = vmatprep.subr.mxu0 0.0
    %6118 = vmatpush2.msra.mxu0 0.0
    %6119 = vmatprep.mubr.f32.mxu0 0.0
    %6120 = vmatmul.mubr.f32.gmra.mxu0 %v6008
    %v6121 = vpop.f32.mrf.mxu0
    %v6122 = vadd.f32 %v6005, %v6121
    %v6123 = vpop.f32.mrf.mxu0
    %6124 = vmatprep.mubr.f32.mxu0 0.0
    %6125 = vmatmul.mubr.f32.gmra.mxu0 %v6011
    %v6126 = vpop.f32.mrf.mxu0
    %v6127 = vadd.f32 %v6005, %v6126
    %v6128 = vpop.f32.mrf.mxu0
    %6129 = vmatprep.mubr.f32.mxu0 0.0
    %6130 = vmatmul.mubr.f32.gmra.mxu0 %v6014
    %v6131 = vpop.f32.mrf.mxu0
    %v6132 = vadd.f32 %v6005, %v6131
    %v6133 = vpop.f32.mrf.mxu0
    %6134 = vmatprep.mubr.f32.mxu0 0.0
    %6135 = vmatmul.mubr.f32.gmra.mxu0 %v6017
    %v6136 = vpop.f32.mrf.mxu0
    %v6137 = vadd.f32 %v6005, %v6136
    %v6138 = vpop.f32.mrf.mxu0
    %6139 = vmatprep.mubr.f32.mxu0 0.0
    %6140 = vmatmul.mubr.f32.gmra.mxu0 %v6020
    %v6141 = vpop.f32.mrf.mxu0
    %v6142 = vadd.f32 %v6005, %v6141
    %v6143 = vpop.f32.mrf.mxu0
    %6144 = vmatprep.mubr.f32.mxu0 0.0
    %6145 = vmatmul.mubr.f32.gmra.mxu0 %v6023
    %v6146 = vpop.f32.mrf.mxu0
    %v6147 = vadd.f32 %v6005, %v6146
    %v6148 = vpop.f32.mrf.mxu0
    %6149 = vmatprep.mubr.f32.mxu0 0.0
    %6150 = vmatmul.mubr.f32.gmra.mxu0 %v6026
    %v6151 = vpop.f32.mrf.mxu0
    %v6152 = vadd.f32 %v6005, %v6151
    %v6153 = vpop.f32.mrf.mxu0
    %6154 = vmatprep.mubr.f32.mxu0 0.0
    %6155 = vmatmul.mubr.f32.gmra.mxu0 %v6029
    %v6156 = vpop.f32.mrf.mxu0
    %v6157 = vadd.f32 %v6005, %v6156
    %v6158 = vpop.f32.mrf.mxu0
    %6159 = vmatprep.mubr.f32.mxu0 0.0
    %6160 = vmatmul.mubr.f32.gmra.mxu0 %v6032
    %v6161 = vpop.f32.mrf.mxu0
    %v6162 = vadd.f32 %v6005, %v6161
    %v6163 = vpop.f32.mrf.mxu0
    %6164 = vmatprep.mubr.f32.mxu0 0.0
    %6165 = vmatmul.mubr.f32.gmra.mxu0 %v6035
    %v6166 = vpop.f32.mrf.mxu0
    %v6167 = vadd.f32 %v6005, %v6166
    %v6168 = vpop.f32.mrf.mxu0
    %6169 = vmatprep.mubr.f32.mxu0 0.0
    %6170 = vmatmul.mubr.f32.gmra.mxu0 %v6038
    %v6171 = vpop.f32.mrf.mxu0
    %v6172 = vadd.f32 %v6005, %v6171
    %v6173 = vpop.f32.mrf.mxu0
    %6174 = vmatprep.mubr.f32.mxu0 0.0
    %6175 = vmatmul.mubr.f32.gmra.mxu0 %v6041
    %v6176 = vpop.f32.mrf.mxu0
    %v6177 = vadd.f32 %v6005, %v6176
    %v6178 = vpop.f32.mrf.mxu0
    %6179 = vmatprep.mubr.f32.mxu0 0.0
    %6180 = vmatmul.mubr.f32.gmra.mxu0 %v6044
    %v6181 = vpop.f32.mrf.mxu0
    %v6182 = vadd.f32 %v6005, %v6181
    %v6183 = vpop.f32.mrf.mxu0
    %6184 = vmatprep.mubr.f32.mxu0 0.0
    %6185 = vmatmul.mubr.f32.gmra.mxu0 %v6047
    %v6186 = vpop.f32.mrf.mxu0
    %v6187 = vadd.f32 %v6005, %v6186
    %v6188 = vpop.f32.mrf.mxu0
    %6189 = vmatprep.mubr.f32.mxu0 0.0
    %6190 = vmatmul.mubr.f32.gmra.mxu0 %v6050
    %v6191 = vpop.f32.mrf.mxu0
    %v6192 = vadd.f32 %v6005, %v6191
    %v6193 = vpop.f32.mrf.mxu0
    %6194 = vmatprep.mubr.f32.mxu0 0.0
    %6195 = vmatmul.mubr.f32.gmra.mxu0 %v6053
    %v6196 = vpop.f32.mrf.mxu0
    %v6197 = vadd.f32 %v6005, %v6196
    %v6198 = vpop.f32.mrf.mxu0
    %6199 = vdwg.mxu0
    %v6200 = vxor.u32 %v6122, 2147483648
    %v6201 = vxor.u32 %v6127, 2147483648
    %v6202 = vxor.u32 %v6132, 2147483648
    %v6203 = vxor.u32 %v6137, 2147483648
    %v6204 = vxor.u32 %v6142, 2147483648
    %v6205 = vxor.u32 %v6147, 2147483648
    %v6206 = vxor.u32 %v6152, 2147483648
    %v6207 = vxor.u32 %v6157, 2147483648
    %v6208 = vxor.u32 %v6162, 2147483648
    %v6209 = vxor.u32 %v6167, 2147483648
    %v6210 = vxor.u32 %v6172, 2147483648
    %v6211 = vxor.u32 %v6177, 2147483648
    %v6212 = vxor.u32 %v6182, 2147483648
    %v6213 = vxor.u32 %v6187, 2147483648
    %v6214 = vxor.u32 %v6192, 2147483648
    %v6215 = vxor.u32 %v6197, 2147483648
    %v6216 = vmul.f32 %v6200, 1.442695
    %v6217 = vpow.pop %v6216
    %v6218 = vmul.f32 %v6201, 1.442695
    %v6219 = vpow.pop %v6218
    %v6220 = vmul.f32 %v6202, 1.442695
    %v6221 = vpow.pop %v6220
    %v6222 = vmul.f32 %v6203, 1.442695
    %v6223 = vpow.pop %v6222
    %v6224 = vmul.f32 %v6204, 1.442695
    %v6225 = vpow.pop %v6224
    %v6226 = vmul.f32 %v6205, 1.442695
    %v6227 = vpow.pop %v6226
    %v6228 = vmul.f32 %v6206, 1.442695
    %v6229 = vpow.pop %v6228
    %v6230 = vmul.f32 %v6207, 1.442695
    %v6231 = vpow.pop %v6230
    %v6232 = vmul.f32 %v6208, 1.442695
    %v6233 = vpow.pop %v6232
    %v6234 = vmul.f32 %v6209, 1.442695
    %v6235 = vpow.pop %v6234
    %v6236 = vmul.f32 %v6210, 1.442695
    %v6237 = vpow.pop %v6236
    %v6238 = vmul.f32 %v6211, 1.442695
    %v6239 = vpow.pop %v6238
    %v6240 = vmul.f32 %v6212, 1.442695
    %v6241 = vpow.pop %v6240
    %v6242 = vmul.f32 %v6213, 1.442695
    %v6243 = vpow.pop %v6242
    %v6244 = vmul.f32 %v6214, 1.442695
    %v6245 = vpow.pop %v6244
    %v6246 = vmul.f32 %v6215, 1.442695
    %v6247 = vpow.pop %v6246
    %v6248 = vadd.f32 %v6217, 1.0
    %v6249 = vadd.f32 %v6219, 1.0
    %v6250 = vadd.f32 %v6221, 1.0
    %v6251 = vadd.f32 %v6223, 1.0
    %v6252 = vadd.f32 %v6225, 1.0
    %v6253 = vadd.f32 %v6227, 1.0
    %v6254 = vadd.f32 %v6229, 1.0
    %v6255 = vadd.f32 %v6231, 1.0
    %v6256 = vadd.f32 %v6233, 1.0
    %v6257 = vadd.f32 %v6235, 1.0
    %v6258 = vadd.f32 %v6237, 1.0
    %v6259 = vadd.f32 %v6239, 1.0
    %v6260 = vadd.f32 %v6241, 1.0
    %v6261 = vadd.f32 %v6243, 1.0
    %v6262 = vadd.f32 %v6245, 1.0
    %v6263 = vadd.f32 %v6247, 1.0
    %v6264 = vrcp.pop %v6248
    %v6265 = vmul.f32 1.0, %v6264
    %v6266 = vrcp.pop %v6249
    %v6267 = vmul.f32 1.0, %v6266
    %v6268 = vrcp.pop %v6250
    %v6269 = vmul.f32 1.0, %v6268
    %v6270 = vrcp.pop %v6251
    %v6271 = vmul.f32 1.0, %v6270
    %v6272 = vrcp.pop %v6252
    %v6273 = vmul.f32 1.0, %v6272
    %v6274 = vrcp.pop %v6253
    %v6275 = vmul.f32 1.0, %v6274
    %v6276 = vrcp.pop %v6254
    %v6277 = vmul.f32 1.0, %v6276
    %v6278 = vrcp.pop %v6255
    %v6279 = vmul.f32 1.0, %v6278
    %v6280 = vrcp.pop %v6256
    %v6281 = vmul.f32 1.0, %v6280
    %v6282 = vrcp.pop %v6257
    %v6283 = vmul.f32 1.0, %v6282
    %v6284 = vrcp.pop %v6258
    %v6285 = vmul.f32 1.0, %v6284
    %v6286 = vrcp.pop %v6259
    %v6287 = vmul.f32 1.0, %v6286
    %v6288 = vrcp.pop %v6260
    %v6289 = vmul.f32 1.0, %v6288
    %v6290 = vrcp.pop %v6261
    %v6291 = vmul.f32 1.0, %v6290
    %v6292 = vrcp.pop %v6262
    %v6293 = vmul.f32 1.0, %v6292
    %v6294 = vrcp.pop %v6263
    %v6295 = vmul.f32 1.0, %v6294
    %vm6296 = vcmask 7168
    %6297 = vst.msk [vmem:[%s17] sm:$0xff] %vm6296, %v6265
    %6298 = vst.msk [vmem:[%s17 + $0x8] sm:$0xff] %vm6296, %v6267
    %6299 = vst.msk [vmem:[%s17 + $0x10] sm:$0xff] %vm6296, %v6269
    %6300 = vst.msk [vmem:[%s17 + $0x18] sm:$0xff] %vm6296, %v6271
    %6301 = vst.msk [vmem:[%s17 + $0x20] sm:$0xff] %vm6296, %v6273
    %6302 = vst.msk [vmem:[%s17 + $0x28] sm:$0xff] %vm6296, %v6275
    %6303 = vst.msk [vmem:[%s17 + $0x30] sm:$0xff] %vm6296, %v6277
    %6304 = vst.msk [vmem:[%s17 + $0x38] sm:$0xff] %vm6296, %v6279
    %6305 = vst.msk [vmem:[%s17 + $0x40] sm:$0xff] %vm6296, %v6281
    %6306 = vst.msk [vmem:[%s17 + $0x48] sm:$0xff] %vm6296, %v6283
    %6307 = vst.msk [vmem:[%s17 + $0x50] sm:$0xff] %vm6296, %v6285
    %6308 = vst.msk [vmem:[%s17 + $0x58] sm:$0xff] %vm6296, %v6287
    %6309 = vst.msk [vmem:[%s17 + $0x60] sm:$0xff] %vm6296, %v6289
    %6310 = vst.msk [vmem:[%s17 + $0x68] sm:$0xff] %vm6296, %v6291
    %6311 = vst.msk [vmem:[%s17 + $0x70] sm:$0xff] %vm6296, %v6293
    %6312 = vst.msk [vmem:[%s17 + $0x78] sm:$0xff] %vm6296, %v6295
    // Predicated region
    $region90: #{_lambda_.1} parent=1 // pred_check
      _
    $region91: #{_lambda_.1} parent=1 // pred_check_branch
      %6314 = sbr.rel (0) target = $region93
    $region92: #{_lambda_.1} parent=1 // pred_region
      _
    $region93: #{_lambda_.1} parent=1 // pred_fallthru
      _
    // Predicated region
    $region94: #{_lambda_.1} parent=1 // pred_check
      _
    $region95: #{_lambda_.1} parent=1 // pred_check_branch
      %6316 = sbr.rel (0) target = $region97
    $region96: #{_lambda_.1} parent=1 // pred_region
      _
    $region97: #{_lambda_.1} parent=1 // pred_fallthru
      _
    %6317 = vsyncpa [#allocation8], 1
    %6318 = vsyncpa [#allocation10], 1
    %6319 = vsyncpa [#allocation13], 1

</llo_original>
